<compile_context>
chip_gen: v7x
topology: tpu7x:2x2x1
jax: 0.10.0
libtpu: 0.0.40
codegen_flags: <defaults>
</compile_context>

<pallas_src>
import functools
import math

import jax
import jax.numpy as jnp
from jax.experimental import pallas as pl
from jax.experimental.pallas import tpu as pltpu

LN_EPS = 1e-5

# Flat parameter order: MUST match the kernel signature below.
PARAM_ORDER = (
    # encoder layer
    "e_sa_wqkv", "e_sa_bqkv", "e_sa_wo", "e_sa_bo",
    "e_n1_g", "e_n1_b",
    "e_w1", "e_b1", "e_w2", "e_b2",
    "e_n2_g", "e_n2_b",
    "e_nf_g", "e_nf_b",
    # decoder layer
    "d_sa_wqkv", "d_sa_bqkv", "d_sa_wo", "d_sa_bo",
    "d_n1_g", "d_n1_b",
    "d_ca_wq", "d_ca_bq", "d_ca_wkv", "d_ca_bkv", "d_ca_wo", "d_ca_bo",
    "d_n2_g", "d_n2_b",
    "d_w1", "d_b1", "d_w2", "d_b2",
    "d_n3_g", "d_n3_b",
    "d_nf_g", "d_nf_b",
)


# ----------------------------------------------------------------------------
# The single fused kernel: encoder layer -> encoder norm -> decoder layer ->
# decoder norm, everything VMEM-resident.
# ----------------------------------------------------------------------------
def _spiral_transformer_kernel(
    q_ref, v_ref,
    # encoder params
    e_sa_wqkv, e_sa_bqkv, e_sa_wo, e_sa_bo,
    e_n1_g, e_n1_b,
    e_w1, e_b1, e_w2, e_b2,
    e_n2_g, e_n2_b,
    e_nf_g, e_nf_b,
    # decoder params
    d_sa_wqkv, d_sa_bqkv, d_sa_wo, d_sa_bo,
    d_n1_g, d_n1_b,
    d_ca_wq, d_ca_bq, d_ca_wkv, d_ca_bkv, d_ca_wo, d_ca_bo,
    d_n2_g, d_n2_b,
    d_w1, d_b1, d_w2, d_b2,
    d_n3_g, d_n3_b,
    d_nf_g, d_nf_b,
    # output
    o_ref,
    *, B, S, H,
):
    E = q_ref.shape[-1]
    Dh = E // H

    def matmul(x, w_ref, b_ref):
        return jnp.dot(x, w_ref[...], preferred_element_type=jnp.float32) + b_ref[...]

    def matmul_bf16(x, w_ref, b_ref):
        # bf16 operands -> single MXU pass; accumulate f32; bias add stays f32.
        return jnp.dot(x.astype(jnp.bfloat16), w_ref[...],
                       preferred_element_type=jnp.float32) + b_ref[...]

    def layer_norm(x, g_ref, b_ref):
        mu = jnp.mean(x, axis=-1, keepdims=True)
        var = jnp.mean((x - mu) ** 2, axis=-1, keepdims=True)
        return (x - mu) * jax.lax.rsqrt(var + LN_EPS) * g_ref[...] + b_ref[...]

    def sdpa(qp, kp, vp):
        # qp/kp/vp: (B*S, E), heads packed along the lane axis.  The 1/sqrt(Dh)
        # score scale is pre-folded into the Q projection weights, so no scale
        # here.  Attention is batched over B (one 'bqd,bkd->bqk' score einsum
        # and one 'bqk,bkd->bqd' context einsum per head); head contexts are
        # concatenated lane-dense -- no VMEM scratch slab, no masked 8-lane
        # stores, no reload.
        q3 = qp.reshape(B, S, E)
        k3 = kp.reshape(B, S, E)
        v3 = vp.reshape(B, S, E)
        ctx_heads = []
        for h in range(H):
            c0 = h * Dh
            q_h = q3[:, :, c0:c0 + Dh]
            k_h = k3[:, :, c0:c0 + Dh]
            v_h = v3[:, :, c0:c0 + Dh]
            s = jnp.einsum("bqd,bkd->bqk", q_h, k_h,
                           preferred_element_type=jnp.float32)
            m = jnp.max(s, axis=-1, keepdims=True)
            p = jnp.exp(s - m)
            p = p / jnp.sum(p, axis=-1, keepdims=True)   # exact divide (parity)
            ctx_heads.append(jnp.einsum("bqk,bkd->bqd", p, v_h,
                                        preferred_element_type=jnp.float32))
        ctx = jnp.concatenate(ctx_heads, axis=-1)        # (B, S, E) lane-dense
        return ctx.reshape(B * S, E)

    def self_attention(x, wqkv, bqkv, wo, bo):
        proj = matmul(x, wqkv, bqkv)                     # (B*S, 3E) packed QKV
        ctx = sdpa(proj[:, 0:E], proj[:, E:2 * E], proj[:, 2 * E:3 * E])
        return matmul(ctx, wo, bo)

    def cross_attention(x, mem, wq, bq, wkv, bkv, wo, bo):
        qp = matmul(x, wq, bq)                           # (B*S, E)
        kvp = matmul(mem, wkv, bkv)                      # (B*S, 2E) packed KV
        ctx = sdpa(qp, kvp[:, 0:E], kvp[:, E:2 * E])
        return matmul(ctx, wo, bo)

    def ffn(x, w1, b1, w2, b2):
        # Matmul operands bf16 (weights stored bf16), ReLU / bias in f32.
        h = jnp.maximum(matmul_bf16(x, w1, b1), 0.0)     # (B*S, F) stays in VMEM
        return matmul_bf16(h, w2, b2)

    src = v_ref[...]          # (B*S, E) -- transformer src = value
    tgt = q_ref[...]          # (B*S, E) -- transformer tgt = query

    # ---- Encoder layer (post-norm) + final encoder LayerNorm ----
    x = layer_norm(src + self_attention(src, e_sa_wqkv, e_sa_bqkv, e_sa_wo, e_sa_bo),
                   e_n1_g, e_n1_b)
    x = layer_norm(x + ffn(x, e_w1, e_b1, e_w2, e_b2), e_n2_g, e_n2_b)
    memory = layer_norm(x, e_nf_g, e_nf_b)

    # ---- Decoder layer (post-norm, non-causal) + final decoder LayerNorm ----
    y = layer_norm(tgt + self_attention(tgt, d_sa_wqkv, d_sa_bqkv, d_sa_wo, d_sa_bo),
                   d_n1_g, d_n1_b)
    y = layer_norm(y + cross_attention(y, memory, d_ca_wq, d_ca_bq,
                                       d_ca_wkv, d_ca_bkv, d_ca_wo, d_ca_bo),
                   d_n2_g, d_n2_b)
    y = layer_norm(y + ffn(y, d_w1, d_b1, d_w2, d_b2), d_n3_g, d_n3_b)
    o_ref[...] = layer_norm(y, d_nf_g, d_nf_b)


# ----------------------------------------------------------------------------
# Wrapper: one pallas_call for the entire forward.  On multi-TensorCore chips
# (v7x) an optional batch-parallel grid shards batches across cores; on
# single-TC chips the fused gridless call is used.
# ----------------------------------------------------------------------------
def _detect_batch_parallel_grid():
    try:
        kind = jax.devices()[0].device_kind.lower().replace(" ", "")
    except Exception:
        return False
    return ("v7" in kind) or ("tpu7" in kind)


def spiral_attention_forward(params, query, key, value, num_heads,
                             batch_parallel_grid=None):
    # query/key/value: (seq, batch, embed); `key` is unused (matches the module).
    del key
    S, B, E = query.shape
    q_bf = jnp.transpose(query, (1, 0, 2)).reshape(B * S, E)   # (B*S, E)
    v_bf = jnp.transpose(value, (1, 0, 2)).reshape(B * S, E)   # (B*S, E)

    flat_params = [params[name] for name in PARAM_ORDER]
    out_shape = jax.ShapeDtypeStruct((B * S, E), jnp.float32)

    if batch_parallel_grid is None:
        batch_parallel_grid = _detect_batch_parallel_grid()

    if batch_parallel_grid and B > 1:
        # grid=(B,): each grid step processes one batch (fully independent work),
        # parallel semantics let the runtime shard batches across TensorCores.
        kernel = functools.partial(_spiral_transformer_kernel, B=1, S=S, H=num_heads)

        def _const_spec(arr):
            nd = arr.ndim
            return pl.BlockSpec(arr.shape, lambda b, _nd=nd: (0,) * _nd)

        io_spec = pl.BlockSpec((S, E), lambda b: (b, 0))
        out = pl.pallas_call(
            kernel,
            out_shape=out_shape,
            grid=(B,),
            in_specs=[io_spec, io_spec] + [_const_spec(p) for p in flat_params],
            out_specs=io_spec,
            compiler_params=pltpu.CompilerParams(dimension_semantics=("parallel",)),
        )(q_bf, v_bf, *flat_params)
    else:
        # Single fused invocation, whole-array VMEM-resident (v5e/v6e path).
        kernel = functools.partial(_spiral_transformer_kernel, B=B, S=S, H=num_heads)
        vmem_spec = pl.BlockSpec(memory_space=pltpu.MemorySpace.VMEM)
        n_in = 2 + len(flat_params)
        out = pl.pallas_call(
            kernel,
            out_shape=out_shape,
            in_specs=[vmem_spec] * n_in,
            out_specs=vmem_spec,
        )(q_bf, v_bf, *flat_params)

    return jnp.transpose(out.reshape(B, S, E), (1, 0, 2))      # back to (S, B, E)


# ----------------------------------------------------------------------------
# Deterministic parameter construction.  Weights are stored pre-transposed in
# (K, N) layout (W_kernel = W_pytorch.T); biases / LN params are (1, N) rows.
# Construction-time folding (apply the same when importing PyTorch weights):
#   * the 1/sqrt(Dh) attention scale is folded into the Q projection weight/bias,
#   * the four FFN weight matrices are stored in bfloat16 (f32 accumulation).
# ----------------------------------------------------------------------------
def _init_params(key, spiral_dim, num_heads, dim_ff):
    E, F = spiral_dim, dim_ff
    Dh = E // num_heads
    q_scale = 1.0 / math.sqrt(Dh)
    keys = iter(jax.random.split(key, 16))

    def w(k_dim, n_dim, scale=0.05):
        return scale * jax.random.normal(next(keys), (k_dim, n_dim), dtype=jnp.float32)

    def zeros(*shape):
        return jnp.zeros(shape, jnp.float32)

    def ones(*shape):
        return jnp.ones(shape, jnp.float32)

    def fold_q_qkv(wqkv, bqkv):
        # Fold the attention score scale into the Q third of the packed QKV proj.
        return wqkv.at[:, :E].multiply(q_scale), bqkv.at[:, :E].multiply(q_scale)

    p = {}
    # encoder layer
    p["e_sa_wqkv"], p["e_sa_bqkv"] = fold_q_qkv(w(E, 3 * E), zeros(1, 3 * E))
    p["e_sa_wo"] = w(E, E);       p["e_sa_bo"] = zeros(1, E)
    p["e_n1_g"] = ones(1, E);     p["e_n1_b"] = zeros(1, E)
    p["e_w1"] = w(E, F).astype(jnp.bfloat16);  p["e_b1"] = zeros(1, F)
    p["e_w2"] = w(F, E).astype(jnp.bfloat16);  p["e_b2"] = zeros(1, E)
    p["e_n2_g"] = ones(1, E);     p["e_n2_b"] = zeros(1, E)
    p["e_nf_g"] = ones(1, E);     p["e_nf_b"] = zeros(1, E)
    # decoder layer
    p["d_sa_wqkv"], p["d_sa_bqkv"] = fold_q_qkv(w(E, 3 * E), zeros(1, 3 * E))
    p["d_sa_wo"] = w(E, E);       p["d_sa_bo"] = zeros(1, E)
    p["d_n1_g"] = ones(1, E);     p["d_n1_b"] = zeros(1, E)
    p["d_ca_wq"] = w(E, E) * q_scale;          p["d_ca_bq"] = zeros(1, E)
    p["d_ca_wkv"] = w(E, 2 * E);  p["d_ca_bkv"] = zeros(1, 2 * E)
    p["d_ca_wo"] = w(E, E);       p["d_ca_bo"] = zeros(1, E)
    p["d_n2_g"] = ones(1, E);     p["d_n2_b"] = zeros(1, E)
    p["d_w1"] = w(E, F).astype(jnp.bfloat16);  p["d_b1"] = zeros(1, F)
    p["d_w2"] = w(F, E).astype(jnp.bfloat16);  p["d_b2"] = zeros(1, E)
    p["d_n3_g"] = ones(1, E);     p["d_n3_b"] = zeros(1, E)
    p["d_nf_g"] = ones(1, E);     p["d_nf_b"] = zeros(1, E)
    return p


if __name__ == "__main__":
    SPIRAL_DIM = 32
    NUM_HEADS = 4
    DIM_FF = 2048          # nn.Transformer default dim_feedforward
    SEQ, BATCH = 8, 2

    root = jax.random.PRNGKey(0)
    k_p, k_q, k_k, k_v = jax.random.split(root, 4)
    params = _init_params(k_p, SPIRAL_DIM, NUM_HEADS, DIM_FF)

    # Inputs are (seq, batch, embed); forward permutes to batch-first internally.
    query = jax.random.normal(k_q, (SEQ, BATCH, SPIRAL_DIM), dtype=jnp.float32)
    key_in = jax.random.normal(k_k, (SEQ, BATCH, SPIRAL_DIM), dtype=jnp.float32)
    value = jax.random.normal(k_v, (SEQ, BATCH, SPIRAL_DIM), dtype=jnp.float32)

    fwd = jax.jit(functools.partial(spiral_attention_forward, num_heads=NUM_HEADS))
    out = fwd(params, query, key_in, value)
    out = jax.block_until_ready(out)

    assert out.shape == (SEQ, BATCH, SPIRAL_DIM), out.shape
    assert bool(jnp.all(jnp.isfinite(out)))
    print("KERNEL_OK")
</pallas_src>

<mosaic_0001>
module attributes {stable_mosaic.version = 11 : i64} {
  func.func @_spiral_transformer_kernel(%arg0: memref<16x32xf32, #tpu.memory_space<vmem>>, %arg1: memref<16x32xf32, #tpu.memory_space<vmem>>, %arg2: memref<32x96xf32, #tpu.memory_space<vmem>>, %arg3: memref<1x96xf32, #tpu.memory_space<vmem>>, %arg4: memref<32x32xf32, #tpu.memory_space<vmem>>, %arg5: memref<1x32xf32, #tpu.memory_space<vmem>>, %arg6: memref<1x32xf32, #tpu.memory_space<vmem>>, %arg7: memref<1x32xf32, #tpu.memory_space<vmem>>, %arg8: memref<32x2048xbf16, #tpu.memory_space<vmem>>, %arg9: memref<1x2048xf32, #tpu.memory_space<vmem>>, %arg10: memref<2048x32xbf16, #tpu.memory_space<vmem>>, %arg11: memref<1x32xf32, #tpu.memory_space<vmem>>, %arg12: memref<1x32xf32, #tpu.memory_space<vmem>>, %arg13: memref<1x32xf32, #tpu.memory_space<vmem>>, %arg14: memref<1x32xf32, #tpu.memory_space<vmem>>, %arg15: memref<1x32xf32, #tpu.memory_space<vmem>>, %arg16: memref<32x96xf32, #tpu.memory_space<vmem>>, %arg17: memref<1x96xf32, #tpu.memory_space<vmem>>, %arg18: memref<32x32xf32, #tpu.memory_space<vmem>>, %arg19: memref<1x32xf32, #tpu.memory_space<vmem>>, %arg20: memref<1x32xf32, #tpu.memory_space<vmem>>, %arg21: memref<1x32xf32, #tpu.memory_space<vmem>>, %arg22: memref<32x32xf32, #tpu.memory_space<vmem>>, %arg23: memref<1x32xf32, #tpu.memory_space<vmem>>, %arg24: memref<32x64xf32, #tpu.memory_space<vmem>>, %arg25: memref<1x64xf32, #tpu.memory_space<vmem>>, %arg26: memref<32x32xf32, #tpu.memory_space<vmem>>, %arg27: memref<1x32xf32, #tpu.memory_space<vmem>>, %arg28: memref<1x32xf32, #tpu.memory_space<vmem>>, %arg29: memref<1x32xf32, #tpu.memory_space<vmem>>, %arg30: memref<32x2048xbf16, #tpu.memory_space<vmem>>, %arg31: memref<1x2048xf32, #tpu.memory_space<vmem>>, %arg32: memref<2048x32xbf16, #tpu.memory_space<vmem>>, %arg33: memref<1x32xf32, #tpu.memory_space<vmem>>, %arg34: memref<1x32xf32, #tpu.memory_space<vmem>>, %arg35: memref<1x32xf32, #tpu.memory_space<vmem>>, %arg36: memref<1x32xf32, #tpu.memory_space<vmem>>, %arg37: memref<1x32xf32, #tpu.memory_space<vmem>>, %arg38: memref<16x32xf32, #tpu.memory_space<vmem>>) attributes {dimension_semantics = [], scalar_prefetch = 0 : i64, scratch_operands = 0 : i64, tpu.core_type = #tpu.core_type<tc>} {
    %c0 = arith.constant 0 : index
    %c0_0 = arith.constant 0 : index
    %0 = vector.load %arg1[%c0, %c0_0] : memref<16x32xf32, #tpu.memory_space<vmem>>, vector<16x32xf32>
    %c0_1 = arith.constant 0 : index
    %c0_2 = arith.constant 0 : index
    %1 = vector.load %arg0[%c0_1, %c0_2] : memref<16x32xf32, #tpu.memory_space<vmem>>, vector<16x32xf32>
    %c0_3 = arith.constant 0 : index
    %c0_4 = arith.constant 0 : index
    %2 = vector.load %arg2[%c0_3, %c0_4] : memref<32x96xf32, #tpu.memory_space<vmem>>, vector<32x96xf32>
    %cst = arith.constant dense<0.000000e+00> : vector<16x96xf32>
    %3 = tpu.matmul %0, %2, %cst {dimension_numbers = #tpu.dot_dimension_numbers<[1], [0], [0], [1], [0, 0, 1, 1], [], []>} : vector<16x32xf32>, vector<32x96xf32>, vector<16x96xf32> -> vector<16x96xf32>
    %c0_5 = arith.constant 0 : index
    %c0_6 = arith.constant 0 : index
    %4 = vector.load %arg3[%c0_5, %c0_6] : memref<1x96xf32, #tpu.memory_space<vmem>>, vector<1x96xf32>
    %5 = vector.broadcast %4 : vector<1x96xf32> to vector<16x96xf32>
    %6 = arith.addf %3, %5 : vector<16x96xf32>
    %7 = vector.extract_strided_slice %6 {offsets = [0, 0], sizes = [16, 32], strides = [1, 1]} : vector<16x96xf32> to vector<16x32xf32>
    %8 = vector.extract_strided_slice %6 {offsets = [0, 32], sizes = [16, 32], strides = [1, 1]} : vector<16x96xf32> to vector<16x32xf32>
    %9 = vector.extract_strided_slice %6 {offsets = [0, 64], sizes = [16, 32], strides = [1, 1]} : vector<16x96xf32> to vector<16x32xf32>
    %10 = vector.shape_cast %7 : vector<16x32xf32> to vector<2x8x32xf32>
    %11 = vector.shape_cast %8 : vector<16x32xf32> to vector<2x8x32xf32>
    %12 = vector.shape_cast %9 : vector<16x32xf32> to vector<2x8x32xf32>
    %13 = vector.extract_strided_slice %10 {offsets = [0, 0, 0], sizes = [2, 8, 8], strides = [1, 1, 1]} : vector<2x8x32xf32> to vector<2x8x8xf32>
    %14 = vector.extract_strided_slice %11 {offsets = [0, 0, 0], sizes = [2, 8, 8], strides = [1, 1, 1]} : vector<2x8x32xf32> to vector<2x8x8xf32>
    %15 = vector.extract_strided_slice %12 {offsets = [0, 0, 0], sizes = [2, 8, 8], strides = [1, 1, 1]} : vector<2x8x32xf32> to vector<2x8x8xf32>
    "tpu.trace_start"() <{level = 10 : i32, message = "bqd,bkd->bqk"}> : () -> ()
    %cst_7 = arith.constant dense<0.000000e+00> : vector<2x8x8xf32>
    %16 = tpu.matmul %13, %14, %cst_7 {dimension_numbers = #tpu.dot_dimension_numbers<[2], [2], [1], [1], [0, 0, 0, 1, 1, 1], [0], [0]>} : vector<2x8x8xf32>, vector<2x8x8xf32>, vector<2x8x8xf32> -> vector<2x8x8xf32>
    "tpu.trace_stop"() : () -> ()
    %cst_8 = arith.constant dense<0xFF800000> : vector<2x8xf32>
    %17 = vector.multi_reduction <maximumf>, %16, %cst_8 [2] : vector<2x8x8xf32> to vector<2x8xf32>
    %18 = vector.shape_cast %17 : vector<2x8xf32> to vector<2x8x1xf32>
    %19 = vector.broadcast %18 : vector<2x8x1xf32> to vector<2x8x8xf32>
    %20 = arith.subf %16, %19 : vector<2x8x8xf32>
    %21 = math.exp %20 : vector<2x8x8xf32>
    %cst_9 = arith.constant dense<0.000000e+00> : vector<2x8xf32>
    %22 = vector.multi_reduction <add>, %21, %cst_9 [2] : vector<2x8x8xf32> to vector<2x8xf32>
    %23 = vector.shape_cast %22 : vector<2x8xf32> to vector<2x8x1xf32>
    %24 = vector.broadcast %23 : vector<2x8x1xf32> to vector<2x8x8xf32>
    %25 = arith.divf %21, %24 : vector<2x8x8xf32>
    "tpu.trace_start"() <{level = 10 : i32, message = "bqk,bkd->bqd"}> : () -> ()
    %cst_10 = arith.constant dense<0.000000e+00> : vector<2x8x8xf32>
    %26 = tpu.matmul %25, %15, %cst_10 {dimension_numbers = #tpu.dot_dimension_numbers<[2], [1], [1], [2], [0, 0, 0, 1, 1, 2], [0], [0]>} : vector<2x8x8xf32>, vector<2x8x8xf32>, vector<2x8x8xf32> -> vector<2x8x8xf32>
    "tpu.trace_stop"() : () -> ()
    %27 = vector.extract_strided_slice %10 {offsets = [0, 0, 8], sizes = [2, 8, 8], strides = [1, 1, 1]} : vector<2x8x32xf32> to vector<2x8x8xf32>
    %28 = vector.extract_strided_slice %11 {offsets = [0, 0, 8], sizes = [2, 8, 8], strides = [1, 1, 1]} : vector<2x8x32xf32> to vector<2x8x8xf32>
    %29 = vector.extract_strided_slice %12 {offsets = [0, 0, 8], sizes = [2, 8, 8], strides = [1, 1, 1]} : vector<2x8x32xf32> to vector<2x8x8xf32>
    "tpu.trace_start"() <{level = 10 : i32, message = "bqd,bkd->bqk"}> : () -> ()
    %cst_11 = arith.constant dense<0.000000e+00> : vector<2x8x8xf32>
    %30 = tpu.matmul %27, %28, %cst_11 {dimension_numbers = #tpu.dot_dimension_numbers<[2], [2], [1], [1], [0, 0, 0, 1, 1, 1], [0], [0]>} : vector<2x8x8xf32>, vector<2x8x8xf32>, vector<2x8x8xf32> -> vector<2x8x8xf32>
    "tpu.trace_stop"() : () -> ()
    %cst_12 = arith.constant dense<0xFF800000> : vector<2x8xf32>
    %31 = vector.multi_reduction <maximumf>, %30, %cst_12 [2] : vector<2x8x8xf32> to vector<2x8xf32>
    %32 = vector.shape_cast %31 : vector<2x8xf32> to vector<2x8x1xf32>
    %33 = vector.broadcast %32 : vector<2x8x1xf32> to vector<2x8x8xf32>
    %34 = arith.subf %30, %33 : vector<2x8x8xf32>
    %35 = math.exp %34 : vector<2x8x8xf32>
    %cst_13 = arith.constant dense<0.000000e+00> : vector<2x8xf32>
    %36 = vector.multi_reduction <add>, %35, %cst_13 [2] : vector<2x8x8xf32> to vector<2x8xf32>
    %37 = vector.shape_cast %36 : vector<2x8xf32> to vector<2x8x1xf32>
    %38 = vector.broadcast %37 : vector<2x8x1xf32> to vector<2x8x8xf32>
    %39 = arith.divf %35, %38 : vector<2x8x8xf32>
    "tpu.trace_start"() <{level = 10 : i32, message = "bqk,bkd->bqd"}> : () -> ()
    %cst_14 = arith.constant dense<0.000000e+00> : vector<2x8x8xf32>
    %40 = tpu.matmul %39, %29, %cst_14 {dimension_numbers = #tpu.dot_dimension_numbers<[2], [1], [1], [2], [0, 0, 0, 1, 1, 2], [0], [0]>} : vector<2x8x8xf32>, vector<2x8x8xf32>, vector<2x8x8xf32> -> vector<2x8x8xf32>
    "tpu.trace_stop"() : () -> ()
    %41 = vector.extract_strided_slice %10 {offsets = [0, 0, 16], sizes = [2, 8, 8], strides = [1, 1, 1]} : vector<2x8x32xf32> to vector<2x8x8xf32>
    %42 = vector.extract_strided_slice %11 {offsets = [0, 0, 16], sizes = [2, 8, 8], strides = [1, 1, 1]} : vector<2x8x32xf32> to vector<2x8x8xf32>
    %43 = vector.extract_strided_slice %12 {offsets = [0, 0, 16], sizes = [2, 8, 8], strides = [1, 1, 1]} : vector<2x8x32xf32> to vector<2x8x8xf32>
    "tpu.trace_start"() <{level = 10 : i32, message = "bqd,bkd->bqk"}> : () -> ()
    %cst_15 = arith.constant dense<0.000000e+00> : vector<2x8x8xf32>
    %44 = tpu.matmul %41, %42, %cst_15 {dimension_numbers = #tpu.dot_dimension_numbers<[2], [2], [1], [1], [0, 0, 0, 1, 1, 1], [0], [0]>} : vector<2x8x8xf32>, vector<2x8x8xf32>, vector<2x8x8xf32> -> vector<2x8x8xf32>
    "tpu.trace_stop"() : () -> ()
    %cst_16 = arith.constant dense<0xFF800000> : vector<2x8xf32>
    %45 = vector.multi_reduction <maximumf>, %44, %cst_16 [2] : vector<2x8x8xf32> to vector<2x8xf32>
    %46 = vector.shape_cast %45 : vector<2x8xf32> to vector<2x8x1xf32>
    %47 = vector.broadcast %46 : vector<2x8x1xf32> to vector<2x8x8xf32>
    %48 = arith.subf %44, %47 : vector<2x8x8xf32>
    %49 = math.exp %48 : vector<2x8x8xf32>
    %cst_17 = arith.constant dense<0.000000e+00> : vector<2x8xf32>
    %50 = vector.multi_reduction <add>, %49, %cst_17 [2] : vector<2x8x8xf32> to vector<2x8xf32>
    %51 = vector.shape_cast %50 : vector<2x8xf32> to vector<2x8x1xf32>
    %52 = vector.broadcast %51 : vector<2x8x1xf32> to vector<2x8x8xf32>
    %53 = arith.divf %49, %52 : vector<2x8x8xf32>
    "tpu.trace_start"() <{level = 10 : i32, message = "bqk,bkd->bqd"}> : () -> ()
    %cst_18 = arith.constant dense<0.000000e+00> : vector<2x8x8xf32>
    %54 = tpu.matmul %53, %43, %cst_18 {dimension_numbers = #tpu.dot_dimension_numbers<[2], [1], [1], [2], [0, 0, 0, 1, 1, 2], [0], [0]>} : vector<2x8x8xf32>, vector<2x8x8xf32>, vector<2x8x8xf32> -> vector<2x8x8xf32>
    "tpu.trace_stop"() : () -> ()
    %55 = vector.extract_strided_slice %10 {offsets = [0, 0, 24], sizes = [2, 8, 8], strides = [1, 1, 1]} : vector<2x8x32xf32> to vector<2x8x8xf32>
    %56 = vector.extract_strided_slice %11 {offsets = [0, 0, 24], sizes = [2, 8, 8], strides = [1, 1, 1]} : vector<2x8x32xf32> to vector<2x8x8xf32>
    %57 = vector.extract_strided_slice %12 {offsets = [0, 0, 24], sizes = [2, 8, 8], strides = [1, 1, 1]} : vector<2x8x32xf32> to vector<2x8x8xf32>
    "tpu.trace_start"() <{level = 10 : i32, message = "bqd,bkd->bqk"}> : () -> ()
    %cst_19 = arith.constant dense<0.000000e+00> : vector<2x8x8xf32>
    %58 = tpu.matmul %55, %56, %cst_19 {dimension_numbers = #tpu.dot_dimension_numbers<[2], [2], [1], [1], [0, 0, 0, 1, 1, 1], [0], [0]>} : vector<2x8x8xf32>, vector<2x8x8xf32>, vector<2x8x8xf32> -> vector<2x8x8xf32>
    "tpu.trace_stop"() : () -> ()
    %cst_20 = arith.constant dense<0xFF800000> : vector<2x8xf32>
    %59 = vector.multi_reduction <maximumf>, %58, %cst_20 [2] : vector<2x8x8xf32> to vector<2x8xf32>
    %60 = vector.shape_cast %59 : vector<2x8xf32> to vector<2x8x1xf32>
    %61 = vector.broadcast %60 : vector<2x8x1xf32> to vector<2x8x8xf32>
    %62 = arith.subf %58, %61 : vector<2x8x8xf32>
    %63 = math.exp %62 : vector<2x8x8xf32>
    %cst_21 = arith.constant dense<0.000000e+00> : vector<2x8xf32>
    %64 = vector.multi_reduction <add>, %63, %cst_21 [2] : vector<2x8x8xf32> to vector<2x8xf32>
    %65 = vector.shape_cast %64 : vector<2x8xf32> to vector<2x8x1xf32>
    %66 = vector.broadcast %65 : vector<2x8x1xf32> to vector<2x8x8xf32>
    %67 = arith.divf %63, %66 : vector<2x8x8xf32>
    "tpu.trace_start"() <{level = 10 : i32, message = "bqk,bkd->bqd"}> : () -> ()
    %cst_22 = arith.constant dense<0.000000e+00> : vector<2x8x8xf32>
    %68 = tpu.matmul %67, %57, %cst_22 {dimension_numbers = #tpu.dot_dimension_numbers<[2], [1], [1], [2], [0, 0, 0, 1, 1, 2], [0], [0]>} : vector<2x8x8xf32>, vector<2x8x8xf32>, vector<2x8x8xf32> -> vector<2x8x8xf32>
    "tpu.trace_stop"() : () -> ()
    %69 = tpu.concatenate %26, %40, %54, %68 in 2 : vector<2x8x8xf32>, vector<2x8x8xf32>, vector<2x8x8xf32>, vector<2x8x8xf32> -> vector<2x8x32xf32>
    %70 = vector.shape_cast %69 : vector<2x8x32xf32> to vector<16x32xf32>
    %c0_23 = arith.constant 0 : index
    %c0_24 = arith.constant 0 : index
    %71 = vector.load %arg4[%c0_23, %c0_24] : memref<32x32xf32, #tpu.memory_space<vmem>>, vector<32x32xf32>
    %cst_25 = arith.constant dense<0.000000e+00> : vector<16x32xf32>
    %72 = tpu.matmul %70, %71, %cst_25 {dimension_numbers = #tpu.dot_dimension_numbers<[1], [0], [0], [1], [0, 0, 1, 1], [], []>} : vector<16x32xf32>, vector<32x32xf32>, vector<16x32xf32> -> vector<16x32xf32>
    %c0_26 = arith.constant 0 : index
    %c0_27 = arith.constant 0 : index
    %73 = vector.load %arg5[%c0_26, %c0_27] : memref<1x32xf32, #tpu.memory_space<vmem>>, vector<1x32xf32>
    %74 = vector.broadcast %73 : vector<1x32xf32> to vector<16x32xf32>
    %75 = arith.addf %72, %74 : vector<16x32xf32>
    %76 = arith.addf %0, %75 : vector<16x32xf32>
    %cst_28 = arith.constant dense<0.000000e+00> : vector<16xf32>
    %77 = vector.multi_reduction <add>, %76, %cst_28 [1] : vector<16x32xf32> to vector<16xf32>
    %78 = vector.shape_cast %77 : vector<16xf32> to vector<16x1xf32>
    %cst_29 = arith.constant 3.200000e+01 : f32
    %79 = vector.broadcast %cst_29 : f32 to vector<16x1xf32>
    %80 = arith.divf %78, %79 : vector<16x1xf32>
    %81 = vector.broadcast %80 : vector<16x1xf32> to vector<16x32xf32>
    %82 = arith.subf %76, %81 : vector<16x32xf32>
    %83 = arith.mulf %82, %82 : vector<16x32xf32>
    %cst_30 = arith.constant dense<0.000000e+00> : vector<16xf32>
    %84 = vector.multi_reduction <add>, %83, %cst_30 [1] : vector<16x32xf32> to vector<16xf32>
    %85 = vector.shape_cast %84 : vector<16xf32> to vector<16x1xf32>
    %cst_31 = arith.constant 3.200000e+01 : f32
    %86 = vector.broadcast %cst_31 : f32 to vector<16x1xf32>
    %87 = arith.divf %85, %86 : vector<16x1xf32>
    %88 = vector.broadcast %80 : vector<16x1xf32> to vector<16x32xf32>
    %89 = arith.subf %76, %88 : vector<16x32xf32>
    %cst_32 = arith.constant 9.99999974E-6 : f32
    %90 = vector.broadcast %cst_32 : f32 to vector<16x1xf32>
    %91 = arith.addf %87, %90 : vector<16x1xf32>
    %92 = math.rsqrt %91 : vector<16x1xf32>
    %93 = vector.broadcast %92 : vector<16x1xf32> to vector<16x32xf32>
    %94 = arith.mulf %89, %93 : vector<16x32xf32>
    %c0_33 = arith.constant 0 : index
    %c0_34 = arith.constant 0 : index
    %95 = vector.load %arg6[%c0_33, %c0_34] : memref<1x32xf32, #tpu.memory_space<vmem>>, vector<1x32xf32>
    %96 = vector.broadcast %95 : vector<1x32xf32> to vector<16x32xf32>
    %97 = arith.mulf %94, %96 : vector<16x32xf32>
    %c0_35 = arith.constant 0 : index
    %c0_36 = arith.constant 0 : index
    %98 = vector.load %arg7[%c0_35, %c0_36] : memref<1x32xf32, #tpu.memory_space<vmem>>, vector<1x32xf32>
    %99 = vector.broadcast %98 : vector<1x32xf32> to vector<16x32xf32>
    %100 = arith.addf %97, %99 : vector<16x32xf32>
    %101 = arith.truncf %100 : vector<16x32xf32> to vector<16x32xbf16>
    %c0_37 = arith.constant 0 : index
    %c0_38 = arith.constant 0 : index
    %102 = vector.load %arg8[%c0_37, %c0_38] : memref<32x2048xbf16, #tpu.memory_space<vmem>>, vector<32x2048xbf16>
    %cst_39 = arith.constant dense<0.000000e+00> : vector<16x2048xf32>
    %103 = tpu.matmul %101, %102, %cst_39 {dimension_numbers = #tpu.dot_dimension_numbers<[1], [0], [0], [1], [0, 0, 1, 1], [], []>} : vector<16x32xbf16>, vector<32x2048xbf16>, vector<16x2048xf32> -> vector<16x2048xf32>
    %c0_40 = arith.constant 0 : index
    %c0_41 = arith.constant 0 : index
    %104 = vector.load %arg9[%c0_40, %c0_41] : memref<1x2048xf32, #tpu.memory_space<vmem>>, vector<1x2048xf32>
    %105 = vector.broadcast %104 : vector<1x2048xf32> to vector<16x2048xf32>
    %106 = arith.addf %103, %105 : vector<16x2048xf32>
    %cst_42 = arith.constant 0.000000e+00 : f32
    %107 = vector.broadcast %cst_42 : f32 to vector<16x2048xf32>
    %108 = arith.maximumf %106, %107 : vector<16x2048xf32>
    %109 = arith.truncf %108 : vector<16x2048xf32> to vector<16x2048xbf16>
    %c0_43 = arith.constant 0 : index
    %c0_44 = arith.constant 0 : index
    %110 = vector.load %arg10[%c0_43, %c0_44] : memref<2048x32xbf16, #tpu.memory_space<vmem>>, vector<2048x32xbf16>
    %cst_45 = arith.constant dense<0.000000e+00> : vector<16x32xf32>
    %111 = tpu.matmul %109, %110, %cst_45 {dimension_numbers = #tpu.dot_dimension_numbers<[1], [0], [0], [1], [0, 0, 1, 1], [], []>} : vector<16x2048xbf16>, vector<2048x32xbf16>, vector<16x32xf32> -> vector<16x32xf32>
    %c0_46 = arith.constant 0 : index
    %c0_47 = arith.constant 0 : index
    %112 = vector.load %arg11[%c0_46, %c0_47] : memref<1x32xf32, #tpu.memory_space<vmem>>, vector<1x32xf32>
    %113 = vector.broadcast %112 : vector<1x32xf32> to vector<16x32xf32>
    %114 = arith.addf %111, %113 : vector<16x32xf32>
    %115 = arith.addf %100, %114 : vector<16x32xf32>
    %cst_48 = arith.constant dense<0.000000e+00> : vector<16xf32>
    %116 = vector.multi_reduction <add>, %115, %cst_48 [1] : vector<16x32xf32> to vector<16xf32>
    %117 = vector.shape_cast %116 : vector<16xf32> to vector<16x1xf32>
    %cst_49 = arith.constant 3.200000e+01 : f32
    %118 = vector.broadcast %cst_49 : f32 to vector<16x1xf32>
    %119 = arith.divf %117, %118 : vector<16x1xf32>
    %120 = vector.broadcast %119 : vector<16x1xf32> to vector<16x32xf32>
    %121 = arith.subf %115, %120 : vector<16x32xf32>
    %122 = arith.mulf %121, %121 : vector<16x32xf32>
    %cst_50 = arith.constant dense<0.000000e+00> : vector<16xf32>
    %123 = vector.multi_reduction <add>, %122, %cst_50 [1] : vector<16x32xf32> to vector<16xf32>
    %124 = vector.shape_cast %123 : vector<16xf32> to vector<16x1xf32>
    %cst_51 = arith.constant 3.200000e+01 : f32
    %125 = vector.broadcast %cst_51 : f32 to vector<16x1xf32>
    %126 = arith.divf %124, %125 : vector<16x1xf32>
    %127 = vector.broadcast %119 : vector<16x1xf32> to vector<16x32xf32>
    %128 = arith.subf %115, %127 : vector<16x32xf32>
    %cst_52 = arith.constant 9.99999974E-6 : f32
    %129 = vector.broadcast %cst_52 : f32 to vector<16x1xf32>
    %130 = arith.addf %126, %129 : vector<16x1xf32>
    %131 = math.rsqrt %130 : vector<16x1xf32>
    %132 = vector.broadcast %131 : vector<16x1xf32> to vector<16x32xf32>
    %133 = arith.mulf %128, %132 : vector<16x32xf32>
    %c0_53 = arith.constant 0 : index
    %c0_54 = arith.constant 0 : index
    %134 = vector.load %arg12[%c0_53, %c0_54] : memref<1x32xf32, #tpu.memory_space<vmem>>, vector<1x32xf32>
    %135 = vector.broadcast %134 : vector<1x32xf32> to vector<16x32xf32>
    %136 = arith.mulf %133, %135 : vector<16x32xf32>
    %c0_55 = arith.constant 0 : index
    %c0_56 = arith.constant 0 : index
    %137 = vector.load %arg13[%c0_55, %c0_56] : memref<1x32xf32, #tpu.memory_space<vmem>>, vector<1x32xf32>
    %138 = vector.broadcast %137 : vector<1x32xf32> to vector<16x32xf32>
    %139 = arith.addf %136, %138 : vector<16x32xf32>
    %cst_57 = arith.constant dense<0.000000e+00> : vector<16xf32>
    %140 = vector.multi_reduction <add>, %139, %cst_57 [1] : vector<16x32xf32> to vector<16xf32>
    %141 = vector.shape_cast %140 : vector<16xf32> to vector<16x1xf32>
    %cst_58 = arith.constant 3.200000e+01 : f32
    %142 = vector.broadcast %cst_58 : f32 to vector<16x1xf32>
    %143 = arith.divf %141, %142 : vector<16x1xf32>
    %144 = vector.broadcast %143 : vector<16x1xf32> to vector<16x32xf32>
    %145 = arith.subf %139, %144 : vector<16x32xf32>
    %146 = arith.mulf %145, %145 : vector<16x32xf32>
    %cst_59 = arith.constant dense<0.000000e+00> : vector<16xf32>
    %147 = vector.multi_reduction <add>, %146, %cst_59 [1] : vector<16x32xf32> to vector<16xf32>
    %148 = vector.shape_cast %147 : vector<16xf32> to vector<16x1xf32>
    %cst_60 = arith.constant 3.200000e+01 : f32
    %149 = vector.broadcast %cst_60 : f32 to vector<16x1xf32>
    %150 = arith.divf %148, %149 : vector<16x1xf32>
    %151 = vector.broadcast %143 : vector<16x1xf32> to vector<16x32xf32>
    %152 = arith.subf %139, %151 : vector<16x32xf32>
    %cst_61 = arith.constant 9.99999974E-6 : f32
    %153 = vector.broadcast %cst_61 : f32 to vector<16x1xf32>
    %154 = arith.addf %150, %153 : vector<16x1xf32>
    %155 = math.rsqrt %154 : vector<16x1xf32>
    %156 = vector.broadcast %155 : vector<16x1xf32> to vector<16x32xf32>
    %157 = arith.mulf %152, %156 : vector<16x32xf32>
    %c0_62 = arith.constant 0 : index
    %c0_63 = arith.constant 0 : index
    %158 = vector.load %arg14[%c0_62, %c0_63] : memref<1x32xf32, #tpu.memory_space<vmem>>, vector<1x32xf32>
    %159 = vector.broadcast %158 : vector<1x32xf32> to vector<16x32xf32>
    %160 = arith.mulf %157, %159 : vector<16x32xf32>
    %c0_64 = arith.constant 0 : index
    %c0_65 = arith.constant 0 : index
    %161 = vector.load %arg15[%c0_64, %c0_65] : memref<1x32xf32, #tpu.memory_space<vmem>>, vector<1x32xf32>
    %162 = vector.broadcast %161 : vector<1x32xf32> to vector<16x32xf32>
    %163 = arith.addf %160, %162 : vector<16x32xf32>
    %c0_66 = arith.constant 0 : index
    %c0_67 = arith.constant 0 : index
    %164 = vector.load %arg16[%c0_66, %c0_67] : memref<32x96xf32, #tpu.memory_space<vmem>>, vector<32x96xf32>
    %cst_68 = arith.constant dense<0.000000e+00> : vector<16x96xf32>
    %165 = tpu.matmul %1, %164, %cst_68 {dimension_numbers = #tpu.dot_dimension_numbers<[1], [0], [0], [1], [0, 0, 1, 1], [], []>} : vector<16x32xf32>, vector<32x96xf32>, vector<16x96xf32> -> vector<16x96xf32>
    %c0_69 = arith.constant 0 : index
    %c0_70 = arith.constant 0 : index
    %166 = vector.load %arg17[%c0_69, %c0_70] : memref<1x96xf32, #tpu.memory_space<vmem>>, vector<1x96xf32>
    %167 = vector.broadcast %166 : vector<1x96xf32> to vector<16x96xf32>
    %168 = arith.addf %165, %167 : vector<16x96xf32>
    %169 = vector.extract_strided_slice %168 {offsets = [0, 0], sizes = [16, 32], strides = [1, 1]} : vector<16x96xf32> to vector<16x32xf32>
    %170 = vector.extract_strided_slice %168 {offsets = [0, 32], sizes = [16, 32], strides = [1, 1]} : vector<16x96xf32> to vector<16x32xf32>
    %171 = vector.extract_strided_slice %168 {offsets = [0, 64], sizes = [16, 32], strides = [1, 1]} : vector<16x96xf32> to vector<16x32xf32>
    %172 = vector.shape_cast %169 : vector<16x32xf32> to vector<2x8x32xf32>
    %173 = vector.shape_cast %170 : vector<16x32xf32> to vector<2x8x32xf32>
    %174 = vector.shape_cast %171 : vector<16x32xf32> to vector<2x8x32xf32>
    %175 = vector.extract_strided_slice %172 {offsets = [0, 0, 0], sizes = [2, 8, 8], strides = [1, 1, 1]} : vector<2x8x32xf32> to vector<2x8x8xf32>
    %176 = vector.extract_strided_slice %173 {offsets = [0, 0, 0], sizes = [2, 8, 8], strides = [1, 1, 1]} : vector<2x8x32xf32> to vector<2x8x8xf32>
    %177 = vector.extract_strided_slice %174 {offsets = [0, 0, 0], sizes = [2, 8, 8], strides = [1, 1, 1]} : vector<2x8x32xf32> to vector<2x8x8xf32>
    "tpu.trace_start"() <{level = 10 : i32, message = "bqd,bkd->bqk"}> : () -> ()
    %cst_71 = arith.constant dense<0.000000e+00> : vector<2x8x8xf32>
    %178 = tpu.matmul %175, %176, %cst_71 {dimension_numbers = #tpu.dot_dimension_numbers<[2], [2], [1], [1], [0, 0, 0, 1, 1, 1], [0], [0]>} : vector<2x8x8xf32>, vector<2x8x8xf32>, vector<2x8x8xf32> -> vector<2x8x8xf32>
    "tpu.trace_stop"() : () -> ()
    %cst_72 = arith.constant dense<0xFF800000> : vector<2x8xf32>
    %179 = vector.multi_reduction <maximumf>, %178, %cst_72 [2] : vector<2x8x8xf32> to vector<2x8xf32>
    %180 = vector.shape_cast %179 : vector<2x8xf32> to vector<2x8x1xf32>
    %181 = vector.broadcast %180 : vector<2x8x1xf32> to vector<2x8x8xf32>
    %182 = arith.subf %178, %181 : vector<2x8x8xf32>
    %183 = math.exp %182 : vector<2x8x8xf32>
    %cst_73 = arith.constant dense<0.000000e+00> : vector<2x8xf32>
    %184 = vector.multi_reduction <add>, %183, %cst_73 [2] : vector<2x8x8xf32> to vector<2x8xf32>
    %185 = vector.shape_cast %184 : vector<2x8xf32> to vector<2x8x1xf32>
    %186 = vector.broadcast %185 : vector<2x8x1xf32> to vector<2x8x8xf32>
    %187 = arith.divf %183, %186 : vector<2x8x8xf32>
    "tpu.trace_start"() <{level = 10 : i32, message = "bqk,bkd->bqd"}> : () -> ()
    %cst_74 = arith.constant dense<0.000000e+00> : vector<2x8x8xf32>
    %188 = tpu.matmul %187, %177, %cst_74 {dimension_numbers = #tpu.dot_dimension_numbers<[2], [1], [1], [2], [0, 0, 0, 1, 1, 2], [0], [0]>} : vector<2x8x8xf32>, vector<2x8x8xf32>, vector<2x8x8xf32> -> vector<2x8x8xf32>
    "tpu.trace_stop"() : () -> ()
    %189 = vector.extract_strided_slice %172 {offsets = [0, 0, 8], sizes = [2, 8, 8], strides = [1, 1, 1]} : vector<2x8x32xf32> to vector<2x8x8xf32>
    %190 = vector.extract_strided_slice %173 {offsets = [0, 0, 8], sizes = [2, 8, 8], strides = [1, 1, 1]} : vector<2x8x32xf32> to vector<2x8x8xf32>
    %191 = vector.extract_strided_slice %174 {offsets = [0, 0, 8], sizes = [2, 8, 8], strides = [1, 1, 1]} : vector<2x8x32xf32> to vector<2x8x8xf32>
    "tpu.trace_start"() <{level = 10 : i32, message = "bqd,bkd->bqk"}> : () -> ()
    %cst_75 = arith.constant dense<0.000000e+00> : vector<2x8x8xf32>
    %192 = tpu.matmul %189, %190, %cst_75 {dimension_numbers = #tpu.dot_dimension_numbers<[2], [2], [1], [1], [0, 0, 0, 1, 1, 1], [0], [0]>} : vector<2x8x8xf32>, vector<2x8x8xf32>, vector<2x8x8xf32> -> vector<2x8x8xf32>
    "tpu.trace_stop"() : () -> ()
    %cst_76 = arith.constant dense<0xFF800000> : vector<2x8xf32>
    %193 = vector.multi_reduction <maximumf>, %192, %cst_76 [2] : vector<2x8x8xf32> to vector<2x8xf32>
    %194 = vector.shape_cast %193 : vector<2x8xf32> to vector<2x8x1xf32>
    %195 = vector.broadcast %194 : vector<2x8x1xf32> to vector<2x8x8xf32>
    %196 = arith.subf %192, %195 : vector<2x8x8xf32>
    %197 = math.exp %196 : vector<2x8x8xf32>
    %cst_77 = arith.constant dense<0.000000e+00> : vector<2x8xf32>
    %198 = vector.multi_reduction <add>, %197, %cst_77 [2] : vector<2x8x8xf32> to vector<2x8xf32>
    %199 = vector.shape_cast %198 : vector<2x8xf32> to vector<2x8x1xf32>
    %200 = vector.broadcast %199 : vector<2x8x1xf32> to vector<2x8x8xf32>
    %201 = arith.divf %197, %200 : vector<2x8x8xf32>
    "tpu.trace_start"() <{level = 10 : i32, message = "bqk,bkd->bqd"}> : () -> ()
    %cst_78 = arith.constant dense<0.000000e+00> : vector<2x8x8xf32>
    %202 = tpu.matmul %201, %191, %cst_78 {dimension_numbers = #tpu.dot_dimension_numbers<[2], [1], [1], [2], [0, 0, 0, 1, 1, 2], [0], [0]>} : vector<2x8x8xf32>, vector<2x8x8xf32>, vector<2x8x8xf32> -> vector<2x8x8xf32>
    "tpu.trace_stop"() : () -> ()
    %203 = vector.extract_strided_slice %172 {offsets = [0, 0, 16], sizes = [2, 8, 8], strides = [1, 1, 1]} : vector<2x8x32xf32> to vector<2x8x8xf32>
    %204 = vector.extract_strided_slice %173 {offsets = [0, 0, 16], sizes = [2, 8, 8], strides = [1, 1, 1]} : vector<2x8x32xf32> to vector<2x8x8xf32>
    %205 = vector.extract_strided_slice %174 {offsets = [0, 0, 16], sizes = [2, 8, 8], strides = [1, 1, 1]} : vector<2x8x32xf32> to vector<2x8x8xf32>
    "tpu.trace_start"() <{level = 10 : i32, message = "bqd,bkd->bqk"}> : () -> ()
    %cst_79 = arith.constant dense<0.000000e+00> : vector<2x8x8xf32>
    %206 = tpu.matmul %203, %204, %cst_79 {dimension_numbers = #tpu.dot_dimension_numbers<[2], [2], [1], [1], [0, 0, 0, 1, 1, 1], [0], [0]>} : vector<2x8x8xf32>, vector<2x8x8xf32>, vector<2x8x8xf32> -> vector<2x8x8xf32>
    "tpu.trace_stop"() : () -> ()
    %cst_80 = arith.constant dense<0xFF800000> : vector<2x8xf32>
    %207 = vector.multi_reduction <maximumf>, %206, %cst_80 [2] : vector<2x8x8xf32> to vector<2x8xf32>
    %208 = vector.shape_cast %207 : vector<2x8xf32> to vector<2x8x1xf32>
    %209 = vector.broadcast %208 : vector<2x8x1xf32> to vector<2x8x8xf32>
    %210 = arith.subf %206, %209 : vector<2x8x8xf32>
    %211 = math.exp %210 : vector<2x8x8xf32>
    %cst_81 = arith.constant dense<0.000000e+00> : vector<2x8xf32>
    %212 = vector.multi_reduction <add>, %211, %cst_81 [2] : vector<2x8x8xf32> to vector<2x8xf32>
    %213 = vector.shape_cast %212 : vector<2x8xf32> to vector<2x8x1xf32>
    %214 = vector.broadcast %213 : vector<2x8x1xf32> to vector<2x8x8xf32>
    %215 = arith.divf %211, %214 : vector<2x8x8xf32>
    "tpu.trace_start"() <{level = 10 : i32, message = "bqk,bkd->bqd"}> : () -> ()
    %cst_82 = arith.constant dense<0.000000e+00> : vector<2x8x8xf32>
    %216 = tpu.matmul %215, %205, %cst_82 {dimension_numbers = #tpu.dot_dimension_numbers<[2], [1], [1], [2], [0, 0, 0, 1, 1, 2], [0], [0]>} : vector<2x8x8xf32>, vector<2x8x8xf32>, vector<2x8x8xf32> -> vector<2x8x8xf32>
    "tpu.trace_stop"() : () -> ()
    %217 = vector.extract_strided_slice %172 {offsets = [0, 0, 24], sizes = [2, 8, 8], strides = [1, 1, 1]} : vector<2x8x32xf32> to vector<2x8x8xf32>
    %218 = vector.extract_strided_slice %173 {offsets = [0, 0, 24], sizes = [2, 8, 8], strides = [1, 1, 1]} : vector<2x8x32xf32> to vector<2x8x8xf32>
    %219 = vector.extract_strided_slice %174 {offsets = [0, 0, 24], sizes = [2, 8, 8], strides = [1, 1, 1]} : vector<2x8x32xf32> to vector<2x8x8xf32>
    "tpu.trace_start"() <{level = 10 : i32, message = "bqd,bkd->bqk"}> : () -> ()
    %cst_83 = arith.constant dense<0.000000e+00> : vector<2x8x8xf32>
    %220 = tpu.matmul %217, %218, %cst_83 {dimension_numbers = #tpu.dot_dimension_numbers<[2], [2], [1], [1], [0, 0, 0, 1, 1, 1], [0], [0]>} : vector<2x8x8xf32>, vector<2x8x8xf32>, vector<2x8x8xf32> -> vector<2x8x8xf32>
    "tpu.trace_stop"() : () -> ()
    %cst_84 = arith.constant dense<0xFF800000> : vector<2x8xf32>
    %221 = vector.multi_reduction <maximumf>, %220, %cst_84 [2] : vector<2x8x8xf32> to vector<2x8xf32>
    %222 = vector.shape_cast %221 : vector<2x8xf32> to vector<2x8x1xf32>
    %223 = vector.broadcast %222 : vector<2x8x1xf32> to vector<2x8x8xf32>
    %224 = arith.subf %220, %223 : vector<2x8x8xf32>
    %225 = math.exp %224 : vector<2x8x8xf32>
    %cst_85 = arith.constant dense<0.000000e+00> : vector<2x8xf32>
    %226 = vector.multi_reduction <add>, %225, %cst_85 [2] : vector<2x8x8xf32> to vector<2x8xf32>
    %227 = vector.shape_cast %226 : vector<2x8xf32> to vector<2x8x1xf32>
    %228 = vector.broadcast %227 : vector<2x8x1xf32> to vector<2x8x8xf32>
    %229 = arith.divf %225, %228 : vector<2x8x8xf32>
    "tpu.trace_start"() <{level = 10 : i32, message = "bqk,bkd->bqd"}> : () -> ()
    %cst_86 = arith.constant dense<0.000000e+00> : vector<2x8x8xf32>
    %230 = tpu.matmul %229, %219, %cst_86 {dimension_numbers = #tpu.dot_dimension_numbers<[2], [1], [1], [2], [0, 0, 0, 1, 1, 2], [0], [0]>} : vector<2x8x8xf32>, vector<2x8x8xf32>, vector<2x8x8xf32> -> vector<2x8x8xf32>
    "tpu.trace_stop"() : () -> ()
    %231 = tpu.concatenate %188, %202, %216, %230 in 2 : vector<2x8x8xf32>, vector<2x8x8xf32>, vector<2x8x8xf32>, vector<2x8x8xf32> -> vector<2x8x32xf32>
    %232 = vector.shape_cast %231 : vector<2x8x32xf32> to vector<16x32xf32>
    %c0_87 = arith.constant 0 : index
    %c0_88 = arith.constant 0 : index
    %233 = vector.load %arg18[%c0_87, %c0_88] : memref<32x32xf32, #tpu.memory_space<vmem>>, vector<32x32xf32>
    %cst_89 = arith.constant dense<0.000000e+00> : vector<16x32xf32>
    %234 = tpu.matmul %232, %233, %cst_89 {dimension_numbers = #tpu.dot_dimension_numbers<[1], [0], [0], [1], [0, 0, 1, 1], [], []>} : vector<16x32xf32>, vector<32x32xf32>, vector<16x32xf32> -> vector<16x32xf32>
    %c0_90 = arith.constant 0 : index
    %c0_91 = arith.constant 0 : index
    %235 = vector.load %arg19[%c0_90, %c0_91] : memref<1x32xf32, #tpu.memory_space<vmem>>, vector<1x32xf32>
    %236 = vector.broadcast %235 : vector<1x32xf32> to vector<16x32xf32>
    %237 = arith.addf %234, %236 : vector<16x32xf32>
    %238 = arith.addf %1, %237 : vector<16x32xf32>
    %cst_92 = arith.constant dense<0.000000e+00> : vector<16xf32>
    %239 = vector.multi_reduction <add>, %238, %cst_92 [1] : vector<16x32xf32> to vector<16xf32>
    %240 = vector.shape_cast %239 : vector<16xf32> to vector<16x1xf32>
    %cst_93 = arith.constant 3.200000e+01 : f32
    %241 = vector.broadcast %cst_93 : f32 to vector<16x1xf32>
    %242 = arith.divf %240, %241 : vector<16x1xf32>
    %243 = vector.broadcast %242 : vector<16x1xf32> to vector<16x32xf32>
    %244 = arith.subf %238, %243 : vector<16x32xf32>
    %245 = arith.mulf %244, %244 : vector<16x32xf32>
    %cst_94 = arith.constant dense<0.000000e+00> : vector<16xf32>
    %246 = vector.multi_reduction <add>, %245, %cst_94 [1] : vector<16x32xf32> to vector<16xf32>
    %247 = vector.shape_cast %246 : vector<16xf32> to vector<16x1xf32>
    %cst_95 = arith.constant 3.200000e+01 : f32
    %248 = vector.broadcast %cst_95 : f32 to vector<16x1xf32>
    %249 = arith.divf %247, %248 : vector<16x1xf32>
    %250 = vector.broadcast %242 : vector<16x1xf32> to vector<16x32xf32>
    %251 = arith.subf %238, %250 : vector<16x32xf32>
    %cst_96 = arith.constant 9.99999974E-6 : f32
    %252 = vector.broadcast %cst_96 : f32 to vector<16x1xf32>
    %253 = arith.addf %249, %252 : vector<16x1xf32>
    %254 = math.rsqrt %253 : vector<16x1xf32>
    %255 = vector.broadcast %254 : vector<16x1xf32> to vector<16x32xf32>
    %256 = arith.mulf %251, %255 : vector<16x32xf32>
    %c0_97 = arith.constant 0 : index
    %c0_98 = arith.constant 0 : index
    %257 = vector.load %arg20[%c0_97, %c0_98] : memref<1x32xf32, #tpu.memory_space<vmem>>, vector<1x32xf32>
    %258 = vector.broadcast %257 : vector<1x32xf32> to vector<16x32xf32>
    %259 = arith.mulf %256, %258 : vector<16x32xf32>
    %c0_99 = arith.constant 0 : index
    %c0_100 = arith.constant 0 : index
    %260 = vector.load %arg21[%c0_99, %c0_100] : memref<1x32xf32, #tpu.memory_space<vmem>>, vector<1x32xf32>
    %261 = vector.broadcast %260 : vector<1x32xf32> to vector<16x32xf32>
    %262 = arith.addf %259, %261 : vector<16x32xf32>
    %c0_101 = arith.constant 0 : index
    %c0_102 = arith.constant 0 : index
    %263 = vector.load %arg22[%c0_101, %c0_102] : memref<32x32xf32, #tpu.memory_space<vmem>>, vector<32x32xf32>
    %cst_103 = arith.constant dense<0.000000e+00> : vector<16x32xf32>
    %264 = tpu.matmul %262, %263, %cst_103 {dimension_numbers = #tpu.dot_dimension_numbers<[1], [0], [0], [1], [0, 0, 1, 1], [], []>} : vector<16x32xf32>, vector<32x32xf32>, vector<16x32xf32> -> vector<16x32xf32>
    %c0_104 = arith.constant 0 : index
    %c0_105 = arith.constant 0 : index
    %265 = vector.load %arg23[%c0_104, %c0_105] : memref<1x32xf32, #tpu.memory_space<vmem>>, vector<1x32xf32>
    %266 = vector.broadcast %265 : vector<1x32xf32> to vector<16x32xf32>
    %267 = arith.addf %264, %266 : vector<16x32xf32>
    %c0_106 = arith.constant 0 : index
    %c0_107 = arith.constant 0 : index
    %268 = vector.load %arg24[%c0_106, %c0_107] : memref<32x64xf32, #tpu.memory_space<vmem>>, vector<32x64xf32>
    %cst_108 = arith.constant dense<0.000000e+00> : vector<16x64xf32>
    %269 = tpu.matmul %163, %268, %cst_108 {dimension_numbers = #tpu.dot_dimension_numbers<[1], [0], [0], [1], [0, 0, 1, 1], [], []>} : vector<16x32xf32>, vector<32x64xf32>, vector<16x64xf32> -> vector<16x64xf32>
    %c0_109 = arith.constant 0 : index
    %c0_110 = arith.constant 0 : index
    %270 = vector.load %arg25[%c0_109, %c0_110] : memref<1x64xf32, #tpu.memory_space<vmem>>, vector<1x64xf32>
    %271 = vector.broadcast %270 : vector<1x64xf32> to vector<16x64xf32>
    %272 = arith.addf %269, %271 : vector<16x64xf32>
    %273 = vector.extract_strided_slice %272 {offsets = [0, 0], sizes = [16, 32], strides = [1, 1]} : vector<16x64xf32> to vector<16x32xf32>
    %274 = vector.extract_strided_slice %272 {offsets = [0, 32], sizes = [16, 32], strides = [1, 1]} : vector<16x64xf32> to vector<16x32xf32>
    %275 = vector.shape_cast %267 : vector<16x32xf32> to vector<2x8x32xf32>
    %276 = vector.shape_cast %273 : vector<16x32xf32> to vector<2x8x32xf32>
    %277 = vector.shape_cast %274 : vector<16x32xf32> to vector<2x8x32xf32>
    %278 = vector.extract_strided_slice %275 {offsets = [0, 0, 0], sizes = [2, 8, 8], strides = [1, 1, 1]} : vector<2x8x32xf32> to vector<2x8x8xf32>
    %279 = vector.extract_strided_slice %276 {offsets = [0, 0, 0], sizes = [2, 8, 8], strides = [1, 1, 1]} : vector<2x8x32xf32> to vector<2x8x8xf32>
    %280 = vector.extract_strided_slice %277 {offsets = [0, 0, 0], sizes = [2, 8, 8], strides = [1, 1, 1]} : vector<2x8x32xf32> to vector<2x8x8xf32>
    "tpu.trace_start"() <{level = 10 : i32, message = "bqd,bkd->bqk"}> : () -> ()
    %cst_111 = arith.constant dense<0.000000e+00> : vector<2x8x8xf32>
    %281 = tpu.matmul %278, %279, %cst_111 {dimension_numbers = #tpu.dot_dimension_numbers<[2], [2], [1], [1], [0, 0, 0, 1, 1, 1], [0], [0]>} : vector<2x8x8xf32>, vector<2x8x8xf32>, vector<2x8x8xf32> -> vector<2x8x8xf32>
    "tpu.trace_stop"() : () -> ()
    %cst_112 = arith.constant dense<0xFF800000> : vector<2x8xf32>
    %282 = vector.multi_reduction <maximumf>, %281, %cst_112 [2] : vector<2x8x8xf32> to vector<2x8xf32>
    %283 = vector.shape_cast %282 : vector<2x8xf32> to vector<2x8x1xf32>
    %284 = vector.broadcast %283 : vector<2x8x1xf32> to vector<2x8x8xf32>
    %285 = arith.subf %281, %284 : vector<2x8x8xf32>
    %286 = math.exp %285 : vector<2x8x8xf32>
    %cst_113 = arith.constant dense<0.000000e+00> : vector<2x8xf32>
    %287 = vector.multi_reduction <add>, %286, %cst_113 [2] : vector<2x8x8xf32> to vector<2x8xf32>
    %288 = vector.shape_cast %287 : vector<2x8xf32> to vector<2x8x1xf32>
    %289 = vector.broadcast %288 : vector<2x8x1xf32> to vector<2x8x8xf32>
    %290 = arith.divf %286, %289 : vector<2x8x8xf32>
    "tpu.trace_start"() <{level = 10 : i32, message = "bqk,bkd->bqd"}> : () -> ()
    %cst_114 = arith.constant dense<0.000000e+00> : vector<2x8x8xf32>
    %291 = tpu.matmul %290, %280, %cst_114 {dimension_numbers = #tpu.dot_dimension_numbers<[2], [1], [1], [2], [0, 0, 0, 1, 1, 2], [0], [0]>} : vector<2x8x8xf32>, vector<2x8x8xf32>, vector<2x8x8xf32> -> vector<2x8x8xf32>
    "tpu.trace_stop"() : () -> ()
    %292 = vector.extract_strided_slice %275 {offsets = [0, 0, 8], sizes = [2, 8, 8], strides = [1, 1, 1]} : vector<2x8x32xf32> to vector<2x8x8xf32>
    %293 = vector.extract_strided_slice %276 {offsets = [0, 0, 8], sizes = [2, 8, 8], strides = [1, 1, 1]} : vector<2x8x32xf32> to vector<2x8x8xf32>
    %294 = vector.extract_strided_slice %277 {offsets = [0, 0, 8], sizes = [2, 8, 8], strides = [1, 1, 1]} : vector<2x8x32xf32> to vector<2x8x8xf32>
    "tpu.trace_start"() <{level = 10 : i32, message = "bqd,bkd->bqk"}> : () -> ()
    %cst_115 = arith.constant dense<0.000000e+00> : vector<2x8x8xf32>
    %295 = tpu.matmul %292, %293, %cst_115 {dimension_numbers = #tpu.dot_dimension_numbers<[2], [2], [1], [1], [0, 0, 0, 1, 1, 1], [0], [0]>} : vector<2x8x8xf32>, vector<2x8x8xf32>, vector<2x8x8xf32> -> vector<2x8x8xf32>
    "tpu.trace_stop"() : () -> ()
    %cst_116 = arith.constant dense<0xFF800000> : vector<2x8xf32>
    %296 = vector.multi_reduction <maximumf>, %295, %cst_116 [2] : vector<2x8x8xf32> to vector<2x8xf32>
    %297 = vector.shape_cast %296 : vector<2x8xf32> to vector<2x8x1xf32>
    %298 = vector.broadcast %297 : vector<2x8x1xf32> to vector<2x8x8xf32>
    %299 = arith.subf %295, %298 : vector<2x8x8xf32>
    %300 = math.exp %299 : vector<2x8x8xf32>
    %cst_117 = arith.constant dense<0.000000e+00> : vector<2x8xf32>
    %301 = vector.multi_reduction <add>, %300, %cst_117 [2] : vector<2x8x8xf32> to vector<2x8xf32>
    %302 = vector.shape_cast %301 : vector<2x8xf32> to vector<2x8x1xf32>
    %303 = vector.broadcast %302 : vector<2x8x1xf32> to vector<2x8x8xf32>
    %304 = arith.divf %300, %303 : vector<2x8x8xf32>
    "tpu.trace_start"() <{level = 10 : i32, message = "bqk,bkd->bqd"}> : () -> ()
    %cst_118 = arith.constant dense<0.000000e+00> : vector<2x8x8xf32>
    %305 = tpu.matmul %304, %294, %cst_118 {dimension_numbers = #tpu.dot_dimension_numbers<[2], [1], [1], [2], [0, 0, 0, 1, 1, 2], [0], [0]>} : vector<2x8x8xf32>, vector<2x8x8xf32>, vector<2x8x8xf32> -> vector<2x8x8xf32>
    "tpu.trace_stop"() : () -> ()
    %306 = vector.extract_strided_slice %275 {offsets = [0, 0, 16], sizes = [2, 8, 8], strides = [1, 1, 1]} : vector<2x8x32xf32> to vector<2x8x8xf32>
    %307 = vector.extract_strided_slice %276 {offsets = [0, 0, 16], sizes = [2, 8, 8], strides = [1, 1, 1]} : vector<2x8x32xf32> to vector<2x8x8xf32>
    %308 = vector.extract_strided_slice %277 {offsets = [0, 0, 16], sizes = [2, 8, 8], strides = [1, 1, 1]} : vector<2x8x32xf32> to vector<2x8x8xf32>
    "tpu.trace_start"() <{level = 10 : i32, message = "bqd,bkd->bqk"}> : () -> ()
    %cst_119 = arith.constant dense<0.000000e+00> : vector<2x8x8xf32>
    %309 = tpu.matmul %306, %307, %cst_119 {dimension_numbers = #tpu.dot_dimension_numbers<[2], [2], [1], [1], [0, 0, 0, 1, 1, 1], [0], [0]>} : vector<2x8x8xf32>, vector<2x8x8xf32>, vector<2x8x8xf32> -> vector<2x8x8xf32>
    "tpu.trace_stop"() : () -> ()
    %cst_120 = arith.constant dense<0xFF800000> : vector<2x8xf32>
    %310 = vector.multi_reduction <maximumf>, %309, %cst_120 [2] : vector<2x8x8xf32> to vector<2x8xf32>
    %311 = vector.shape_cast %310 : vector<2x8xf32> to vector<2x8x1xf32>
    %312 = vector.broadcast %311 : vector<2x8x1xf32> to vector<2x8x8xf32>
    %313 = arith.subf %309, %312 : vector<2x8x8xf32>
    %314 = math.exp %313 : vector<2x8x8xf32>
    %cst_121 = arith.constant dense<0.000000e+00> : vector<2x8xf32>
    %315 = vector.multi_reduction <add>, %314, %cst_121 [2] : vector<2x8x8xf32> to vector<2x8xf32>
    %316 = vector.shape_cast %315 : vector<2x8xf32> to vector<2x8x1xf32>
    %317 = vector.broadcast %316 : vector<2x8x1xf32> to vector<2x8x8xf32>
    %318 = arith.divf %314, %317 : vector<2x8x8xf32>
    "tpu.trace_start"() <{level = 10 : i32, message = "bqk,bkd->bqd"}> : () -> ()
    %cst_122 = arith.constant dense<0.000000e+00> : vector<2x8x8xf32>
    %319 = tpu.matmul %318, %308, %cst_122 {dimension_numbers = #tpu.dot_dimension_numbers<[2], [1], [1], [2], [0, 0, 0, 1, 1, 2], [0], [0]>} : vector<2x8x8xf32>, vector<2x8x8xf32>, vector<2x8x8xf32> -> vector<2x8x8xf32>
    "tpu.trace_stop"() : () -> ()
    %320 = vector.extract_strided_slice %275 {offsets = [0, 0, 24], sizes = [2, 8, 8], strides = [1, 1, 1]} : vector<2x8x32xf32> to vector<2x8x8xf32>
    %321 = vector.extract_strided_slice %276 {offsets = [0, 0, 24], sizes = [2, 8, 8], strides = [1, 1, 1]} : vector<2x8x32xf32> to vector<2x8x8xf32>
    %322 = vector.extract_strided_slice %277 {offsets = [0, 0, 24], sizes = [2, 8, 8], strides = [1, 1, 1]} : vector<2x8x32xf32> to vector<2x8x8xf32>
    "tpu.trace_start"() <{level = 10 : i32, message = "bqd,bkd->bqk"}> : () -> ()
    %cst_123 = arith.constant dense<0.000000e+00> : vector<2x8x8xf32>
    %323 = tpu.matmul %320, %321, %cst_123 {dimension_numbers = #tpu.dot_dimension_numbers<[2], [2], [1], [1], [0, 0, 0, 1, 1, 1], [0], [0]>} : vector<2x8x8xf32>, vector<2x8x8xf32>, vector<2x8x8xf32> -> vector<2x8x8xf32>
    "tpu.trace_stop"() : () -> ()
    %cst_124 = arith.constant dense<0xFF800000> : vector<2x8xf32>
    %324 = vector.multi_reduction <maximumf>, %323, %cst_124 [2] : vector<2x8x8xf32> to vector<2x8xf32>
    %325 = vector.shape_cast %324 : vector<2x8xf32> to vector<2x8x1xf32>
    %326 = vector.broadcast %325 : vector<2x8x1xf32> to vector<2x8x8xf32>
    %327 = arith.subf %323, %326 : vector<2x8x8xf32>
    %328 = math.exp %327 : vector<2x8x8xf32>
    %cst_125 = arith.constant dense<0.000000e+00> : vector<2x8xf32>
    %329 = vector.multi_reduction <add>, %328, %cst_125 [2] : vector<2x8x8xf32> to vector<2x8xf32>
    %330 = vector.shape_cast %329 : vector<2x8xf32> to vector<2x8x1xf32>
    %331 = vector.broadcast %330 : vector<2x8x1xf32> to vector<2x8x8xf32>
    %332 = arith.divf %328, %331 : vector<2x8x8xf32>
    "tpu.trace_start"() <{level = 10 : i32, message = "bqk,bkd->bqd"}> : () -> ()
    %cst_126 = arith.constant dense<0.000000e+00> : vector<2x8x8xf32>
    %333 = tpu.matmul %332, %322, %cst_126 {dimension_numbers = #tpu.dot_dimension_numbers<[2], [1], [1], [2], [0, 0, 0, 1, 1, 2], [0], [0]>} : vector<2x8x8xf32>, vector<2x8x8xf32>, vector<2x8x8xf32> -> vector<2x8x8xf32>
    "tpu.trace_stop"() : () -> ()
    %334 = tpu.concatenate %291, %305, %319, %333 in 2 : vector<2x8x8xf32>, vector<2x8x8xf32>, vector<2x8x8xf32>, vector<2x8x8xf32> -> vector<2x8x32xf32>
    %335 = vector.shape_cast %334 : vector<2x8x32xf32> to vector<16x32xf32>
    %c0_127 = arith.constant 0 : index
    %c0_128 = arith.constant 0 : index
    %336 = vector.load %arg26[%c0_127, %c0_128] : memref<32x32xf32, #tpu.memory_space<vmem>>, vector<32x32xf32>
    %cst_129 = arith.constant dense<0.000000e+00> : vector<16x32xf32>
    %337 = tpu.matmul %335, %336, %cst_129 {dimension_numbers = #tpu.dot_dimension_numbers<[1], [0], [0], [1], [0, 0, 1, 1], [], []>} : vector<16x32xf32>, vector<32x32xf32>, vector<16x32xf32> -> vector<16x32xf32>
    %c0_130 = arith.constant 0 : index
    %c0_131 = arith.constant 0 : index
    %338 = vector.load %arg27[%c0_130, %c0_131] : memref<1x32xf32, #tpu.memory_space<vmem>>, vector<1x32xf32>
    %339 = vector.broadcast %338 : vector<1x32xf32> to vector<16x32xf32>
    %340 = arith.addf %337, %339 : vector<16x32xf32>
    %341 = arith.addf %262, %340 : vector<16x32xf32>
    %cst_132 = arith.constant dense<0.000000e+00> : vector<16xf32>
    %342 = vector.multi_reduction <add>, %341, %cst_132 [1] : vector<16x32xf32> to vector<16xf32>
    %343 = vector.shape_cast %342 : vector<16xf32> to vector<16x1xf32>
    %cst_133 = arith.constant 3.200000e+01 : f32
    %344 = vector.broadcast %cst_133 : f32 to vector<16x1xf32>
    %345 = arith.divf %343, %344 : vector<16x1xf32>
    %346 = vector.broadcast %345 : vector<16x1xf32> to vector<16x32xf32>
    %347 = arith.subf %341, %346 : vector<16x32xf32>
    %348 = arith.mulf %347, %347 : vector<16x32xf32>
    %cst_134 = arith.constant dense<0.000000e+00> : vector<16xf32>
    %349 = vector.multi_reduction <add>, %348, %cst_134 [1] : vector<16x32xf32> to vector<16xf32>
    %350 = vector.shape_cast %349 : vector<16xf32> to vector<16x1xf32>
    %cst_135 = arith.constant 3.200000e+01 : f32
    %351 = vector.broadcast %cst_135 : f32 to vector<16x1xf32>
    %352 = arith.divf %350, %351 : vector<16x1xf32>
    %353 = vector.broadcast %345 : vector<16x1xf32> to vector<16x32xf32>
    %354 = arith.subf %341, %353 : vector<16x32xf32>
    %cst_136 = arith.constant 9.99999974E-6 : f32
    %355 = vector.broadcast %cst_136 : f32 to vector<16x1xf32>
    %356 = arith.addf %352, %355 : vector<16x1xf32>
    %357 = math.rsqrt %356 : vector<16x1xf32>
    %358 = vector.broadcast %357 : vector<16x1xf32> to vector<16x32xf32>
    %359 = arith.mulf %354, %358 : vector<16x32xf32>
    %c0_137 = arith.constant 0 : index
    %c0_138 = arith.constant 0 : index
    %360 = vector.load %arg28[%c0_137, %c0_138] : memref<1x32xf32, #tpu.memory_space<vmem>>, vector<1x32xf32>
    %361 = vector.broadcast %360 : vector<1x32xf32> to vector<16x32xf32>
    %362 = arith.mulf %359, %361 : vector<16x32xf32>
    %c0_139 = arith.constant 0 : index
    %c0_140 = arith.constant 0 : index
    %363 = vector.load %arg29[%c0_139, %c0_140] : memref<1x32xf32, #tpu.memory_space<vmem>>, vector<1x32xf32>
    %364 = vector.broadcast %363 : vector<1x32xf32> to vector<16x32xf32>
    %365 = arith.addf %362, %364 : vector<16x32xf32>
    %366 = arith.truncf %365 : vector<16x32xf32> to vector<16x32xbf16>
    %c0_141 = arith.constant 0 : index
    %c0_142 = arith.constant 0 : index
    %367 = vector.load %arg30[%c0_141, %c0_142] : memref<32x2048xbf16, #tpu.memory_space<vmem>>, vector<32x2048xbf16>
    %cst_143 = arith.constant dense<0.000000e+00> : vector<16x2048xf32>
    %368 = tpu.matmul %366, %367, %cst_143 {dimension_numbers = #tpu.dot_dimension_numbers<[1], [0], [0], [1], [0, 0, 1, 1], [], []>} : vector<16x32xbf16>, vector<32x2048xbf16>, vector<16x2048xf32> -> vector<16x2048xf32>
    %c0_144 = arith.constant 0 : index
    %c0_145 = arith.constant 0 : index
    %369 = vector.load %arg31[%c0_144, %c0_145] : memref<1x2048xf32, #tpu.memory_space<vmem>>, vector<1x2048xf32>
    %370 = vector.broadcast %369 : vector<1x2048xf32> to vector<16x2048xf32>
    %371 = arith.addf %368, %370 : vector<16x2048xf32>
    %cst_146 = arith.constant 0.000000e+00 : f32
    %372 = vector.broadcast %cst_146 : f32 to vector<16x2048xf32>
    %373 = arith.maximumf %371, %372 : vector<16x2048xf32>
    %374 = arith.truncf %373 : vector<16x2048xf32> to vector<16x2048xbf16>
    %c0_147 = arith.constant 0 : index
    %c0_148 = arith.constant 0 : index
    %375 = vector.load %arg32[%c0_147, %c0_148] : memref<2048x32xbf16, #tpu.memory_space<vmem>>, vector<2048x32xbf16>
    %cst_149 = arith.constant dense<0.000000e+00> : vector<16x32xf32>
    %376 = tpu.matmul %374, %375, %cst_149 {dimension_numbers = #tpu.dot_dimension_numbers<[1], [0], [0], [1], [0, 0, 1, 1], [], []>} : vector<16x2048xbf16>, vector<2048x32xbf16>, vector<16x32xf32> -> vector<16x32xf32>
    %c0_150 = arith.constant 0 : index
    %c0_151 = arith.constant 0 : index
    %377 = vector.load %arg33[%c0_150, %c0_151] : memref<1x32xf32, #tpu.memory_space<vmem>>, vector<1x32xf32>
    %378 = vector.broadcast %377 : vector<1x32xf32> to vector<16x32xf32>
    %379 = arith.addf %376, %378 : vector<16x32xf32>
    %380 = arith.addf %365, %379 : vector<16x32xf32>
    %cst_152 = arith.constant dense<0.000000e+00> : vector<16xf32>
    %381 = vector.multi_reduction <add>, %380, %cst_152 [1] : vector<16x32xf32> to vector<16xf32>
    %382 = vector.shape_cast %381 : vector<16xf32> to vector<16x1xf32>
    %cst_153 = arith.constant 3.200000e+01 : f32
    %383 = vector.broadcast %cst_153 : f32 to vector<16x1xf32>
    %384 = arith.divf %382, %383 : vector<16x1xf32>
    %385 = vector.broadcast %384 : vector<16x1xf32> to vector<16x32xf32>
    %386 = arith.subf %380, %385 : vector<16x32xf32>
    %387 = arith.mulf %386, %386 : vector<16x32xf32>
    %cst_154 = arith.constant dense<0.000000e+00> : vector<16xf32>
    %388 = vector.multi_reduction <add>, %387, %cst_154 [1] : vector<16x32xf32> to vector<16xf32>
    %389 = vector.shape_cast %388 : vector<16xf32> to vector<16x1xf32>
    %cst_155 = arith.constant 3.200000e+01 : f32
    %390 = vector.broadcast %cst_155 : f32 to vector<16x1xf32>
    %391 = arith.divf %389, %390 : vector<16x1xf32>
    %392 = vector.broadcast %384 : vector<16x1xf32> to vector<16x32xf32>
    %393 = arith.subf %380, %392 : vector<16x32xf32>
    %cst_156 = arith.constant 9.99999974E-6 : f32
    %394 = vector.broadcast %cst_156 : f32 to vector<16x1xf32>
    %395 = arith.addf %391, %394 : vector<16x1xf32>
    %396 = math.rsqrt %395 : vector<16x1xf32>
    %397 = vector.broadcast %396 : vector<16x1xf32> to vector<16x32xf32>
    %398 = arith.mulf %393, %397 : vector<16x32xf32>
    %c0_157 = arith.constant 0 : index
    %c0_158 = arith.constant 0 : index
    %399 = vector.load %arg34[%c0_157, %c0_158] : memref<1x32xf32, #tpu.memory_space<vmem>>, vector<1x32xf32>
    %400 = vector.broadcast %399 : vector<1x32xf32> to vector<16x32xf32>
    %401 = arith.mulf %398, %400 : vector<16x32xf32>
    %c0_159 = arith.constant 0 : index
    %c0_160 = arith.constant 0 : index
    %402 = vector.load %arg35[%c0_159, %c0_160] : memref<1x32xf32, #tpu.memory_space<vmem>>, vector<1x32xf32>
    %403 = vector.broadcast %402 : vector<1x32xf32> to vector<16x32xf32>
    %404 = arith.addf %401, %403 : vector<16x32xf32>
    %cst_161 = arith.constant dense<0.000000e+00> : vector<16xf32>
    %405 = vector.multi_reduction <add>, %404, %cst_161 [1] : vector<16x32xf32> to vector<16xf32>
    %406 = vector.shape_cast %405 : vector<16xf32> to vector<16x1xf32>
    %cst_162 = arith.constant 3.200000e+01 : f32
    %407 = vector.broadcast %cst_162 : f32 to vector<16x1xf32>
    %408 = arith.divf %406, %407 : vector<16x1xf32>
    %409 = vector.broadcast %408 : vector<16x1xf32> to vector<16x32xf32>
    %410 = arith.subf %404, %409 : vector<16x32xf32>
    %411 = arith.mulf %410, %410 : vector<16x32xf32>
    %cst_163 = arith.constant dense<0.000000e+00> : vector<16xf32>
    %412 = vector.multi_reduction <add>, %411, %cst_163 [1] : vector<16x32xf32> to vector<16xf32>
    %413 = vector.shape_cast %412 : vector<16xf32> to vector<16x1xf32>
    %cst_164 = arith.constant 3.200000e+01 : f32
    %414 = vector.broadcast %cst_164 : f32 to vector<16x1xf32>
    %415 = arith.divf %413, %414 : vector<16x1xf32>
    %416 = vector.broadcast %408 : vector<16x1xf32> to vector<16x32xf32>
    %417 = arith.subf %404, %416 : vector<16x32xf32>
    %cst_165 = arith.constant 9.99999974E-6 : f32
    %418 = vector.broadcast %cst_165 : f32 to vector<16x1xf32>
    %419 = arith.addf %415, %418 : vector<16x1xf32>
    %420 = math.rsqrt %419 : vector<16x1xf32>
    %421 = vector.broadcast %420 : vector<16x1xf32> to vector<16x32xf32>
    %422 = arith.mulf %417, %421 : vector<16x32xf32>
    %c0_166 = arith.constant 0 : index
    %c0_167 = arith.constant 0 : index
    %423 = vector.load %arg36[%c0_166, %c0_167] : memref<1x32xf32, #tpu.memory_space<vmem>>, vector<1x32xf32>
    %424 = vector.broadcast %423 : vector<1x32xf32> to vector<16x32xf32>
    %425 = arith.mulf %422, %424 : vector<16x32xf32>
    %c0_168 = arith.constant 0 : index
    %c0_169 = arith.constant 0 : index
    %426 = vector.load %arg37[%c0_168, %c0_169] : memref<1x32xf32, #tpu.memory_space<vmem>>, vector<1x32xf32>
    %427 = vector.broadcast %426 : vector<1x32xf32> to vector<16x32xf32>
    %428 = arith.addf %425, %427 : vector<16x32xf32>
    %c0_170 = arith.constant 0 : index
    %c0_171 = arith.constant 0 : index
    %429 = vector.load %arg38[%c0_170, %c0_171] : memref<16x32xf32, #tpu.memory_space<vmem>>, vector<16x32xf32>
    tpu.vector_store %arg38[%c0_170, %c0_171], %428 {strides = array<i32>} : memref<16x32xf32, #tpu.memory_space<vmem>>, vector<16x32xf32>,
    return
  }
}

</mosaic_0001>

<llo_original>
// kernel: spiral_attention_forward.1
$region0: #{spiral_attention_forward.1}
  #allocation0 [shape = 'u32[]', space=smem, size = 0x4, offset = 0x4, fixed_abs, tag = 'smem constant byte address 0x4 - core index']
  #allocation1 [shape = 'u32[144,128]{1,0:T(1,128)}', space=vmem, size = 0x12000, scoped, tag = 'internal scratch']
  %s0 = inlined_call_operand.smem [shape: u32[39], index: -1, kind: input, shape index: {}]
  %s1 = sld [smem:[%s0]]
  %s2 = scalar_lea.smem %s0, 1
  %s3 = sld [smem:[%s2]]
  %s4 = scalar_lea.smem %s0, 2
  %s5 = sld [smem:[%s4]]
  %s6 = scalar_lea.smem %s0, 3
  %s7 = sld [smem:[%s6]]
  %s8 = scalar_lea.smem %s0, 4
  %s9 = sld [smem:[%s8]]
  %s10 = scalar_lea.smem %s0, 5
  %s11 = sld [smem:[%s10]]
  %s12 = scalar_lea.smem %s0, 6
  %s13 = sld [smem:[%s12]]
  %s14 = scalar_lea.smem %s0, 7
  %s15 = sld [smem:[%s14]]
  %s16 = scalar_lea.smem %s0, 8
  %s17 = sld [smem:[%s16]]
  %s18 = scalar_lea.smem %s0, 9
  %s19 = sld [smem:[%s18]]
  %s20 = scalar_lea.smem %s0, 10
  %s21 = sld [smem:[%s20]]
  %s22 = scalar_lea.smem %s0, 11
  %s23 = sld [smem:[%s22]]
  %s24 = scalar_lea.smem %s0, 12
  %s25 = sld [smem:[%s24]]
  %s26 = scalar_lea.smem %s0, 13
  %s27 = sld [smem:[%s26]]
  %s28 = scalar_lea.smem %s0, 14
  %s29 = sld [smem:[%s28]]
  %s30 = scalar_lea.smem %s0, 15
  %s31 = sld [smem:[%s30]]
  %s32 = scalar_lea.smem %s0, 16
  %s33 = sld [smem:[%s32]]
  %s34 = scalar_lea.smem %s0, 17
  %s35 = sld [smem:[%s34]]
  %s36 = scalar_lea.smem %s0, 18
  %s37 = sld [smem:[%s36]]
  %s38 = scalar_lea.smem %s0, 19
  %s39 = sld [smem:[%s38]]
  %s40 = scalar_lea.smem %s0, 20
  %s41 = sld [smem:[%s40]]
  %s42 = scalar_lea.smem %s0, 21
  %s43 = sld [smem:[%s42]]
  %s44 = scalar_lea.smem %s0, 22
  %s45 = sld [smem:[%s44]]
  %s46 = scalar_lea.smem %s0, 23
  %s47 = sld [smem:[%s46]]
  %s48 = scalar_lea.smem %s0, 24
  %s49 = sld [smem:[%s48]]
  %s50 = scalar_lea.smem %s0, 25
  %s51 = sld [smem:[%s50]]
  %s52 = scalar_lea.smem %s0, 26
  %s53 = sld [smem:[%s52]]
  %s54 = scalar_lea.smem %s0, 27
  %s55 = sld [smem:[%s54]]
  %s56 = scalar_lea.smem %s0, 28
  %s57 = sld [smem:[%s56]]
  %s58 = scalar_lea.smem %s0, 29
  %s59 = sld [smem:[%s58]]
  %s60 = scalar_lea.smem %s0, 30
  %s61 = sld [smem:[%s60]]
  %s62 = scalar_lea.smem %s0, 31
  %s63 = sld [smem:[%s62]]
  %s64 = scalar_lea.smem %s0, 32
  %s65 = sld [smem:[%s64]]
  %s66 = scalar_lea.smem %s0, 33
  %s67 = sld [smem:[%s66]]
  %s68 = scalar_lea.smem %s0, 34
  %s69 = sld [smem:[%s68]]
  %s70 = scalar_lea.smem %s0, 35
  %s71 = sld [smem:[%s70]]
  %s72 = scalar_lea.smem %s0, 36
  %s73 = sld [smem:[%s72]]
  %s74 = scalar_lea.smem %s0, 37
  %s75 = sld [smem:[%s74]]
  %s76 = scalar_lea.smem %s0, 38
  %s77 = sld [smem:[%s76]]
  %s78 = sld [smem:[#allocation0]]
  $region162: #{spiral_attention_forward.1} parent=0
    _
  %s80 = ssub.s32 1, %s78
  %s81 = scalar_select 0, %s80, %s78
  // Predicated region
  $region2: #{spiral_attention_forward.1} parent=0 // pred_check
    _
  $region3: #{spiral_attention_forward.1} parent=0 // pred_check_branch
    %83 = sbr.rel (0) target = $region5
  $region4: #{spiral_attention_forward.1} parent=0 // pred_region
    _
  $region5: #{spiral_attention_forward.1} parent=0 // pred_fallthru
    _
  // Predicated region
  $region6: #{spiral_attention_forward.1} parent=0 // pred_check
    _
  $region7: #{spiral_attention_forward.1} parent=0 // pred_check_branch
    %85 = sbr.rel (0) target = $region9
  $region8: #{spiral_attention_forward.1} parent=0 // pred_region
    _
  $region9: #{spiral_attention_forward.1} parent=0 // pred_fallthru
    _
  // Predicated region
  $region10: #{spiral_attention_forward.1} parent=0 // pred_check
    _
  $region11: #{spiral_attention_forward.1} parent=0 // pred_check_branch
    %87 = sbr.rel (0) target = $region13
  $region12: #{spiral_attention_forward.1} parent=0 // pred_region
    _
  $region13: #{spiral_attention_forward.1} parent=0 // pred_fallthru
    _
  // Predicated region
  $region14: #{spiral_attention_forward.1} parent=0 // pred_check
    _
  $region15: #{spiral_attention_forward.1} parent=0 // pred_check_branch
    %89 = sbr.rel (0) target = $region17
  $region16: #{spiral_attention_forward.1} parent=0 // pred_region
    _
  $region17: #{spiral_attention_forward.1} parent=0 // pred_fallthru
    _
  // Predicated region
  $region18: #{spiral_attention_forward.1} parent=0 // pred_check
    _
  $region19: #{spiral_attention_forward.1} parent=0 // pred_check_branch
    %91 = sbr.rel (0) target = $region21
  $region20: #{spiral_attention_forward.1} parent=0 // pred_region
    _
  $region21: #{spiral_attention_forward.1} parent=0 // pred_fallthru
    _
  // Predicated region
  $region22: #{spiral_attention_forward.1} parent=0 // pred_check
    _
  $region23: #{spiral_attention_forward.1} parent=0 // pred_check_branch
    %93 = sbr.rel (0) target = $region25
  $region24: #{spiral_attention_forward.1} parent=0 // pred_region
    _
  $region25: #{spiral_attention_forward.1} parent=0 // pred_fallthru
    _
  // Predicated region
  $region26: #{spiral_attention_forward.1} parent=0 // pred_check
    _
  $region27: #{spiral_attention_forward.1} parent=0 // pred_check_branch
    %95 = sbr.rel (0) target = $region29
  $region28: #{spiral_attention_forward.1} parent=0 // pred_region
    _
  $region29: #{spiral_attention_forward.1} parent=0 // pred_fallthru
    _
  // Predicated region
  $region30: #{spiral_attention_forward.1} parent=0 // pred_check
    _
  $region31: #{spiral_attention_forward.1} parent=0 // pred_check_branch
    %97 = sbr.rel (0) target = $region33
  $region32: #{spiral_attention_forward.1} parent=0 // pred_region
    _
  $region33: #{spiral_attention_forward.1} parent=0 // pred_fallthru
    _
  // Predicated region
  $region34: #{spiral_attention_forward.1} parent=0 // pred_check
    _
  $region35: #{spiral_attention_forward.1} parent=0 // pred_check_branch
    %99 = sbr.rel (0) target = $region37
  $region36: #{spiral_attention_forward.1} parent=0 // pred_region
    _
  $region37: #{spiral_attention_forward.1} parent=0 // pred_fallthru
    _
  // Predicated region
  $region38: #{spiral_attention_forward.1} parent=0 // pred_check
    _
  $region39: #{spiral_attention_forward.1} parent=0 // pred_check_branch
    %101 = sbr.rel (0) target = $region41
  $region40: #{spiral_attention_forward.1} parent=0 // pred_region
    _
  $region41: #{spiral_attention_forward.1} parent=0 // pred_fallthru
    _
  // Predicated region
  $region42: #{spiral_attention_forward.1} parent=0 // pred_check
    _
  $region43: #{spiral_attention_forward.1} parent=0 // pred_check_branch
    %103 = sbr.rel (0) target = $region45
  $region44: #{spiral_attention_forward.1} parent=0 // pred_region
    _
  $region45: #{spiral_attention_forward.1} parent=0 // pred_fallthru
    _
  // Predicated region
  $region46: #{spiral_attention_forward.1} parent=0 // pred_check
    _
  $region47: #{spiral_attention_forward.1} parent=0 // pred_check_branch
    %105 = sbr.rel (0) target = $region49
  $region48: #{spiral_attention_forward.1} parent=0 // pred_region
    _
  $region49: #{spiral_attention_forward.1} parent=0 // pred_fallthru
    _
  // Predicated region
  $region50: #{spiral_attention_forward.1} parent=0 // pred_check
    _
  $region51: #{spiral_attention_forward.1} parent=0 // pred_check_branch
    %107 = sbr.rel (0) target = $region53
  $region52: #{spiral_attention_forward.1} parent=0 // pred_region
    _
  $region53: #{spiral_attention_forward.1} parent=0 // pred_fallthru
    _
  // Predicated region
  $region54: #{spiral_attention_forward.1} parent=0 // pred_check
    _
  $region55: #{spiral_attention_forward.1} parent=0 // pred_check_branch
    %109 = sbr.rel (0) target = $region57
  $region56: #{spiral_attention_forward.1} parent=0 // pred_region
    _
  $region57: #{spiral_attention_forward.1} parent=0 // pred_fallthru
    _
  // Predicated region
  $region58: #{spiral_attention_forward.1} parent=0 // pred_check
    _
  $region59: #{spiral_attention_forward.1} parent=0 // pred_check_branch
    %111 = sbr.rel (0) target = $region61
  $region60: #{spiral_attention_forward.1} parent=0 // pred_region
    _
  $region61: #{spiral_attention_forward.1} parent=0 // pred_fallthru
    _
  // Predicated region
  $region62: #{spiral_attention_forward.1} parent=0 // pred_check
    _
  $region63: #{spiral_attention_forward.1} parent=0 // pred_check_branch
    %113 = sbr.rel (0) target = $region65
  $region64: #{spiral_attention_forward.1} parent=0 // pred_region
    _
  $region65: #{spiral_attention_forward.1} parent=0 // pred_fallthru
    _
  // Predicated region
  $region66: #{spiral_attention_forward.1} parent=0 // pred_check
    _
  $region67: #{spiral_attention_forward.1} parent=0 // pred_check_branch
    %115 = sbr.rel (0) target = $region69
  $region68: #{spiral_attention_forward.1} parent=0 // pred_region
    _
  $region69: #{spiral_attention_forward.1} parent=0 // pred_fallthru
    _
  // Predicated region
  $region70: #{spiral_attention_forward.1} parent=0 // pred_check
    _
  $region71: #{spiral_attention_forward.1} parent=0 // pred_check_branch
    %117 = sbr.rel (0) target = $region73
  $region72: #{spiral_attention_forward.1} parent=0 // pred_region
    _
  $region73: #{spiral_attention_forward.1} parent=0 // pred_fallthru
    _
  // Predicated region
  $region74: #{spiral_attention_forward.1} parent=0 // pred_check
    _
  $region75: #{spiral_attention_forward.1} parent=0 // pred_check_branch
    %119 = sbr.rel (0) target = $region77
  $region76: #{spiral_attention_forward.1} parent=0 // pred_region
    _
  $region77: #{spiral_attention_forward.1} parent=0 // pred_fallthru
    _
  // Predicated region
  $region78: #{spiral_attention_forward.1} parent=0 // pred_check
    _
  $region79: #{spiral_attention_forward.1} parent=0 // pred_check_branch
    %121 = sbr.rel (0) target = $region81
  $region80: #{spiral_attention_forward.1} parent=0 // pred_region
    _
  $region81: #{spiral_attention_forward.1} parent=0 // pred_fallthru
    _
  // Predicated region
  $region82: #{spiral_attention_forward.1} parent=0 // pred_check
    _
  $region83: #{spiral_attention_forward.1} parent=0 // pred_check_branch
    %123 = sbr.rel (0) target = $region85
  $region84: #{spiral_attention_forward.1} parent=0 // pred_region
    _
  $region85: #{spiral_attention_forward.1} parent=0 // pred_fallthru
    _
  // Predicated region
  $region86: #{spiral_attention_forward.1} parent=0 // pred_check
    _
  $region87: #{spiral_attention_forward.1} parent=0 // pred_check_branch
    %125 = sbr.rel (0) target = $region89
  $region88: #{spiral_attention_forward.1} parent=0 // pred_region
    _
  $region89: #{spiral_attention_forward.1} parent=0 // pred_fallthru
    _
  // Predicated region
  $region90: #{spiral_attention_forward.1} parent=0 // pred_check
    _
  $region91: #{spiral_attention_forward.1} parent=0 // pred_check_branch
    %127 = sbr.rel (0) target = $region93
  $region92: #{spiral_attention_forward.1} parent=0 // pred_region
    _
  $region93: #{spiral_attention_forward.1} parent=0 // pred_fallthru
    _
  // Predicated region
  $region94: #{spiral_attention_forward.1} parent=0 // pred_check
    _
  $region95: #{spiral_attention_forward.1} parent=0 // pred_check_branch
    %129 = sbr.rel (0) target = $region97
  $region96: #{spiral_attention_forward.1} parent=0 // pred_region
    _
  $region97: #{spiral_attention_forward.1} parent=0 // pred_fallthru
    _
  // Predicated region
  $region98: #{spiral_attention_forward.1} parent=0 // pred_check
    _
  $region99: #{spiral_attention_forward.1} parent=0 // pred_check_branch
    %131 = sbr.rel (0) target = $region101
  $region100: #{spiral_attention_forward.1} parent=0 // pred_region
    _
  $region101: #{spiral_attention_forward.1} parent=0 // pred_fallthru
    _
  // Predicated region
  $region102: #{spiral_attention_forward.1} parent=0 // pred_check
    _
  $region103: #{spiral_attention_forward.1} parent=0 // pred_check_branch
    %133 = sbr.rel (0) target = $region105
  $region104: #{spiral_attention_forward.1} parent=0 // pred_region
    _
  $region105: #{spiral_attention_forward.1} parent=0 // pred_fallthru
    _
  // Predicated region
  $region106: #{spiral_attention_forward.1} parent=0 // pred_check
    _
  $region107: #{spiral_attention_forward.1} parent=0 // pred_check_branch
    %135 = sbr.rel (0) target = $region109
  $region108: #{spiral_attention_forward.1} parent=0 // pred_region
    _
  $region109: #{spiral_attention_forward.1} parent=0 // pred_fallthru
    _
  // Predicated region
  $region110: #{spiral_attention_forward.1} parent=0 // pred_check
    _
  $region111: #{spiral_attention_forward.1} parent=0 // pred_check_branch
    %137 = sbr.rel (0) target = $region113
  $region112: #{spiral_attention_forward.1} parent=0 // pred_region
    _
  $region113: #{spiral_attention_forward.1} parent=0 // pred_fallthru
    _
  // Predicated region
  $region114: #{spiral_attention_forward.1} parent=0 // pred_check
    _
  $region115: #{spiral_attention_forward.1} parent=0 // pred_check_branch
    %139 = sbr.rel (0) target = $region117
  $region116: #{spiral_attention_forward.1} parent=0 // pred_region
    _
  $region117: #{spiral_attention_forward.1} parent=0 // pred_fallthru
    _
  // Predicated region
  $region118: #{spiral_attention_forward.1} parent=0 // pred_check
    _
  $region119: #{spiral_attention_forward.1} parent=0 // pred_check_branch
    %141 = sbr.rel (0) target = $region121
  $region120: #{spiral_attention_forward.1} parent=0 // pred_region
    _
  $region121: #{spiral_attention_forward.1} parent=0 // pred_fallthru
    _
  // Predicated region
  $region122: #{spiral_attention_forward.1} parent=0 // pred_check
    _
  $region123: #{spiral_attention_forward.1} parent=0 // pred_check_branch
    %143 = sbr.rel (0) target = $region125
  $region124: #{spiral_attention_forward.1} parent=0 // pred_region
    _
  $region125: #{spiral_attention_forward.1} parent=0 // pred_fallthru
    _
  // Predicated region
  $region126: #{spiral_attention_forward.1} parent=0 // pred_check
    _
  $region127: #{spiral_attention_forward.1} parent=0 // pred_check_branch
    %145 = sbr.rel (0) target = $region129
  $region128: #{spiral_attention_forward.1} parent=0 // pred_region
    _
  $region129: #{spiral_attention_forward.1} parent=0 // pred_fallthru
    _
  // Predicated region
  $region130: #{spiral_attention_forward.1} parent=0 // pred_check
    _
  $region131: #{spiral_attention_forward.1} parent=0 // pred_check_branch
    %147 = sbr.rel (0) target = $region133
  $region132: #{spiral_attention_forward.1} parent=0 // pred_region
    _
  $region133: #{spiral_attention_forward.1} parent=0 // pred_fallthru
    _
  // Predicated region
  $region134: #{spiral_attention_forward.1} parent=0 // pred_check
    _
  $region135: #{spiral_attention_forward.1} parent=0 // pred_check_branch
    %149 = sbr.rel (0) target = $region137
  $region136: #{spiral_attention_forward.1} parent=0 // pred_region
    _
  $region137: #{spiral_attention_forward.1} parent=0 // pred_fallthru
    _
  // Predicated region
  $region138: #{spiral_attention_forward.1} parent=0 // pred_check
    _
  $region139: #{spiral_attention_forward.1} parent=0 // pred_check_branch
    %151 = sbr.rel (0) target = $region141
  $region140: #{spiral_attention_forward.1} parent=0 // pred_region
    _
  $region141: #{spiral_attention_forward.1} parent=0 // pred_fallthru
    _
  // Predicated region
  $region142: #{spiral_attention_forward.1} parent=0 // pred_check
    _
  $region143: #{spiral_attention_forward.1} parent=0 // pred_check_branch
    %153 = sbr.rel (0) target = $region145
  $region144: #{spiral_attention_forward.1} parent=0 // pred_region
    _
  $region145: #{spiral_attention_forward.1} parent=0 // pred_fallthru
    _
  // Predicated region
  $region146: #{spiral_attention_forward.1} parent=0 // pred_check
    _
  $region147: #{spiral_attention_forward.1} parent=0 // pred_check_branch
    %155 = sbr.rel (0) target = $region149
  $region148: #{spiral_attention_forward.1} parent=0 // pred_region
    _
  $region149: #{spiral_attention_forward.1} parent=0 // pred_fallthru
    _
  // Predicated region
  $region150: #{spiral_attention_forward.1} parent=0 // pred_check
    _
  $region151: #{spiral_attention_forward.1} parent=0 // pred_check_branch
    %157 = sbr.rel (0) target = $region153
  $region152: #{spiral_attention_forward.1} parent=0 // pred_region
    _
  $region153: #{spiral_attention_forward.1} parent=0 // pred_fallthru
    _
  %v159 = vld [vmem:[%s3] sm:$0xff]
  %v160 = vld [vmem:[%s3 + $0x8] sm:$0xff]
  %v161 = vld [vmem:[%s1] sm:$0xff]
  %v162 = vld [vmem:[%s1 + $0x8] sm:$0xff]
  %v163 = vld [vmem:[%s5] sm:$0xff]
  %v164 = vld [vmem:[%s5 + $0x8] sm:$0xff]
  %v165 = vld [vmem:[%s5 + $0x10] sm:$0xff]
  %v166 = vld [vmem:[%s5 + $0x18] sm:$0xff]
  %v167 = vld [vmem:[%s7] sm:$0x1]
  %v169 = vlaneseq
  %v170 = vshrl.u32 %v169, 7
  %v171 = vsub.s32 0, %v170
  %v172 = vrot.slane %v167, %v171
  %vm174 = vcmask 261120
  %v176 = vsel %vm174, %v159, 0
  %v179 = vsel %vm174, %v160, 0
  %181 = vmatprep.subr.mxu0 0.0
  %182 = vmatpush1.msra.mxu0 %v163
  %183 = vmatprep.subr.mxu0 0.0
  %184 = vmatpush1.msra.mxu0 %v164
  %185 = vmatprep.subr.mxu0 0.0
  %186 = vmatpush1.msra.mxu0 %v165
  %187 = vmatprep.subr.mxu0 0.0
  %188 = vmatpush1.msra.mxu0 %v166
  %189 = vmatprep.subr.mxu0 0.0
  %190 = vmatpush1.msra.mxu0 0.0
  %191 = vmatprep.subr.mxu0 0.0
  %192 = vmatpush1.msra.mxu0 0.0
  %193 = vmatprep.subr.mxu0 0.0
  %194 = vmatpush1.msra.mxu0 0.0
  %195 = vmatprep.subr.mxu0 0.0
  %196 = vmatpush1.msra.mxu0 0.0
  %197 = vmatprep.subr.mxu0 0.0
  %198 = vmatpush1.msra.mxu0 0.0
  %199 = vmatprep.subr.mxu0 0.0
  %200 = vmatpush1.msra.mxu0 0.0
  %201 = vmatprep.subr.mxu0 0.0
  %202 = vmatpush1.msra.mxu0 0.0
  %203 = vmatprep.subr.mxu0 0.0
  %204 = vmatpush1.msra.mxu0 0.0
  %205 = vmatprep.subr.mxu0 0.0
  %206 = vmatpush1.msra.mxu0 0.0
  %207 = vmatprep.subr.mxu0 0.0
  %208 = vmatpush1.msra.mxu0 0.0
  %209 = vmatprep.subr.mxu0 0.0
  %210 = vmatpush1.msra.mxu0 0.0
  %211 = vmatprep.subr.mxu0 0.0
  %212 = vmatpush1.msra.mxu0 0.0
  %213 = vmatprep.subr.mxu0 0.0
  %214 = vmatpush1.msra.mxu0 0.0
  %215 = vmatprep.subr.mxu0 0.0
  %216 = vmatpush1.msra.mxu0 0.0
  %217 = vmatprep.subr.mxu0 0.0
  %218 = vmatpush1.msra.mxu0 0.0
  %219 = vmatprep.subr.mxu0 0.0
  %220 = vmatpush1.msra.mxu0 0.0
  %221 = vmatprep.subr.mxu0 0.0
  %222 = vmatpush1.msra.mxu0 0.0
  %223 = vmatprep.subr.mxu0 0.0
  %224 = vmatpush1.msra.mxu0 0.0
  %225 = vmatprep.subr.mxu0 0.0
  %226 = vmatpush1.msra.mxu0 0.0
  %227 = vmatprep.subr.mxu0 0.0
  %228 = vmatpush1.msra.mxu0 0.0
  %229 = vmatprep.subr.mxu0 0.0
  %230 = vmatpush1.msra.mxu0 0.0
  %231 = vmatprep.subr.mxu0 0.0
  %232 = vmatpush1.msra.mxu0 0.0
  %233 = vmatprep.subr.mxu0 0.0
  %234 = vmatpush1.msra.mxu0 0.0
  %235 = vmatprep.subr.mxu0 0.0
  %236 = vmatpush1.msra.mxu0 0.0
  %237 = vmatprep.subr.mxu0 0.0
  %238 = vmatpush1.msra.mxu0 0.0
  %239 = vmatprep.subr.mxu0 0.0
  %240 = vmatpush1.msra.mxu0 0.0
  %241 = vmatprep.subr.mxu0 0.0
  %242 = vmatpush1.msra.mxu0 0.0
  %243 = vmatprep.subr.mxu0 0.0
  %244 = vmatpush1.msra.mxu0 0.0
  %245 = vmatprep.mubr.f32.mxu0 0.0
  %246 = vmatmul.mubr.f32.gmra.mrb[0].mxu0 %v176
  %v247 = vpop.f32.mrb[0].mxu0
  %v248 = vadd.f32 %v172, %v247
  %v249 = vpop.f32.mrb[0].mxu0
  %250 = vmatprep.mubr.f32.mxu0 0.0
  %251 = vmatmul.mubr.f32.gmra.mrb[0].mxu0 %v179
  %v252 = vpop.f32.mrb[0].mxu0
  %v253 = vadd.f32 %v172, %v252
  %v254 = vpop.f32.mrb[0].mxu0
  %255 = vdwg.mxu0
  %257 = vrot.lane.b32.xlu0 %v248, 96
  %v258 = vpop.permute.xlu0 %257
  %vm259 = vcmask 64512
  %v260 = vsel %vm259, %v248, 0
  %v262 = vsel %vm259, %v258, 0
  %264 = vmatprep.subr.mxu0 0.0
  %265 = vmatpush1.xpose.msra.mxu0 %v262
  %266 = vmatprep.subr.mxu0 0.0
  %267 = vmatpush1.xpose.msra.mxu0 0.0
  %268 = vmatprep.subr.mxu0 0.0
  %269 = vmatpush1.xpose.msra.mxu0 0.0
  %270 = vmatprep.subr.mxu0 0.0
  %271 = vmatpush1.xpose.msra.mxu0 0.0
  %272 = vmatprep.subr.mxu0 0.0
  %273 = vmatpush1.xpose.msra.mxu0 0.0
  %274 = vmatprep.subr.mxu0 0.0
  %275 = vmatpush1.xpose.msra.mxu0 0.0
  %276 = vmatprep.subr.mxu0 0.0
  %277 = vmatpush1.xpose.msra.mxu0 0.0
  %278 = vmatprep.subr.mxu0 0.0
  %279 = vmatpush1.xpose.msra.mxu0 0.0
  %280 = vmatprep.subr.mxu0 0.0
  %281 = vmatpush1.xpose.msra.mxu0 0.0
  %282 = vmatprep.subr.mxu0 0.0
  %283 = vmatpush1.xpose.msra.mxu0 0.0
  %284 = vmatprep.subr.mxu0 0.0
  %285 = vmatpush1.xpose.msra.mxu0 0.0
  %286 = vmatprep.subr.mxu0 0.0
  %287 = vmatpush1.xpose.msra.mxu0 0.0
  %288 = vmatprep.subr.mxu0 0.0
  %289 = vmatpush1.xpose.msra.mxu0 0.0
  %290 = vmatprep.subr.mxu0 0.0
  %291 = vmatpush1.xpose.msra.mxu0 0.0
  %292 = vmatprep.subr.mxu0 0.0
  %293 = vmatpush1.xpose.msra.mxu0 0.0
  %294 = vmatprep.subr.mxu0 0.0
  %295 = vmatpush1.xpose.msra.mxu0 0.0
  %296 = vmatprep.subr.mxu0 0.0
  %297 = vmatpush1.xpose.msra.mxu0 0.0
  %298 = vmatprep.subr.mxu0 0.0
  %299 = vmatpush1.xpose.msra.mxu0 0.0
  %300 = vmatprep.subr.mxu0 0.0
  %301 = vmatpush1.xpose.msra.mxu0 0.0
  %302 = vmatprep.subr.mxu0 0.0
  %303 = vmatpush1.xpose.msra.mxu0 0.0
  %304 = vmatprep.subr.mxu0 0.0
  %305 = vmatpush1.xpose.msra.mxu0 0.0
  %306 = vmatprep.subr.mxu0 0.0
  %307 = vmatpush1.xpose.msra.mxu0 0.0
  %308 = vmatprep.subr.mxu0 0.0
  %309 = vmatpush1.xpose.msra.mxu0 0.0
  %310 = vmatprep.subr.mxu0 0.0
  %311 = vmatpush1.xpose.msra.mxu0 0.0
  %312 = vmatprep.subr.mxu0 0.0
  %313 = vmatpush1.xpose.msra.mxu0 0.0
  %314 = vmatprep.subr.mxu0 0.0
  %315 = vmatpush1.xpose.msra.mxu0 0.0
  %316 = vmatprep.subr.mxu0 0.0
  %317 = vmatpush1.xpose.msra.mxu0 0.0
  %318 = vmatprep.subr.mxu0 0.0
  %319 = vmatpush1.xpose.msra.mxu0 0.0
  %320 = vmatprep.subr.mxu0 0.0
  %321 = vmatpush1.xpose.msra.mxu0 0.0
  %322 = vmatprep.subr.mxu0 0.0
  %323 = vmatpush1.xpose.msra.mxu0 0.0
  %324 = vmatprep.subr.mxu0 0.0
  %325 = vmatpush1.xpose.msra.mxu0 0.0
  %326 = vmatprep.subr.mxu0 0.0
  %327 = vmatpush1.xpose.msra.mxu0 0.0
  %328 = vmatprep.mubr.f32.mxu0 0.0
  %329 = vmatmul.mubr.f32.gmra.mrb[0].mxu0 %v260
  %v330 = vpop.f32.mrb[0].mxu0
  %v331 = vadd.f32 0.0, %v330
  %v332 = vpop.f32.mrb[0].mxu0
  %333 = vdwg.mxu0
  %335 = vrot.lane.b32.xlu0 %v253, 96
  %v336 = vpop.permute.xlu0 %335
  %v337 = vsel %vm259, %v253, 0
  %v339 = vsel %vm259, %v336, 0
  %341 = vmatprep.subr.mxu0 0.0
  %342 = vmatpush1.xpose.msra.mxu0 %v339
  %343 = vmatprep.subr.mxu0 0.0
  %344 = vmatpush1.xpose.msra.mxu0 0.0
  %345 = vmatprep.subr.mxu0 0.0
  %346 = vmatpush1.xpose.msra.mxu0 0.0
  %347 = vmatprep.subr.mxu0 0.0
  %348 = vmatpush1.xpose.msra.mxu0 0.0
  %349 = vmatprep.subr.mxu0 0.0
  %350 = vmatpush1.xpose.msra.mxu0 0.0
  %351 = vmatprep.subr.mxu0 0.0
  %352 = vmatpush1.xpose.msra.mxu0 0.0
  %353 = vmatprep.subr.mxu0 0.0
  %354 = vmatpush1.xpose.msra.mxu0 0.0
  %355 = vmatprep.subr.mxu0 0.0
  %356 = vmatpush1.xpose.msra.mxu0 0.0
  %357 = vmatprep.subr.mxu0 0.0
  %358 = vmatpush1.xpose.msra.mxu0 0.0
  %359 = vmatprep.subr.mxu0 0.0
  %360 = vmatpush1.xpose.msra.mxu0 0.0
  %361 = vmatprep.subr.mxu0 0.0
  %362 = vmatpush1.xpose.msra.mxu0 0.0
  %363 = vmatprep.subr.mxu0 0.0
  %364 = vmatpush1.xpose.msra.mxu0 0.0
  %365 = vmatprep.subr.mxu0 0.0
  %366 = vmatpush1.xpose.msra.mxu0 0.0
  %367 = vmatprep.subr.mxu0 0.0
  %368 = vmatpush1.xpose.msra.mxu0 0.0
  %369 = vmatprep.subr.mxu0 0.0
  %370 = vmatpush1.xpose.msra.mxu0 0.0
  %371 = vmatprep.subr.mxu0 0.0
  %372 = vmatpush1.xpose.msra.mxu0 0.0
  %373 = vmatprep.subr.mxu0 0.0
  %374 = vmatpush1.xpose.msra.mxu0 0.0
  %375 = vmatprep.subr.mxu0 0.0
  %376 = vmatpush1.xpose.msra.mxu0 0.0
  %377 = vmatprep.subr.mxu0 0.0
  %378 = vmatpush1.xpose.msra.mxu0 0.0
  %379 = vmatprep.subr.mxu0 0.0
  %380 = vmatpush1.xpose.msra.mxu0 0.0
  %381 = vmatprep.subr.mxu0 0.0
  %382 = vmatpush1.xpose.msra.mxu0 0.0
  %383 = vmatprep.subr.mxu0 0.0
  %384 = vmatpush1.xpose.msra.mxu0 0.0
  %385 = vmatprep.subr.mxu0 0.0
  %386 = vmatpush1.xpose.msra.mxu0 0.0
  %387 = vmatprep.subr.mxu0 0.0
  %388 = vmatpush1.xpose.msra.mxu0 0.0
  %389 = vmatprep.subr.mxu0 0.0
  %390 = vmatpush1.xpose.msra.mxu0 0.0
  %391 = vmatprep.subr.mxu0 0.0
  %392 = vmatpush1.xpose.msra.mxu0 0.0
  %393 = vmatprep.subr.mxu0 0.0
  %394 = vmatpush1.xpose.msra.mxu0 0.0
  %395 = vmatprep.subr.mxu0 0.0
  %396 = vmatpush1.xpose.msra.mxu0 0.0
  %397 = vmatprep.subr.mxu0 0.0
  %398 = vmatpush1.xpose.msra.mxu0 0.0
  %399 = vmatprep.subr.mxu0 0.0
  %400 = vmatpush1.xpose.msra.mxu0 0.0
  %401 = vmatprep.subr.mxu0 0.0
  %402 = vmatpush1.xpose.msra.mxu0 0.0
  %403 = vmatprep.subr.mxu0 0.0
  %404 = vmatpush1.xpose.msra.mxu0 0.0
  %405 = vmatprep.mubr.f32.mxu0 0.0
  %406 = vmatmul.mubr.f32.gmra.mrb[0].mxu0 %v337
  %v407 = vpop.f32.mrb[0].mxu0
  %v408 = vadd.f32 0.0, %v407
  %v409 = vpop.f32.mrb[0].mxu0
  %410 = vdwg.mxu0
  %v411 = vsel %vm259, %v331, -inf
  %412 = vmax.xlane.f32.xlu0 %v411
  %v413 = vpop.xlane.xlu0 %412
  %v414 = vsel %vm259, %v408, -inf
  %415 = vmax.xlane.f32.xlu0 %v414
  %v416 = vpop.xlane.xlu0 %415
  %v417 = vsub.f32 %v331, %v413
  %v418 = vsub.f32 %v408, %v416
  %v419 = vmul.f32 %v417, 1.442695
  %v420 = vpow.pop %v419
  %v421 = vmul.f32 %v418, 1.442695
  %v422 = vpow.pop %v421
  %v423 = vsel %vm259, %v420, 0.0
  %424 = vadd.xlane.f32.xlu0 %v423
  %v425 = vpop.xlane.xlu0 %424
  %v426 = vsel %vm259, %v422, 0.0
  %427 = vadd.xlane.f32.xlu0 %v426
  %v428 = vpop.xlane.xlu0 %427
  %v429 = vrcp.pop %v425
  %v430 = vmul.f32 %v420, %v429
  %v431 = vrcp.pop %v428
  %v432 = vmul.f32 %v422, %v431
  %433 = vrot.lane.b32.xlu0 %v248, 64
  %v434 = vpop.permute.xlu0 %433
  %v437 = vsel %vm259, %v430, 0
  %439 = vmatprep.subr.mxu0 0.0
  %440 = vmatpush1.msra.mxu0 %v434
  %441 = vmatprep.subr.mxu0 0.0
  %442 = vmatpush1.msra.mxu0 0.0
  %443 = vmatprep.subr.mxu0 0.0
  %444 = vmatpush1.msra.mxu0 0.0
  %445 = vmatprep.subr.mxu0 0.0
  %446 = vmatpush1.msra.mxu0 0.0
  %447 = vmatprep.subr.mxu0 0.0
  %448 = vmatpush1.msra.mxu0 0.0
  %449 = vmatprep.subr.mxu0 0.0
  %450 = vmatpush1.msra.mxu0 0.0
  %451 = vmatprep.subr.mxu0 0.0
  %452 = vmatpush1.msra.mxu0 0.0
  %453 = vmatprep.subr.mxu0 0.0
  %454 = vmatpush1.msra.mxu0 0.0
  %455 = vmatprep.subr.mxu0 0.0
  %456 = vmatpush1.msra.mxu0 0.0
  %457 = vmatprep.subr.mxu0 0.0
  %458 = vmatpush1.msra.mxu0 0.0
  %459 = vmatprep.subr.mxu0 0.0
  %460 = vmatpush1.msra.mxu0 0.0
  %461 = vmatprep.subr.mxu0 0.0
  %462 = vmatpush1.msra.mxu0 0.0
  %463 = vmatprep.subr.mxu0 0.0
  %464 = vmatpush1.msra.mxu0 0.0
  %465 = vmatprep.subr.mxu0 0.0
  %466 = vmatpush1.msra.mxu0 0.0
  %467 = vmatprep.subr.mxu0 0.0
  %468 = vmatpush1.msra.mxu0 0.0
  %469 = vmatprep.subr.mxu0 0.0
  %470 = vmatpush1.msra.mxu0 0.0
  %471 = vmatprep.subr.mxu0 0.0
  %472 = vmatpush1.msra.mxu0 0.0
  %473 = vmatprep.subr.mxu0 0.0
  %474 = vmatpush1.msra.mxu0 0.0
  %475 = vmatprep.subr.mxu0 0.0
  %476 = vmatpush1.msra.mxu0 0.0
  %477 = vmatprep.subr.mxu0 0.0
  %478 = vmatpush1.msra.mxu0 0.0
  %479 = vmatprep.subr.mxu0 0.0
  %480 = vmatpush1.msra.mxu0 0.0
  %481 = vmatprep.subr.mxu0 0.0
  %482 = vmatpush1.msra.mxu0 0.0
  %483 = vmatprep.subr.mxu0 0.0
  %484 = vmatpush1.msra.mxu0 0.0
  %485 = vmatprep.subr.mxu0 0.0
  %486 = vmatpush1.msra.mxu0 0.0
  %487 = vmatprep.subr.mxu0 0.0
  %488 = vmatpush1.msra.mxu0 0.0
  %489 = vmatprep.subr.mxu0 0.0
  %490 = vmatpush1.msra.mxu0 0.0
  %491 = vmatprep.subr.mxu0 0.0
  %492 = vmatpush1.msra.mxu0 0.0
  %493 = vmatprep.subr.mxu0 0.0
  %494 = vmatpush1.msra.mxu0 0.0
  %495 = vmatprep.subr.mxu0 0.0
  %496 = vmatpush1.msra.mxu0 0.0
  %497 = vmatprep.subr.mxu0 0.0
  %498 = vmatpush1.msra.mxu0 0.0
  %499 = vmatprep.subr.mxu0 0.0
  %500 = vmatpush1.msra.mxu0 0.0
  %501 = vmatprep.subr.mxu0 0.0
  %502 = vmatpush1.msra.mxu0 0.0
  %503 = vmatprep.mubr.f32.mxu0 0.0
  %504 = vmatmul.mubr.f32.gmra.mrb[0].mxu0 %v437
  %v505 = vpop.f32.mrb[0].mxu0
  %v506 = vadd.f32 0.0, %v505
  %v507 = vpop.f32.mrb[0].mxu0
  %508 = vdwg.mxu0
  %509 = vrot.lane.b32.xlu0 %v253, 64
  %v510 = vpop.permute.xlu0 %509
  %v513 = vsel %vm259, %v432, 0
  %515 = vmatprep.subr.mxu0 0.0
  %516 = vmatpush1.msra.mxu0 %v510
  %517 = vmatprep.subr.mxu0 0.0
  %518 = vmatpush1.msra.mxu0 0.0
  %519 = vmatprep.subr.mxu0 0.0
  %520 = vmatpush1.msra.mxu0 0.0
  %521 = vmatprep.subr.mxu0 0.0
  %522 = vmatpush1.msra.mxu0 0.0
  %523 = vmatprep.subr.mxu0 0.0
  %524 = vmatpush1.msra.mxu0 0.0
  %525 = vmatprep.subr.mxu0 0.0
  %526 = vmatpush1.msra.mxu0 0.0
  %527 = vmatprep.subr.mxu0 0.0
  %528 = vmatpush1.msra.mxu0 0.0
  %529 = vmatprep.subr.mxu0 0.0
  %530 = vmatpush1.msra.mxu0 0.0
  %531 = vmatprep.subr.mxu0 0.0
  %532 = vmatpush1.msra.mxu0 0.0
  %533 = vmatprep.subr.mxu0 0.0
  %534 = vmatpush1.msra.mxu0 0.0
  %535 = vmatprep.subr.mxu0 0.0
  %536 = vmatpush1.msra.mxu0 0.0
  %537 = vmatprep.subr.mxu0 0.0
  %538 = vmatpush1.msra.mxu0 0.0
  %539 = vmatprep.subr.mxu0 0.0
  %540 = vmatpush1.msra.mxu0 0.0
  %541 = vmatprep.subr.mxu0 0.0
  %542 = vmatpush1.msra.mxu0 0.0
  %543 = vmatprep.subr.mxu0 0.0
  %544 = vmatpush1.msra.mxu0 0.0
  %545 = vmatprep.subr.mxu0 0.0
  %546 = vmatpush1.msra.mxu0 0.0
  %547 = vmatprep.subr.mxu0 0.0
  %548 = vmatpush1.msra.mxu0 0.0
  %549 = vmatprep.subr.mxu0 0.0
  %550 = vmatpush1.msra.mxu0 0.0
  %551 = vmatprep.subr.mxu0 0.0
  %552 = vmatpush1.msra.mxu0 0.0
  %553 = vmatprep.subr.mxu0 0.0
  %554 = vmatpush1.msra.mxu0 0.0
  %555 = vmatprep.subr.mxu0 0.0
  %556 = vmatpush1.msra.mxu0 0.0
  %557 = vmatprep.subr.mxu0 0.0
  %558 = vmatpush1.msra.mxu0 0.0
  %559 = vmatprep.subr.mxu0 0.0
  %560 = vmatpush1.msra.mxu0 0.0
  %561 = vmatprep.subr.mxu0 0.0
  %562 = vmatpush1.msra.mxu0 0.0
  %563 = vmatprep.subr.mxu0 0.0
  %564 = vmatpush1.msra.mxu0 0.0
  %565 = vmatprep.subr.mxu0 0.0
  %566 = vmatpush1.msra.mxu0 0.0
  %567 = vmatprep.subr.mxu0 0.0
  %568 = vmatpush1.msra.mxu0 0.0
  %569 = vmatprep.subr.mxu0 0.0
  %570 = vmatpush1.msra.mxu0 0.0
  %571 = vmatprep.subr.mxu0 0.0
  %572 = vmatpush1.msra.mxu0 0.0
  %573 = vmatprep.subr.mxu0 0.0
  %574 = vmatpush1.msra.mxu0 0.0
  %575 = vmatprep.subr.mxu0 0.0
  %576 = vmatpush1.msra.mxu0 0.0
  %577 = vmatprep.subr.mxu0 0.0
  %578 = vmatpush1.msra.mxu0 0.0
  %579 = vmatprep.mubr.f32.mxu0 0.0
  %580 = vmatmul.mubr.f32.gmra.mrb[0].mxu0 %v513
  %v581 = vpop.f32.mrb[0].mxu0
  %v582 = vadd.f32 0.0, %v581
  %v583 = vpop.f32.mrb[0].mxu0
  %584 = vdwg.mxu0
  %585 = vrot.lane.b32.xlu0 %v248, 120
  %v586 = vpop.permute.xlu0 %585
  %587 = vrot.lane.b32.xlu0 %v248, 88
  %v588 = vpop.permute.xlu0 %587
  %v589 = vsel %vm259, %v586, 0
  %v591 = vsel %vm259, %v588, 0
  %593 = vmatprep.subr.mxu0 0.0
  %594 = vmatpush1.xpose.msra.mxu0 %v591
  %595 = vmatprep.subr.mxu0 0.0
  %596 = vmatpush1.xpose.msra.mxu0 0.0
  %597 = vmatprep.subr.mxu0 0.0
  %598 = vmatpush1.xpose.msra.mxu0 0.0
  %599 = vmatprep.subr.mxu0 0.0
  %600 = vmatpush1.xpose.msra.mxu0 0.0
  %601 = vmatprep.subr.mxu0 0.0
  %602 = vmatpush1.xpose.msra.mxu0 0.0
  %603 = vmatprep.subr.mxu0 0.0
  %604 = vmatpush1.xpose.msra.mxu0 0.0
  %605 = vmatprep.subr.mxu0 0.0
  %606 = vmatpush1.xpose.msra.mxu0 0.0
  %607 = vmatprep.subr.mxu0 0.0
  %608 = vmatpush1.xpose.msra.mxu0 0.0
  %609 = vmatprep.subr.mxu0 0.0
  %610 = vmatpush1.xpose.msra.mxu0 0.0
  %611 = vmatprep.subr.mxu0 0.0
  %612 = vmatpush1.xpose.msra.mxu0 0.0
  %613 = vmatprep.subr.mxu0 0.0
  %614 = vmatpush1.xpose.msra.mxu0 0.0
  %615 = vmatprep.subr.mxu0 0.0
  %616 = vmatpush1.xpose.msra.mxu0 0.0
  %617 = vmatprep.subr.mxu0 0.0
  %618 = vmatpush1.xpose.msra.mxu0 0.0
  %619 = vmatprep.subr.mxu0 0.0
  %620 = vmatpush1.xpose.msra.mxu0 0.0
  %621 = vmatprep.subr.mxu0 0.0
  %622 = vmatpush1.xpose.msra.mxu0 0.0
  %623 = vmatprep.subr.mxu0 0.0
  %624 = vmatpush1.xpose.msra.mxu0 0.0
  %625 = vmatprep.subr.mxu0 0.0
  %626 = vmatpush1.xpose.msra.mxu0 0.0
  %627 = vmatprep.subr.mxu0 0.0
  %628 = vmatpush1.xpose.msra.mxu0 0.0
  %629 = vmatprep.subr.mxu0 0.0
  %630 = vmatpush1.xpose.msra.mxu0 0.0
  %631 = vmatprep.subr.mxu0 0.0
  %632 = vmatpush1.xpose.msra.mxu0 0.0
  %633 = vmatprep.subr.mxu0 0.0
  %634 = vmatpush1.xpose.msra.mxu0 0.0
  %635 = vmatprep.subr.mxu0 0.0
  %636 = vmatpush1.xpose.msra.mxu0 0.0
  %637 = vmatprep.subr.mxu0 0.0
  %638 = vmatpush1.xpose.msra.mxu0 0.0
  %639 = vmatprep.subr.mxu0 0.0
  %640 = vmatpush1.xpose.msra.mxu0 0.0
  %641 = vmatprep.subr.mxu0 0.0
  %642 = vmatpush1.xpose.msra.mxu0 0.0
  %643 = vmatprep.subr.mxu0 0.0
  %644 = vmatpush1.xpose.msra.mxu0 0.0
  %645 = vmatprep.subr.mxu0 0.0
  %646 = vmatpush1.xpose.msra.mxu0 0.0
  %647 = vmatprep.subr.mxu0 0.0
  %648 = vmatpush1.xpose.msra.mxu0 0.0
  %649 = vmatprep.subr.mxu0 0.0
  %650 = vmatpush1.xpose.msra.mxu0 0.0
  %651 = vmatprep.subr.mxu0 0.0
  %652 = vmatpush1.xpose.msra.mxu0 0.0
  %653 = vmatprep.subr.mxu0 0.0
  %654 = vmatpush1.xpose.msra.mxu0 0.0
  %655 = vmatprep.subr.mxu0 0.0
  %656 = vmatpush1.xpose.msra.mxu0 0.0
  %657 = vmatprep.mubr.f32.mxu0 0.0
  %658 = vmatmul.mubr.f32.gmra.mrb[0].mxu0 %v589
  %v659 = vpop.f32.mrb[0].mxu0
  %v660 = vadd.f32 0.0, %v659
  %v661 = vpop.f32.mrb[0].mxu0
  %662 = vdwg.mxu0
  %663 = vrot.lane.b32.xlu0 %v253, 120
  %v664 = vpop.permute.xlu0 %663
  %665 = vrot.lane.b32.xlu0 %v253, 88
  %v666 = vpop.permute.xlu0 %665
  %v667 = vsel %vm259, %v664, 0
  %v669 = vsel %vm259, %v666, 0
  %671 = vmatprep.subr.mxu0 0.0
  %672 = vmatpush1.xpose.msra.mxu0 %v669
  %673 = vmatprep.subr.mxu0 0.0
  %674 = vmatpush1.xpose.msra.mxu0 0.0
  %675 = vmatprep.subr.mxu0 0.0
  %676 = vmatpush1.xpose.msra.mxu0 0.0
  %677 = vmatprep.subr.mxu0 0.0
  %678 = vmatpush1.xpose.msra.mxu0 0.0
  %679 = vmatprep.subr.mxu0 0.0
  %680 = vmatpush1.xpose.msra.mxu0 0.0
  %681 = vmatprep.subr.mxu0 0.0
  %682 = vmatpush1.xpose.msra.mxu0 0.0
  %683 = vmatprep.subr.mxu0 0.0
  %684 = vmatpush1.xpose.msra.mxu0 0.0
  %685 = vmatprep.subr.mxu0 0.0
  %686 = vmatpush1.xpose.msra.mxu0 0.0
  %687 = vmatprep.subr.mxu0 0.0
  %688 = vmatpush1.xpose.msra.mxu0 0.0
  %689 = vmatprep.subr.mxu0 0.0
  %690 = vmatpush1.xpose.msra.mxu0 0.0
  %691 = vmatprep.subr.mxu0 0.0
  %692 = vmatpush1.xpose.msra.mxu0 0.0
  %693 = vmatprep.subr.mxu0 0.0
  %694 = vmatpush1.xpose.msra.mxu0 0.0
  %695 = vmatprep.subr.mxu0 0.0
  %696 = vmatpush1.xpose.msra.mxu0 0.0
  %697 = vmatprep.subr.mxu0 0.0
  %698 = vmatpush1.xpose.msra.mxu0 0.0
  %699 = vmatprep.subr.mxu0 0.0
  %700 = vmatpush1.xpose.msra.mxu0 0.0
  %701 = vmatprep.subr.mxu0 0.0
  %702 = vmatpush1.xpose.msra.mxu0 0.0
  %703 = vmatprep.subr.mxu0 0.0
  %704 = vmatpush1.xpose.msra.mxu0 0.0
  %705 = vmatprep.subr.mxu0 0.0
  %706 = vmatpush1.xpose.msra.mxu0 0.0
  %707 = vmatprep.subr.mxu0 0.0
  %708 = vmatpush1.xpose.msra.mxu0 0.0
  %709 = vmatprep.subr.mxu0 0.0
  %710 = vmatpush1.xpose.msra.mxu0 0.0
  %711 = vmatprep.subr.mxu0 0.0
  %712 = vmatpush1.xpose.msra.mxu0 0.0
  %713 = vmatprep.subr.mxu0 0.0
  %714 = vmatpush1.xpose.msra.mxu0 0.0
  %715 = vmatprep.subr.mxu0 0.0
  %716 = vmatpush1.xpose.msra.mxu0 0.0
  %717 = vmatprep.subr.mxu0 0.0
  %718 = vmatpush1.xpose.msra.mxu0 0.0
  %719 = vmatprep.subr.mxu0 0.0
  %720 = vmatpush1.xpose.msra.mxu0 0.0
  %721 = vmatprep.subr.mxu0 0.0
  %722 = vmatpush1.xpose.msra.mxu0 0.0
  %723 = vmatprep.subr.mxu0 0.0
  %724 = vmatpush1.xpose.msra.mxu0 0.0
  %725 = vmatprep.subr.mxu0 0.0
  %726 = vmatpush1.xpose.msra.mxu0 0.0
  %727 = vmatprep.subr.mxu0 0.0
  %728 = vmatpush1.xpose.msra.mxu0 0.0
  %729 = vmatprep.subr.mxu0 0.0
  %730 = vmatpush1.xpose.msra.mxu0 0.0
  %731 = vmatprep.subr.mxu0 0.0
  %732 = vmatpush1.xpose.msra.mxu0 0.0
  %733 = vmatprep.subr.mxu0 0.0
  %734 = vmatpush1.xpose.msra.mxu0 0.0
  %735 = vmatprep.mubr.f32.mxu0 0.0
  %736 = vmatmul.mubr.f32.gmra.mrb[0].mxu0 %v667
  %v737 = vpop.f32.mrb[0].mxu0
  %v738 = vadd.f32 0.0, %v737
  %v739 = vpop.f32.mrb[0].mxu0
  %740 = vdwg.mxu0
  %v741 = vsel %vm259, %v660, -inf
  %742 = vmax.xlane.f32.xlu0 %v741
  %v743 = vpop.xlane.xlu0 %742
  %v744 = vsel %vm259, %v738, -inf
  %745 = vmax.xlane.f32.xlu0 %v744
  %v746 = vpop.xlane.xlu0 %745
  %v747 = vsub.f32 %v660, %v743
  %v748 = vsub.f32 %v738, %v746
  %v749 = vmul.f32 %v747, 1.442695
  %v750 = vpow.pop %v749
  %v751 = vmul.f32 %v748, 1.442695
  %v752 = vpow.pop %v751
  %v753 = vsel %vm259, %v750, 0.0
  %754 = vadd.xlane.f32.xlu0 %v753
  %v755 = vpop.xlane.xlu0 %754
  %v756 = vsel %vm259, %v752, 0.0
  %757 = vadd.xlane.f32.xlu0 %v756
  %v758 = vpop.xlane.xlu0 %757
  %v759 = vrcp.pop %v755
  %v760 = vmul.f32 %v750, %v759
  %v761 = vrcp.pop %v758
  %v762 = vmul.f32 %v752, %v761
  %763 = vrot.lane.b32.xlu0 %v248, 56
  %v764 = vpop.permute.xlu0 %763
  %v767 = vsel %vm259, %v760, 0
  %769 = vmatprep.subr.mxu0 0.0
  %770 = vmatpush1.msra.mxu0 %v764
  %771 = vmatprep.subr.mxu0 0.0
  %772 = vmatpush1.msra.mxu0 0.0
  %773 = vmatprep.subr.mxu0 0.0
  %774 = vmatpush1.msra.mxu0 0.0
  %775 = vmatprep.subr.mxu0 0.0
  %776 = vmatpush1.msra.mxu0 0.0
  %777 = vmatprep.subr.mxu0 0.0
  %778 = vmatpush1.msra.mxu0 0.0
  %779 = vmatprep.subr.mxu0 0.0
  %780 = vmatpush1.msra.mxu0 0.0
  %781 = vmatprep.subr.mxu0 0.0
  %782 = vmatpush1.msra.mxu0 0.0
  %783 = vmatprep.subr.mxu0 0.0
  %784 = vmatpush1.msra.mxu0 0.0
  %785 = vmatprep.subr.mxu0 0.0
  %786 = vmatpush1.msra.mxu0 0.0
  %787 = vmatprep.subr.mxu0 0.0
  %788 = vmatpush1.msra.mxu0 0.0
  %789 = vmatprep.subr.mxu0 0.0
  %790 = vmatpush1.msra.mxu0 0.0
  %791 = vmatprep.subr.mxu0 0.0
  %792 = vmatpush1.msra.mxu0 0.0
  %793 = vmatprep.subr.mxu0 0.0
  %794 = vmatpush1.msra.mxu0 0.0
  %795 = vmatprep.subr.mxu0 0.0
  %796 = vmatpush1.msra.mxu0 0.0
  %797 = vmatprep.subr.mxu0 0.0
  %798 = vmatpush1.msra.mxu0 0.0
  %799 = vmatprep.subr.mxu0 0.0
  %800 = vmatpush1.msra.mxu0 0.0
  %801 = vmatprep.subr.mxu0 0.0
  %802 = vmatpush1.msra.mxu0 0.0
  %803 = vmatprep.subr.mxu0 0.0
  %804 = vmatpush1.msra.mxu0 0.0
  %805 = vmatprep.subr.mxu0 0.0
  %806 = vmatpush1.msra.mxu0 0.0
  %807 = vmatprep.subr.mxu0 0.0
  %808 = vmatpush1.msra.mxu0 0.0
  %809 = vmatprep.subr.mxu0 0.0
  %810 = vmatpush1.msra.mxu0 0.0
  %811 = vmatprep.subr.mxu0 0.0
  %812 = vmatpush1.msra.mxu0 0.0
  %813 = vmatprep.subr.mxu0 0.0
  %814 = vmatpush1.msra.mxu0 0.0
  %815 = vmatprep.subr.mxu0 0.0
  %816 = vmatpush1.msra.mxu0 0.0
  %817 = vmatprep.subr.mxu0 0.0
  %818 = vmatpush1.msra.mxu0 0.0
  %819 = vmatprep.subr.mxu0 0.0
  %820 = vmatpush1.msra.mxu0 0.0
  %821 = vmatprep.subr.mxu0 0.0
  %822 = vmatpush1.msra.mxu0 0.0
  %823 = vmatprep.subr.mxu0 0.0
  %824 = vmatpush1.msra.mxu0 0.0
  %825 = vmatprep.subr.mxu0 0.0
  %826 = vmatpush1.msra.mxu0 0.0
  %827 = vmatprep.subr.mxu0 0.0
  %828 = vmatpush1.msra.mxu0 0.0
  %829 = vmatprep.subr.mxu0 0.0
  %830 = vmatpush1.msra.mxu0 0.0
  %831 = vmatprep.subr.mxu0 0.0
  %832 = vmatpush1.msra.mxu0 0.0
  %833 = vmatprep.mubr.f32.mxu0 0.0
  %834 = vmatmul.mubr.f32.gmra.mrb[0].mxu0 %v767
  %v835 = vpop.f32.mrb[0].mxu0
  %v836 = vadd.f32 0.0, %v835
  %v837 = vpop.f32.mrb[0].mxu0
  %838 = vdwg.mxu0
  %839 = vrot.lane.b32.xlu0 %v253, 56
  %v840 = vpop.permute.xlu0 %839
  %v843 = vsel %vm259, %v762, 0
  %845 = vmatprep.subr.mxu0 0.0
  %846 = vmatpush1.msra.mxu0 %v840
  %847 = vmatprep.subr.mxu0 0.0
  %848 = vmatpush1.msra.mxu0 0.0
  %849 = vmatprep.subr.mxu0 0.0
  %850 = vmatpush1.msra.mxu0 0.0
  %851 = vmatprep.subr.mxu0 0.0
  %852 = vmatpush1.msra.mxu0 0.0
  %853 = vmatprep.subr.mxu0 0.0
  %854 = vmatpush1.msra.mxu0 0.0
  %855 = vmatprep.subr.mxu0 0.0
  %856 = vmatpush1.msra.mxu0 0.0
  %857 = vmatprep.subr.mxu0 0.0
  %858 = vmatpush1.msra.mxu0 0.0
  %859 = vmatprep.subr.mxu0 0.0
  %860 = vmatpush1.msra.mxu0 0.0
  %861 = vmatprep.subr.mxu0 0.0
  %862 = vmatpush1.msra.mxu0 0.0
  %863 = vmatprep.subr.mxu0 0.0
  %864 = vmatpush1.msra.mxu0 0.0
  %865 = vmatprep.subr.mxu0 0.0
  %866 = vmatpush1.msra.mxu0 0.0
  %867 = vmatprep.subr.mxu0 0.0
  %868 = vmatpush1.msra.mxu0 0.0
  %869 = vmatprep.subr.mxu0 0.0
  %870 = vmatpush1.msra.mxu0 0.0
  %871 = vmatprep.subr.mxu0 0.0
  %872 = vmatpush1.msra.mxu0 0.0
  %873 = vmatprep.subr.mxu0 0.0
  %874 = vmatpush1.msra.mxu0 0.0
  %875 = vmatprep.subr.mxu0 0.0
  %876 = vmatpush1.msra.mxu0 0.0
  %877 = vmatprep.subr.mxu0 0.0
  %878 = vmatpush1.msra.mxu0 0.0
  %879 = vmatprep.subr.mxu0 0.0
  %880 = vmatpush1.msra.mxu0 0.0
  %881 = vmatprep.subr.mxu0 0.0
  %882 = vmatpush1.msra.mxu0 0.0
  %883 = vmatprep.subr.mxu0 0.0
  %884 = vmatpush1.msra.mxu0 0.0
  %885 = vmatprep.subr.mxu0 0.0
  %886 = vmatpush1.msra.mxu0 0.0
  %887 = vmatprep.subr.mxu0 0.0
  %888 = vmatpush1.msra.mxu0 0.0
  %889 = vmatprep.subr.mxu0 0.0
  %890 = vmatpush1.msra.mxu0 0.0
  %891 = vmatprep.subr.mxu0 0.0
  %892 = vmatpush1.msra.mxu0 0.0
  %893 = vmatprep.subr.mxu0 0.0
  %894 = vmatpush1.msra.mxu0 0.0
  %895 = vmatprep.subr.mxu0 0.0
  %896 = vmatpush1.msra.mxu0 0.0
  %897 = vmatprep.subr.mxu0 0.0
  %898 = vmatpush1.msra.mxu0 0.0
  %899 = vmatprep.subr.mxu0 0.0
  %900 = vmatpush1.msra.mxu0 0.0
  %901 = vmatprep.subr.mxu0 0.0
  %902 = vmatpush1.msra.mxu0 0.0
  %903 = vmatprep.subr.mxu0 0.0
  %904 = vmatpush1.msra.mxu0 0.0
  %905 = vmatprep.subr.mxu0 0.0
  %906 = vmatpush1.msra.mxu0 0.0
  %907 = vmatprep.subr.mxu0 0.0
  %908 = vmatpush1.msra.mxu0 0.0
  %909 = vmatprep.mubr.f32.mxu0 0.0
  %910 = vmatmul.mubr.f32.gmra.mrb[0].mxu0 %v843
  %v911 = vpop.f32.mrb[0].mxu0
  %v912 = vadd.f32 0.0, %v911
  %v913 = vpop.f32.mrb[0].mxu0
  %914 = vdwg.mxu0
  %915 = vrot.lane.b32.xlu0 %v248, 112
  %v916 = vpop.permute.xlu0 %915
  %917 = vrot.lane.b32.xlu0 %v248, 80
  %v918 = vpop.permute.xlu0 %917
  %v919 = vsel %vm259, %v916, 0
  %v921 = vsel %vm259, %v918, 0
  %923 = vmatprep.subr.mxu0 0.0
  %924 = vmatpush1.xpose.msra.mxu0 %v921
  %925 = vmatprep.subr.mxu0 0.0
  %926 = vmatpush1.xpose.msra.mxu0 0.0
  %927 = vmatprep.subr.mxu0 0.0
  %928 = vmatpush1.xpose.msra.mxu0 0.0
  %929 = vmatprep.subr.mxu0 0.0
  %930 = vmatpush1.xpose.msra.mxu0 0.0
  %931 = vmatprep.subr.mxu0 0.0
  %932 = vmatpush1.xpose.msra.mxu0 0.0
  %933 = vmatprep.subr.mxu0 0.0
  %934 = vmatpush1.xpose.msra.mxu0 0.0
  %935 = vmatprep.subr.mxu0 0.0
  %936 = vmatpush1.xpose.msra.mxu0 0.0
  %937 = vmatprep.subr.mxu0 0.0
  %938 = vmatpush1.xpose.msra.mxu0 0.0
  %939 = vmatprep.subr.mxu0 0.0
  %940 = vmatpush1.xpose.msra.mxu0 0.0
  %941 = vmatprep.subr.mxu0 0.0
  %942 = vmatpush1.xpose.msra.mxu0 0.0
  %943 = vmatprep.subr.mxu0 0.0
  %944 = vmatpush1.xpose.msra.mxu0 0.0
  %945 = vmatprep.subr.mxu0 0.0
  %946 = vmatpush1.xpose.msra.mxu0 0.0
  %947 = vmatprep.subr.mxu0 0.0
  %948 = vmatpush1.xpose.msra.mxu0 0.0
  %949 = vmatprep.subr.mxu0 0.0
  %950 = vmatpush1.xpose.msra.mxu0 0.0
  %951 = vmatprep.subr.mxu0 0.0
  %952 = vmatpush1.xpose.msra.mxu0 0.0
  %953 = vmatprep.subr.mxu0 0.0
  %954 = vmatpush1.xpose.msra.mxu0 0.0
  %955 = vmatprep.subr.mxu0 0.0
  %956 = vmatpush1.xpose.msra.mxu0 0.0
  %957 = vmatprep.subr.mxu0 0.0
  %958 = vmatpush1.xpose.msra.mxu0 0.0
  %959 = vmatprep.subr.mxu0 0.0
  %960 = vmatpush1.xpose.msra.mxu0 0.0
  %961 = vmatprep.subr.mxu0 0.0
  %962 = vmatpush1.xpose.msra.mxu0 0.0
  %963 = vmatprep.subr.mxu0 0.0
  %964 = vmatpush1.xpose.msra.mxu0 0.0
  %965 = vmatprep.subr.mxu0 0.0
  %966 = vmatpush1.xpose.msra.mxu0 0.0
  %967 = vmatprep.subr.mxu0 0.0
  %968 = vmatpush1.xpose.msra.mxu0 0.0
  %969 = vmatprep.subr.mxu0 0.0
  %970 = vmatpush1.xpose.msra.mxu0 0.0
  %971 = vmatprep.subr.mxu0 0.0
  %972 = vmatpush1.xpose.msra.mxu0 0.0
  %973 = vmatprep.subr.mxu0 0.0
  %974 = vmatpush1.xpose.msra.mxu0 0.0
  %975 = vmatprep.subr.mxu0 0.0
  %976 = vmatpush1.xpose.msra.mxu0 0.0
  %977 = vmatprep.subr.mxu0 0.0
  %978 = vmatpush1.xpose.msra.mxu0 0.0
  %979 = vmatprep.subr.mxu0 0.0
  %980 = vmatpush1.xpose.msra.mxu0 0.0
  %981 = vmatprep.subr.mxu0 0.0
  %982 = vmatpush1.xpose.msra.mxu0 0.0
  %983 = vmatprep.subr.mxu0 0.0
  %984 = vmatpush1.xpose.msra.mxu0 0.0
  %985 = vmatprep.subr.mxu0 0.0
  %986 = vmatpush1.xpose.msra.mxu0 0.0
  %987 = vmatprep.mubr.f32.mxu0 0.0
  %988 = vmatmul.mubr.f32.gmra.mrb[0].mxu0 %v919
  %v989 = vpop.f32.mrb[0].mxu0
  %v990 = vadd.f32 0.0, %v989
  %v991 = vpop.f32.mrb[0].mxu0
  %992 = vdwg.mxu0
  %993 = vrot.lane.b32.xlu0 %v253, 112
  %v994 = vpop.permute.xlu0 %993
  %995 = vrot.lane.b32.xlu0 %v253, 80
  %v996 = vpop.permute.xlu0 %995
  %v997 = vsel %vm259, %v994, 0
  %v999 = vsel %vm259, %v996, 0
  %1001 = vmatprep.subr.mxu0 0.0
  %1002 = vmatpush1.xpose.msra.mxu0 %v999
  %1003 = vmatprep.subr.mxu0 0.0
  %1004 = vmatpush1.xpose.msra.mxu0 0.0
  %1005 = vmatprep.subr.mxu0 0.0
  %1006 = vmatpush1.xpose.msra.mxu0 0.0
  %1007 = vmatprep.subr.mxu0 0.0
  %1008 = vmatpush1.xpose.msra.mxu0 0.0
  %1009 = vmatprep.subr.mxu0 0.0
  %1010 = vmatpush1.xpose.msra.mxu0 0.0
  %1011 = vmatprep.subr.mxu0 0.0
  %1012 = vmatpush1.xpose.msra.mxu0 0.0
  %1013 = vmatprep.subr.mxu0 0.0
  %1014 = vmatpush1.xpose.msra.mxu0 0.0
  %1015 = vmatprep.subr.mxu0 0.0
  %1016 = vmatpush1.xpose.msra.mxu0 0.0
  %1017 = vmatprep.subr.mxu0 0.0
  %1018 = vmatpush1.xpose.msra.mxu0 0.0
  %1019 = vmatprep.subr.mxu0 0.0
  %1020 = vmatpush1.xpose.msra.mxu0 0.0
  %1021 = vmatprep.subr.mxu0 0.0
  %1022 = vmatpush1.xpose.msra.mxu0 0.0
  %1023 = vmatprep.subr.mxu0 0.0
  %1024 = vmatpush1.xpose.msra.mxu0 0.0
  %1025 = vmatprep.subr.mxu0 0.0
  %1026 = vmatpush1.xpose.msra.mxu0 0.0
  %1027 = vmatprep.subr.mxu0 0.0
  %1028 = vmatpush1.xpose.msra.mxu0 0.0
  %1029 = vmatprep.subr.mxu0 0.0
  %1030 = vmatpush1.xpose.msra.mxu0 0.0
  %1031 = vmatprep.subr.mxu0 0.0
  %1032 = vmatpush1.xpose.msra.mxu0 0.0
  %1033 = vmatprep.subr.mxu0 0.0
  %1034 = vmatpush1.xpose.msra.mxu0 0.0
  %1035 = vmatprep.subr.mxu0 0.0
  %1036 = vmatpush1.xpose.msra.mxu0 0.0
  %1037 = vmatprep.subr.mxu0 0.0
  %1038 = vmatpush1.xpose.msra.mxu0 0.0
  %1039 = vmatprep.subr.mxu0 0.0
  %1040 = vmatpush1.xpose.msra.mxu0 0.0
  %1041 = vmatprep.subr.mxu0 0.0
  %1042 = vmatpush1.xpose.msra.mxu0 0.0
  %1043 = vmatprep.subr.mxu0 0.0
  %1044 = vmatpush1.xpose.msra.mxu0 0.0
  %1045 = vmatprep.subr.mxu0 0.0
  %1046 = vmatpush1.xpose.msra.mxu0 0.0
  %1047 = vmatprep.subr.mxu0 0.0
  %1048 = vmatpush1.xpose.msra.mxu0 0.0
  %1049 = vmatprep.subr.mxu0 0.0
  %1050 = vmatpush1.xpose.msra.mxu0 0.0
  %1051 = vmatprep.subr.mxu0 0.0
  %1052 = vmatpush1.xpose.msra.mxu0 0.0
  %1053 = vmatprep.subr.mxu0 0.0
  %1054 = vmatpush1.xpose.msra.mxu0 0.0
  %1055 = vmatprep.subr.mxu0 0.0
  %1056 = vmatpush1.xpose.msra.mxu0 0.0
  %1057 = vmatprep.subr.mxu0 0.0
  %1058 = vmatpush1.xpose.msra.mxu0 0.0
  %1059 = vmatprep.subr.mxu0 0.0
  %1060 = vmatpush1.xpose.msra.mxu0 0.0
  %1061 = vmatprep.subr.mxu0 0.0
  %1062 = vmatpush1.xpose.msra.mxu0 0.0
  %1063 = vmatprep.subr.mxu0 0.0
  %1064 = vmatpush1.xpose.msra.mxu0 0.0
  %1065 = vmatprep.mubr.f32.mxu0 0.0
  %1066 = vmatmul.mubr.f32.gmra.mrb[0].mxu0 %v997
  %v1067 = vpop.f32.mrb[0].mxu0
  %v1068 = vadd.f32 0.0, %v1067
  %v1069 = vpop.f32.mrb[0].mxu0
  %1070 = vdwg.mxu0
  %v1071 = vsel %vm259, %v990, -inf
  %1072 = vmax.xlane.f32.xlu0 %v1071
  %v1073 = vpop.xlane.xlu0 %1072
  %v1074 = vsel %vm259, %v1068, -inf
  %1075 = vmax.xlane.f32.xlu0 %v1074
  %v1076 = vpop.xlane.xlu0 %1075
  %v1077 = vsub.f32 %v990, %v1073
  %v1078 = vsub.f32 %v1068, %v1076
  %v1079 = vmul.f32 %v1077, 1.442695
  %v1080 = vpow.pop %v1079
  %v1081 = vmul.f32 %v1078, 1.442695
  %v1082 = vpow.pop %v1081
  %v1083 = vsel %vm259, %v1080, 0.0
  %1084 = vadd.xlane.f32.xlu0 %v1083
  %v1085 = vpop.xlane.xlu0 %1084
  %v1086 = vsel %vm259, %v1082, 0.0
  %1087 = vadd.xlane.f32.xlu0 %v1086
  %v1088 = vpop.xlane.xlu0 %1087
  %v1089 = vrcp.pop %v1085
  %v1090 = vmul.f32 %v1080, %v1089
  %v1091 = vrcp.pop %v1088
  %v1092 = vmul.f32 %v1082, %v1091
  %1093 = vrot.lane.b32.xlu0 %v248, 48
  %v1094 = vpop.permute.xlu0 %1093
  %v1097 = vsel %vm259, %v1090, 0
  %1099 = vmatprep.subr.mxu0 0.0
  %1100 = vmatpush1.msra.mxu0 %v1094
  %1101 = vmatprep.subr.mxu0 0.0
  %1102 = vmatpush1.msra.mxu0 0.0
  %1103 = vmatprep.subr.mxu0 0.0
  %1104 = vmatpush1.msra.mxu0 0.0
  %1105 = vmatprep.subr.mxu0 0.0
  %1106 = vmatpush1.msra.mxu0 0.0
  %1107 = vmatprep.subr.mxu0 0.0
  %1108 = vmatpush1.msra.mxu0 0.0
  %1109 = vmatprep.subr.mxu0 0.0
  %1110 = vmatpush1.msra.mxu0 0.0
  %1111 = vmatprep.subr.mxu0 0.0
  %1112 = vmatpush1.msra.mxu0 0.0
  %1113 = vmatprep.subr.mxu0 0.0
  %1114 = vmatpush1.msra.mxu0 0.0
  %1115 = vmatprep.subr.mxu0 0.0
  %1116 = vmatpush1.msra.mxu0 0.0
  %1117 = vmatprep.subr.mxu0 0.0
  %1118 = vmatpush1.msra.mxu0 0.0
  %1119 = vmatprep.subr.mxu0 0.0
  %1120 = vmatpush1.msra.mxu0 0.0
  %1121 = vmatprep.subr.mxu0 0.0
  %1122 = vmatpush1.msra.mxu0 0.0
  %1123 = vmatprep.subr.mxu0 0.0
  %1124 = vmatpush1.msra.mxu0 0.0
  %1125 = vmatprep.subr.mxu0 0.0
  %1126 = vmatpush1.msra.mxu0 0.0
  %1127 = vmatprep.subr.mxu0 0.0
  %1128 = vmatpush1.msra.mxu0 0.0
  %1129 = vmatprep.subr.mxu0 0.0
  %1130 = vmatpush1.msra.mxu0 0.0
  %1131 = vmatprep.subr.mxu0 0.0
  %1132 = vmatpush1.msra.mxu0 0.0
  %1133 = vmatprep.subr.mxu0 0.0
  %1134 = vmatpush1.msra.mxu0 0.0
  %1135 = vmatprep.subr.mxu0 0.0
  %1136 = vmatpush1.msra.mxu0 0.0
  %1137 = vmatprep.subr.mxu0 0.0
  %1138 = vmatpush1.msra.mxu0 0.0
  %1139 = vmatprep.subr.mxu0 0.0
  %1140 = vmatpush1.msra.mxu0 0.0
  %1141 = vmatprep.subr.mxu0 0.0
  %1142 = vmatpush1.msra.mxu0 0.0
  %1143 = vmatprep.subr.mxu0 0.0
  %1144 = vmatpush1.msra.mxu0 0.0
  %1145 = vmatprep.subr.mxu0 0.0
  %1146 = vmatpush1.msra.mxu0 0.0
  %1147 = vmatprep.subr.mxu0 0.0
  %1148 = vmatpush1.msra.mxu0 0.0
  %1149 = vmatprep.subr.mxu0 0.0
  %1150 = vmatpush1.msra.mxu0 0.0
  %1151 = vmatprep.subr.mxu0 0.0
  %1152 = vmatpush1.msra.mxu0 0.0
  %1153 = vmatprep.subr.mxu0 0.0
  %1154 = vmatpush1.msra.mxu0 0.0
  %1155 = vmatprep.subr.mxu0 0.0
  %1156 = vmatpush1.msra.mxu0 0.0
  %1157 = vmatprep.subr.mxu0 0.0
  %1158 = vmatpush1.msra.mxu0 0.0
  %1159 = vmatprep.subr.mxu0 0.0
  %1160 = vmatpush1.msra.mxu0 0.0
  %1161 = vmatprep.subr.mxu0 0.0
  %1162 = vmatpush1.msra.mxu0 0.0
  %1163 = vmatprep.mubr.f32.mxu0 0.0
  %1164 = vmatmul.mubr.f32.gmra.mrb[0].mxu0 %v1097
  %v1165 = vpop.f32.mrb[0].mxu0
  %v1166 = vadd.f32 0.0, %v1165
  %v1167 = vpop.f32.mrb[0].mxu0
  %1168 = vdwg.mxu0
  %1169 = vrot.lane.b32.xlu0 %v253, 48
  %v1170 = vpop.permute.xlu0 %1169
  %v1173 = vsel %vm259, %v1092, 0
  %1175 = vmatprep.subr.mxu0 0.0
  %1176 = vmatpush1.msra.mxu0 %v1170
  %1177 = vmatprep.subr.mxu0 0.0
  %1178 = vmatpush1.msra.mxu0 0.0
  %1179 = vmatprep.subr.mxu0 0.0
  %1180 = vmatpush1.msra.mxu0 0.0
  %1181 = vmatprep.subr.mxu0 0.0
  %1182 = vmatpush1.msra.mxu0 0.0
  %1183 = vmatprep.subr.mxu0 0.0
  %1184 = vmatpush1.msra.mxu0 0.0
  %1185 = vmatprep.subr.mxu0 0.0
  %1186 = vmatpush1.msra.mxu0 0.0
  %1187 = vmatprep.subr.mxu0 0.0
  %1188 = vmatpush1.msra.mxu0 0.0
  %1189 = vmatprep.subr.mxu0 0.0
  %1190 = vmatpush1.msra.mxu0 0.0
  %1191 = vmatprep.subr.mxu0 0.0
  %1192 = vmatpush1.msra.mxu0 0.0
  %1193 = vmatprep.subr.mxu0 0.0
  %1194 = vmatpush1.msra.mxu0 0.0
  %1195 = vmatprep.subr.mxu0 0.0
  %1196 = vmatpush1.msra.mxu0 0.0
  %1197 = vmatprep.subr.mxu0 0.0
  %1198 = vmatpush1.msra.mxu0 0.0
  %1199 = vmatprep.subr.mxu0 0.0
  %1200 = vmatpush1.msra.mxu0 0.0
  %1201 = vmatprep.subr.mxu0 0.0
  %1202 = vmatpush1.msra.mxu0 0.0
  %1203 = vmatprep.subr.mxu0 0.0
  %1204 = vmatpush1.msra.mxu0 0.0
  %1205 = vmatprep.subr.mxu0 0.0
  %1206 = vmatpush1.msra.mxu0 0.0
  %1207 = vmatprep.subr.mxu0 0.0
  %1208 = vmatpush1.msra.mxu0 0.0
  %1209 = vmatprep.subr.mxu0 0.0
  %1210 = vmatpush1.msra.mxu0 0.0
  %1211 = vmatprep.subr.mxu0 0.0
  %1212 = vmatpush1.msra.mxu0 0.0
  %1213 = vmatprep.subr.mxu0 0.0
  %1214 = vmatpush1.msra.mxu0 0.0
  %1215 = vmatprep.subr.mxu0 0.0
  %1216 = vmatpush1.msra.mxu0 0.0
  %1217 = vmatprep.subr.mxu0 0.0
  %1218 = vmatpush1.msra.mxu0 0.0
  %1219 = vmatprep.subr.mxu0 0.0
  %1220 = vmatpush1.msra.mxu0 0.0
  %1221 = vmatprep.subr.mxu0 0.0
  %1222 = vmatpush1.msra.mxu0 0.0
  %1223 = vmatprep.subr.mxu0 0.0
  %1224 = vmatpush1.msra.mxu0 0.0
  %1225 = vmatprep.subr.mxu0 0.0
  %1226 = vmatpush1.msra.mxu0 0.0
  %1227 = vmatprep.subr.mxu0 0.0
  %1228 = vmatpush1.msra.mxu0 0.0
  %1229 = vmatprep.subr.mxu0 0.0
  %1230 = vmatpush1.msra.mxu0 0.0
  %1231 = vmatprep.subr.mxu0 0.0
  %1232 = vmatpush1.msra.mxu0 0.0
  %1233 = vmatprep.subr.mxu0 0.0
  %1234 = vmatpush1.msra.mxu0 0.0
  %1235 = vmatprep.subr.mxu0 0.0
  %1236 = vmatpush1.msra.mxu0 0.0
  %1237 = vmatprep.subr.mxu0 0.0
  %1238 = vmatpush1.msra.mxu0 0.0
  %1239 = vmatprep.mubr.f32.mxu0 0.0
  %1240 = vmatmul.mubr.f32.gmra.mrb[0].mxu0 %v1173
  %v1241 = vpop.f32.mrb[0].mxu0
  %v1242 = vadd.f32 0.0, %v1241
  %v1243 = vpop.f32.mrb[0].mxu0
  %1244 = vdwg.mxu0
  %1245 = vrot.lane.b32.xlu0 %v248, 104
  %v1246 = vpop.permute.xlu0 %1245
  %1247 = vrot.lane.b32.xlu0 %v248, 72
  %v1248 = vpop.permute.xlu0 %1247
  %v1249 = vsel %vm259, %v1246, 0
  %v1251 = vsel %vm259, %v1248, 0
  %1253 = vmatprep.subr.mxu0 0.0
  %1254 = vmatpush1.xpose.msra.mxu0 %v1251
  %1255 = vmatprep.subr.mxu0 0.0
  %1256 = vmatpush1.xpose.msra.mxu0 0.0
  %1257 = vmatprep.subr.mxu0 0.0
  %1258 = vmatpush1.xpose.msra.mxu0 0.0
  %1259 = vmatprep.subr.mxu0 0.0
  %1260 = vmatpush1.xpose.msra.mxu0 0.0
  %1261 = vmatprep.subr.mxu0 0.0
  %1262 = vmatpush1.xpose.msra.mxu0 0.0
  %1263 = vmatprep.subr.mxu0 0.0
  %1264 = vmatpush1.xpose.msra.mxu0 0.0
  %1265 = vmatprep.subr.mxu0 0.0
  %1266 = vmatpush1.xpose.msra.mxu0 0.0
  %1267 = vmatprep.subr.mxu0 0.0
  %1268 = vmatpush1.xpose.msra.mxu0 0.0
  %1269 = vmatprep.subr.mxu0 0.0
  %1270 = vmatpush1.xpose.msra.mxu0 0.0
  %1271 = vmatprep.subr.mxu0 0.0
  %1272 = vmatpush1.xpose.msra.mxu0 0.0
  %1273 = vmatprep.subr.mxu0 0.0
  %1274 = vmatpush1.xpose.msra.mxu0 0.0
  %1275 = vmatprep.subr.mxu0 0.0
  %1276 = vmatpush1.xpose.msra.mxu0 0.0
  %1277 = vmatprep.subr.mxu0 0.0
  %1278 = vmatpush1.xpose.msra.mxu0 0.0
  %1279 = vmatprep.subr.mxu0 0.0
  %1280 = vmatpush1.xpose.msra.mxu0 0.0
  %1281 = vmatprep.subr.mxu0 0.0
  %1282 = vmatpush1.xpose.msra.mxu0 0.0
  %1283 = vmatprep.subr.mxu0 0.0
  %1284 = vmatpush1.xpose.msra.mxu0 0.0
  %1285 = vmatprep.subr.mxu0 0.0
  %1286 = vmatpush1.xpose.msra.mxu0 0.0
  %1287 = vmatprep.subr.mxu0 0.0
  %1288 = vmatpush1.xpose.msra.mxu0 0.0
  %1289 = vmatprep.subr.mxu0 0.0
  %1290 = vmatpush1.xpose.msra.mxu0 0.0
  %1291 = vmatprep.subr.mxu0 0.0
  %1292 = vmatpush1.xpose.msra.mxu0 0.0
  %1293 = vmatprep.subr.mxu0 0.0
  %1294 = vmatpush1.xpose.msra.mxu0 0.0
  %1295 = vmatprep.subr.mxu0 0.0
  %1296 = vmatpush1.xpose.msra.mxu0 0.0
  %1297 = vmatprep.subr.mxu0 0.0
  %1298 = vmatpush1.xpose.msra.mxu0 0.0
  %1299 = vmatprep.subr.mxu0 0.0
  %1300 = vmatpush1.xpose.msra.mxu0 0.0
  %1301 = vmatprep.subr.mxu0 0.0
  %1302 = vmatpush1.xpose.msra.mxu0 0.0
  %1303 = vmatprep.subr.mxu0 0.0
  %1304 = vmatpush1.xpose.msra.mxu0 0.0
  %1305 = vmatprep.subr.mxu0 0.0
  %1306 = vmatpush1.xpose.msra.mxu0 0.0
  %1307 = vmatprep.subr.mxu0 0.0
  %1308 = vmatpush1.xpose.msra.mxu0 0.0
  %1309 = vmatprep.subr.mxu0 0.0
  %1310 = vmatpush1.xpose.msra.mxu0 0.0
  %1311 = vmatprep.subr.mxu0 0.0
  %1312 = vmatpush1.xpose.msra.mxu0 0.0
  %1313 = vmatprep.subr.mxu0 0.0
  %1314 = vmatpush1.xpose.msra.mxu0 0.0
  %1315 = vmatprep.subr.mxu0 0.0
  %1316 = vmatpush1.xpose.msra.mxu0 0.0
  %1317 = vmatprep.mubr.f32.mxu0 0.0
  %1318 = vmatmul.mubr.f32.gmra.mrb[0].mxu0 %v1249
  %v1319 = vpop.f32.mrb[0].mxu0
  %v1320 = vadd.f32 0.0, %v1319
  %v1321 = vpop.f32.mrb[0].mxu0
  %1322 = vdwg.mxu0
  %1323 = vrot.lane.b32.xlu0 %v253, 104
  %v1324 = vpop.permute.xlu0 %1323
  %1325 = vrot.lane.b32.xlu0 %v253, 72
  %v1326 = vpop.permute.xlu0 %1325
  %v1327 = vsel %vm259, %v1324, 0
  %v1329 = vsel %vm259, %v1326, 0
  %1331 = vmatprep.subr.mxu0 0.0
  %1332 = vmatpush1.xpose.msra.mxu0 %v1329
  %1333 = vmatprep.subr.mxu0 0.0
  %1334 = vmatpush1.xpose.msra.mxu0 0.0
  %1335 = vmatprep.subr.mxu0 0.0
  %1336 = vmatpush1.xpose.msra.mxu0 0.0
  %1337 = vmatprep.subr.mxu0 0.0
  %1338 = vmatpush1.xpose.msra.mxu0 0.0
  %1339 = vmatprep.subr.mxu0 0.0
  %1340 = vmatpush1.xpose.msra.mxu0 0.0
  %1341 = vmatprep.subr.mxu0 0.0
  %1342 = vmatpush1.xpose.msra.mxu0 0.0
  %1343 = vmatprep.subr.mxu0 0.0
  %1344 = vmatpush1.xpose.msra.mxu0 0.0
  %1345 = vmatprep.subr.mxu0 0.0
  %1346 = vmatpush1.xpose.msra.mxu0 0.0
  %1347 = vmatprep.subr.mxu0 0.0
  %1348 = vmatpush1.xpose.msra.mxu0 0.0
  %1349 = vmatprep.subr.mxu0 0.0
  %1350 = vmatpush1.xpose.msra.mxu0 0.0
  %1351 = vmatprep.subr.mxu0 0.0
  %1352 = vmatpush1.xpose.msra.mxu0 0.0
  %1353 = vmatprep.subr.mxu0 0.0
  %1354 = vmatpush1.xpose.msra.mxu0 0.0
  %1355 = vmatprep.subr.mxu0 0.0
  %1356 = vmatpush1.xpose.msra.mxu0 0.0
  %1357 = vmatprep.subr.mxu0 0.0
  %1358 = vmatpush1.xpose.msra.mxu0 0.0
  %1359 = vmatprep.subr.mxu0 0.0
  %1360 = vmatpush1.xpose.msra.mxu0 0.0
  %1361 = vmatprep.subr.mxu0 0.0
  %1362 = vmatpush1.xpose.msra.mxu0 0.0
  %1363 = vmatprep.subr.mxu0 0.0
  %1364 = vmatpush1.xpose.msra.mxu0 0.0
  %1365 = vmatprep.subr.mxu0 0.0
  %1366 = vmatpush1.xpose.msra.mxu0 0.0
  %1367 = vmatprep.subr.mxu0 0.0
  %1368 = vmatpush1.xpose.msra.mxu0 0.0
  %1369 = vmatprep.subr.mxu0 0.0
  %1370 = vmatpush1.xpose.msra.mxu0 0.0
  %1371 = vmatprep.subr.mxu0 0.0
  %1372 = vmatpush1.xpose.msra.mxu0 0.0
  %1373 = vmatprep.subr.mxu0 0.0
  %1374 = vmatpush1.xpose.msra.mxu0 0.0
  %1375 = vmatprep.subr.mxu0 0.0
  %1376 = vmatpush1.xpose.msra.mxu0 0.0
  %1377 = vmatprep.subr.mxu0 0.0
  %1378 = vmatpush1.xpose.msra.mxu0 0.0
  %1379 = vmatprep.subr.mxu0 0.0
  %1380 = vmatpush1.xpose.msra.mxu0 0.0
  %1381 = vmatprep.subr.mxu0 0.0
  %1382 = vmatpush1.xpose.msra.mxu0 0.0
  %1383 = vmatprep.subr.mxu0 0.0
  %1384 = vmatpush1.xpose.msra.mxu0 0.0
  %1385 = vmatprep.subr.mxu0 0.0
  %1386 = vmatpush1.xpose.msra.mxu0 0.0
  %1387 = vmatprep.subr.mxu0 0.0
  %1388 = vmatpush1.xpose.msra.mxu0 0.0
  %1389 = vmatprep.subr.mxu0 0.0
  %1390 = vmatpush1.xpose.msra.mxu0 0.0
  %1391 = vmatprep.subr.mxu0 0.0
  %1392 = vmatpush1.xpose.msra.mxu0 0.0
  %1393 = vmatprep.subr.mxu0 0.0
  %1394 = vmatpush1.xpose.msra.mxu0 0.0
  %1395 = vmatprep.mubr.f32.mxu0 0.0
  %1396 = vmatmul.mubr.f32.gmra.mrb[0].mxu0 %v1327
  %v1397 = vpop.f32.mrb[0].mxu0
  %v1398 = vadd.f32 0.0, %v1397
  %v1399 = vpop.f32.mrb[0].mxu0
  %1400 = vdwg.mxu0
  %v1401 = vsel %vm259, %v1320, -inf
  %1402 = vmax.xlane.f32.xlu0 %v1401
  %v1403 = vpop.xlane.xlu0 %1402
  %v1404 = vsel %vm259, %v1398, -inf
  %1405 = vmax.xlane.f32.xlu0 %v1404
  %v1406 = vpop.xlane.xlu0 %1405
  %v1407 = vsub.f32 %v1320, %v1403
  %v1408 = vsub.f32 %v1398, %v1406
  %v1409 = vmul.f32 %v1407, 1.442695
  %v1410 = vpow.pop %v1409
  %v1411 = vmul.f32 %v1408, 1.442695
  %v1412 = vpow.pop %v1411
  %v1413 = vsel %vm259, %v1410, 0.0
  %1414 = vadd.xlane.f32.xlu0 %v1413
  %v1415 = vpop.xlane.xlu0 %1414
  %v1416 = vsel %vm259, %v1412, 0.0
  %1417 = vadd.xlane.f32.xlu0 %v1416
  %v1418 = vpop.xlane.xlu0 %1417
  %v1419 = vrcp.pop %v1415
  %v1420 = vmul.f32 %v1410, %v1419
  %v1421 = vrcp.pop %v1418
  %v1422 = vmul.f32 %v1412, %v1421
  %1423 = vrot.lane.b32.xlu0 %v248, 40
  %v1424 = vpop.permute.xlu0 %1423
  %v1427 = vsel %vm259, %v1420, 0
  %1429 = vmatprep.subr.mxu0 0.0
  %1430 = vmatpush1.msra.mxu0 %v1424
  %1431 = vmatprep.subr.mxu0 0.0
  %1432 = vmatpush1.msra.mxu0 0.0
  %1433 = vmatprep.subr.mxu0 0.0
  %1434 = vmatpush1.msra.mxu0 0.0
  %1435 = vmatprep.subr.mxu0 0.0
  %1436 = vmatpush1.msra.mxu0 0.0
  %1437 = vmatprep.subr.mxu0 0.0
  %1438 = vmatpush1.msra.mxu0 0.0
  %1439 = vmatprep.subr.mxu0 0.0
  %1440 = vmatpush1.msra.mxu0 0.0
  %1441 = vmatprep.subr.mxu0 0.0
  %1442 = vmatpush1.msra.mxu0 0.0
  %1443 = vmatprep.subr.mxu0 0.0
  %1444 = vmatpush1.msra.mxu0 0.0
  %1445 = vmatprep.subr.mxu0 0.0
  %1446 = vmatpush1.msra.mxu0 0.0
  %1447 = vmatprep.subr.mxu0 0.0
  %1448 = vmatpush1.msra.mxu0 0.0
  %1449 = vmatprep.subr.mxu0 0.0
  %1450 = vmatpush1.msra.mxu0 0.0
  %1451 = vmatprep.subr.mxu0 0.0
  %1452 = vmatpush1.msra.mxu0 0.0
  %1453 = vmatprep.subr.mxu0 0.0
  %1454 = vmatpush1.msra.mxu0 0.0
  %1455 = vmatprep.subr.mxu0 0.0
  %1456 = vmatpush1.msra.mxu0 0.0
  %1457 = vmatprep.subr.mxu0 0.0
  %1458 = vmatpush1.msra.mxu0 0.0
  %1459 = vmatprep.subr.mxu0 0.0
  %1460 = vmatpush1.msra.mxu0 0.0
  %1461 = vmatprep.subr.mxu0 0.0
  %1462 = vmatpush1.msra.mxu0 0.0
  %1463 = vmatprep.subr.mxu0 0.0
  %1464 = vmatpush1.msra.mxu0 0.0
  %1465 = vmatprep.subr.mxu0 0.0
  %1466 = vmatpush1.msra.mxu0 0.0
  %1467 = vmatprep.subr.mxu0 0.0
  %1468 = vmatpush1.msra.mxu0 0.0
  %1469 = vmatprep.subr.mxu0 0.0
  %1470 = vmatpush1.msra.mxu0 0.0
  %1471 = vmatprep.subr.mxu0 0.0
  %1472 = vmatpush1.msra.mxu0 0.0
  %1473 = vmatprep.subr.mxu0 0.0
  %1474 = vmatpush1.msra.mxu0 0.0
  %1475 = vmatprep.subr.mxu0 0.0
  %1476 = vmatpush1.msra.mxu0 0.0
  %1477 = vmatprep.subr.mxu0 0.0
  %1478 = vmatpush1.msra.mxu0 0.0
  %1479 = vmatprep.subr.mxu0 0.0
  %1480 = vmatpush1.msra.mxu0 0.0
  %1481 = vmatprep.subr.mxu0 0.0
  %1482 = vmatpush1.msra.mxu0 0.0
  %1483 = vmatprep.subr.mxu0 0.0
  %1484 = vmatpush1.msra.mxu0 0.0
  %1485 = vmatprep.subr.mxu0 0.0
  %1486 = vmatpush1.msra.mxu0 0.0
  %1487 = vmatprep.subr.mxu0 0.0
  %1488 = vmatpush1.msra.mxu0 0.0
  %1489 = vmatprep.subr.mxu0 0.0
  %1490 = vmatpush1.msra.mxu0 0.0
  %1491 = vmatprep.subr.mxu0 0.0
  %1492 = vmatpush1.msra.mxu0 0.0
  %1493 = vmatprep.mubr.f32.mxu0 0.0
  %1494 = vmatmul.mubr.f32.gmra.mrb[0].mxu0 %v1427
  %v1495 = vpop.f32.mrb[0].mxu0
  %v1496 = vadd.f32 0.0, %v1495
  %v1497 = vpop.f32.mrb[0].mxu0
  %1498 = vdwg.mxu0
  %1499 = vrot.lane.b32.xlu0 %v253, 40
  %v1500 = vpop.permute.xlu0 %1499
  %v1503 = vsel %vm259, %v1422, 0
  %1505 = vmatprep.subr.mxu0 0.0
  %1506 = vmatpush1.msra.mxu0 %v1500
  %1507 = vmatprep.subr.mxu0 0.0
  %1508 = vmatpush1.msra.mxu0 0.0
  %1509 = vmatprep.subr.mxu0 0.0
  %1510 = vmatpush1.msra.mxu0 0.0
  %1511 = vmatprep.subr.mxu0 0.0
  %1512 = vmatpush1.msra.mxu0 0.0
  %1513 = vmatprep.subr.mxu0 0.0
  %1514 = vmatpush1.msra.mxu0 0.0
  %1515 = vmatprep.subr.mxu0 0.0
  %1516 = vmatpush1.msra.mxu0 0.0
  %1517 = vmatprep.subr.mxu0 0.0
  %1518 = vmatpush1.msra.mxu0 0.0
  %1519 = vmatprep.subr.mxu0 0.0
  %1520 = vmatpush1.msra.mxu0 0.0
  %1521 = vmatprep.subr.mxu0 0.0
  %1522 = vmatpush1.msra.mxu0 0.0
  %1523 = vmatprep.subr.mxu0 0.0
  %1524 = vmatpush1.msra.mxu0 0.0
  %1525 = vmatprep.subr.mxu0 0.0
  %1526 = vmatpush1.msra.mxu0 0.0
  %1527 = vmatprep.subr.mxu0 0.0
  %1528 = vmatpush1.msra.mxu0 0.0
  %1529 = vmatprep.subr.mxu0 0.0
  %1530 = vmatpush1.msra.mxu0 0.0
  %1531 = vmatprep.subr.mxu0 0.0
  %1532 = vmatpush1.msra.mxu0 0.0
  %1533 = vmatprep.subr.mxu0 0.0
  %1534 = vmatpush1.msra.mxu0 0.0
  %1535 = vmatprep.subr.mxu0 0.0
  %1536 = vmatpush1.msra.mxu0 0.0
  %1537 = vmatprep.subr.mxu0 0.0
  %1538 = vmatpush1.msra.mxu0 0.0
  %1539 = vmatprep.subr.mxu0 0.0
  %1540 = vmatpush1.msra.mxu0 0.0
  %1541 = vmatprep.subr.mxu0 0.0
  %1542 = vmatpush1.msra.mxu0 0.0
  %1543 = vmatprep.subr.mxu0 0.0
  %1544 = vmatpush1.msra.mxu0 0.0
  %1545 = vmatprep.subr.mxu0 0.0
  %1546 = vmatpush1.msra.mxu0 0.0
  %1547 = vmatprep.subr.mxu0 0.0
  %1548 = vmatpush1.msra.mxu0 0.0
  %1549 = vmatprep.subr.mxu0 0.0
  %1550 = vmatpush1.msra.mxu0 0.0
  %1551 = vmatprep.subr.mxu0 0.0
  %1552 = vmatpush1.msra.mxu0 0.0
  %1553 = vmatprep.subr.mxu0 0.0
  %1554 = vmatpush1.msra.mxu0 0.0
  %1555 = vmatprep.subr.mxu0 0.0
  %1556 = vmatpush1.msra.mxu0 0.0
  %1557 = vmatprep.subr.mxu0 0.0
  %1558 = vmatpush1.msra.mxu0 0.0
  %1559 = vmatprep.subr.mxu0 0.0
  %1560 = vmatpush1.msra.mxu0 0.0
  %1561 = vmatprep.subr.mxu0 0.0
  %1562 = vmatpush1.msra.mxu0 0.0
  %1563 = vmatprep.subr.mxu0 0.0
  %1564 = vmatpush1.msra.mxu0 0.0
  %1565 = vmatprep.subr.mxu0 0.0
  %1566 = vmatpush1.msra.mxu0 0.0
  %1567 = vmatprep.subr.mxu0 0.0
  %1568 = vmatpush1.msra.mxu0 0.0
  %1569 = vmatprep.mubr.f32.mxu0 0.0
  %1570 = vmatmul.mubr.f32.gmra.mrb[0].mxu0 %v1503
  %v1571 = vpop.f32.mrb[0].mxu0
  %v1572 = vadd.f32 0.0, %v1571
  %v1573 = vpop.f32.mrb[0].mxu0
  %1574 = vdwg.mxu0
  %1577 = vrot.lane.b32.xlu0 %v836, 8
  %v1578 = vpop.permute.xlu0 %1577
  %1579 = vrot.lane.b32.xlu0 %v912, 8
  %v1580 = vpop.permute.xlu0 %1579
  %1585 = vrot.lane.b32.xlu0 %v1166, 16
  %v1586 = vpop.permute.xlu0 %1585
  %1587 = vrot.lane.b32.xlu0 %v1242, 16
  %v1588 = vpop.permute.xlu0 %1587
  %1593 = vrot.lane.b32.xlu0 %v1496, 24
  %v1594 = vpop.permute.xlu0 %1593
  %1595 = vrot.lane.b32.xlu0 %v1572, 24
  %v1596 = vpop.permute.xlu0 %1595
  %v1599 = vsel %vm259, %v506, %v1578
  %v1600 = vsel %vm259, %v582, %v1580
  %vm1601 = vcmask 130048
  %v1602 = vsel %vm1601, %v1599, %v1586
  %v1603 = vsel %vm1601, %v1600, %v1588
  %vm1604 = vcmask 195584
  %v1605 = vsel %vm1604, %v1602, %v1594
  %v1606 = vsel %vm1604, %v1603, %v1596
  %v1607 = vld [vmem:[%s9] sm:$0xff]
  %v1608 = vld [vmem:[%s9 + $0x8] sm:$0xff]
  %v1609 = vld [vmem:[%s9 + $0x10] sm:$0xff]
  %v1610 = vld [vmem:[%s9 + $0x18] sm:$0xff]
  %v1611 = vld [vmem:[%s11] sm:$0x1]
  %v1613 = vlaneseq
  %v1614 = vshrl.u32 %v1613, 7
  %v1615 = vsub.s32 0, %v1614
  %v1616 = vrot.slane %v1611, %v1615
  %v1619 = vsel %vm174, %v1605, 0
  %v1622 = vsel %vm174, %v1606, 0
  %1624 = vmatprep.subr.mxu0 0.0
  %1625 = vmatpush1.msra.mxu0 %v1607
  %1626 = vmatprep.subr.mxu0 0.0
  %1627 = vmatpush1.msra.mxu0 %v1608
  %1628 = vmatprep.subr.mxu0 0.0
  %1629 = vmatpush1.msra.mxu0 %v1609
  %1630 = vmatprep.subr.mxu0 0.0
  %1631 = vmatpush1.msra.mxu0 %v1610
  %1632 = vmatprep.subr.mxu0 0.0
  %1633 = vmatpush1.msra.mxu0 0.0
  %1634 = vmatprep.subr.mxu0 0.0
  %1635 = vmatpush1.msra.mxu0 0.0
  %1636 = vmatprep.subr.mxu0 0.0
  %1637 = vmatpush1.msra.mxu0 0.0
  %1638 = vmatprep.subr.mxu0 0.0
  %1639 = vmatpush1.msra.mxu0 0.0
  %1640 = vmatprep.subr.mxu0 0.0
  %1641 = vmatpush1.msra.mxu0 0.0
  %1642 = vmatprep.subr.mxu0 0.0
  %1643 = vmatpush1.msra.mxu0 0.0
  %1644 = vmatprep.subr.mxu0 0.0
  %1645 = vmatpush1.msra.mxu0 0.0
  %1646 = vmatprep.subr.mxu0 0.0
  %1647 = vmatpush1.msra.mxu0 0.0
  %1648 = vmatprep.subr.mxu0 0.0
  %1649 = vmatpush1.msra.mxu0 0.0
  %1650 = vmatprep.subr.mxu0 0.0
  %1651 = vmatpush1.msra.mxu0 0.0
  %1652 = vmatprep.subr.mxu0 0.0
  %1653 = vmatpush1.msra.mxu0 0.0
  %1654 = vmatprep.subr.mxu0 0.0
  %1655 = vmatpush1.msra.mxu0 0.0
  %1656 = vmatprep.subr.mxu0 0.0
  %1657 = vmatpush1.msra.mxu0 0.0
  %1658 = vmatprep.subr.mxu0 0.0
  %1659 = vmatpush1.msra.mxu0 0.0
  %1660 = vmatprep.subr.mxu0 0.0
  %1661 = vmatpush1.msra.mxu0 0.0
  %1662 = vmatprep.subr.mxu0 0.0
  %1663 = vmatpush1.msra.mxu0 0.0
  %1664 = vmatprep.subr.mxu0 0.0
  %1665 = vmatpush1.msra.mxu0 0.0
  %1666 = vmatprep.subr.mxu0 0.0
  %1667 = vmatpush1.msra.mxu0 0.0
  %1668 = vmatprep.subr.mxu0 0.0
  %1669 = vmatpush1.msra.mxu0 0.0
  %1670 = vmatprep.subr.mxu0 0.0
  %1671 = vmatpush1.msra.mxu0 0.0
  %1672 = vmatprep.subr.mxu0 0.0
  %1673 = vmatpush1.msra.mxu0 0.0
  %1674 = vmatprep.subr.mxu0 0.0
  %1675 = vmatpush1.msra.mxu0 0.0
  %1676 = vmatprep.subr.mxu0 0.0
  %1677 = vmatpush1.msra.mxu0 0.0
  %1678 = vmatprep.subr.mxu0 0.0
  %1679 = vmatpush1.msra.mxu0 0.0
  %1680 = vmatprep.subr.mxu0 0.0
  %1681 = vmatpush1.msra.mxu0 0.0
  %1682 = vmatprep.subr.mxu0 0.0
  %1683 = vmatpush1.msra.mxu0 0.0
  %1684 = vmatprep.subr.mxu0 0.0
  %1685 = vmatpush1.msra.mxu0 0.0
  %1686 = vmatprep.subr.mxu0 0.0
  %1687 = vmatpush1.msra.mxu0 0.0
  %1688 = vmatprep.mubr.f32.mxu0 0.0
  %1689 = vmatmul.mubr.f32.gmra.mrb[0].mxu0 %v1619
  %v1690 = vpop.f32.mrb[0].mxu0
  %v1691 = vadd.f32 %v1616, %v1690
  %v1692 = vpop.f32.mrb[0].mxu0
  %1693 = vmatprep.mubr.f32.mxu0 0.0
  %1694 = vmatmul.mubr.f32.gmra.mrb[0].mxu0 %v1622
  %v1695 = vpop.f32.mrb[0].mxu0
  %v1696 = vadd.f32 %v1616, %v1695
  %v1697 = vpop.f32.mrb[0].mxu0
  %1698 = vdwg.mxu0
  %v1699 = vadd.f32 %v159, %v1691
  %v1700 = vadd.f32 %v160, %v1696
  %v1701 = vsel %vm174, %v1699, 0.0
  %1702 = vadd.xlane.f32.xlu0 %v1701
  %v1703 = vpop.xlane.xlu0 %1702
  %v1704 = vsel %vm174, %v1700, 0.0
  %1705 = vadd.xlane.f32.xlu0 %v1704
  %v1706 = vpop.xlane.xlu0 %1705
  %v1707 = vrcp.pop 32.0
  %v1708 = vmul.f32 %v1703, %v1707
  %v1709 = vmul.f32 %v1706, %v1707
  %v1710 = vsub.f32 %v1699, %v1708
  %v1711 = vsub.f32 %v1700, %v1709
  %v1712 = vmul.f32 %v1710, %v1710
  %v1713 = vmul.f32 %v1711, %v1711
  %v1714 = vsel %vm174, %v1712, 0.0
  %1715 = vadd.xlane.f32.xlu0 %v1714
  %v1716 = vpop.xlane.xlu0 %1715
  %v1717 = vsel %vm174, %v1713, 0.0
  %1718 = vadd.xlane.f32.xlu0 %v1717
  %v1719 = vpop.xlane.xlu0 %1718
  %v1720 = vmul.f32 %v1716, %v1707
  %v1721 = vmul.f32 %v1719, %v1707
  %v1722 = vadd.f32 %v1720, 1e-05
  %v1723 = vadd.f32 %v1721, 1e-05
  %v1724 = vrsqrt.pop %v1722
  %v1725 = vrsqrt.pop %v1723
  %v1726 = vmul.f32 %v1710, %v1724
  %v1727 = vmul.f32 %v1711, %v1725
  %v1728 = vld [vmem:[%s13] sm:$0x1]
  %v1730 = vlaneseq
  %v1731 = vshrl.u32 %v1730, 7
  %v1732 = vsub.s32 0, %v1731
  %v1733 = vrot.slane %v1728, %v1732
  %v1735 = vmul.f32 %v1726, %v1733
  %v1736 = vmul.f32 %v1727, %v1733
  %v1737 = vld [vmem:[%s15] sm:$0x1]
  %v1739 = vlaneseq
  %v1740 = vshrl.u32 %v1739, 7
  %v1741 = vsub.s32 0, %v1740
  %v1742 = vrot.slane %v1737, %v1741
  %v1744 = vadd.f32 %v1735, %v1742
  %v1745 = vadd.f32 %v1736, %v1742
  %v1746 = vpack.c.bf16 %v1745, %v1744
  %v1747 = vld [vmem:[%s17] sm:$0xff]
  %v1748 = vld [vmem:[%s17 + $0x8] sm:$0xff]
  %v1749 = vld [vmem:[%s17 + $0x10] sm:$0xff]
  %v1750 = vld [vmem:[%s17 + $0x18] sm:$0xff]
  %v1751 = vld [vmem:[%s17 + $0x20] sm:$0xff]
  %v1752 = vld [vmem:[%s17 + $0x28] sm:$0xff]
  %v1753 = vld [vmem:[%s17 + $0x30] sm:$0xff]
  %v1754 = vld [vmem:[%s17 + $0x38] sm:$0xff]
  %v1755 = vld [vmem:[%s17 + $0x40] sm:$0xff]
  %v1756 = vld [vmem:[%s17 + $0x48] sm:$0xff]
  %v1757 = vld [vmem:[%s17 + $0x50] sm:$0xff]
  %v1758 = vld [vmem:[%s17 + $0x58] sm:$0xff]
  %v1759 = vld [vmem:[%s17 + $0x60] sm:$0xff]
  %v1760 = vld [vmem:[%s17 + $0x68] sm:$0xff]
  %v1761 = vld [vmem:[%s17 + $0x70] sm:$0xff]
  %v1762 = vld [vmem:[%s17 + $0x78] sm:$0xff]
  %v1763 = vld [vmem:[%s17 + $0x80] sm:$0xff]
  %v1764 = vld [vmem:[%s17 + $0x88] sm:$0xff]
  %v1765 = vld [vmem:[%s17 + $0x90] sm:$0xff]
  %v1766 = vld [vmem:[%s17 + $0x98] sm:$0xff]
  %v1767 = vld [vmem:[%s17 + $0xa0] sm:$0xff]
  %v1768 = vld [vmem:[%s17 + $0xa8] sm:$0xff]
  %v1769 = vld [vmem:[%s17 + $0xb0] sm:$0xff]
  %v1770 = vld [vmem:[%s17 + $0xb8] sm:$0xff]
  %v1771 = vld [vmem:[%s17 + $0xc0] sm:$0xff]
  %v1772 = vld [vmem:[%s17 + $0xc8] sm:$0xff]
  %v1773 = vld [vmem:[%s17 + $0xd0] sm:$0xff]
  %v1774 = vld [vmem:[%s17 + $0xd8] sm:$0xff]
  %v1775 = vld [vmem:[%s17 + $0xe0] sm:$0xff]
  %v1776 = vld [vmem:[%s17 + $0xe8] sm:$0xff]
  %v1777 = vld [vmem:[%s17 + $0xf0] sm:$0xff]
  %v1778 = vld [vmem:[%s17 + $0xf8] sm:$0xff]
  %v1779 = vld [vmem:[%s19] sm:$0xff]
  %v1780 = vld [vmem:[%s19 + $0x8] sm:$0xff]
  %v1783 = vlaneseq
  %v1784 = vshrl.u32 %v1783, 7
  %v1785 = vsub.s32 0, %v1784
  %v1786 = vrot.slane %v1779, %v1785
  %v1787 = vlaneseq
  %v1788 = vshrl.u32 %v1787, 7
  %v1789 = vsub.s32 1, %v1788
  %v1790 = vrot.slane %v1779, %v1789
  %v1791 = vlaneseq
  %v1792 = vshrl.u32 %v1791, 7
  %v1793 = vsub.s32 2, %v1792
  %v1794 = vrot.slane %v1779, %v1793
  %v1795 = vlaneseq
  %v1796 = vshrl.u32 %v1795, 7
  %v1797 = vsub.s32 3, %v1796
  %v1798 = vrot.slane %v1779, %v1797
  %v1799 = vlaneseq
  %v1800 = vshrl.u32 %v1799, 7
  %v1801 = vsub.s32 4, %v1800
  %v1802 = vrot.slane %v1779, %v1801
  %v1803 = vlaneseq
  %v1804 = vshrl.u32 %v1803, 7
  %v1805 = vsub.s32 5, %v1804
  %v1806 = vrot.slane %v1779, %v1805
  %v1807 = vlaneseq
  %v1808 = vshrl.u32 %v1807, 7
  %v1809 = vsub.s32 6, %v1808
  %v1810 = vrot.slane %v1779, %v1809
  %v1811 = vlaneseq
  %v1812 = vshrl.u32 %v1811, 7
  %v1813 = vsub.s32 7, %v1812
  %v1814 = vrot.slane %v1779, %v1813
  %v1815 = vlaneseq
  %v1816 = vshrl.u32 %v1815, 7
  %v1817 = vsub.s32 0, %v1816
  %v1818 = vrot.slane %v1780, %v1817
  %v1819 = vlaneseq
  %v1820 = vshrl.u32 %v1819, 7
  %v1821 = vsub.s32 1, %v1820
  %v1822 = vrot.slane %v1780, %v1821
  %v1823 = vlaneseq
  %v1824 = vshrl.u32 %v1823, 7
  %v1825 = vsub.s32 2, %v1824
  %v1826 = vrot.slane %v1780, %v1825
  %v1827 = vlaneseq
  %v1828 = vshrl.u32 %v1827, 7
  %v1829 = vsub.s32 3, %v1828
  %v1830 = vrot.slane %v1780, %v1829
  %v1831 = vlaneseq
  %v1832 = vshrl.u32 %v1831, 7
  %v1833 = vsub.s32 4, %v1832
  %v1834 = vrot.slane %v1780, %v1833
  %v1835 = vlaneseq
  %v1836 = vshrl.u32 %v1835, 7
  %v1837 = vsub.s32 5, %v1836
  %v1838 = vrot.slane %v1780, %v1837
  %v1839 = vlaneseq
  %v1840 = vshrl.u32 %v1839, 7
  %v1841 = vsub.s32 6, %v1840
  %v1842 = vrot.slane %v1780, %v1841
  %v1843 = vlaneseq
  %v1844 = vshrl.u32 %v1843, 7
  %v1845 = vsub.s32 7, %v1844
  %v1846 = vrot.slane %v1780, %v1845
  %v1895 = vunpack.c.l.b16 %v1747
  %v1896 = vunpack.c.h.b16 %v1747
  %v1897 = vunpack.c.l.b16 %v1748
  %v1898 = vunpack.c.h.b16 %v1748
  %v1899 = vunpack.c.l.b16 %v1749
  %v1900 = vunpack.c.h.b16 %v1749
  %v1901 = vunpack.c.l.b16 %v1750
  %v1902 = vunpack.c.h.b16 %v1750
  %v1903 = vunpack.c.l.b16 %v1751
  %v1904 = vunpack.c.h.b16 %v1751
  %v1905 = vunpack.c.l.b16 %v1752
  %v1906 = vunpack.c.h.b16 %v1752
  %v1907 = vunpack.c.l.b16 %v1753
  %v1908 = vunpack.c.h.b16 %v1753
  %v1909 = vunpack.c.l.b16 %v1754
  %v1910 = vunpack.c.h.b16 %v1754
  %v1911 = vunpack.c.l.b16 %v1755
  %v1912 = vunpack.c.h.b16 %v1755
  %v1913 = vunpack.c.l.b16 %v1756
  %v1914 = vunpack.c.h.b16 %v1756
  %v1915 = vunpack.c.l.b16 %v1757
  %v1916 = vunpack.c.h.b16 %v1757
  %v1917 = vunpack.c.l.b16 %v1758
  %v1918 = vunpack.c.h.b16 %v1758
  %v1919 = vunpack.c.l.b16 %v1759
  %v1920 = vunpack.c.h.b16 %v1759
  %v1921 = vunpack.c.l.b16 %v1760
  %v1922 = vunpack.c.h.b16 %v1760
  %v1923 = vunpack.c.l.b16 %v1761
  %v1924 = vunpack.c.h.b16 %v1761
  %v1925 = vunpack.c.l.b16 %v1762
  %v1926 = vunpack.c.h.b16 %v1762
  %v1927 = vunpack.c.l.b16 %v1763
  %v1928 = vunpack.c.h.b16 %v1763
  %v1929 = vunpack.c.l.b16 %v1764
  %v1930 = vunpack.c.h.b16 %v1764
  %v1931 = vunpack.c.l.b16 %v1765
  %v1932 = vunpack.c.h.b16 %v1765
  %v1933 = vunpack.c.l.b16 %v1766
  %v1934 = vunpack.c.h.b16 %v1766
  %v1935 = vunpack.c.l.b16 %v1767
  %v1936 = vunpack.c.h.b16 %v1767
  %v1937 = vunpack.c.l.b16 %v1768
  %v1938 = vunpack.c.h.b16 %v1768
  %v1939 = vunpack.c.l.b16 %v1769
  %v1940 = vunpack.c.h.b16 %v1769
  %v1941 = vunpack.c.l.b16 %v1770
  %v1942 = vunpack.c.h.b16 %v1770
  %v1943 = vunpack.c.l.b16 %v1771
  %v1944 = vunpack.c.h.b16 %v1771
  %v1945 = vunpack.c.l.b16 %v1772
  %v1946 = vunpack.c.h.b16 %v1772
  %v1947 = vunpack.c.l.b16 %v1773
  %v1948 = vunpack.c.h.b16 %v1773
  %v1949 = vunpack.c.l.b16 %v1774
  %v1950 = vunpack.c.h.b16 %v1774
  %v1951 = vunpack.c.l.b16 %v1775
  %v1952 = vunpack.c.h.b16 %v1775
  %v1953 = vunpack.c.l.b16 %v1776
  %v1954 = vunpack.c.h.b16 %v1776
  %v1955 = vunpack.c.l.b16 %v1777
  %v1956 = vunpack.c.h.b16 %v1777
  %v1957 = vunpack.c.l.b16 %v1778
  %v1958 = vunpack.c.h.b16 %v1778
  %v1959 = vpack.c.b16 %v1911, %v1895
  %v1960 = vpack.c.b16 %v1912, %v1896
  %v1961 = vpack.c.b16 %v1913, %v1897
  %v1962 = vpack.c.b16 %v1914, %v1898
  %v1963 = vpack.c.b16 %v1915, %v1899
  %v1964 = vpack.c.b16 %v1916, %v1900
  %v1965 = vpack.c.b16 %v1917, %v1901
  %v1966 = vpack.c.b16 %v1918, %v1902
  %v1967 = vpack.c.b16 %v1919, %v1903
  %v1968 = vpack.c.b16 %v1920, %v1904
  %v1969 = vpack.c.b16 %v1921, %v1905
  %v1970 = vpack.c.b16 %v1922, %v1906
  %v1971 = vpack.c.b16 %v1923, %v1907
  %v1972 = vpack.c.b16 %v1924, %v1908
  %v1973 = vpack.c.b16 %v1925, %v1909
  %v1974 = vpack.c.b16 %v1926, %v1910
  %v1975 = vpack.c.b16 %v1943, %v1927
  %v1976 = vpack.c.b16 %v1944, %v1928
  %v1977 = vpack.c.b16 %v1945, %v1929
  %v1978 = vpack.c.b16 %v1946, %v1930
  %v1979 = vpack.c.b16 %v1947, %v1931
  %v1980 = vpack.c.b16 %v1948, %v1932
  %v1981 = vpack.c.b16 %v1949, %v1933
  %v1982 = vpack.c.b16 %v1950, %v1934
  %v1983 = vpack.c.b16 %v1951, %v1935
  %v1984 = vpack.c.b16 %v1952, %v1936
  %v1985 = vpack.c.b16 %v1953, %v1937
  %v1986 = vpack.c.b16 %v1954, %v1938
  %v1987 = vpack.c.b16 %v1955, %v1939
  %v1988 = vpack.c.b16 %v1956, %v1940
  %v1989 = vpack.c.b16 %v1957, %v1941
  %v1990 = vpack.c.b16 %v1958, %v1942
  %v2024 = vsel %vm174, %v1746, 0
  %2026 = vmatprep.subr.bf16.mxu0 %v1960
  %2027 = vmatpush1.bf16.msra.mxu0 %v1959
  %2028 = vmatprep.subr.bf16.mxu0 %v1976
  %2029 = vmatpush1.bf16.msra.mxu0 %v1975
  %2030 = vmatprep.subr.bf16.mxu0 0
  %2031 = vmatpush1.bf16.msra.mxu0 0
  %2032 = vmatprep.subr.bf16.mxu0 0
  %2033 = vmatpush1.bf16.msra.mxu0 0
  %2034 = vmatprep.subr.bf16.mxu0 0
  %2035 = vmatpush1.bf16.msra.mxu0 0
  %2036 = vmatprep.subr.bf16.mxu0 0
  %2037 = vmatpush1.bf16.msra.mxu0 0
  %2038 = vmatprep.subr.bf16.mxu0 0
  %2039 = vmatpush1.bf16.msra.mxu0 0
  %2040 = vmatprep.subr.bf16.mxu0 0
  %2041 = vmatpush1.bf16.msra.mxu0 0
  %2042 = vmatprep.subr.bf16.mxu0 0
  %2043 = vmatpush1.bf16.msra.mxu0 0
  %2044 = vmatprep.subr.bf16.mxu0 0
  %2045 = vmatpush1.bf16.msra.mxu0 0
  %2046 = vmatprep.subr.bf16.mxu0 0
  %2047 = vmatpush1.bf16.msra.mxu0 0
  %2048 = vmatprep.subr.bf16.mxu0 0
  %2049 = vmatpush1.bf16.msra.mxu0 0
  %2050 = vmatprep.subr.bf16.mxu0 0
  %2051 = vmatpush1.bf16.msra.mxu0 0
  %2052 = vmatprep.subr.bf16.mxu0 0
  %2053 = vmatpush1.bf16.msra.mxu0 0
  %2054 = vmatprep.subr.bf16.mxu0 0
  %2055 = vmatpush1.bf16.msra.mxu0 0
  %2056 = vmatprep.subr.bf16.mxu0 0
  %2057 = vmatpush1.bf16.msra.mxu0 0
  %2058 = vmatprep.mubr.bf16.mxu0 0
  %2059 = vmatmul.mubr.bf16.gmra.mrb[0].mxu0 %v2024
  %v2060 = vpop.f32.mrb[0].mxu0
  %v2061 = vadd.f32 %v1786, %v2060
  %v2062 = vpop.f32.mrb[0].mxu0
  %v2063 = vadd.f32 %v1790, %v2062
  %v2064 = vpop.f32.mrb[0].mxu0
  %v2065 = vadd.f32 %v1786, %v2064
  %v2066 = vpop.f32.mrb[0].mxu0
  %v2067 = vadd.f32 %v1790, %v2066
  %2068 = vdwg.mxu0
  %2069 = vmatprep.subr.bf16.mxu0 %v1962
  %2070 = vmatpush1.bf16.msra.mxu0 %v1961
  %2071 = vmatprep.subr.bf16.mxu0 %v1978
  %2072 = vmatpush1.bf16.msra.mxu0 %v1977
  %2073 = vmatprep.subr.bf16.mxu0 0
  %2074 = vmatpush1.bf16.msra.mxu0 0
  %2075 = vmatprep.subr.bf16.mxu0 0
  %2076 = vmatpush1.bf16.msra.mxu0 0
  %2077 = vmatprep.subr.bf16.mxu0 0
  %2078 = vmatpush1.bf16.msra.mxu0 0
  %2079 = vmatprep.subr.bf16.mxu0 0
  %2080 = vmatpush1.bf16.msra.mxu0 0
  %2081 = vmatprep.subr.bf16.mxu0 0
  %2082 = vmatpush1.bf16.msra.mxu0 0
  %2083 = vmatprep.subr.bf16.mxu0 0
  %2084 = vmatpush1.bf16.msra.mxu0 0
  %2085 = vmatprep.subr.bf16.mxu0 0
  %2086 = vmatpush1.bf16.msra.mxu0 0
  %2087 = vmatprep.subr.bf16.mxu0 0
  %2088 = vmatpush1.bf16.msra.mxu0 0
  %2089 = vmatprep.subr.bf16.mxu0 0
  %2090 = vmatpush1.bf16.msra.mxu0 0
  %2091 = vmatprep.subr.bf16.mxu0 0
  %2092 = vmatpush1.bf16.msra.mxu0 0
  %2093 = vmatprep.subr.bf16.mxu0 0
  %2094 = vmatpush1.bf16.msra.mxu0 0
  %2095 = vmatprep.subr.bf16.mxu0 0
  %2096 = vmatpush1.bf16.msra.mxu0 0
  %2097 = vmatprep.subr.bf16.mxu0 0
  %2098 = vmatpush1.bf16.msra.mxu0 0
  %2099 = vmatprep.subr.bf16.mxu0 0
  %2100 = vmatpush1.bf16.msra.mxu0 0
  %2101 = vmatprep.mubr.bf16.mxu0 0
  %2102 = vmatmul.mubr.bf16.gmra.mrb[0].mxu0 %v2024
  %v2103 = vpop.f32.mrb[0].mxu0
  %v2104 = vadd.f32 %v1794, %v2103
  %v2105 = vpop.f32.mrb[0].mxu0
  %v2106 = vadd.f32 %v1798, %v2105
  %v2107 = vpop.f32.mrb[0].mxu0
  %v2108 = vadd.f32 %v1794, %v2107
  %v2109 = vpop.f32.mrb[0].mxu0
  %v2110 = vadd.f32 %v1798, %v2109
  %2111 = vdwg.mxu0
  %2112 = vmatprep.subr.bf16.mxu0 %v1964
  %2113 = vmatpush1.bf16.msra.mxu0 %v1963
  %2114 = vmatprep.subr.bf16.mxu0 %v1980
  %2115 = vmatpush1.bf16.msra.mxu0 %v1979
  %2116 = vmatprep.subr.bf16.mxu0 0
  %2117 = vmatpush1.bf16.msra.mxu0 0
  %2118 = vmatprep.subr.bf16.mxu0 0
  %2119 = vmatpush1.bf16.msra.mxu0 0
  %2120 = vmatprep.subr.bf16.mxu0 0
  %2121 = vmatpush1.bf16.msra.mxu0 0
  %2122 = vmatprep.subr.bf16.mxu0 0
  %2123 = vmatpush1.bf16.msra.mxu0 0
  %2124 = vmatprep.subr.bf16.mxu0 0
  %2125 = vmatpush1.bf16.msra.mxu0 0
  %2126 = vmatprep.subr.bf16.mxu0 0
  %2127 = vmatpush1.bf16.msra.mxu0 0
  %2128 = vmatprep.subr.bf16.mxu0 0
  %2129 = vmatpush1.bf16.msra.mxu0 0
  %2130 = vmatprep.subr.bf16.mxu0 0
  %2131 = vmatpush1.bf16.msra.mxu0 0
  %2132 = vmatprep.subr.bf16.mxu0 0
  %2133 = vmatpush1.bf16.msra.mxu0 0
  %2134 = vmatprep.subr.bf16.mxu0 0
  %2135 = vmatpush1.bf16.msra.mxu0 0
  %2136 = vmatprep.subr.bf16.mxu0 0
  %2137 = vmatpush1.bf16.msra.mxu0 0
  %2138 = vmatprep.subr.bf16.mxu0 0
  %2139 = vmatpush1.bf16.msra.mxu0 0
  %2140 = vmatprep.subr.bf16.mxu0 0
  %2141 = vmatpush1.bf16.msra.mxu0 0
  %2142 = vmatprep.subr.bf16.mxu0 0
  %2143 = vmatpush1.bf16.msra.mxu0 0
  %2144 = vmatprep.mubr.bf16.mxu0 0
  %2145 = vmatmul.mubr.bf16.gmra.mrb[0].mxu0 %v2024
  %v2146 = vpop.f32.mrb[0].mxu0
  %v2147 = vadd.f32 %v1802, %v2146
  %v2148 = vpop.f32.mrb[0].mxu0
  %v2149 = vadd.f32 %v1806, %v2148
  %v2150 = vpop.f32.mrb[0].mxu0
  %v2151 = vadd.f32 %v1802, %v2150
  %v2152 = vpop.f32.mrb[0].mxu0
  %v2153 = vadd.f32 %v1806, %v2152
  %2154 = vdwg.mxu0
  %2155 = vmatprep.subr.bf16.mxu0 %v1966
  %2156 = vmatpush1.bf16.msra.mxu0 %v1965
  %2157 = vmatprep.subr.bf16.mxu0 %v1982
  %2158 = vmatpush1.bf16.msra.mxu0 %v1981
  %2159 = vmatprep.subr.bf16.mxu0 0
  %2160 = vmatpush1.bf16.msra.mxu0 0
  %2161 = vmatprep.subr.bf16.mxu0 0
  %2162 = vmatpush1.bf16.msra.mxu0 0
  %2163 = vmatprep.subr.bf16.mxu0 0
  %2164 = vmatpush1.bf16.msra.mxu0 0
  %2165 = vmatprep.subr.bf16.mxu0 0
  %2166 = vmatpush1.bf16.msra.mxu0 0
  %2167 = vmatprep.subr.bf16.mxu0 0
  %2168 = vmatpush1.bf16.msra.mxu0 0
  %2169 = vmatprep.subr.bf16.mxu0 0
  %2170 = vmatpush1.bf16.msra.mxu0 0
  %2171 = vmatprep.subr.bf16.mxu0 0
  %2172 = vmatpush1.bf16.msra.mxu0 0
  %2173 = vmatprep.subr.bf16.mxu0 0
  %2174 = vmatpush1.bf16.msra.mxu0 0
  %2175 = vmatprep.subr.bf16.mxu0 0
  %2176 = vmatpush1.bf16.msra.mxu0 0
  %2177 = vmatprep.subr.bf16.mxu0 0
  %2178 = vmatpush1.bf16.msra.mxu0 0
  %2179 = vmatprep.subr.bf16.mxu0 0
  %2180 = vmatpush1.bf16.msra.mxu0 0
  %2181 = vmatprep.subr.bf16.mxu0 0
  %2182 = vmatpush1.bf16.msra.mxu0 0
  %2183 = vmatprep.subr.bf16.mxu0 0
  %2184 = vmatpush1.bf16.msra.mxu0 0
  %2185 = vmatprep.subr.bf16.mxu0 0
  %2186 = vmatpush1.bf16.msra.mxu0 0
  %2187 = vmatprep.mubr.bf16.mxu0 0
  %2188 = vmatmul.mubr.bf16.gmra.mrb[0].mxu0 %v2024
  %v2189 = vpop.f32.mrb[0].mxu0
  %v2190 = vadd.f32 %v1810, %v2189
  %v2191 = vpop.f32.mrb[0].mxu0
  %v2192 = vadd.f32 %v1814, %v2191
  %v2193 = vpop.f32.mrb[0].mxu0
  %v2194 = vadd.f32 %v1810, %v2193
  %v2195 = vpop.f32.mrb[0].mxu0
  %v2196 = vadd.f32 %v1814, %v2195
  %2197 = vdwg.mxu0
  %2198 = vmatprep.subr.bf16.mxu0 %v1968
  %2199 = vmatpush1.bf16.msra.mxu0 %v1967
  %2200 = vmatprep.subr.bf16.mxu0 %v1984
  %2201 = vmatpush1.bf16.msra.mxu0 %v1983
  %2202 = vmatprep.subr.bf16.mxu0 0
  %2203 = vmatpush1.bf16.msra.mxu0 0
  %2204 = vmatprep.subr.bf16.mxu0 0
  %2205 = vmatpush1.bf16.msra.mxu0 0
  %2206 = vmatprep.subr.bf16.mxu0 0
  %2207 = vmatpush1.bf16.msra.mxu0 0
  %2208 = vmatprep.subr.bf16.mxu0 0
  %2209 = vmatpush1.bf16.msra.mxu0 0
  %2210 = vmatprep.subr.bf16.mxu0 0
  %2211 = vmatpush1.bf16.msra.mxu0 0
  %2212 = vmatprep.subr.bf16.mxu0 0
  %2213 = vmatpush1.bf16.msra.mxu0 0
  %2214 = vmatprep.subr.bf16.mxu0 0
  %2215 = vmatpush1.bf16.msra.mxu0 0
  %2216 = vmatprep.subr.bf16.mxu0 0
  %2217 = vmatpush1.bf16.msra.mxu0 0
  %2218 = vmatprep.subr.bf16.mxu0 0
  %2219 = vmatpush1.bf16.msra.mxu0 0
  %2220 = vmatprep.subr.bf16.mxu0 0
  %2221 = vmatpush1.bf16.msra.mxu0 0
  %2222 = vmatprep.subr.bf16.mxu0 0
  %2223 = vmatpush1.bf16.msra.mxu0 0
  %2224 = vmatprep.subr.bf16.mxu0 0
  %2225 = vmatpush1.bf16.msra.mxu0 0
  %2226 = vmatprep.subr.bf16.mxu0 0
  %2227 = vmatpush1.bf16.msra.mxu0 0
  %2228 = vmatprep.subr.bf16.mxu0 0
  %2229 = vmatpush1.bf16.msra.mxu0 0
  %2230 = vmatprep.mubr.bf16.mxu0 0
  %2231 = vmatmul.mubr.bf16.gmra.mrb[0].mxu0 %v2024
  %v2232 = vpop.f32.mrb[0].mxu0
  %v2233 = vadd.f32 %v1818, %v2232
  %v2234 = vpop.f32.mrb[0].mxu0
  %v2235 = vadd.f32 %v1822, %v2234
  %v2236 = vpop.f32.mrb[0].mxu0
  %v2237 = vadd.f32 %v1818, %v2236
  %v2238 = vpop.f32.mrb[0].mxu0
  %v2239 = vadd.f32 %v1822, %v2238
  %2240 = vdwg.mxu0
  %2241 = vmatprep.subr.bf16.mxu0 %v1970
  %2242 = vmatpush1.bf16.msra.mxu0 %v1969
  %2243 = vmatprep.subr.bf16.mxu0 %v1986
  %2244 = vmatpush1.bf16.msra.mxu0 %v1985
  %2245 = vmatprep.subr.bf16.mxu0 0
  %2246 = vmatpush1.bf16.msra.mxu0 0
  %2247 = vmatprep.subr.bf16.mxu0 0
  %2248 = vmatpush1.bf16.msra.mxu0 0
  %2249 = vmatprep.subr.bf16.mxu0 0
  %2250 = vmatpush1.bf16.msra.mxu0 0
  %2251 = vmatprep.subr.bf16.mxu0 0
  %2252 = vmatpush1.bf16.msra.mxu0 0
  %2253 = vmatprep.subr.bf16.mxu0 0
  %2254 = vmatpush1.bf16.msra.mxu0 0
  %2255 = vmatprep.subr.bf16.mxu0 0
  %2256 = vmatpush1.bf16.msra.mxu0 0
  %2257 = vmatprep.subr.bf16.mxu0 0
  %2258 = vmatpush1.bf16.msra.mxu0 0
  %2259 = vmatprep.subr.bf16.mxu0 0
  %2260 = vmatpush1.bf16.msra.mxu0 0
  %2261 = vmatprep.subr.bf16.mxu0 0
  %2262 = vmatpush1.bf16.msra.mxu0 0
  %2263 = vmatprep.subr.bf16.mxu0 0
  %2264 = vmatpush1.bf16.msra.mxu0 0
  %2265 = vmatprep.subr.bf16.mxu0 0
  %2266 = vmatpush1.bf16.msra.mxu0 0
  %2267 = vmatprep.subr.bf16.mxu0 0
  %2268 = vmatpush1.bf16.msra.mxu0 0
  %2269 = vmatprep.subr.bf16.mxu0 0
  %2270 = vmatpush1.bf16.msra.mxu0 0
  %2271 = vmatprep.subr.bf16.mxu0 0
  %2272 = vmatpush1.bf16.msra.mxu0 0
  %2273 = vmatprep.mubr.bf16.mxu0 0
  %2274 = vmatmul.mubr.bf16.gmra.mrb[0].mxu0 %v2024
  %v2275 = vpop.f32.mrb[0].mxu0
  %v2276 = vadd.f32 %v1826, %v2275
  %v2277 = vpop.f32.mrb[0].mxu0
  %v2278 = vadd.f32 %v1830, %v2277
  %v2279 = vpop.f32.mrb[0].mxu0
  %v2280 = vadd.f32 %v1826, %v2279
  %v2281 = vpop.f32.mrb[0].mxu0
  %v2282 = vadd.f32 %v1830, %v2281
  %2283 = vdwg.mxu0
  %2284 = vmatprep.subr.bf16.mxu0 %v1972
  %2285 = vmatpush1.bf16.msra.mxu0 %v1971
  %2286 = vmatprep.subr.bf16.mxu0 %v1988
  %2287 = vmatpush1.bf16.msra.mxu0 %v1987
  %2288 = vmatprep.subr.bf16.mxu0 0
  %2289 = vmatpush1.bf16.msra.mxu0 0
  %2290 = vmatprep.subr.bf16.mxu0 0
  %2291 = vmatpush1.bf16.msra.mxu0 0
  %2292 = vmatprep.subr.bf16.mxu0 0
  %2293 = vmatpush1.bf16.msra.mxu0 0
  %2294 = vmatprep.subr.bf16.mxu0 0
  %2295 = vmatpush1.bf16.msra.mxu0 0
  %2296 = vmatprep.subr.bf16.mxu0 0
  %2297 = vmatpush1.bf16.msra.mxu0 0
  %2298 = vmatprep.subr.bf16.mxu0 0
  %2299 = vmatpush1.bf16.msra.mxu0 0
  %2300 = vmatprep.subr.bf16.mxu0 0
  %2301 = vmatpush1.bf16.msra.mxu0 0
  %2302 = vmatprep.subr.bf16.mxu0 0
  %2303 = vmatpush1.bf16.msra.mxu0 0
  %2304 = vmatprep.subr.bf16.mxu0 0
  %2305 = vmatpush1.bf16.msra.mxu0 0
  %2306 = vmatprep.subr.bf16.mxu0 0
  %2307 = vmatpush1.bf16.msra.mxu0 0
  %2308 = vmatprep.subr.bf16.mxu0 0
  %2309 = vmatpush1.bf16.msra.mxu0 0
  %2310 = vmatprep.subr.bf16.mxu0 0
  %2311 = vmatpush1.bf16.msra.mxu0 0
  %2312 = vmatprep.subr.bf16.mxu0 0
  %2313 = vmatpush1.bf16.msra.mxu0 0
  %2314 = vmatprep.subr.bf16.mxu0 0
  %2315 = vmatpush1.bf16.msra.mxu0 0
  %2316 = vmatprep.mubr.bf16.mxu0 0
  %2317 = vmatmul.mubr.bf16.gmra.mrb[0].mxu0 %v2024
  %v2318 = vpop.f32.mrb[0].mxu0
  %v2319 = vadd.f32 %v1834, %v2318
  %v2320 = vpop.f32.mrb[0].mxu0
  %v2321 = vadd.f32 %v1838, %v2320
  %v2322 = vpop.f32.mrb[0].mxu0
  %v2323 = vadd.f32 %v1834, %v2322
  %v2324 = vpop.f32.mrb[0].mxu0
  %v2325 = vadd.f32 %v1838, %v2324
  %2326 = vdwg.mxu0
  %2327 = vmatprep.subr.bf16.mxu0 %v1974
  %2328 = vmatpush1.bf16.msra.mxu0 %v1973
  %2329 = vmatprep.subr.bf16.mxu0 %v1990
  %2330 = vmatpush1.bf16.msra.mxu0 %v1989
  %2331 = vmatprep.subr.bf16.mxu0 0
  %2332 = vmatpush1.bf16.msra.mxu0 0
  %2333 = vmatprep.subr.bf16.mxu0 0
  %2334 = vmatpush1.bf16.msra.mxu0 0
  %2335 = vmatprep.subr.bf16.mxu0 0
  %2336 = vmatpush1.bf16.msra.mxu0 0
  %2337 = vmatprep.subr.bf16.mxu0 0
  %2338 = vmatpush1.bf16.msra.mxu0 0
  %2339 = vmatprep.subr.bf16.mxu0 0
  %2340 = vmatpush1.bf16.msra.mxu0 0
  %2341 = vmatprep.subr.bf16.mxu0 0
  %2342 = vmatpush1.bf16.msra.mxu0 0
  %2343 = vmatprep.subr.bf16.mxu0 0
  %2344 = vmatpush1.bf16.msra.mxu0 0
  %2345 = vmatprep.subr.bf16.mxu0 0
  %2346 = vmatpush1.bf16.msra.mxu0 0
  %2347 = vmatprep.subr.bf16.mxu0 0
  %2348 = vmatpush1.bf16.msra.mxu0 0
  %2349 = vmatprep.subr.bf16.mxu0 0
  %2350 = vmatpush1.bf16.msra.mxu0 0
  %2351 = vmatprep.subr.bf16.mxu0 0
  %2352 = vmatpush1.bf16.msra.mxu0 0
  %2353 = vmatprep.subr.bf16.mxu0 0
  %2354 = vmatpush1.bf16.msra.mxu0 0
  %2355 = vmatprep.subr.bf16.mxu0 0
  %2356 = vmatpush1.bf16.msra.mxu0 0
  %2357 = vmatprep.subr.bf16.mxu0 0
  %2358 = vmatpush1.bf16.msra.mxu0 0
  %2359 = vmatprep.mubr.bf16.mxu0 0
  %2360 = vmatmul.mubr.bf16.gmra.mrb[0].mxu0 %v2024
  %v2361 = vpop.f32.mrb[0].mxu0
  %v2362 = vadd.f32 %v1842, %v2361
  %v2363 = vpop.f32.mrb[0].mxu0
  %v2364 = vadd.f32 %v1846, %v2363
  %v2365 = vpop.f32.mrb[0].mxu0
  %v2366 = vadd.f32 %v1842, %v2365
  %v2367 = vpop.f32.mrb[0].mxu0
  %v2368 = vadd.f32 %v1846, %v2367
  %2369 = vdwg.mxu0
  %v2370 = vmax.f32 %v2061, 0.0
  %v2371 = vmax.f32 %v2063, 0.0
  %v2372 = vmax.f32 %v2104, 0.0
  %v2373 = vmax.f32 %v2106, 0.0
  %v2374 = vmax.f32 %v2147, 0.0
  %v2375 = vmax.f32 %v2149, 0.0
  %v2376 = vmax.f32 %v2190, 0.0
  %v2377 = vmax.f32 %v2192, 0.0
  %v2378 = vmax.f32 %v2233, 0.0
  %v2379 = vmax.f32 %v2235, 0.0
  %v2380 = vmax.f32 %v2276, 0.0
  %v2381 = vmax.f32 %v2278, 0.0
  %v2382 = vmax.f32 %v2319, 0.0
  %v2383 = vmax.f32 %v2321, 0.0
  %v2384 = vmax.f32 %v2362, 0.0
  %v2385 = vmax.f32 %v2364, 0.0
  %v2386 = vmax.f32 %v2065, 0.0
  %v2387 = vmax.f32 %v2067, 0.0
  %v2388 = vmax.f32 %v2108, 0.0
  %v2389 = vmax.f32 %v2110, 0.0
  %v2390 = vmax.f32 %v2151, 0.0
  %v2391 = vmax.f32 %v2153, 0.0
  %v2392 = vmax.f32 %v2194, 0.0
  %v2393 = vmax.f32 %v2196, 0.0
  %v2394 = vmax.f32 %v2237, 0.0
  %v2395 = vmax.f32 %v2239, 0.0
  %v2396 = vmax.f32 %v2280, 0.0
  %v2397 = vmax.f32 %v2282, 0.0
  %v2398 = vmax.f32 %v2323, 0.0
  %v2399 = vmax.f32 %v2325, 0.0
  %v2400 = vmax.f32 %v2366, 0.0
  %v2401 = vmax.f32 %v2368, 0.0
  %v2402 = vpack.c.bf16 %v2386, %v2370
  %v2403 = vpack.c.bf16 %v2387, %v2371
  %v2404 = vpack.c.bf16 %v2388, %v2372
  %v2405 = vpack.c.bf16 %v2389, %v2373
  %v2406 = vpack.c.bf16 %v2390, %v2374
  %v2407 = vpack.c.bf16 %v2391, %v2375
  %v2408 = vpack.c.bf16 %v2392, %v2376
  %v2409 = vpack.c.bf16 %v2393, %v2377
  %v2410 = vpack.c.bf16 %v2394, %v2378
  %v2411 = vpack.c.bf16 %v2395, %v2379
  %v2412 = vpack.c.bf16 %v2396, %v2380
  %v2413 = vpack.c.bf16 %v2397, %v2381
  %v2414 = vpack.c.bf16 %v2398, %v2382
  %v2415 = vpack.c.bf16 %v2399, %v2383
  %v2416 = vpack.c.bf16 %v2400, %v2384
  %v2417 = vpack.c.bf16 %v2401, %v2385
  %v2418 = vld [vmem:[%s21] sm:$0xf]
  %v2419 = vld [vmem:[%s21 + $0x4] sm:$0xf]
  %v2420 = vld [vmem:[%s21 + $0x8] sm:$0xf]
  %v2421 = vld [vmem:[%s21 + $0xc] sm:$0xf]
  %v2422 = vld [vmem:[%s21 + $0x10] sm:$0xf]
  %v2423 = vld [vmem:[%s21 + $0x14] sm:$0xf]
  %v2424 = vld [vmem:[%s21 + $0x18] sm:$0xf]
  %v2425 = vld [vmem:[%s21 + $0x1c] sm:$0xf]
  %v2426 = vld [vmem:[%s21 + $0x20] sm:$0xf]
  %v2427 = vld [vmem:[%s21 + $0x24] sm:$0xf]
  %v2428 = vld [vmem:[%s21 + $0x28] sm:$0xf]
  %v2429 = vld [vmem:[%s21 + $0x2c] sm:$0xf]
  %v2430 = vld [vmem:[%s21 + $0x30] sm:$0xf]
  %v2431 = vld [vmem:[%s21 + $0x34] sm:$0xf]
  %v2432 = vld [vmem:[%s21 + $0x38] sm:$0xf]
  %v2433 = vld [vmem:[%s21 + $0x3c] sm:$0xf]
  %v2434 = vld [vmem:[%s21 + $0x40] sm:$0xf]
  %v2435 = vld [vmem:[%s21 + $0x44] sm:$0xf]
  %v2436 = vld [vmem:[%s21 + $0x48] sm:$0xf]
  %v2437 = vld [vmem:[%s21 + $0x4c] sm:$0xf]
  %v2438 = vld [vmem:[%s21 + $0x50] sm:$0xf]
  %v2439 = vld [vmem:[%s21 + $0x54] sm:$0xf]
  %v2440 = vld [vmem:[%s21 + $0x58] sm:$0xf]
  %v2441 = vld [vmem:[%s21 + $0x5c] sm:$0xf]
  %v2442 = vld [vmem:[%s21 + $0x60] sm:$0xf]
  %v2443 = vld [vmem:[%s21 + $0x64] sm:$0xf]
  %v2444 = vld [vmem:[%s21 + $0x68] sm:$0xf]
  %v2445 = vld [vmem:[%s21 + $0x6c] sm:$0xf]
  %v2446 = vld [vmem:[%s21 + $0x70] sm:$0xf]
  %v2447 = vld [vmem:[%s21 + $0x74] sm:$0xf]
  %v2448 = vld [vmem:[%s21 + $0x78] sm:$0xf]
  %v2449 = vld [vmem:[%s21 + $0x7c] sm:$0xf]
  %v2450 = vld [vmem:[%s21 + $0x80] sm:$0xf]
  %v2451 = vld [vmem:[%s21 + $0x84] sm:$0xf]
  %v2452 = vld [vmem:[%s21 + $0x88] sm:$0xf]
  %v2453 = vld [vmem:[%s21 + $0x8c] sm:$0xf]
  %v2454 = vld [vmem:[%s21 + $0x90] sm:$0xf]
  %v2455 = vld [vmem:[%s21 + $0x94] sm:$0xf]
  %v2456 = vld [vmem:[%s21 + $0x98] sm:$0xf]
  %v2457 = vld [vmem:[%s21 + $0x9c] sm:$0xf]
  %v2458 = vld [vmem:[%s21 + $0xa0] sm:$0xf]
  %v2459 = vld [vmem:[%s21 + $0xa4] sm:$0xf]
  %v2460 = vld [vmem:[%s21 + $0xa8] sm:$0xf]
  %v2461 = vld [vmem:[%s21 + $0xac] sm:$0xf]
  %v2462 = vld [vmem:[%s21 + $0xb0] sm:$0xf]
  %v2463 = vld [vmem:[%s21 + $0xb4] sm:$0xf]
  %v2464 = vld [vmem:[%s21 + $0xb8] sm:$0xf]
  %v2465 = vld [vmem:[%s21 + $0xbc] sm:$0xf]
  %v2466 = vld [vmem:[%s21 + $0xc0] sm:$0xf]
  %v2467 = vld [vmem:[%s21 + $0xc4] sm:$0xf]
  %v2468 = vld [vmem:[%s21 + $0xc8] sm:$0xf]
  %v2469 = vld [vmem:[%s21 + $0xcc] sm:$0xf]
  %v2470 = vld [vmem:[%s21 + $0xd0] sm:$0xf]
  %v2471 = vld [vmem:[%s21 + $0xd4] sm:$0xf]
  %v2472 = vld [vmem:[%s21 + $0xd8] sm:$0xf]
  %v2473 = vld [vmem:[%s21 + $0xdc] sm:$0xf]
  %v2474 = vld [vmem:[%s21 + $0xe0] sm:$0xf]
  %v2475 = vld [vmem:[%s21 + $0xe4] sm:$0xf]
  %v2476 = vld [vmem:[%s21 + $0xe8] sm:$0xf]
  %v2477 = vld [vmem:[%s21 + $0xec] sm:$0xf]
  %v2478 = vld [vmem:[%s21 + $0xf0] sm:$0xf]
  %v2479 = vld [vmem:[%s21 + $0xf4] sm:$0xf]
  %v2480 = vld [vmem:[%s21 + $0xf8] sm:$0xf]
  %v2481 = vld [vmem:[%s21 + $0xfc] sm:$0xf]
  %v2482 = vld [vmem:[%s21 + $0x100] sm:$0xf]
  %v2483 = vld [vmem:[%s21 + $0x104] sm:$0xf]
  %v2484 = vld [vmem:[%s21 + $0x108] sm:$0xf]
  %v2485 = vld [vmem:[%s21 + $0x10c] sm:$0xf]
  %v2486 = vld [vmem:[%s21 + $0x110] sm:$0xf]
  %v2487 = vld [vmem:[%s21 + $0x114] sm:$0xf]
  %v2488 = vld [vmem:[%s21 + $0x118] sm:$0xf]
  %v2489 = vld [vmem:[%s21 + $0x11c] sm:$0xf]
  %v2490 = vld [vmem:[%s21 + $0x120] sm:$0xf]
  %v2491 = vld [vmem:[%s21 + $0x124] sm:$0xf]
  %v2492 = vld [vmem:[%s21 + $0x128] sm:$0xf]
  %v2493 = vld [vmem:[%s21 + $0x12c] sm:$0xf]
  %v2494 = vld [vmem:[%s21 + $0x130] sm:$0xf]
  %v2495 = vld [vmem:[%s21 + $0x134] sm:$0xf]
  %v2496 = vld [vmem:[%s21 + $0x138] sm:$0xf]
  %v2497 = vld [vmem:[%s21 + $0x13c] sm:$0xf]
  %v2498 = vld [vmem:[%s21 + $0x140] sm:$0xf]
  %v2499 = vld [vmem:[%s21 + $0x144] sm:$0xf]
  %v2500 = vld [vmem:[%s21 + $0x148] sm:$0xf]
  %v2501 = vld [vmem:[%s21 + $0x14c] sm:$0xf]
  %v2502 = vld [vmem:[%s21 + $0x150] sm:$0xf]
  %v2503 = vld [vmem:[%s21 + $0x154] sm:$0xf]
  %v2504 = vld [vmem:[%s21 + $0x158] sm:$0xf]
  %v2505 = vld [vmem:[%s21 + $0x15c] sm:$0xf]
  %v2506 = vld [vmem:[%s21 + $0x160] sm:$0xf]
  %v2507 = vld [vmem:[%s21 + $0x164] sm:$0xf]
  %v2508 = vld [vmem:[%s21 + $0x168] sm:$0xf]
  %v2509 = vld [vmem:[%s21 + $0x16c] sm:$0xf]
  %v2510 = vld [vmem:[%s21 + $0x170] sm:$0xf]
  %v2511 = vld [vmem:[%s21 + $0x174] sm:$0xf]
  %v2512 = vld [vmem:[%s21 + $0x178] sm:$0xf]
  %v2513 = vld [vmem:[%s21 + $0x17c] sm:$0xf]
  %v2514 = vld [vmem:[%s21 + $0x180] sm:$0xf]
  %v2515 = vld [vmem:[%s21 + $0x184] sm:$0xf]
  %v2516 = vld [vmem:[%s21 + $0x188] sm:$0xf]
  %v2517 = vld [vmem:[%s21 + $0x18c] sm:$0xf]
  %v2518 = vld [vmem:[%s21 + $0x190] sm:$0xf]
  %v2519 = vld [vmem:[%s21 + $0x194] sm:$0xf]
  %v2520 = vld [vmem:[%s21 + $0x198] sm:$0xf]
  %v2521 = vld [vmem:[%s21 + $0x19c] sm:$0xf]
  %v2522 = vld [vmem:[%s21 + $0x1a0] sm:$0xf]
  %v2523 = vld [vmem:[%s21 + $0x1a4] sm:$0xf]
  %v2524 = vld [vmem:[%s21 + $0x1a8] sm:$0xf]
  %v2525 = vld [vmem:[%s21 + $0x1ac] sm:$0xf]
  %v2526 = vld [vmem:[%s21 + $0x1b0] sm:$0xf]
  %v2527 = vld [vmem:[%s21 + $0x1b4] sm:$0xf]
  %v2528 = vld [vmem:[%s21 + $0x1b8] sm:$0xf]
  %v2529 = vld [vmem:[%s21 + $0x1bc] sm:$0xf]
  %v2530 = vld [vmem:[%s21 + $0x1c0] sm:$0xf]
  %v2531 = vld [vmem:[%s21 + $0x1c4] sm:$0xf]
  %v2532 = vld [vmem:[%s21 + $0x1c8] sm:$0xf]
  %v2533 = vld [vmem:[%s21 + $0x1cc] sm:$0xf]
  %v2534 = vld [vmem:[%s21 + $0x1d0] sm:$0xf]
  %v2535 = vld [vmem:[%s21 + $0x1d4] sm:$0xf]
  %v2536 = vld [vmem:[%s21 + $0x1d8] sm:$0xf]
  %v2537 = vld [vmem:[%s21 + $0x1dc] sm:$0xf]
  %v2538 = vld [vmem:[%s21 + $0x1e0] sm:$0xf]
  %v2539 = vld [vmem:[%s21 + $0x1e4] sm:$0xf]
  %v2540 = vld [vmem:[%s21 + $0x1e8] sm:$0xf]
  %v2541 = vld [vmem:[%s21 + $0x1ec] sm:$0xf]
  %v2542 = vld [vmem:[%s21 + $0x1f0] sm:$0xf]
  %v2543 = vld [vmem:[%s21 + $0x1f4] sm:$0xf]
  %v2544 = vld [vmem:[%s21 + $0x1f8] sm:$0xf]
  %v2545 = vld [vmem:[%s21 + $0x1fc] sm:$0xf]
  %v2546 = vld [vmem:[%s21 + $0x200] sm:$0xf]
  %v2547 = vld [vmem:[%s21 + $0x204] sm:$0xf]
  %v2548 = vld [vmem:[%s21 + $0x208] sm:$0xf]
  %v2549 = vld [vmem:[%s21 + $0x20c] sm:$0xf]
  %v2550 = vld [vmem:[%s21 + $0x210] sm:$0xf]
  %v2551 = vld [vmem:[%s21 + $0x214] sm:$0xf]
  %v2552 = vld [vmem:[%s21 + $0x218] sm:$0xf]
  %v2553 = vld [vmem:[%s21 + $0x21c] sm:$0xf]
  %v2554 = vld [vmem:[%s21 + $0x220] sm:$0xf]
  %v2555 = vld [vmem:[%s21 + $0x224] sm:$0xf]
  %v2556 = vld [vmem:[%s21 + $0x228] sm:$0xf]
  %v2557 = vld [vmem:[%s21 + $0x22c] sm:$0xf]
  %v2558 = vld [vmem:[%s21 + $0x230] sm:$0xf]
  %v2559 = vld [vmem:[%s21 + $0x234] sm:$0xf]
  %v2560 = vld [vmem:[%s21 + $0x238] sm:$0xf]
  %v2561 = vld [vmem:[%s21 + $0x23c] sm:$0xf]
  %v2562 = vld [vmem:[%s21 + $0x240] sm:$0xf]
  %v2563 = vld [vmem:[%s21 + $0x244] sm:$0xf]
  %v2564 = vld [vmem:[%s21 + $0x248] sm:$0xf]
  %v2565 = vld [vmem:[%s21 + $0x24c] sm:$0xf]
  %v2566 = vld [vmem:[%s21 + $0x250] sm:$0xf]
  %v2567 = vld [vmem:[%s21 + $0x254] sm:$0xf]
  %v2568 = vld [vmem:[%s21 + $0x258] sm:$0xf]
  %v2569 = vld [vmem:[%s21 + $0x25c] sm:$0xf]
  %v2570 = vld [vmem:[%s21 + $0x260] sm:$0xf]
  %v2571 = vld [vmem:[%s21 + $0x264] sm:$0xf]
  %v2572 = vld [vmem:[%s21 + $0x268] sm:$0xf]
  %v2573 = vld [vmem:[%s21 + $0x26c] sm:$0xf]
  %v2574 = vld [vmem:[%s21 + $0x270] sm:$0xf]
  %v2575 = vld [vmem:[%s21 + $0x274] sm:$0xf]
  %v2576 = vld [vmem:[%s21 + $0x278] sm:$0xf]
  %v2577 = vld [vmem:[%s21 + $0x27c] sm:$0xf]
  %v2578 = vld [vmem:[%s21 + $0x280] sm:$0xf]
  %v2579 = vld [vmem:[%s21 + $0x284] sm:$0xf]
  %v2580 = vld [vmem:[%s21 + $0x288] sm:$0xf]
  %v2581 = vld [vmem:[%s21 + $0x28c] sm:$0xf]
  %v2582 = vld [vmem:[%s21 + $0x290] sm:$0xf]
  %v2583 = vld [vmem:[%s21 + $0x294] sm:$0xf]
  %v2584 = vld [vmem:[%s21 + $0x298] sm:$0xf]
  %v2585 = vld [vmem:[%s21 + $0x29c] sm:$0xf]
  %v2586 = vld [vmem:[%s21 + $0x2a0] sm:$0xf]
  %v2587 = vld [vmem:[%s21 + $0x2a4] sm:$0xf]
  %v2588 = vld [vmem:[%s21 + $0x2a8] sm:$0xf]
  %v2589 = vld [vmem:[%s21 + $0x2ac] sm:$0xf]
  %v2590 = vld [vmem:[%s21 + $0x2b0] sm:$0xf]
  %v2591 = vld [vmem:[%s21 + $0x2b4] sm:$0xf]
  %v2592 = vld [vmem:[%s21 + $0x2b8] sm:$0xf]
  %v2593 = vld [vmem:[%s21 + $0x2bc] sm:$0xf]
  %v2594 = vld [vmem:[%s21 + $0x2c0] sm:$0xf]
  %v2595 = vld [vmem:[%s21 + $0x2c4] sm:$0xf]
  %v2596 = vld [vmem:[%s21 + $0x2c8] sm:$0xf]
  %v2597 = vld [vmem:[%s21 + $0x2cc] sm:$0xf]
  %v2598 = vld [vmem:[%s21 + $0x2d0] sm:$0xf]
  %v2599 = vld [vmem:[%s21 + $0x2d4] sm:$0xf]
  %v2600 = vld [vmem:[%s21 + $0x2d8] sm:$0xf]
  %v2601 = vld [vmem:[%s21 + $0x2dc] sm:$0xf]
  %v2602 = vld [vmem:[%s21 + $0x2e0] sm:$0xf]
  %v2603 = vld [vmem:[%s21 + $0x2e4] sm:$0xf]
  %v2604 = vld [vmem:[%s21 + $0x2e8] sm:$0xf]
  %v2605 = vld [vmem:[%s21 + $0x2ec] sm:$0xf]
  %v2606 = vld [vmem:[%s21 + $0x2f0] sm:$0xf]
  %v2607 = vld [vmem:[%s21 + $0x2f4] sm:$0xf]
  %v2608 = vld [vmem:[%s21 + $0x2f8] sm:$0xf]
  %v2609 = vld [vmem:[%s21 + $0x2fc] sm:$0xf]
  %v2610 = vld [vmem:[%s21 + $0x300] sm:$0xf]
  %v2611 = vld [vmem:[%s21 + $0x304] sm:$0xf]
  %v2612 = vld [vmem:[%s21 + $0x308] sm:$0xf]
  %v2613 = vld [vmem:[%s21 + $0x30c] sm:$0xf]
  %v2614 = vld [vmem:[%s21 + $0x310] sm:$0xf]
  %v2615 = vld [vmem:[%s21 + $0x314] sm:$0xf]
  %v2616 = vld [vmem:[%s21 + $0x318] sm:$0xf]
  %v2617 = vld [vmem:[%s21 + $0x31c] sm:$0xf]
  %v2618 = vld [vmem:[%s21 + $0x320] sm:$0xf]
  %v2619 = vld [vmem:[%s21 + $0x324] sm:$0xf]
  %v2620 = vld [vmem:[%s21 + $0x328] sm:$0xf]
  %v2621 = vld [vmem:[%s21 + $0x32c] sm:$0xf]
  %v2622 = vld [vmem:[%s21 + $0x330] sm:$0xf]
  %v2623 = vld [vmem:[%s21 + $0x334] sm:$0xf]
  %v2624 = vld [vmem:[%s21 + $0x338] sm:$0xf]
  %v2625 = vld [vmem:[%s21 + $0x33c] sm:$0xf]
  %v2626 = vld [vmem:[%s21 + $0x340] sm:$0xf]
  %v2627 = vld [vmem:[%s21 + $0x344] sm:$0xf]
  %v2628 = vld [vmem:[%s21 + $0x348] sm:$0xf]
  %v2629 = vld [vmem:[%s21 + $0x34c] sm:$0xf]
  %v2630 = vld [vmem:[%s21 + $0x350] sm:$0xf]
  %v2631 = vld [vmem:[%s21 + $0x354] sm:$0xf]
  %v2632 = vld [vmem:[%s21 + $0x358] sm:$0xf]
  %v2633 = vld [vmem:[%s21 + $0x35c] sm:$0xf]
  %v2634 = vld [vmem:[%s21 + $0x360] sm:$0xf]
  %v2635 = vld [vmem:[%s21 + $0x364] sm:$0xf]
  %v2636 = vld [vmem:[%s21 + $0x368] sm:$0xf]
  %v2637 = vld [vmem:[%s21 + $0x36c] sm:$0xf]
  %v2638 = vld [vmem:[%s21 + $0x370] sm:$0xf]
  %v2639 = vld [vmem:[%s21 + $0x374] sm:$0xf]
  %v2640 = vld [vmem:[%s21 + $0x378] sm:$0xf]
  %v2641 = vld [vmem:[%s21 + $0x37c] sm:$0xf]
  %v2642 = vld [vmem:[%s21 + $0x380] sm:$0xf]
  %v2643 = vld [vmem:[%s21 + $0x384] sm:$0xf]
  %v2644 = vld [vmem:[%s21 + $0x388] sm:$0xf]
  %v2645 = vld [vmem:[%s21 + $0x38c] sm:$0xf]
  %v2646 = vld [vmem:[%s21 + $0x390] sm:$0xf]
  %v2647 = vld [vmem:[%s21 + $0x394] sm:$0xf]
  %v2648 = vld [vmem:[%s21 + $0x398] sm:$0xf]
  %v2649 = vld [vmem:[%s21 + $0x39c] sm:$0xf]
  %v2650 = vld [vmem:[%s21 + $0x3a0] sm:$0xf]
  %v2651 = vld [vmem:[%s21 + $0x3a4] sm:$0xf]
  %v2652 = vld [vmem:[%s21 + $0x3a8] sm:$0xf]
  %v2653 = vld [vmem:[%s21 + $0x3ac] sm:$0xf]
  %v2654 = vld [vmem:[%s21 + $0x3b0] sm:$0xf]
  %v2655 = vld [vmem:[%s21 + $0x3b4] sm:$0xf]
  %v2656 = vld [vmem:[%s21 + $0x3b8] sm:$0xf]
  %v2657 = vld [vmem:[%s21 + $0x3bc] sm:$0xf]
  %v2658 = vld [vmem:[%s21 + $0x3c0] sm:$0xf]
  %v2659 = vld [vmem:[%s21 + $0x3c4] sm:$0xf]
  %v2660 = vld [vmem:[%s21 + $0x3c8] sm:$0xf]
  %v2661 = vld [vmem:[%s21 + $0x3cc] sm:$0xf]
  %v2662 = vld [vmem:[%s21 + $0x3d0] sm:$0xf]
  %v2663 = vld [vmem:[%s21 + $0x3d4] sm:$0xf]
  %v2664 = vld [vmem:[%s21 + $0x3d8] sm:$0xf]
  %v2665 = vld [vmem:[%s21 + $0x3dc] sm:$0xf]
  %v2666 = vld [vmem:[%s21 + $0x3e0] sm:$0xf]
  %v2667 = vld [vmem:[%s21 + $0x3e4] sm:$0xf]
  %v2668 = vld [vmem:[%s21 + $0x3e8] sm:$0xf]
  %v2669 = vld [vmem:[%s21 + $0x3ec] sm:$0xf]
  %v2670 = vld [vmem:[%s21 + $0x3f0] sm:$0xf]
  %v2671 = vld [vmem:[%s21 + $0x3f4] sm:$0xf]
  %v2672 = vld [vmem:[%s21 + $0x3f8] sm:$0xf]
  %v2673 = vld [vmem:[%s21 + $0x3fc] sm:$0xf]
  %v2674 = vld [vmem:[%s23] sm:$0x1]
  %v2676 = vlaneseq
  %v2677 = vshrl.u32 %v2676, 7
  %v2678 = vsub.s32 0, %v2677
  %v2679 = vrot.slane %v2674, %v2678
  %v2937 = vunpack.c.l.b16 %v2418
  %v2938 = vunpack.c.l.b16 %v2419
  %v2939 = vunpack.c.l.b16 %v2420
  %v2940 = vunpack.c.l.b16 %v2421
  %v2941 = vunpack.c.l.b16 %v2422
  %v2942 = vunpack.c.l.b16 %v2423
  %v2943 = vunpack.c.l.b16 %v2424
  %v2944 = vunpack.c.l.b16 %v2425
  %v2945 = vunpack.c.l.b16 %v2426
  %v2946 = vunpack.c.l.b16 %v2427
  %v2947 = vunpack.c.l.b16 %v2428
  %v2948 = vunpack.c.l.b16 %v2429
  %v2949 = vunpack.c.l.b16 %v2430
  %v2950 = vunpack.c.l.b16 %v2431
  %v2951 = vunpack.c.l.b16 %v2432
  %v2952 = vunpack.c.l.b16 %v2433
  %v2953 = vunpack.c.l.b16 %v2434
  %v2954 = vunpack.c.l.b16 %v2435
  %v2955 = vunpack.c.l.b16 %v2436
  %v2956 = vunpack.c.l.b16 %v2437
  %v2957 = vunpack.c.l.b16 %v2438
  %v2958 = vunpack.c.l.b16 %v2439
  %v2959 = vunpack.c.l.b16 %v2440
  %v2960 = vunpack.c.l.b16 %v2441
  %v2961 = vunpack.c.l.b16 %v2442
  %v2962 = vunpack.c.l.b16 %v2443
  %v2963 = vunpack.c.l.b16 %v2444
  %v2964 = vunpack.c.l.b16 %v2445
  %v2965 = vunpack.c.l.b16 %v2446
  %v2966 = vunpack.c.l.b16 %v2447
  %v2967 = vunpack.c.l.b16 %v2448
  %v2968 = vunpack.c.l.b16 %v2449
  %v2969 = vunpack.c.l.b16 %v2450
  %v2970 = vunpack.c.l.b16 %v2451
  %v2971 = vunpack.c.l.b16 %v2452
  %v2972 = vunpack.c.l.b16 %v2453
  %v2973 = vunpack.c.l.b16 %v2454
  %v2974 = vunpack.c.l.b16 %v2455
  %v2975 = vunpack.c.l.b16 %v2456
  %v2976 = vunpack.c.l.b16 %v2457
  %v2977 = vunpack.c.l.b16 %v2458
  %v2978 = vunpack.c.l.b16 %v2459
  %v2979 = vunpack.c.l.b16 %v2460
  %v2980 = vunpack.c.l.b16 %v2461
  %v2981 = vunpack.c.l.b16 %v2462
  %v2982 = vunpack.c.l.b16 %v2463
  %v2983 = vunpack.c.l.b16 %v2464
  %v2984 = vunpack.c.l.b16 %v2465
  %v2985 = vunpack.c.l.b16 %v2466
  %v2986 = vunpack.c.l.b16 %v2467
  %v2987 = vunpack.c.l.b16 %v2468
  %v2988 = vunpack.c.l.b16 %v2469
  %v2989 = vunpack.c.l.b16 %v2470
  %v2990 = vunpack.c.l.b16 %v2471
  %v2991 = vunpack.c.l.b16 %v2472
  %v2992 = vunpack.c.l.b16 %v2473
  %v2993 = vunpack.c.l.b16 %v2474
  %v2994 = vunpack.c.l.b16 %v2475
  %v2995 = vunpack.c.l.b16 %v2476
  %v2996 = vunpack.c.l.b16 %v2477
  %v2997 = vunpack.c.l.b16 %v2478
  %v2998 = vunpack.c.l.b16 %v2479
  %v2999 = vunpack.c.l.b16 %v2480
  %v3000 = vunpack.c.l.b16 %v2481
  %v3001 = vunpack.c.l.b16 %v2482
  %v3002 = vunpack.c.l.b16 %v2483
  %v3003 = vunpack.c.l.b16 %v2484
  %v3004 = vunpack.c.l.b16 %v2485
  %v3005 = vunpack.c.l.b16 %v2486
  %v3006 = vunpack.c.l.b16 %v2487
  %v3007 = vunpack.c.l.b16 %v2488
  %v3008 = vunpack.c.l.b16 %v2489
  %v3009 = vunpack.c.l.b16 %v2490
  %v3010 = vunpack.c.l.b16 %v2491
  %v3011 = vunpack.c.l.b16 %v2492
  %v3012 = vunpack.c.l.b16 %v2493
  %v3013 = vunpack.c.l.b16 %v2494
  %v3014 = vunpack.c.l.b16 %v2495
  %v3015 = vunpack.c.l.b16 %v2496
  %v3016 = vunpack.c.l.b16 %v2497
  %v3017 = vunpack.c.l.b16 %v2498
  %v3018 = vunpack.c.l.b16 %v2499
  %v3019 = vunpack.c.l.b16 %v2500
  %v3020 = vunpack.c.l.b16 %v2501
  %v3021 = vunpack.c.l.b16 %v2502
  %v3022 = vunpack.c.l.b16 %v2503
  %v3023 = vunpack.c.l.b16 %v2504
  %v3024 = vunpack.c.l.b16 %v2505
  %v3025 = vunpack.c.l.b16 %v2506
  %v3026 = vunpack.c.l.b16 %v2507
  %v3027 = vunpack.c.l.b16 %v2508
  %v3028 = vunpack.c.l.b16 %v2509
  %v3029 = vunpack.c.l.b16 %v2510
  %v3030 = vunpack.c.l.b16 %v2511
  %v3031 = vunpack.c.l.b16 %v2512
  %v3032 = vunpack.c.l.b16 %v2513
  %v3033 = vunpack.c.l.b16 %v2514
  %v3034 = vunpack.c.l.b16 %v2515
  %v3035 = vunpack.c.l.b16 %v2516
  %v3036 = vunpack.c.l.b16 %v2517
  %v3037 = vunpack.c.l.b16 %v2518
  %v3038 = vunpack.c.l.b16 %v2519
  %v3039 = vunpack.c.l.b16 %v2520
  %v3040 = vunpack.c.l.b16 %v2521
  %v3041 = vunpack.c.l.b16 %v2522
  %v3042 = vunpack.c.l.b16 %v2523
  %v3043 = vunpack.c.l.b16 %v2524
  %v3044 = vunpack.c.l.b16 %v2525
  %v3045 = vunpack.c.l.b16 %v2526
  %v3046 = vunpack.c.l.b16 %v2527
  %v3047 = vunpack.c.l.b16 %v2528
  %v3048 = vunpack.c.l.b16 %v2529
  %v3049 = vunpack.c.l.b16 %v2530
  %v3050 = vunpack.c.l.b16 %v2531
  %v3051 = vunpack.c.l.b16 %v2532
  %v3052 = vunpack.c.l.b16 %v2533
  %v3053 = vunpack.c.l.b16 %v2534
  %v3054 = vunpack.c.l.b16 %v2535
  %v3055 = vunpack.c.l.b16 %v2536
  %v3056 = vunpack.c.l.b16 %v2537
  %v3057 = vunpack.c.l.b16 %v2538
  %v3058 = vunpack.c.l.b16 %v2539
  %v3059 = vunpack.c.l.b16 %v2540
  %v3060 = vunpack.c.l.b16 %v2541
  %v3061 = vunpack.c.l.b16 %v2542
  %v3062 = vunpack.c.l.b16 %v2543
  %v3063 = vunpack.c.l.b16 %v2544
  %v3064 = vunpack.c.l.b16 %v2545
  %v3065 = vunpack.c.l.b16 %v2546
  %v3066 = vunpack.c.l.b16 %v2547
  %v3067 = vunpack.c.l.b16 %v2548
  %v3068 = vunpack.c.l.b16 %v2549
  %v3069 = vunpack.c.l.b16 %v2550
  %v3070 = vunpack.c.l.b16 %v2551
  %v3071 = vunpack.c.l.b16 %v2552
  %v3072 = vunpack.c.l.b16 %v2553
  %v3073 = vunpack.c.l.b16 %v2554
  %v3074 = vunpack.c.l.b16 %v2555
  %v3075 = vunpack.c.l.b16 %v2556
  %v3076 = vunpack.c.l.b16 %v2557
  %v3077 = vunpack.c.l.b16 %v2558
  %v3078 = vunpack.c.l.b16 %v2559
  %v3079 = vunpack.c.l.b16 %v2560
  %v3080 = vunpack.c.l.b16 %v2561
  %v3081 = vunpack.c.l.b16 %v2562
  %v3082 = vunpack.c.l.b16 %v2563
  %v3083 = vunpack.c.l.b16 %v2564
  %v3084 = vunpack.c.l.b16 %v2565
  %v3085 = vunpack.c.l.b16 %v2566
  %v3086 = vunpack.c.l.b16 %v2567
  %v3087 = vunpack.c.l.b16 %v2568
  %v3088 = vunpack.c.l.b16 %v2569
  %v3089 = vunpack.c.l.b16 %v2570
  %v3090 = vunpack.c.l.b16 %v2571
  %v3091 = vunpack.c.l.b16 %v2572
  %v3092 = vunpack.c.l.b16 %v2573
  %v3093 = vunpack.c.l.b16 %v2574
  %v3094 = vunpack.c.l.b16 %v2575
  %v3095 = vunpack.c.l.b16 %v2576
  %v3096 = vunpack.c.l.b16 %v2577
  %v3097 = vunpack.c.l.b16 %v2578
  %v3098 = vunpack.c.l.b16 %v2579
  %v3099 = vunpack.c.l.b16 %v2580
  %v3100 = vunpack.c.l.b16 %v2581
  %v3101 = vunpack.c.l.b16 %v2582
  %v3102 = vunpack.c.l.b16 %v2583
  %v3103 = vunpack.c.l.b16 %v2584
  %v3104 = vunpack.c.l.b16 %v2585
  %v3105 = vunpack.c.l.b16 %v2586
  %v3106 = vunpack.c.l.b16 %v2587
  %v3107 = vunpack.c.l.b16 %v2588
  %v3108 = vunpack.c.l.b16 %v2589
  %v3109 = vunpack.c.l.b16 %v2590
  %v3110 = vunpack.c.l.b16 %v2591
  %v3111 = vunpack.c.l.b16 %v2592
  %v3112 = vunpack.c.l.b16 %v2593
  %v3113 = vunpack.c.l.b16 %v2594
  %v3114 = vunpack.c.l.b16 %v2595
  %v3115 = vunpack.c.l.b16 %v2596
  %v3116 = vunpack.c.l.b16 %v2597
  %v3117 = vunpack.c.l.b16 %v2598
  %v3118 = vunpack.c.l.b16 %v2599
  %v3119 = vunpack.c.l.b16 %v2600
  %v3120 = vunpack.c.l.b16 %v2601
  %v3121 = vunpack.c.l.b16 %v2602
  %v3122 = vunpack.c.l.b16 %v2603
  %v3123 = vunpack.c.l.b16 %v2604
  %v3124 = vunpack.c.l.b16 %v2605
  %v3125 = vunpack.c.l.b16 %v2606
  %v3126 = vunpack.c.l.b16 %v2607
  %v3127 = vunpack.c.l.b16 %v2608
  %v3128 = vunpack.c.l.b16 %v2609
  %v3129 = vunpack.c.l.b16 %v2610
  %v3130 = vunpack.c.l.b16 %v2611
  %v3131 = vunpack.c.l.b16 %v2612
  %v3132 = vunpack.c.l.b16 %v2613
  %v3133 = vunpack.c.l.b16 %v2614
  %v3134 = vunpack.c.l.b16 %v2615
  %v3135 = vunpack.c.l.b16 %v2616
  %v3136 = vunpack.c.l.b16 %v2617
  %v3137 = vunpack.c.l.b16 %v2618
  %v3138 = vunpack.c.l.b16 %v2619
  %v3139 = vunpack.c.l.b16 %v2620
  %v3140 = vunpack.c.l.b16 %v2621
  %v3141 = vunpack.c.l.b16 %v2622
  %v3142 = vunpack.c.l.b16 %v2623
  %v3143 = vunpack.c.l.b16 %v2624
  %v3144 = vunpack.c.l.b16 %v2625
  %v3145 = vunpack.c.l.b16 %v2626
  %v3146 = vunpack.c.l.b16 %v2627
  %v3147 = vunpack.c.l.b16 %v2628
  %v3148 = vunpack.c.l.b16 %v2629
  %v3149 = vunpack.c.l.b16 %v2630
  %v3150 = vunpack.c.l.b16 %v2631
  %v3151 = vunpack.c.l.b16 %v2632
  %v3152 = vunpack.c.l.b16 %v2633
  %v3153 = vunpack.c.l.b16 %v2634
  %v3154 = vunpack.c.l.b16 %v2635
  %v3155 = vunpack.c.l.b16 %v2636
  %v3156 = vunpack.c.l.b16 %v2637
  %v3157 = vunpack.c.l.b16 %v2638
  %v3158 = vunpack.c.l.b16 %v2639
  %v3159 = vunpack.c.l.b16 %v2640
  %v3160 = vunpack.c.l.b16 %v2641
  %v3161 = vunpack.c.l.b16 %v2642
  %v3162 = vunpack.c.l.b16 %v2643
  %v3163 = vunpack.c.l.b16 %v2644
  %v3164 = vunpack.c.l.b16 %v2645
  %v3165 = vunpack.c.l.b16 %v2646
  %v3166 = vunpack.c.l.b16 %v2647
  %v3167 = vunpack.c.l.b16 %v2648
  %v3168 = vunpack.c.l.b16 %v2649
  %v3169 = vunpack.c.l.b16 %v2650
  %v3170 = vunpack.c.l.b16 %v2651
  %v3171 = vunpack.c.l.b16 %v2652
  %v3172 = vunpack.c.l.b16 %v2653
  %v3173 = vunpack.c.l.b16 %v2654
  %v3174 = vunpack.c.l.b16 %v2655
  %v3175 = vunpack.c.l.b16 %v2656
  %v3176 = vunpack.c.l.b16 %v2657
  %v3177 = vunpack.c.l.b16 %v2658
  %v3178 = vunpack.c.l.b16 %v2659
  %v3179 = vunpack.c.l.b16 %v2660
  %v3180 = vunpack.c.l.b16 %v2661
  %v3181 = vunpack.c.l.b16 %v2662
  %v3182 = vunpack.c.l.b16 %v2663
  %v3183 = vunpack.c.l.b16 %v2664
  %v3184 = vunpack.c.l.b16 %v2665
  %v3185 = vunpack.c.l.b16 %v2666
  %v3186 = vunpack.c.l.b16 %v2667
  %v3187 = vunpack.c.l.b16 %v2668
  %v3188 = vunpack.c.l.b16 %v2669
  %v3189 = vunpack.c.l.b16 %v2670
  %v3190 = vunpack.c.l.b16 %v2671
  %v3191 = vunpack.c.l.b16 %v2672
  %v3192 = vunpack.c.l.b16 %v2673
  %v3193 = vpack.c.b16 %v2938, %v2937
  %v3194 = vpack.c.b16 %v2940, %v2939
  %v3195 = vpack.c.b16 %v2942, %v2941
  %v3196 = vpack.c.b16 %v2944, %v2943
  %v3197 = vpack.c.b16 %v2946, %v2945
  %v3198 = vpack.c.b16 %v2948, %v2947
  %v3199 = vpack.c.b16 %v2950, %v2949
  %v3200 = vpack.c.b16 %v2952, %v2951
  %v3201 = vpack.c.b16 %v2954, %v2953
  %v3202 = vpack.c.b16 %v2956, %v2955
  %v3203 = vpack.c.b16 %v2958, %v2957
  %v3204 = vpack.c.b16 %v2960, %v2959
  %v3205 = vpack.c.b16 %v2962, %v2961
  %v3206 = vpack.c.b16 %v2964, %v2963
  %v3207 = vpack.c.b16 %v2966, %v2965
  %v3208 = vpack.c.b16 %v2968, %v2967
  %v3209 = vpack.c.b16 %v2970, %v2969
  %v3210 = vpack.c.b16 %v2972, %v2971
  %v3211 = vpack.c.b16 %v2974, %v2973
  %v3212 = vpack.c.b16 %v2976, %v2975
  %v3213 = vpack.c.b16 %v2978, %v2977
  %v3214 = vpack.c.b16 %v2980, %v2979
  %v3215 = vpack.c.b16 %v2982, %v2981
  %v3216 = vpack.c.b16 %v2984, %v2983
  %v3217 = vpack.c.b16 %v2986, %v2985
  %v3218 = vpack.c.b16 %v2988, %v2987
  %v3219 = vpack.c.b16 %v2990, %v2989
  %v3220 = vpack.c.b16 %v2992, %v2991
  %v3221 = vpack.c.b16 %v2994, %v2993
  %v3222 = vpack.c.b16 %v2996, %v2995
  %v3223 = vpack.c.b16 %v2998, %v2997
  %v3224 = vpack.c.b16 %v3000, %v2999
  %v3225 = vpack.c.b16 %v3002, %v3001
  %v3226 = vpack.c.b16 %v3004, %v3003
  %v3227 = vpack.c.b16 %v3006, %v3005
  %v3228 = vpack.c.b16 %v3008, %v3007
  %v3229 = vpack.c.b16 %v3010, %v3009
  %v3230 = vpack.c.b16 %v3012, %v3011
  %v3231 = vpack.c.b16 %v3014, %v3013
  %v3232 = vpack.c.b16 %v3016, %v3015
  %v3233 = vpack.c.b16 %v3018, %v3017
  %v3234 = vpack.c.b16 %v3020, %v3019
  %v3235 = vpack.c.b16 %v3022, %v3021
  %v3236 = vpack.c.b16 %v3024, %v3023
  %v3237 = vpack.c.b16 %v3026, %v3025
  %v3238 = vpack.c.b16 %v3028, %v3027
  %v3239 = vpack.c.b16 %v3030, %v3029
  %v3240 = vpack.c.b16 %v3032, %v3031
  %v3241 = vpack.c.b16 %v3034, %v3033
  %v3242 = vpack.c.b16 %v3036, %v3035
  %v3243 = vpack.c.b16 %v3038, %v3037
  %v3244 = vpack.c.b16 %v3040, %v3039
  %v3245 = vpack.c.b16 %v3042, %v3041
  %v3246 = vpack.c.b16 %v3044, %v3043
  %v3247 = vpack.c.b16 %v3046, %v3045
  %v3248 = vpack.c.b16 %v3048, %v3047
  %v3249 = vpack.c.b16 %v3050, %v3049
  %v3250 = vpack.c.b16 %v3052, %v3051
  %v3251 = vpack.c.b16 %v3054, %v3053
  %v3252 = vpack.c.b16 %v3056, %v3055
  %v3253 = vpack.c.b16 %v3058, %v3057
  %v3254 = vpack.c.b16 %v3060, %v3059
  %v3255 = vpack.c.b16 %v3062, %v3061
  %v3256 = vpack.c.b16 %v3064, %v3063
  %v3257 = vpack.c.b16 %v3066, %v3065
  %v3258 = vpack.c.b16 %v3068, %v3067
  %v3259 = vpack.c.b16 %v3070, %v3069
  %v3260 = vpack.c.b16 %v3072, %v3071
  %v3261 = vpack.c.b16 %v3074, %v3073
  %v3262 = vpack.c.b16 %v3076, %v3075
  %v3263 = vpack.c.b16 %v3078, %v3077
  %v3264 = vpack.c.b16 %v3080, %v3079
  %v3265 = vpack.c.b16 %v3082, %v3081
  %v3266 = vpack.c.b16 %v3084, %v3083
  %v3267 = vpack.c.b16 %v3086, %v3085
  %v3268 = vpack.c.b16 %v3088, %v3087
  %v3269 = vpack.c.b16 %v3090, %v3089
  %v3270 = vpack.c.b16 %v3092, %v3091
  %v3271 = vpack.c.b16 %v3094, %v3093
  %v3272 = vpack.c.b16 %v3096, %v3095
  %v3273 = vpack.c.b16 %v3098, %v3097
  %v3274 = vpack.c.b16 %v3100, %v3099
  %v3275 = vpack.c.b16 %v3102, %v3101
  %v3276 = vpack.c.b16 %v3104, %v3103
  %v3277 = vpack.c.b16 %v3106, %v3105
  %v3278 = vpack.c.b16 %v3108, %v3107
  %v3279 = vpack.c.b16 %v3110, %v3109
  %v3280 = vpack.c.b16 %v3112, %v3111
  %v3281 = vpack.c.b16 %v3114, %v3113
  %v3282 = vpack.c.b16 %v3116, %v3115
  %v3283 = vpack.c.b16 %v3118, %v3117
  %v3284 = vpack.c.b16 %v3120, %v3119
  %v3285 = vpack.c.b16 %v3122, %v3121
  %v3286 = vpack.c.b16 %v3124, %v3123
  %v3287 = vpack.c.b16 %v3126, %v3125
  %v3288 = vpack.c.b16 %v3128, %v3127
  %v3289 = vpack.c.b16 %v3130, %v3129
  %v3290 = vpack.c.b16 %v3132, %v3131
  %v3291 = vpack.c.b16 %v3134, %v3133
  %v3292 = vpack.c.b16 %v3136, %v3135
  %v3293 = vpack.c.b16 %v3138, %v3137
  %v3294 = vpack.c.b16 %v3140, %v3139
  %v3295 = vpack.c.b16 %v3142, %v3141
  %v3296 = vpack.c.b16 %v3144, %v3143
  %v3297 = vpack.c.b16 %v3146, %v3145
  %v3298 = vpack.c.b16 %v3148, %v3147
  %v3299 = vpack.c.b16 %v3150, %v3149
  %v3300 = vpack.c.b16 %v3152, %v3151
  %v3301 = vpack.c.b16 %v3154, %v3153
  %v3302 = vpack.c.b16 %v3156, %v3155
  %v3303 = vpack.c.b16 %v3158, %v3157
  %v3304 = vpack.c.b16 %v3160, %v3159
  %v3305 = vpack.c.b16 %v3162, %v3161
  %v3306 = vpack.c.b16 %v3164, %v3163
  %v3307 = vpack.c.b16 %v3166, %v3165
  %v3308 = vpack.c.b16 %v3168, %v3167
  %v3309 = vpack.c.b16 %v3170, %v3169
  %v3310 = vpack.c.b16 %v3172, %v3171
  %v3311 = vpack.c.b16 %v3174, %v3173
  %v3312 = vpack.c.b16 %v3176, %v3175
  %v3313 = vpack.c.b16 %v3178, %v3177
  %v3314 = vpack.c.b16 %v3180, %v3179
  %v3315 = vpack.c.b16 %v3182, %v3181
  %v3316 = vpack.c.b16 %v3184, %v3183
  %v3317 = vpack.c.b16 %v3186, %v3185
  %v3318 = vpack.c.b16 %v3188, %v3187
  %v3319 = vpack.c.b16 %v3190, %v3189
  %v3320 = vpack.c.b16 %v3192, %v3191
  %3449 = vmatprep.subr.bf16.mxu0 0
  %3450 = vmatpush1.bf16.msra.mxu0 %v3193
  %3451 = vmatprep.subr.bf16.mxu0 0
  %3452 = vmatpush1.bf16.msra.mxu0 %v3194
  %3453 = vmatprep.subr.bf16.mxu0 0
  %3454 = vmatpush1.bf16.msra.mxu0 %v3195
  %3455 = vmatprep.subr.bf16.mxu0 0
  %3456 = vmatpush1.bf16.msra.mxu0 %v3196
  %3457 = vmatprep.subr.bf16.mxu0 0
  %3458 = vmatpush1.bf16.msra.mxu0 %v3197
  %3459 = vmatprep.subr.bf16.mxu0 0
  %3460 = vmatpush1.bf16.msra.mxu0 %v3198
  %3461 = vmatprep.subr.bf16.mxu0 0
  %3462 = vmatpush1.bf16.msra.mxu0 %v3199
  %3463 = vmatprep.subr.bf16.mxu0 0
  %3464 = vmatpush1.bf16.msra.mxu0 %v3200
  %3465 = vmatprep.subr.bf16.mxu0 0
  %3466 = vmatpush1.bf16.msra.mxu0 %v3201
  %3467 = vmatprep.subr.bf16.mxu0 0
  %3468 = vmatpush1.bf16.msra.mxu0 %v3202
  %3469 = vmatprep.subr.bf16.mxu0 0
  %3470 = vmatpush1.bf16.msra.mxu0 %v3203
  %3471 = vmatprep.subr.bf16.mxu0 0
  %3472 = vmatpush1.bf16.msra.mxu0 %v3204
  %3473 = vmatprep.subr.bf16.mxu0 0
  %3474 = vmatpush1.bf16.msra.mxu0 %v3205
  %3475 = vmatprep.subr.bf16.mxu0 0
  %3476 = vmatpush1.bf16.msra.mxu0 %v3206
  %3477 = vmatprep.subr.bf16.mxu0 0
  %3478 = vmatpush1.bf16.msra.mxu0 %v3207
  %3479 = vmatprep.subr.bf16.mxu0 0
  %3480 = vmatpush1.bf16.msra.mxu0 %v3208
  %3481 = vmatprep.mubr.bf16.mxu0 %v2403
  %3482 = vmatmul.mubr.bf16.gmra.mrb[0].mxu0 %v2402
  %v3483 = vpop.f32.mrb[0].mxu0
  %v3484 = vadd.f32 %v2679, %v3483
  %v3485 = vpop.f32.mrb[0].mxu0
  %v3486 = vpop.f32.mrb[0].mxu0
  %v3487 = vadd.f32 %v2679, %v3486
  %v3488 = vpop.f32.mrb[0].mxu0
  %3489 = vdwg.mxu0
  %3490 = vmatprep.subr.bf16.mxu0 0
  %3491 = vmatpush1.bf16.msra.mxu0 %v3209
  %3492 = vmatprep.subr.bf16.mxu0 0
  %3493 = vmatpush1.bf16.msra.mxu0 %v3210
  %3494 = vmatprep.subr.bf16.mxu0 0
  %3495 = vmatpush1.bf16.msra.mxu0 %v3211
  %3496 = vmatprep.subr.bf16.mxu0 0
  %3497 = vmatpush1.bf16.msra.mxu0 %v3212
  %3498 = vmatprep.subr.bf16.mxu0 0
  %3499 = vmatpush1.bf16.msra.mxu0 %v3213
  %3500 = vmatprep.subr.bf16.mxu0 0
  %3501 = vmatpush1.bf16.msra.mxu0 %v3214
  %3502 = vmatprep.subr.bf16.mxu0 0
  %3503 = vmatpush1.bf16.msra.mxu0 %v3215
  %3504 = vmatprep.subr.bf16.mxu0 0
  %3505 = vmatpush1.bf16.msra.mxu0 %v3216
  %3506 = vmatprep.subr.bf16.mxu0 0
  %3507 = vmatpush1.bf16.msra.mxu0 %v3217
  %3508 = vmatprep.subr.bf16.mxu0 0
  %3509 = vmatpush1.bf16.msra.mxu0 %v3218
  %3510 = vmatprep.subr.bf16.mxu0 0
  %3511 = vmatpush1.bf16.msra.mxu0 %v3219
  %3512 = vmatprep.subr.bf16.mxu0 0
  %3513 = vmatpush1.bf16.msra.mxu0 %v3220
  %3514 = vmatprep.subr.bf16.mxu0 0
  %3515 = vmatpush1.bf16.msra.mxu0 %v3221
  %3516 = vmatprep.subr.bf16.mxu0 0
  %3517 = vmatpush1.bf16.msra.mxu0 %v3222
  %3518 = vmatprep.subr.bf16.mxu0 0
  %3519 = vmatpush1.bf16.msra.mxu0 %v3223
  %3520 = vmatprep.subr.bf16.mxu0 0
  %3521 = vmatpush1.bf16.msra.mxu0 %v3224
  %3522 = vmatprep.mubr.bf16.mxu0 %v2405
  %3523 = vmatmul.mubr.bf16.gmra.mrb[0].mxu0 %v2404
  %v3524 = vpop.f32.mrb[0].mxu0
  %v3525 = vadd.f32 %v3484, %v3524
  %v3526 = vpop.f32.mrb[0].mxu0
  %v3527 = vpop.f32.mrb[0].mxu0
  %v3528 = vadd.f32 %v3487, %v3527
  %v3529 = vpop.f32.mrb[0].mxu0
  %3530 = vdwg.mxu0
  %3531 = vmatprep.subr.bf16.mxu0 0
  %3532 = vmatpush1.bf16.msra.mxu0 %v3225
  %3533 = vmatprep.subr.bf16.mxu0 0
  %3534 = vmatpush1.bf16.msra.mxu0 %v3226
  %3535 = vmatprep.subr.bf16.mxu0 0
  %3536 = vmatpush1.bf16.msra.mxu0 %v3227
  %3537 = vmatprep.subr.bf16.mxu0 0
  %3538 = vmatpush1.bf16.msra.mxu0 %v3228
  %3539 = vmatprep.subr.bf16.mxu0 0
  %3540 = vmatpush1.bf16.msra.mxu0 %v3229
  %3541 = vmatprep.subr.bf16.mxu0 0
  %3542 = vmatpush1.bf16.msra.mxu0 %v3230
  %3543 = vmatprep.subr.bf16.mxu0 0
  %3544 = vmatpush1.bf16.msra.mxu0 %v3231
  %3545 = vmatprep.subr.bf16.mxu0 0
  %3546 = vmatpush1.bf16.msra.mxu0 %v3232
  %3547 = vmatprep.subr.bf16.mxu0 0
  %3548 = vmatpush1.bf16.msra.mxu0 %v3233
  %3549 = vmatprep.subr.bf16.mxu0 0
  %3550 = vmatpush1.bf16.msra.mxu0 %v3234
  %3551 = vmatprep.subr.bf16.mxu0 0
  %3552 = vmatpush1.bf16.msra.mxu0 %v3235
  %3553 = vmatprep.subr.bf16.mxu0 0
  %3554 = vmatpush1.bf16.msra.mxu0 %v3236
  %3555 = vmatprep.subr.bf16.mxu0 0
  %3556 = vmatpush1.bf16.msra.mxu0 %v3237
  %3557 = vmatprep.subr.bf16.mxu0 0
  %3558 = vmatpush1.bf16.msra.mxu0 %v3238
  %3559 = vmatprep.subr.bf16.mxu0 0
  %3560 = vmatpush1.bf16.msra.mxu0 %v3239
  %3561 = vmatprep.subr.bf16.mxu0 0
  %3562 = vmatpush1.bf16.msra.mxu0 %v3240
  %3563 = vmatprep.mubr.bf16.mxu0 %v2407
  %3564 = vmatmul.mubr.bf16.gmra.mrb[0].mxu0 %v2406
  %v3565 = vpop.f32.mrb[0].mxu0
  %v3566 = vadd.f32 %v3525, %v3565
  %v3567 = vpop.f32.mrb[0].mxu0
  %v3568 = vpop.f32.mrb[0].mxu0
  %v3569 = vadd.f32 %v3528, %v3568
  %v3570 = vpop.f32.mrb[0].mxu0
  %3571 = vdwg.mxu0
  %3572 = vmatprep.subr.bf16.mxu0 0
  %3573 = vmatpush1.bf16.msra.mxu0 %v3241
  %3574 = vmatprep.subr.bf16.mxu0 0
  %3575 = vmatpush1.bf16.msra.mxu0 %v3242
  %3576 = vmatprep.subr.bf16.mxu0 0
  %3577 = vmatpush1.bf16.msra.mxu0 %v3243
  %3578 = vmatprep.subr.bf16.mxu0 0
  %3579 = vmatpush1.bf16.msra.mxu0 %v3244
  %3580 = vmatprep.subr.bf16.mxu0 0
  %3581 = vmatpush1.bf16.msra.mxu0 %v3245
  %3582 = vmatprep.subr.bf16.mxu0 0
  %3583 = vmatpush1.bf16.msra.mxu0 %v3246
  %3584 = vmatprep.subr.bf16.mxu0 0
  %3585 = vmatpush1.bf16.msra.mxu0 %v3247
  %3586 = vmatprep.subr.bf16.mxu0 0
  %3587 = vmatpush1.bf16.msra.mxu0 %v3248
  %3588 = vmatprep.subr.bf16.mxu0 0
  %3589 = vmatpush1.bf16.msra.mxu0 %v3249
  %3590 = vmatprep.subr.bf16.mxu0 0
  %3591 = vmatpush1.bf16.msra.mxu0 %v3250
  %3592 = vmatprep.subr.bf16.mxu0 0
  %3593 = vmatpush1.bf16.msra.mxu0 %v3251
  %3594 = vmatprep.subr.bf16.mxu0 0
  %3595 = vmatpush1.bf16.msra.mxu0 %v3252
  %3596 = vmatprep.subr.bf16.mxu0 0
  %3597 = vmatpush1.bf16.msra.mxu0 %v3253
  %3598 = vmatprep.subr.bf16.mxu0 0
  %3599 = vmatpush1.bf16.msra.mxu0 %v3254
  %3600 = vmatprep.subr.bf16.mxu0 0
  %3601 = vmatpush1.bf16.msra.mxu0 %v3255
  %3602 = vmatprep.subr.bf16.mxu0 0
  %3603 = vmatpush1.bf16.msra.mxu0 %v3256
  %3604 = vmatprep.mubr.bf16.mxu0 %v2409
  %3605 = vmatmul.mubr.bf16.gmra.mrb[0].mxu0 %v2408
  %v3606 = vpop.f32.mrb[0].mxu0
  %v3607 = vadd.f32 %v3566, %v3606
  %v3608 = vpop.f32.mrb[0].mxu0
  %v3609 = vpop.f32.mrb[0].mxu0
  %v3610 = vadd.f32 %v3569, %v3609
  %v3611 = vpop.f32.mrb[0].mxu0
  %3612 = vdwg.mxu0
  %3613 = vmatprep.subr.bf16.mxu0 0
  %3614 = vmatpush1.bf16.msra.mxu0 %v3257
  %3615 = vmatprep.subr.bf16.mxu0 0
  %3616 = vmatpush1.bf16.msra.mxu0 %v3258
  %3617 = vmatprep.subr.bf16.mxu0 0
  %3618 = vmatpush1.bf16.msra.mxu0 %v3259
  %3619 = vmatprep.subr.bf16.mxu0 0
  %3620 = vmatpush1.bf16.msra.mxu0 %v3260
  %3621 = vmatprep.subr.bf16.mxu0 0
  %3622 = vmatpush1.bf16.msra.mxu0 %v3261
  %3623 = vmatprep.subr.bf16.mxu0 0
  %3624 = vmatpush1.bf16.msra.mxu0 %v3262
  %3625 = vmatprep.subr.bf16.mxu0 0
  %3626 = vmatpush1.bf16.msra.mxu0 %v3263
  %3627 = vmatprep.subr.bf16.mxu0 0
  %3628 = vmatpush1.bf16.msra.mxu0 %v3264
  %3629 = vmatprep.subr.bf16.mxu0 0
  %3630 = vmatpush1.bf16.msra.mxu0 %v3265
  %3631 = vmatprep.subr.bf16.mxu0 0
  %3632 = vmatpush1.bf16.msra.mxu0 %v3266
  %3633 = vmatprep.subr.bf16.mxu0 0
  %3634 = vmatpush1.bf16.msra.mxu0 %v3267
  %3635 = vmatprep.subr.bf16.mxu0 0
  %3636 = vmatpush1.bf16.msra.mxu0 %v3268
  %3637 = vmatprep.subr.bf16.mxu0 0
  %3638 = vmatpush1.bf16.msra.mxu0 %v3269
  %3639 = vmatprep.subr.bf16.mxu0 0
  %3640 = vmatpush1.bf16.msra.mxu0 %v3270
  %3641 = vmatprep.subr.bf16.mxu0 0
  %3642 = vmatpush1.bf16.msra.mxu0 %v3271
  %3643 = vmatprep.subr.bf16.mxu0 0
  %3644 = vmatpush1.bf16.msra.mxu0 %v3272
  %3645 = vmatprep.mubr.bf16.mxu0 %v2411
  %3646 = vmatmul.mubr.bf16.gmra.mrb[0].mxu0 %v2410
  %v3647 = vpop.f32.mrb[0].mxu0
  %v3648 = vadd.f32 %v3607, %v3647
  %v3649 = vpop.f32.mrb[0].mxu0
  %v3650 = vpop.f32.mrb[0].mxu0
  %v3651 = vadd.f32 %v3610, %v3650
  %v3652 = vpop.f32.mrb[0].mxu0
  %3653 = vdwg.mxu0
  %3654 = vmatprep.subr.bf16.mxu0 0
  %3655 = vmatpush1.bf16.msra.mxu0 %v3273
  %3656 = vmatprep.subr.bf16.mxu0 0
  %3657 = vmatpush1.bf16.msra.mxu0 %v3274
  %3658 = vmatprep.subr.bf16.mxu0 0
  %3659 = vmatpush1.bf16.msra.mxu0 %v3275
  %3660 = vmatprep.subr.bf16.mxu0 0
  %3661 = vmatpush1.bf16.msra.mxu0 %v3276
  %3662 = vmatprep.subr.bf16.mxu0 0
  %3663 = vmatpush1.bf16.msra.mxu0 %v3277
  %3664 = vmatprep.subr.bf16.mxu0 0
  %3665 = vmatpush1.bf16.msra.mxu0 %v3278
  %3666 = vmatprep.subr.bf16.mxu0 0
  %3667 = vmatpush1.bf16.msra.mxu0 %v3279
  %3668 = vmatprep.subr.bf16.mxu0 0
  %3669 = vmatpush1.bf16.msra.mxu0 %v3280
  %3670 = vmatprep.subr.bf16.mxu0 0
  %3671 = vmatpush1.bf16.msra.mxu0 %v3281
  %3672 = vmatprep.subr.bf16.mxu0 0
  %3673 = vmatpush1.bf16.msra.mxu0 %v3282
  %3674 = vmatprep.subr.bf16.mxu0 0
  %3675 = vmatpush1.bf16.msra.mxu0 %v3283
  %3676 = vmatprep.subr.bf16.mxu0 0
  %3677 = vmatpush1.bf16.msra.mxu0 %v3284
  %3678 = vmatprep.subr.bf16.mxu0 0
  %3679 = vmatpush1.bf16.msra.mxu0 %v3285
  %3680 = vmatprep.subr.bf16.mxu0 0
  %3681 = vmatpush1.bf16.msra.mxu0 %v3286
  %3682 = vmatprep.subr.bf16.mxu0 0
  %3683 = vmatpush1.bf16.msra.mxu0 %v3287
  %3684 = vmatprep.subr.bf16.mxu0 0
  %3685 = vmatpush1.bf16.msra.mxu0 %v3288
  %3686 = vmatprep.mubr.bf16.mxu0 %v2413
  %3687 = vmatmul.mubr.bf16.gmra.mrb[0].mxu0 %v2412
  %v3688 = vpop.f32.mrb[0].mxu0
  %v3689 = vadd.f32 %v3648, %v3688
  %v3690 = vpop.f32.mrb[0].mxu0
  %v3691 = vpop.f32.mrb[0].mxu0
  %v3692 = vadd.f32 %v3651, %v3691
  %v3693 = vpop.f32.mrb[0].mxu0
  %3694 = vdwg.mxu0
  %3695 = vmatprep.subr.bf16.mxu0 0
  %3696 = vmatpush1.bf16.msra.mxu0 %v3289
  %3697 = vmatprep.subr.bf16.mxu0 0
  %3698 = vmatpush1.bf16.msra.mxu0 %v3290
  %3699 = vmatprep.subr.bf16.mxu0 0
  %3700 = vmatpush1.bf16.msra.mxu0 %v3291
  %3701 = vmatprep.subr.bf16.mxu0 0
  %3702 = vmatpush1.bf16.msra.mxu0 %v3292
  %3703 = vmatprep.subr.bf16.mxu0 0
  %3704 = vmatpush1.bf16.msra.mxu0 %v3293
  %3705 = vmatprep.subr.bf16.mxu0 0
  %3706 = vmatpush1.bf16.msra.mxu0 %v3294
  %3707 = vmatprep.subr.bf16.mxu0 0
  %3708 = vmatpush1.bf16.msra.mxu0 %v3295
  %3709 = vmatprep.subr.bf16.mxu0 0
  %3710 = vmatpush1.bf16.msra.mxu0 %v3296
  %3711 = vmatprep.subr.bf16.mxu0 0
  %3712 = vmatpush1.bf16.msra.mxu0 %v3297
  %3713 = vmatprep.subr.bf16.mxu0 0
  %3714 = vmatpush1.bf16.msra.mxu0 %v3298
  %3715 = vmatprep.subr.bf16.mxu0 0
  %3716 = vmatpush1.bf16.msra.mxu0 %v3299
  %3717 = vmatprep.subr.bf16.mxu0 0
  %3718 = vmatpush1.bf16.msra.mxu0 %v3300
  %3719 = vmatprep.subr.bf16.mxu0 0
  %3720 = vmatpush1.bf16.msra.mxu0 %v3301
  %3721 = vmatprep.subr.bf16.mxu0 0
  %3722 = vmatpush1.bf16.msra.mxu0 %v3302
  %3723 = vmatprep.subr.bf16.mxu0 0
  %3724 = vmatpush1.bf16.msra.mxu0 %v3303
  %3725 = vmatprep.subr.bf16.mxu0 0
  %3726 = vmatpush1.bf16.msra.mxu0 %v3304
  %3727 = vmatprep.mubr.bf16.mxu0 %v2415
  %3728 = vmatmul.mubr.bf16.gmra.mrb[0].mxu0 %v2414
  %v3729 = vpop.f32.mrb[0].mxu0
  %v3730 = vadd.f32 %v3689, %v3729
  %v3731 = vpop.f32.mrb[0].mxu0
  %v3732 = vpop.f32.mrb[0].mxu0
  %v3733 = vadd.f32 %v3692, %v3732
  %v3734 = vpop.f32.mrb[0].mxu0
  %3735 = vdwg.mxu0
  %3736 = vmatprep.subr.bf16.mxu0 0
  %3737 = vmatpush1.bf16.msra.mxu0 %v3305
  %3738 = vmatprep.subr.bf16.mxu0 0
  %3739 = vmatpush1.bf16.msra.mxu0 %v3306
  %3740 = vmatprep.subr.bf16.mxu0 0
  %3741 = vmatpush1.bf16.msra.mxu0 %v3307
  %3742 = vmatprep.subr.bf16.mxu0 0
  %3743 = vmatpush1.bf16.msra.mxu0 %v3308
  %3744 = vmatprep.subr.bf16.mxu0 0
  %3745 = vmatpush1.bf16.msra.mxu0 %v3309
  %3746 = vmatprep.subr.bf16.mxu0 0
  %3747 = vmatpush1.bf16.msra.mxu0 %v3310
  %3748 = vmatprep.subr.bf16.mxu0 0
  %3749 = vmatpush1.bf16.msra.mxu0 %v3311
  %3750 = vmatprep.subr.bf16.mxu0 0
  %3751 = vmatpush1.bf16.msra.mxu0 %v3312
  %3752 = vmatprep.subr.bf16.mxu0 0
  %3753 = vmatpush1.bf16.msra.mxu0 %v3313
  %3754 = vmatprep.subr.bf16.mxu0 0
  %3755 = vmatpush1.bf16.msra.mxu0 %v3314
  %3756 = vmatprep.subr.bf16.mxu0 0
  %3757 = vmatpush1.bf16.msra.mxu0 %v3315
  %3758 = vmatprep.subr.bf16.mxu0 0
  %3759 = vmatpush1.bf16.msra.mxu0 %v3316
  %3760 = vmatprep.subr.bf16.mxu0 0
  %3761 = vmatpush1.bf16.msra.mxu0 %v3317
  %3762 = vmatprep.subr.bf16.mxu0 0
  %3763 = vmatpush1.bf16.msra.mxu0 %v3318
  %3764 = vmatprep.subr.bf16.mxu0 0
  %3765 = vmatpush1.bf16.msra.mxu0 %v3319
  %3766 = vmatprep.subr.bf16.mxu0 0
  %3767 = vmatpush1.bf16.msra.mxu0 %v3320
  %3768 = vmatprep.mubr.bf16.mxu0 %v2417
  %3769 = vmatmul.mubr.bf16.gmra.mrb[0].mxu0 %v2416
  %v3770 = vpop.f32.mrb[0].mxu0
  %v3771 = vadd.f32 %v3730, %v3770
  %v3772 = vpop.f32.mrb[0].mxu0
  %v3773 = vpop.f32.mrb[0].mxu0
  %v3774 = vadd.f32 %v3733, %v3773
  %v3775 = vpop.f32.mrb[0].mxu0
  %3776 = vdwg.mxu0
  %v3777 = vadd.f32 %v1744, %v3771
  %v3778 = vadd.f32 %v1745, %v3774
  %v3779 = vsel %vm174, %v3777, 0.0
  %3780 = vadd.xlane.f32.xlu0 %v3779
  %v3781 = vpop.xlane.xlu0 %3780
  %v3782 = vsel %vm174, %v3778, 0.0
  %3783 = vadd.xlane.f32.xlu0 %v3782
  %v3784 = vpop.xlane.xlu0 %3783
  %v3785 = vmul.f32 %v3781, %v1707
  %v3786 = vmul.f32 %v3784, %v1707
  %v3787 = vsub.f32 %v3777, %v3785
  %v3788 = vsub.f32 %v3778, %v3786
  %v3789 = vmul.f32 %v3787, %v3787
  %v3790 = vmul.f32 %v3788, %v3788
  %v3791 = vsel %vm174, %v3789, 0.0
  %3792 = vadd.xlane.f32.xlu0 %v3791
  %v3793 = vpop.xlane.xlu0 %3792
  %v3794 = vsel %vm174, %v3790, 0.0
  %3795 = vadd.xlane.f32.xlu0 %v3794
  %v3796 = vpop.xlane.xlu0 %3795
  %v3797 = vmul.f32 %v3793, %v1707
  %v3798 = vmul.f32 %v3796, %v1707
  %v3799 = vadd.f32 %v3797, 1e-05
  %v3800 = vadd.f32 %v3798, 1e-05
  %v3801 = vrsqrt.pop %v3799
  %v3802 = vrsqrt.pop %v3800
  %v3803 = vmul.f32 %v3787, %v3801
  %v3804 = vmul.f32 %v3788, %v3802
  %v3805 = vld [vmem:[%s25] sm:$0x1]
  %v3807 = vlaneseq
  %v3808 = vshrl.u32 %v3807, 7
  %v3809 = vsub.s32 0, %v3808
  %v3810 = vrot.slane %v3805, %v3809
  %v3812 = vmul.f32 %v3803, %v3810
  %v3813 = vmul.f32 %v3804, %v3810
  %v3814 = vld [vmem:[%s27] sm:$0x1]
  %v3816 = vlaneseq
  %v3817 = vshrl.u32 %v3816, 7
  %v3818 = vsub.s32 0, %v3817
  %v3819 = vrot.slane %v3814, %v3818
  %v3821 = vadd.f32 %v3812, %v3819
  %v3822 = vadd.f32 %v3813, %v3819
  %v3823 = vsel %vm174, %v3821, 0.0
  %3824 = vadd.xlane.f32.xlu0 %v3823
  %v3825 = vpop.xlane.xlu0 %3824
  %v3826 = vsel %vm174, %v3822, 0.0
  %3827 = vadd.xlane.f32.xlu0 %v3826
  %v3828 = vpop.xlane.xlu0 %3827
  %v3829 = vmul.f32 %v3825, %v1707
  %v3830 = vmul.f32 %v3828, %v1707
  %v3831 = vsub.f32 %v3821, %v3829
  %v3832 = vsub.f32 %v3822, %v3830
  %v3833 = vmul.f32 %v3831, %v3831
  %v3834 = vmul.f32 %v3832, %v3832
  %v3835 = vsel %vm174, %v3833, 0.0
  %3836 = vadd.xlane.f32.xlu0 %v3835
  %v3837 = vpop.xlane.xlu0 %3836
  %v3838 = vsel %vm174, %v3834, 0.0
  %3839 = vadd.xlane.f32.xlu0 %v3838
  %v3840 = vpop.xlane.xlu0 %3839
  %v3841 = vmul.f32 %v3837, %v1707
  %v3842 = vmul.f32 %v3840, %v1707
  %v3843 = vadd.f32 %v3841, 1e-05
  %v3844 = vadd.f32 %v3842, 1e-05
  %v3845 = vrsqrt.pop %v3843
  %v3846 = vrsqrt.pop %v3844
  %v3847 = vmul.f32 %v3831, %v3845
  %v3848 = vmul.f32 %v3832, %v3846
  %v3849 = vld [vmem:[%s29] sm:$0x1]
  %v3851 = vlaneseq
  %v3852 = vshrl.u32 %v3851, 7
  %v3853 = vsub.s32 0, %v3852
  %v3854 = vrot.slane %v3849, %v3853
  %v3856 = vmul.f32 %v3847, %v3854
  %v3857 = vmul.f32 %v3848, %v3854
  %v3858 = vld [vmem:[%s31] sm:$0x1]
  %v3860 = vlaneseq
  %v3861 = vshrl.u32 %v3860, 7
  %v3862 = vsub.s32 0, %v3861
  %v3863 = vrot.slane %v3858, %v3862
  %v3865 = vadd.f32 %v3856, %v3863
  %v3866 = vadd.f32 %v3857, %v3863
  %v3867 = vld [vmem:[%s33] sm:$0xff]
  %v3868 = vld [vmem:[%s33 + $0x8] sm:$0xff]
  %v3869 = vld [vmem:[%s33 + $0x10] sm:$0xff]
  %v3870 = vld [vmem:[%s33 + $0x18] sm:$0xff]
  %v3871 = vld [vmem:[%s35] sm:$0x1]
  %v3873 = vlaneseq
  %v3874 = vshrl.u32 %v3873, 7
  %v3875 = vsub.s32 0, %v3874
  %v3876 = vrot.slane %v3871, %v3875
  %v3879 = vsel %vm174, %v161, 0
  %v3882 = vsel %vm174, %v162, 0
  %3884 = vmatprep.subr.mxu0 0.0
  %3885 = vmatpush1.msra.mxu0 %v3867
  %3886 = vmatprep.subr.mxu0 0.0
  %3887 = vmatpush1.msra.mxu0 %v3868
  %3888 = vmatprep.subr.mxu0 0.0
  %3889 = vmatpush1.msra.mxu0 %v3869
  %3890 = vmatprep.subr.mxu0 0.0
  %3891 = vmatpush1.msra.mxu0 %v3870
  %3892 = vmatprep.subr.mxu0 0.0
  %3893 = vmatpush1.msra.mxu0 0.0
  %3894 = vmatprep.subr.mxu0 0.0
  %3895 = vmatpush1.msra.mxu0 0.0
  %3896 = vmatprep.subr.mxu0 0.0
  %3897 = vmatpush1.msra.mxu0 0.0
  %3898 = vmatprep.subr.mxu0 0.0
  %3899 = vmatpush1.msra.mxu0 0.0
  %3900 = vmatprep.subr.mxu0 0.0
  %3901 = vmatpush1.msra.mxu0 0.0
  %3902 = vmatprep.subr.mxu0 0.0
  %3903 = vmatpush1.msra.mxu0 0.0
  %3904 = vmatprep.subr.mxu0 0.0
  %3905 = vmatpush1.msra.mxu0 0.0
  %3906 = vmatprep.subr.mxu0 0.0
  %3907 = vmatpush1.msra.mxu0 0.0
  %3908 = vmatprep.subr.mxu0 0.0
  %3909 = vmatpush1.msra.mxu0 0.0
  %3910 = vmatprep.subr.mxu0 0.0
  %3911 = vmatpush1.msra.mxu0 0.0
  %3912 = vmatprep.subr.mxu0 0.0
  %3913 = vmatpush1.msra.mxu0 0.0
  %3914 = vmatprep.subr.mxu0 0.0
  %3915 = vmatpush1.msra.mxu0 0.0
  %3916 = vmatprep.subr.mxu0 0.0
  %3917 = vmatpush1.msra.mxu0 0.0
  %3918 = vmatprep.subr.mxu0 0.0
  %3919 = vmatpush1.msra.mxu0 0.0
  %3920 = vmatprep.subr.mxu0 0.0
  %3921 = vmatpush1.msra.mxu0 0.0
  %3922 = vmatprep.subr.mxu0 0.0
  %3923 = vmatpush1.msra.mxu0 0.0
  %3924 = vmatprep.subr.mxu0 0.0
  %3925 = vmatpush1.msra.mxu0 0.0
  %3926 = vmatprep.subr.mxu0 0.0
  %3927 = vmatpush1.msra.mxu0 0.0
  %3928 = vmatprep.subr.mxu0 0.0
  %3929 = vmatpush1.msra.mxu0 0.0
  %3930 = vmatprep.subr.mxu0 0.0
  %3931 = vmatpush1.msra.mxu0 0.0
  %3932 = vmatprep.subr.mxu0 0.0
  %3933 = vmatpush1.msra.mxu0 0.0
  %3934 = vmatprep.subr.mxu0 0.0
  %3935 = vmatpush1.msra.mxu0 0.0
  %3936 = vmatprep.subr.mxu0 0.0
  %3937 = vmatpush1.msra.mxu0 0.0
  %3938 = vmatprep.subr.mxu0 0.0
  %3939 = vmatpush1.msra.mxu0 0.0
  %3940 = vmatprep.subr.mxu0 0.0
  %3941 = vmatpush1.msra.mxu0 0.0
  %3942 = vmatprep.subr.mxu0 0.0
  %3943 = vmatpush1.msra.mxu0 0.0
  %3944 = vmatprep.subr.mxu0 0.0
  %3945 = vmatpush1.msra.mxu0 0.0
  %3946 = vmatprep.subr.mxu0 0.0
  %3947 = vmatpush1.msra.mxu0 0.0
  %3948 = vmatprep.mubr.f32.mxu0 0.0
  %3949 = vmatmul.mubr.f32.gmra.mrb[0].mxu0 %v3879
  %v3950 = vpop.f32.mrb[0].mxu0
  %v3951 = vadd.f32 %v3876, %v3950
  %v3952 = vpop.f32.mrb[0].mxu0
  %3953 = vmatprep.mubr.f32.mxu0 0.0
  %3954 = vmatmul.mubr.f32.gmra.mrb[0].mxu0 %v3882
  %v3955 = vpop.f32.mrb[0].mxu0
  %v3956 = vadd.f32 %v3876, %v3955
  %v3957 = vpop.f32.mrb[0].mxu0
  %3958 = vdwg.mxu0
  %3960 = vrot.lane.b32.xlu0 %v3951, 96
  %v3961 = vpop.permute.xlu0 %3960
  %v3962 = vsel %vm259, %v3951, 0
  %v3964 = vsel %vm259, %v3961, 0
  %3966 = vmatprep.subr.mxu0 0.0
  %3967 = vmatpush1.xpose.msra.mxu0 %v3964
  %3968 = vmatprep.subr.mxu0 0.0
  %3969 = vmatpush1.xpose.msra.mxu0 0.0
  %3970 = vmatprep.subr.mxu0 0.0
  %3971 = vmatpush1.xpose.msra.mxu0 0.0
  %3972 = vmatprep.subr.mxu0 0.0
  %3973 = vmatpush1.xpose.msra.mxu0 0.0
  %3974 = vmatprep.subr.mxu0 0.0
  %3975 = vmatpush1.xpose.msra.mxu0 0.0
  %3976 = vmatprep.subr.mxu0 0.0
  %3977 = vmatpush1.xpose.msra.mxu0 0.0
  %3978 = vmatprep.subr.mxu0 0.0
  %3979 = vmatpush1.xpose.msra.mxu0 0.0
  %3980 = vmatprep.subr.mxu0 0.0
  %3981 = vmatpush1.xpose.msra.mxu0 0.0
  %3982 = vmatprep.subr.mxu0 0.0
  %3983 = vmatpush1.xpose.msra.mxu0 0.0
  %3984 = vmatprep.subr.mxu0 0.0
  %3985 = vmatpush1.xpose.msra.mxu0 0.0
  %3986 = vmatprep.subr.mxu0 0.0
  %3987 = vmatpush1.xpose.msra.mxu0 0.0
  %3988 = vmatprep.subr.mxu0 0.0
  %3989 = vmatpush1.xpose.msra.mxu0 0.0
  %3990 = vmatprep.subr.mxu0 0.0
  %3991 = vmatpush1.xpose.msra.mxu0 0.0
  %3992 = vmatprep.subr.mxu0 0.0
  %3993 = vmatpush1.xpose.msra.mxu0 0.0
  %3994 = vmatprep.subr.mxu0 0.0
  %3995 = vmatpush1.xpose.msra.mxu0 0.0
  %3996 = vmatprep.subr.mxu0 0.0
  %3997 = vmatpush1.xpose.msra.mxu0 0.0
  %3998 = vmatprep.subr.mxu0 0.0
  %3999 = vmatpush1.xpose.msra.mxu0 0.0
  %4000 = vmatprep.subr.mxu0 0.0
  %4001 = vmatpush1.xpose.msra.mxu0 0.0
  %4002 = vmatprep.subr.mxu0 0.0
  %4003 = vmatpush1.xpose.msra.mxu0 0.0
  %4004 = vmatprep.subr.mxu0 0.0
  %4005 = vmatpush1.xpose.msra.mxu0 0.0
  %4006 = vmatprep.subr.mxu0 0.0
  %4007 = vmatpush1.xpose.msra.mxu0 0.0
  %4008 = vmatprep.subr.mxu0 0.0
  %4009 = vmatpush1.xpose.msra.mxu0 0.0
  %4010 = vmatprep.subr.mxu0 0.0
  %4011 = vmatpush1.xpose.msra.mxu0 0.0
  %4012 = vmatprep.subr.mxu0 0.0
  %4013 = vmatpush1.xpose.msra.mxu0 0.0
  %4014 = vmatprep.subr.mxu0 0.0
  %4015 = vmatpush1.xpose.msra.mxu0 0.0
  %4016 = vmatprep.subr.mxu0 0.0
  %4017 = vmatpush1.xpose.msra.mxu0 0.0
  %4018 = vmatprep.subr.mxu0 0.0
  %4019 = vmatpush1.xpose.msra.mxu0 0.0
  %4020 = vmatprep.subr.mxu0 0.0
  %4021 = vmatpush1.xpose.msra.mxu0 0.0
  %4022 = vmatprep.subr.mxu0 0.0
  %4023 = vmatpush1.xpose.msra.mxu0 0.0
  %4024 = vmatprep.subr.mxu0 0.0
  %4025 = vmatpush1.xpose.msra.mxu0 0.0
  %4026 = vmatprep.subr.mxu0 0.0
  %4027 = vmatpush1.xpose.msra.mxu0 0.0
  %4028 = vmatprep.subr.mxu0 0.0
  %4029 = vmatpush1.xpose.msra.mxu0 0.0
  %4030 = vmatprep.mubr.f32.mxu0 0.0
  %4031 = vmatmul.mubr.f32.gmra.mrb[0].mxu0 %v3962
  %v4032 = vpop.f32.mrb[0].mxu0
  %v4033 = vadd.f32 0.0, %v4032
  %v4034 = vpop.f32.mrb[0].mxu0
  %4035 = vdwg.mxu0
  %4037 = vrot.lane.b32.xlu0 %v3956, 96
  %v4038 = vpop.permute.xlu0 %4037
  %v4039 = vsel %vm259, %v3956, 0
  %v4041 = vsel %vm259, %v4038, 0
  %4043 = vmatprep.subr.mxu0 0.0
  %4044 = vmatpush1.xpose.msra.mxu0 %v4041
  %4045 = vmatprep.subr.mxu0 0.0
  %4046 = vmatpush1.xpose.msra.mxu0 0.0
  %4047 = vmatprep.subr.mxu0 0.0
  %4048 = vmatpush1.xpose.msra.mxu0 0.0
  %4049 = vmatprep.subr.mxu0 0.0
  %4050 = vmatpush1.xpose.msra.mxu0 0.0
  %4051 = vmatprep.subr.mxu0 0.0
  %4052 = vmatpush1.xpose.msra.mxu0 0.0
  %4053 = vmatprep.subr.mxu0 0.0
  %4054 = vmatpush1.xpose.msra.mxu0 0.0
  %4055 = vmatprep.subr.mxu0 0.0
  %4056 = vmatpush1.xpose.msra.mxu0 0.0
  %4057 = vmatprep.subr.mxu0 0.0
  %4058 = vmatpush1.xpose.msra.mxu0 0.0
  %4059 = vmatprep.subr.mxu0 0.0
  %4060 = vmatpush1.xpose.msra.mxu0 0.0
  %4061 = vmatprep.subr.mxu0 0.0
  %4062 = vmatpush1.xpose.msra.mxu0 0.0
  %4063 = vmatprep.subr.mxu0 0.0
  %4064 = vmatpush1.xpose.msra.mxu0 0.0
  %4065 = vmatprep.subr.mxu0 0.0
  %4066 = vmatpush1.xpose.msra.mxu0 0.0
  %4067 = vmatprep.subr.mxu0 0.0
  %4068 = vmatpush1.xpose.msra.mxu0 0.0
  %4069 = vmatprep.subr.mxu0 0.0
  %4070 = vmatpush1.xpose.msra.mxu0 0.0
  %4071 = vmatprep.subr.mxu0 0.0
  %4072 = vmatpush1.xpose.msra.mxu0 0.0
  %4073 = vmatprep.subr.mxu0 0.0
  %4074 = vmatpush1.xpose.msra.mxu0 0.0
  %4075 = vmatprep.subr.mxu0 0.0
  %4076 = vmatpush1.xpose.msra.mxu0 0.0
  %4077 = vmatprep.subr.mxu0 0.0
  %4078 = vmatpush1.xpose.msra.mxu0 0.0
  %4079 = vmatprep.subr.mxu0 0.0
  %4080 = vmatpush1.xpose.msra.mxu0 0.0
  %4081 = vmatprep.subr.mxu0 0.0
  %4082 = vmatpush1.xpose.msra.mxu0 0.0
  %4083 = vmatprep.subr.mxu0 0.0
  %4084 = vmatpush1.xpose.msra.mxu0 0.0
  %4085 = vmatprep.subr.mxu0 0.0
  %4086 = vmatpush1.xpose.msra.mxu0 0.0
  %4087 = vmatprep.subr.mxu0 0.0
  %4088 = vmatpush1.xpose.msra.mxu0 0.0
  %4089 = vmatprep.subr.mxu0 0.0
  %4090 = vmatpush1.xpose.msra.mxu0 0.0
  %4091 = vmatprep.subr.mxu0 0.0
  %4092 = vmatpush1.xpose.msra.mxu0 0.0
  %4093 = vmatprep.subr.mxu0 0.0
  %4094 = vmatpush1.xpose.msra.mxu0 0.0
  %4095 = vmatprep.subr.mxu0 0.0
  %4096 = vmatpush1.xpose.msra.mxu0 0.0
  %4097 = vmatprep.subr.mxu0 0.0
  %4098 = vmatpush1.xpose.msra.mxu0 0.0
  %4099 = vmatprep.subr.mxu0 0.0
  %4100 = vmatpush1.xpose.msra.mxu0 0.0
  %4101 = vmatprep.subr.mxu0 0.0
  %4102 = vmatpush1.xpose.msra.mxu0 0.0
  %4103 = vmatprep.subr.mxu0 0.0
  %4104 = vmatpush1.xpose.msra.mxu0 0.0
  %4105 = vmatprep.subr.mxu0 0.0
  %4106 = vmatpush1.xpose.msra.mxu0 0.0
  %4107 = vmatprep.mubr.f32.mxu0 0.0
  %4108 = vmatmul.mubr.f32.gmra.mrb[0].mxu0 %v4039
  %v4109 = vpop.f32.mrb[0].mxu0
  %v4110 = vadd.f32 0.0, %v4109
  %v4111 = vpop.f32.mrb[0].mxu0
  %4112 = vdwg.mxu0
  %v4113 = vsel %vm259, %v4033, -inf
  %4114 = vmax.xlane.f32.xlu0 %v4113
  %v4115 = vpop.xlane.xlu0 %4114
  %v4116 = vsel %vm259, %v4110, -inf
  %4117 = vmax.xlane.f32.xlu0 %v4116
  %v4118 = vpop.xlane.xlu0 %4117
  %v4119 = vsub.f32 %v4033, %v4115
  %v4120 = vsub.f32 %v4110, %v4118
  %v4121 = vmul.f32 %v4119, 1.442695
  %v4122 = vpow.pop %v4121
  %v4123 = vmul.f32 %v4120, 1.442695
  %v4124 = vpow.pop %v4123
  %v4125 = vsel %vm259, %v4122, 0.0
  %4126 = vadd.xlane.f32.xlu0 %v4125
  %v4127 = vpop.xlane.xlu0 %4126
  %v4128 = vsel %vm259, %v4124, 0.0
  %4129 = vadd.xlane.f32.xlu0 %v4128
  %v4130 = vpop.xlane.xlu0 %4129
  %v4131 = vrcp.pop %v4127
  %v4132 = vmul.f32 %v4122, %v4131
  %v4133 = vrcp.pop %v4130
  %v4134 = vmul.f32 %v4124, %v4133
  %4135 = vrot.lane.b32.xlu0 %v3951, 64
  %v4136 = vpop.permute.xlu0 %4135
  %v4139 = vsel %vm259, %v4132, 0
  %4141 = vmatprep.subr.mxu0 0.0
  %4142 = vmatpush1.msra.mxu0 %v4136
  %4143 = vmatprep.subr.mxu0 0.0
  %4144 = vmatpush1.msra.mxu0 0.0
  %4145 = vmatprep.subr.mxu0 0.0
  %4146 = vmatpush1.msra.mxu0 0.0
  %4147 = vmatprep.subr.mxu0 0.0
  %4148 = vmatpush1.msra.mxu0 0.0
  %4149 = vmatprep.subr.mxu0 0.0
  %4150 = vmatpush1.msra.mxu0 0.0
  %4151 = vmatprep.subr.mxu0 0.0
  %4152 = vmatpush1.msra.mxu0 0.0
  %4153 = vmatprep.subr.mxu0 0.0
  %4154 = vmatpush1.msra.mxu0 0.0
  %4155 = vmatprep.subr.mxu0 0.0
  %4156 = vmatpush1.msra.mxu0 0.0
  %4157 = vmatprep.subr.mxu0 0.0
  %4158 = vmatpush1.msra.mxu0 0.0
  %4159 = vmatprep.subr.mxu0 0.0
  %4160 = vmatpush1.msra.mxu0 0.0
  %4161 = vmatprep.subr.mxu0 0.0
  %4162 = vmatpush1.msra.mxu0 0.0
  %4163 = vmatprep.subr.mxu0 0.0
  %4164 = vmatpush1.msra.mxu0 0.0
  %4165 = vmatprep.subr.mxu0 0.0
  %4166 = vmatpush1.msra.mxu0 0.0
  %4167 = vmatprep.subr.mxu0 0.0
  %4168 = vmatpush1.msra.mxu0 0.0
  %4169 = vmatprep.subr.mxu0 0.0
  %4170 = vmatpush1.msra.mxu0 0.0
  %4171 = vmatprep.subr.mxu0 0.0
  %4172 = vmatpush1.msra.mxu0 0.0
  %4173 = vmatprep.subr.mxu0 0.0
  %4174 = vmatpush1.msra.mxu0 0.0
  %4175 = vmatprep.subr.mxu0 0.0
  %4176 = vmatpush1.msra.mxu0 0.0
  %4177 = vmatprep.subr.mxu0 0.0
  %4178 = vmatpush1.msra.mxu0 0.0
  %4179 = vmatprep.subr.mxu0 0.0
  %4180 = vmatpush1.msra.mxu0 0.0
  %4181 = vmatprep.subr.mxu0 0.0
  %4182 = vmatpush1.msra.mxu0 0.0
  %4183 = vmatprep.subr.mxu0 0.0
  %4184 = vmatpush1.msra.mxu0 0.0
  %4185 = vmatprep.subr.mxu0 0.0
  %4186 = vmatpush1.msra.mxu0 0.0
  %4187 = vmatprep.subr.mxu0 0.0
  %4188 = vmatpush1.msra.mxu0 0.0
  %4189 = vmatprep.subr.mxu0 0.0
  %4190 = vmatpush1.msra.mxu0 0.0
  %4191 = vmatprep.subr.mxu0 0.0
  %4192 = vmatpush1.msra.mxu0 0.0
  %4193 = vmatprep.subr.mxu0 0.0
  %4194 = vmatpush1.msra.mxu0 0.0
  %4195 = vmatprep.subr.mxu0 0.0
  %4196 = vmatpush1.msra.mxu0 0.0
  %4197 = vmatprep.subr.mxu0 0.0
  %4198 = vmatpush1.msra.mxu0 0.0
  %4199 = vmatprep.subr.mxu0 0.0
  %4200 = vmatpush1.msra.mxu0 0.0
  %4201 = vmatprep.subr.mxu0 0.0
  %4202 = vmatpush1.msra.mxu0 0.0
  %4203 = vmatprep.subr.mxu0 0.0
  %4204 = vmatpush1.msra.mxu0 0.0
  %4205 = vmatprep.mubr.f32.mxu0 0.0
  %4206 = vmatmul.mubr.f32.gmra.mrb[0].mxu0 %v4139
  %v4207 = vpop.f32.mrb[0].mxu0
  %v4208 = vadd.f32 0.0, %v4207
  %v4209 = vpop.f32.mrb[0].mxu0
  %4210 = vdwg.mxu0
  %4211 = vrot.lane.b32.xlu0 %v3956, 64
  %v4212 = vpop.permute.xlu0 %4211
  %v4215 = vsel %vm259, %v4134, 0
  %4217 = vmatprep.subr.mxu0 0.0
  %4218 = vmatpush1.msra.mxu0 %v4212
  %4219 = vmatprep.subr.mxu0 0.0
  %4220 = vmatpush1.msra.mxu0 0.0
  %4221 = vmatprep.subr.mxu0 0.0
  %4222 = vmatpush1.msra.mxu0 0.0
  %4223 = vmatprep.subr.mxu0 0.0
  %4224 = vmatpush1.msra.mxu0 0.0
  %4225 = vmatprep.subr.mxu0 0.0
  %4226 = vmatpush1.msra.mxu0 0.0
  %4227 = vmatprep.subr.mxu0 0.0
  %4228 = vmatpush1.msra.mxu0 0.0
  %4229 = vmatprep.subr.mxu0 0.0
  %4230 = vmatpush1.msra.mxu0 0.0
  %4231 = vmatprep.subr.mxu0 0.0
  %4232 = vmatpush1.msra.mxu0 0.0
  %4233 = vmatprep.subr.mxu0 0.0
  %4234 = vmatpush1.msra.mxu0 0.0
  %4235 = vmatprep.subr.mxu0 0.0
  %4236 = vmatpush1.msra.mxu0 0.0
  %4237 = vmatprep.subr.mxu0 0.0
  %4238 = vmatpush1.msra.mxu0 0.0
  %4239 = vmatprep.subr.mxu0 0.0
  %4240 = vmatpush1.msra.mxu0 0.0
  %4241 = vmatprep.subr.mxu0 0.0
  %4242 = vmatpush1.msra.mxu0 0.0
  %4243 = vmatprep.subr.mxu0 0.0
  %4244 = vmatpush1.msra.mxu0 0.0
  %4245 = vmatprep.subr.mxu0 0.0
  %4246 = vmatpush1.msra.mxu0 0.0
  %4247 = vmatprep.subr.mxu0 0.0
  %4248 = vmatpush1.msra.mxu0 0.0
  %4249 = vmatprep.subr.mxu0 0.0
  %4250 = vmatpush1.msra.mxu0 0.0
  %4251 = vmatprep.subr.mxu0 0.0
  %4252 = vmatpush1.msra.mxu0 0.0
  %4253 = vmatprep.subr.mxu0 0.0
  %4254 = vmatpush1.msra.mxu0 0.0
  %4255 = vmatprep.subr.mxu0 0.0
  %4256 = vmatpush1.msra.mxu0 0.0
  %4257 = vmatprep.subr.mxu0 0.0
  %4258 = vmatpush1.msra.mxu0 0.0
  %4259 = vmatprep.subr.mxu0 0.0
  %4260 = vmatpush1.msra.mxu0 0.0
  %4261 = vmatprep.subr.mxu0 0.0
  %4262 = vmatpush1.msra.mxu0 0.0
  %4263 = vmatprep.subr.mxu0 0.0
  %4264 = vmatpush1.msra.mxu0 0.0
  %4265 = vmatprep.subr.mxu0 0.0
  %4266 = vmatpush1.msra.mxu0 0.0
  %4267 = vmatprep.subr.mxu0 0.0
  %4268 = vmatpush1.msra.mxu0 0.0
  %4269 = vmatprep.subr.mxu0 0.0
  %4270 = vmatpush1.msra.mxu0 0.0
  %4271 = vmatprep.subr.mxu0 0.0
  %4272 = vmatpush1.msra.mxu0 0.0
  %4273 = vmatprep.subr.mxu0 0.0
  %4274 = vmatpush1.msra.mxu0 0.0
  %4275 = vmatprep.subr.mxu0 0.0
  %4276 = vmatpush1.msra.mxu0 0.0
  %4277 = vmatprep.subr.mxu0 0.0
  %4278 = vmatpush1.msra.mxu0 0.0
  %4279 = vmatprep.subr.mxu0 0.0
  %4280 = vmatpush1.msra.mxu0 0.0
  %4281 = vmatprep.mubr.f32.mxu0 0.0
  %4282 = vmatmul.mubr.f32.gmra.mrb[0].mxu0 %v4215
  %v4283 = vpop.f32.mrb[0].mxu0
  %v4284 = vadd.f32 0.0, %v4283
  %v4285 = vpop.f32.mrb[0].mxu0
  %4286 = vdwg.mxu0
  %4287 = vrot.lane.b32.xlu0 %v3951, 120
  %v4288 = vpop.permute.xlu0 %4287
  %4289 = vrot.lane.b32.xlu0 %v3951, 88
  %v4290 = vpop.permute.xlu0 %4289
  %v4291 = vsel %vm259, %v4288, 0
  %v4293 = vsel %vm259, %v4290, 0
  %4295 = vmatprep.subr.mxu0 0.0
  %4296 = vmatpush1.xpose.msra.mxu0 %v4293
  %4297 = vmatprep.subr.mxu0 0.0
  %4298 = vmatpush1.xpose.msra.mxu0 0.0
  %4299 = vmatprep.subr.mxu0 0.0
  %4300 = vmatpush1.xpose.msra.mxu0 0.0
  %4301 = vmatprep.subr.mxu0 0.0
  %4302 = vmatpush1.xpose.msra.mxu0 0.0
  %4303 = vmatprep.subr.mxu0 0.0
  %4304 = vmatpush1.xpose.msra.mxu0 0.0
  %4305 = vmatprep.subr.mxu0 0.0
  %4306 = vmatpush1.xpose.msra.mxu0 0.0
  %4307 = vmatprep.subr.mxu0 0.0
  %4308 = vmatpush1.xpose.msra.mxu0 0.0
  %4309 = vmatprep.subr.mxu0 0.0
  %4310 = vmatpush1.xpose.msra.mxu0 0.0
  %4311 = vmatprep.subr.mxu0 0.0
  %4312 = vmatpush1.xpose.msra.mxu0 0.0
  %4313 = vmatprep.subr.mxu0 0.0
  %4314 = vmatpush1.xpose.msra.mxu0 0.0
  %4315 = vmatprep.subr.mxu0 0.0
  %4316 = vmatpush1.xpose.msra.mxu0 0.0
  %4317 = vmatprep.subr.mxu0 0.0
  %4318 = vmatpush1.xpose.msra.mxu0 0.0
  %4319 = vmatprep.subr.mxu0 0.0
  %4320 = vmatpush1.xpose.msra.mxu0 0.0
  %4321 = vmatprep.subr.mxu0 0.0
  %4322 = vmatpush1.xpose.msra.mxu0 0.0
  %4323 = vmatprep.subr.mxu0 0.0
  %4324 = vmatpush1.xpose.msra.mxu0 0.0
  %4325 = vmatprep.subr.mxu0 0.0
  %4326 = vmatpush1.xpose.msra.mxu0 0.0
  %4327 = vmatprep.subr.mxu0 0.0
  %4328 = vmatpush1.xpose.msra.mxu0 0.0
  %4329 = vmatprep.subr.mxu0 0.0
  %4330 = vmatpush1.xpose.msra.mxu0 0.0
  %4331 = vmatprep.subr.mxu0 0.0
  %4332 = vmatpush1.xpose.msra.mxu0 0.0
  %4333 = vmatprep.subr.mxu0 0.0
  %4334 = vmatpush1.xpose.msra.mxu0 0.0
  %4335 = vmatprep.subr.mxu0 0.0
  %4336 = vmatpush1.xpose.msra.mxu0 0.0
  %4337 = vmatprep.subr.mxu0 0.0
  %4338 = vmatpush1.xpose.msra.mxu0 0.0
  %4339 = vmatprep.subr.mxu0 0.0
  %4340 = vmatpush1.xpose.msra.mxu0 0.0
  %4341 = vmatprep.subr.mxu0 0.0
  %4342 = vmatpush1.xpose.msra.mxu0 0.0
  %4343 = vmatprep.subr.mxu0 0.0
  %4344 = vmatpush1.xpose.msra.mxu0 0.0
  %4345 = vmatprep.subr.mxu0 0.0
  %4346 = vmatpush1.xpose.msra.mxu0 0.0
  %4347 = vmatprep.subr.mxu0 0.0
  %4348 = vmatpush1.xpose.msra.mxu0 0.0
  %4349 = vmatprep.subr.mxu0 0.0
  %4350 = vmatpush1.xpose.msra.mxu0 0.0
  %4351 = vmatprep.subr.mxu0 0.0
  %4352 = vmatpush1.xpose.msra.mxu0 0.0
  %4353 = vmatprep.subr.mxu0 0.0
  %4354 = vmatpush1.xpose.msra.mxu0 0.0
  %4355 = vmatprep.subr.mxu0 0.0
  %4356 = vmatpush1.xpose.msra.mxu0 0.0
  %4357 = vmatprep.subr.mxu0 0.0
  %4358 = vmatpush1.xpose.msra.mxu0 0.0
  %4359 = vmatprep.mubr.f32.mxu0 0.0
  %4360 = vmatmul.mubr.f32.gmra.mrb[0].mxu0 %v4291
  %v4361 = vpop.f32.mrb[0].mxu0
  %v4362 = vadd.f32 0.0, %v4361
  %v4363 = vpop.f32.mrb[0].mxu0
  %4364 = vdwg.mxu0
  %4365 = vrot.lane.b32.xlu0 %v3956, 120
  %v4366 = vpop.permute.xlu0 %4365
  %4367 = vrot.lane.b32.xlu0 %v3956, 88
  %v4368 = vpop.permute.xlu0 %4367
  %v4369 = vsel %vm259, %v4366, 0
  %v4371 = vsel %vm259, %v4368, 0
  %4373 = vmatprep.subr.mxu0 0.0
  %4374 = vmatpush1.xpose.msra.mxu0 %v4371
  %4375 = vmatprep.subr.mxu0 0.0
  %4376 = vmatpush1.xpose.msra.mxu0 0.0
  %4377 = vmatprep.subr.mxu0 0.0
  %4378 = vmatpush1.xpose.msra.mxu0 0.0
  %4379 = vmatprep.subr.mxu0 0.0
  %4380 = vmatpush1.xpose.msra.mxu0 0.0
  %4381 = vmatprep.subr.mxu0 0.0
  %4382 = vmatpush1.xpose.msra.mxu0 0.0
  %4383 = vmatprep.subr.mxu0 0.0
  %4384 = vmatpush1.xpose.msra.mxu0 0.0
  %4385 = vmatprep.subr.mxu0 0.0
  %4386 = vmatpush1.xpose.msra.mxu0 0.0
  %4387 = vmatprep.subr.mxu0 0.0
  %4388 = vmatpush1.xpose.msra.mxu0 0.0
  %4389 = vmatprep.subr.mxu0 0.0
  %4390 = vmatpush1.xpose.msra.mxu0 0.0
  %4391 = vmatprep.subr.mxu0 0.0
  %4392 = vmatpush1.xpose.msra.mxu0 0.0
  %4393 = vmatprep.subr.mxu0 0.0
  %4394 = vmatpush1.xpose.msra.mxu0 0.0
  %4395 = vmatprep.subr.mxu0 0.0
  %4396 = vmatpush1.xpose.msra.mxu0 0.0
  %4397 = vmatprep.subr.mxu0 0.0
  %4398 = vmatpush1.xpose.msra.mxu0 0.0
  %4399 = vmatprep.subr.mxu0 0.0
  %4400 = vmatpush1.xpose.msra.mxu0 0.0
  %4401 = vmatprep.subr.mxu0 0.0
  %4402 = vmatpush1.xpose.msra.mxu0 0.0
  %4403 = vmatprep.subr.mxu0 0.0
  %4404 = vmatpush1.xpose.msra.mxu0 0.0
  %4405 = vmatprep.subr.mxu0 0.0
  %4406 = vmatpush1.xpose.msra.mxu0 0.0
  %4407 = vmatprep.subr.mxu0 0.0
  %4408 = vmatpush1.xpose.msra.mxu0 0.0
  %4409 = vmatprep.subr.mxu0 0.0
  %4410 = vmatpush1.xpose.msra.mxu0 0.0
  %4411 = vmatprep.subr.mxu0 0.0
  %4412 = vmatpush1.xpose.msra.mxu0 0.0
  %4413 = vmatprep.subr.mxu0 0.0
  %4414 = vmatpush1.xpose.msra.mxu0 0.0
  %4415 = vmatprep.subr.mxu0 0.0
  %4416 = vmatpush1.xpose.msra.mxu0 0.0
  %4417 = vmatprep.subr.mxu0 0.0
  %4418 = vmatpush1.xpose.msra.mxu0 0.0
  %4419 = vmatprep.subr.mxu0 0.0
  %4420 = vmatpush1.xpose.msra.mxu0 0.0
  %4421 = vmatprep.subr.mxu0 0.0
  %4422 = vmatpush1.xpose.msra.mxu0 0.0
  %4423 = vmatprep.subr.mxu0 0.0
  %4424 = vmatpush1.xpose.msra.mxu0 0.0
  %4425 = vmatprep.subr.mxu0 0.0
  %4426 = vmatpush1.xpose.msra.mxu0 0.0
  %4427 = vmatprep.subr.mxu0 0.0
  %4428 = vmatpush1.xpose.msra.mxu0 0.0
  %4429 = vmatprep.subr.mxu0 0.0
  %4430 = vmatpush1.xpose.msra.mxu0 0.0
  %4431 = vmatprep.subr.mxu0 0.0
  %4432 = vmatpush1.xpose.msra.mxu0 0.0
  %4433 = vmatprep.subr.mxu0 0.0
  %4434 = vmatpush1.xpose.msra.mxu0 0.0
  %4435 = vmatprep.subr.mxu0 0.0
  %4436 = vmatpush1.xpose.msra.mxu0 0.0
  %4437 = vmatprep.mubr.f32.mxu0 0.0
  %4438 = vmatmul.mubr.f32.gmra.mrb[0].mxu0 %v4369
  %v4439 = vpop.f32.mrb[0].mxu0
  %v4440 = vadd.f32 0.0, %v4439
  %v4441 = vpop.f32.mrb[0].mxu0
  %4442 = vdwg.mxu0
  %v4443 = vsel %vm259, %v4362, -inf
  %4444 = vmax.xlane.f32.xlu0 %v4443
  %v4445 = vpop.xlane.xlu0 %4444
  %v4446 = vsel %vm259, %v4440, -inf
  %4447 = vmax.xlane.f32.xlu0 %v4446
  %v4448 = vpop.xlane.xlu0 %4447
  %v4449 = vsub.f32 %v4362, %v4445
  %v4450 = vsub.f32 %v4440, %v4448
  %v4451 = vmul.f32 %v4449, 1.442695
  %v4452 = vpow.pop %v4451
  %v4453 = vmul.f32 %v4450, 1.442695
  %v4454 = vpow.pop %v4453
  %v4455 = vsel %vm259, %v4452, 0.0
  %4456 = vadd.xlane.f32.xlu0 %v4455
  %v4457 = vpop.xlane.xlu0 %4456
  %v4458 = vsel %vm259, %v4454, 0.0
  %4459 = vadd.xlane.f32.xlu0 %v4458
  %v4460 = vpop.xlane.xlu0 %4459
  %v4461 = vrcp.pop %v4457
  %v4462 = vmul.f32 %v4452, %v4461
  %v4463 = vrcp.pop %v4460
  %v4464 = vmul.f32 %v4454, %v4463
  %4465 = vrot.lane.b32.xlu0 %v3951, 56
  %v4466 = vpop.permute.xlu0 %4465
  %v4469 = vsel %vm259, %v4462, 0
  %4471 = vmatprep.subr.mxu0 0.0
  %4472 = vmatpush1.msra.mxu0 %v4466
  %4473 = vmatprep.subr.mxu0 0.0
  %4474 = vmatpush1.msra.mxu0 0.0
  %4475 = vmatprep.subr.mxu0 0.0
  %4476 = vmatpush1.msra.mxu0 0.0
  %4477 = vmatprep.subr.mxu0 0.0
  %4478 = vmatpush1.msra.mxu0 0.0
  %4479 = vmatprep.subr.mxu0 0.0
  %4480 = vmatpush1.msra.mxu0 0.0
  %4481 = vmatprep.subr.mxu0 0.0
  %4482 = vmatpush1.msra.mxu0 0.0
  %4483 = vmatprep.subr.mxu0 0.0
  %4484 = vmatpush1.msra.mxu0 0.0
  %4485 = vmatprep.subr.mxu0 0.0
  %4486 = vmatpush1.msra.mxu0 0.0
  %4487 = vmatprep.subr.mxu0 0.0
  %4488 = vmatpush1.msra.mxu0 0.0
  %4489 = vmatprep.subr.mxu0 0.0
  %4490 = vmatpush1.msra.mxu0 0.0
  %4491 = vmatprep.subr.mxu0 0.0
  %4492 = vmatpush1.msra.mxu0 0.0
  %4493 = vmatprep.subr.mxu0 0.0
  %4494 = vmatpush1.msra.mxu0 0.0
  %4495 = vmatprep.subr.mxu0 0.0
  %4496 = vmatpush1.msra.mxu0 0.0
  %4497 = vmatprep.subr.mxu0 0.0
  %4498 = vmatpush1.msra.mxu0 0.0
  %4499 = vmatprep.subr.mxu0 0.0
  %4500 = vmatpush1.msra.mxu0 0.0
  %4501 = vmatprep.subr.mxu0 0.0
  %4502 = vmatpush1.msra.mxu0 0.0
  %4503 = vmatprep.subr.mxu0 0.0
  %4504 = vmatpush1.msra.mxu0 0.0
  %4505 = vmatprep.subr.mxu0 0.0
  %4506 = vmatpush1.msra.mxu0 0.0
  %4507 = vmatprep.subr.mxu0 0.0
  %4508 = vmatpush1.msra.mxu0 0.0
  %4509 = vmatprep.subr.mxu0 0.0
  %4510 = vmatpush1.msra.mxu0 0.0
  %4511 = vmatprep.subr.mxu0 0.0
  %4512 = vmatpush1.msra.mxu0 0.0
  %4513 = vmatprep.subr.mxu0 0.0
  %4514 = vmatpush1.msra.mxu0 0.0
  %4515 = vmatprep.subr.mxu0 0.0
  %4516 = vmatpush1.msra.mxu0 0.0
  %4517 = vmatprep.subr.mxu0 0.0
  %4518 = vmatpush1.msra.mxu0 0.0
  %4519 = vmatprep.subr.mxu0 0.0
  %4520 = vmatpush1.msra.mxu0 0.0
  %4521 = vmatprep.subr.mxu0 0.0
  %4522 = vmatpush1.msra.mxu0 0.0
  %4523 = vmatprep.subr.mxu0 0.0
  %4524 = vmatpush1.msra.mxu0 0.0
  %4525 = vmatprep.subr.mxu0 0.0
  %4526 = vmatpush1.msra.mxu0 0.0
  %4527 = vmatprep.subr.mxu0 0.0
  %4528 = vmatpush1.msra.mxu0 0.0
  %4529 = vmatprep.subr.mxu0 0.0
  %4530 = vmatpush1.msra.mxu0 0.0
  %4531 = vmatprep.subr.mxu0 0.0
  %4532 = vmatpush1.msra.mxu0 0.0
  %4533 = vmatprep.subr.mxu0 0.0
  %4534 = vmatpush1.msra.mxu0 0.0
  %4535 = vmatprep.mubr.f32.mxu0 0.0
  %4536 = vmatmul.mubr.f32.gmra.mrb[0].mxu0 %v4469
  %v4537 = vpop.f32.mrb[0].mxu0
  %v4538 = vadd.f32 0.0, %v4537
  %v4539 = vpop.f32.mrb[0].mxu0
  %4540 = vdwg.mxu0
  %4541 = vrot.lane.b32.xlu0 %v3956, 56
  %v4542 = vpop.permute.xlu0 %4541
  %v4545 = vsel %vm259, %v4464, 0
  %4547 = vmatprep.subr.mxu0 0.0
  %4548 = vmatpush1.msra.mxu0 %v4542
  %4549 = vmatprep.subr.mxu0 0.0
  %4550 = vmatpush1.msra.mxu0 0.0
  %4551 = vmatprep.subr.mxu0 0.0
  %4552 = vmatpush1.msra.mxu0 0.0
  %4553 = vmatprep.subr.mxu0 0.0
  %4554 = vmatpush1.msra.mxu0 0.0
  %4555 = vmatprep.subr.mxu0 0.0
  %4556 = vmatpush1.msra.mxu0 0.0
  %4557 = vmatprep.subr.mxu0 0.0
  %4558 = vmatpush1.msra.mxu0 0.0
  %4559 = vmatprep.subr.mxu0 0.0
  %4560 = vmatpush1.msra.mxu0 0.0
  %4561 = vmatprep.subr.mxu0 0.0
  %4562 = vmatpush1.msra.mxu0 0.0
  %4563 = vmatprep.subr.mxu0 0.0
  %4564 = vmatpush1.msra.mxu0 0.0
  %4565 = vmatprep.subr.mxu0 0.0
  %4566 = vmatpush1.msra.mxu0 0.0
  %4567 = vmatprep.subr.mxu0 0.0
  %4568 = vmatpush1.msra.mxu0 0.0
  %4569 = vmatprep.subr.mxu0 0.0
  %4570 = vmatpush1.msra.mxu0 0.0
  %4571 = vmatprep.subr.mxu0 0.0
  %4572 = vmatpush1.msra.mxu0 0.0
  %4573 = vmatprep.subr.mxu0 0.0
  %4574 = vmatpush1.msra.mxu0 0.0
  %4575 = vmatprep.subr.mxu0 0.0
  %4576 = vmatpush1.msra.mxu0 0.0
  %4577 = vmatprep.subr.mxu0 0.0
  %4578 = vmatpush1.msra.mxu0 0.0
  %4579 = vmatprep.subr.mxu0 0.0
  %4580 = vmatpush1.msra.mxu0 0.0
  %4581 = vmatprep.subr.mxu0 0.0
  %4582 = vmatpush1.msra.mxu0 0.0
  %4583 = vmatprep.subr.mxu0 0.0
  %4584 = vmatpush1.msra.mxu0 0.0
  %4585 = vmatprep.subr.mxu0 0.0
  %4586 = vmatpush1.msra.mxu0 0.0
  %4587 = vmatprep.subr.mxu0 0.0
  %4588 = vmatpush1.msra.mxu0 0.0
  %4589 = vmatprep.subr.mxu0 0.0
  %4590 = vmatpush1.msra.mxu0 0.0
  %4591 = vmatprep.subr.mxu0 0.0
  %4592 = vmatpush1.msra.mxu0 0.0
  %4593 = vmatprep.subr.mxu0 0.0
  %4594 = vmatpush1.msra.mxu0 0.0
  %4595 = vmatprep.subr.mxu0 0.0
  %4596 = vmatpush1.msra.mxu0 0.0
  %4597 = vmatprep.subr.mxu0 0.0
  %4598 = vmatpush1.msra.mxu0 0.0
  %4599 = vmatprep.subr.mxu0 0.0
  %4600 = vmatpush1.msra.mxu0 0.0
  %4601 = vmatprep.subr.mxu0 0.0
  %4602 = vmatpush1.msra.mxu0 0.0
  %4603 = vmatprep.subr.mxu0 0.0
  %4604 = vmatpush1.msra.mxu0 0.0
  %4605 = vmatprep.subr.mxu0 0.0
  %4606 = vmatpush1.msra.mxu0 0.0
  %4607 = vmatprep.subr.mxu0 0.0
  %4608 = vmatpush1.msra.mxu0 0.0
  %4609 = vmatprep.subr.mxu0 0.0
  %4610 = vmatpush1.msra.mxu0 0.0
  %4611 = vmatprep.mubr.f32.mxu0 0.0
  %4612 = vmatmul.mubr.f32.gmra.mrb[0].mxu0 %v4545
  %v4613 = vpop.f32.mrb[0].mxu0
  %v4614 = vadd.f32 0.0, %v4613
  %v4615 = vpop.f32.mrb[0].mxu0
  %4616 = vdwg.mxu0
  %4617 = vrot.lane.b32.xlu0 %v3951, 112
  %v4618 = vpop.permute.xlu0 %4617
  %4619 = vrot.lane.b32.xlu0 %v3951, 80
  %v4620 = vpop.permute.xlu0 %4619
  %v4621 = vsel %vm259, %v4618, 0
  %v4623 = vsel %vm259, %v4620, 0
  %4625 = vmatprep.subr.mxu0 0.0
  %4626 = vmatpush1.xpose.msra.mxu0 %v4623
  %4627 = vmatprep.subr.mxu0 0.0
  %4628 = vmatpush1.xpose.msra.mxu0 0.0
  %4629 = vmatprep.subr.mxu0 0.0
  %4630 = vmatpush1.xpose.msra.mxu0 0.0
  %4631 = vmatprep.subr.mxu0 0.0
  %4632 = vmatpush1.xpose.msra.mxu0 0.0
  %4633 = vmatprep.subr.mxu0 0.0
  %4634 = vmatpush1.xpose.msra.mxu0 0.0
  %4635 = vmatprep.subr.mxu0 0.0
  %4636 = vmatpush1.xpose.msra.mxu0 0.0
  %4637 = vmatprep.subr.mxu0 0.0
  %4638 = vmatpush1.xpose.msra.mxu0 0.0
  %4639 = vmatprep.subr.mxu0 0.0
  %4640 = vmatpush1.xpose.msra.mxu0 0.0
  %4641 = vmatprep.subr.mxu0 0.0
  %4642 = vmatpush1.xpose.msra.mxu0 0.0
  %4643 = vmatprep.subr.mxu0 0.0
  %4644 = vmatpush1.xpose.msra.mxu0 0.0
  %4645 = vmatprep.subr.mxu0 0.0
  %4646 = vmatpush1.xpose.msra.mxu0 0.0
  %4647 = vmatprep.subr.mxu0 0.0
  %4648 = vmatpush1.xpose.msra.mxu0 0.0
  %4649 = vmatprep.subr.mxu0 0.0
  %4650 = vmatpush1.xpose.msra.mxu0 0.0
  %4651 = vmatprep.subr.mxu0 0.0
  %4652 = vmatpush1.xpose.msra.mxu0 0.0
  %4653 = vmatprep.subr.mxu0 0.0
  %4654 = vmatpush1.xpose.msra.mxu0 0.0
  %4655 = vmatprep.subr.mxu0 0.0
  %4656 = vmatpush1.xpose.msra.mxu0 0.0
  %4657 = vmatprep.subr.mxu0 0.0
  %4658 = vmatpush1.xpose.msra.mxu0 0.0
  %4659 = vmatprep.subr.mxu0 0.0
  %4660 = vmatpush1.xpose.msra.mxu0 0.0
  %4661 = vmatprep.subr.mxu0 0.0
  %4662 = vmatpush1.xpose.msra.mxu0 0.0
  %4663 = vmatprep.subr.mxu0 0.0
  %4664 = vmatpush1.xpose.msra.mxu0 0.0
  %4665 = vmatprep.subr.mxu0 0.0
  %4666 = vmatpush1.xpose.msra.mxu0 0.0
  %4667 = vmatprep.subr.mxu0 0.0
  %4668 = vmatpush1.xpose.msra.mxu0 0.0
  %4669 = vmatprep.subr.mxu0 0.0
  %4670 = vmatpush1.xpose.msra.mxu0 0.0
  %4671 = vmatprep.subr.mxu0 0.0
  %4672 = vmatpush1.xpose.msra.mxu0 0.0
  %4673 = vmatprep.subr.mxu0 0.0
  %4674 = vmatpush1.xpose.msra.mxu0 0.0
  %4675 = vmatprep.subr.mxu0 0.0
  %4676 = vmatpush1.xpose.msra.mxu0 0.0
  %4677 = vmatprep.subr.mxu0 0.0
  %4678 = vmatpush1.xpose.msra.mxu0 0.0
  %4679 = vmatprep.subr.mxu0 0.0
  %4680 = vmatpush1.xpose.msra.mxu0 0.0
  %4681 = vmatprep.subr.mxu0 0.0
  %4682 = vmatpush1.xpose.msra.mxu0 0.0
  %4683 = vmatprep.subr.mxu0 0.0
  %4684 = vmatpush1.xpose.msra.mxu0 0.0
  %4685 = vmatprep.subr.mxu0 0.0
  %4686 = vmatpush1.xpose.msra.mxu0 0.0
  %4687 = vmatprep.subr.mxu0 0.0
  %4688 = vmatpush1.xpose.msra.mxu0 0.0
  %4689 = vmatprep.mubr.f32.mxu0 0.0
  %4690 = vmatmul.mubr.f32.gmra.mrb[0].mxu0 %v4621
  %v4691 = vpop.f32.mrb[0].mxu0
  %v4692 = vadd.f32 0.0, %v4691
  %v4693 = vpop.f32.mrb[0].mxu0
  %4694 = vdwg.mxu0
  %4695 = vrot.lane.b32.xlu0 %v3956, 112
  %v4696 = vpop.permute.xlu0 %4695
  %4697 = vrot.lane.b32.xlu0 %v3956, 80
  %v4698 = vpop.permute.xlu0 %4697
  %v4699 = vsel %vm259, %v4696, 0
  %v4701 = vsel %vm259, %v4698, 0
  %4703 = vmatprep.subr.mxu0 0.0
  %4704 = vmatpush1.xpose.msra.mxu0 %v4701
  %4705 = vmatprep.subr.mxu0 0.0
  %4706 = vmatpush1.xpose.msra.mxu0 0.0
  %4707 = vmatprep.subr.mxu0 0.0
  %4708 = vmatpush1.xpose.msra.mxu0 0.0
  %4709 = vmatprep.subr.mxu0 0.0
  %4710 = vmatpush1.xpose.msra.mxu0 0.0
  %4711 = vmatprep.subr.mxu0 0.0
  %4712 = vmatpush1.xpose.msra.mxu0 0.0
  %4713 = vmatprep.subr.mxu0 0.0
  %4714 = vmatpush1.xpose.msra.mxu0 0.0
  %4715 = vmatprep.subr.mxu0 0.0
  %4716 = vmatpush1.xpose.msra.mxu0 0.0
  %4717 = vmatprep.subr.mxu0 0.0
  %4718 = vmatpush1.xpose.msra.mxu0 0.0
  %4719 = vmatprep.subr.mxu0 0.0
  %4720 = vmatpush1.xpose.msra.mxu0 0.0
  %4721 = vmatprep.subr.mxu0 0.0
  %4722 = vmatpush1.xpose.msra.mxu0 0.0
  %4723 = vmatprep.subr.mxu0 0.0
  %4724 = vmatpush1.xpose.msra.mxu0 0.0
  %4725 = vmatprep.subr.mxu0 0.0
  %4726 = vmatpush1.xpose.msra.mxu0 0.0
  %4727 = vmatprep.subr.mxu0 0.0
  %4728 = vmatpush1.xpose.msra.mxu0 0.0
  %4729 = vmatprep.subr.mxu0 0.0
  %4730 = vmatpush1.xpose.msra.mxu0 0.0
  %4731 = vmatprep.subr.mxu0 0.0
  %4732 = vmatpush1.xpose.msra.mxu0 0.0
  %4733 = vmatprep.subr.mxu0 0.0
  %4734 = vmatpush1.xpose.msra.mxu0 0.0
  %4735 = vmatprep.subr.mxu0 0.0
  %4736 = vmatpush1.xpose.msra.mxu0 0.0
  %4737 = vmatprep.subr.mxu0 0.0
  %4738 = vmatpush1.xpose.msra.mxu0 0.0
  %4739 = vmatprep.subr.mxu0 0.0
  %4740 = vmatpush1.xpose.msra.mxu0 0.0
  %4741 = vmatprep.subr.mxu0 0.0
  %4742 = vmatpush1.xpose.msra.mxu0 0.0
  %4743 = vmatprep.subr.mxu0 0.0
  %4744 = vmatpush1.xpose.msra.mxu0 0.0
  %4745 = vmatprep.subr.mxu0 0.0
  %4746 = vmatpush1.xpose.msra.mxu0 0.0
  %4747 = vmatprep.subr.mxu0 0.0
  %4748 = vmatpush1.xpose.msra.mxu0 0.0
  %4749 = vmatprep.subr.mxu0 0.0
  %4750 = vmatpush1.xpose.msra.mxu0 0.0
  %4751 = vmatprep.subr.mxu0 0.0
  %4752 = vmatpush1.xpose.msra.mxu0 0.0
  %4753 = vmatprep.subr.mxu0 0.0
  %4754 = vmatpush1.xpose.msra.mxu0 0.0
  %4755 = vmatprep.subr.mxu0 0.0
  %4756 = vmatpush1.xpose.msra.mxu0 0.0
  %4757 = vmatprep.subr.mxu0 0.0
  %4758 = vmatpush1.xpose.msra.mxu0 0.0
  %4759 = vmatprep.subr.mxu0 0.0
  %4760 = vmatpush1.xpose.msra.mxu0 0.0
  %4761 = vmatprep.subr.mxu0 0.0
  %4762 = vmatpush1.xpose.msra.mxu0 0.0
  %4763 = vmatprep.subr.mxu0 0.0
  %4764 = vmatpush1.xpose.msra.mxu0 0.0
  %4765 = vmatprep.subr.mxu0 0.0
  %4766 = vmatpush1.xpose.msra.mxu0 0.0
  %4767 = vmatprep.mubr.f32.mxu0 0.0
  %4768 = vmatmul.mubr.f32.gmra.mrb[0].mxu0 %v4699
  %v4769 = vpop.f32.mrb[0].mxu0
  %v4770 = vadd.f32 0.0, %v4769
  %v4771 = vpop.f32.mrb[0].mxu0
  %4772 = vdwg.mxu0
  %v4773 = vsel %vm259, %v4692, -inf
  %4774 = vmax.xlane.f32.xlu0 %v4773
  %v4775 = vpop.xlane.xlu0 %4774
  %v4776 = vsel %vm259, %v4770, -inf
  %4777 = vmax.xlane.f32.xlu0 %v4776
  %v4778 = vpop.xlane.xlu0 %4777
  %v4779 = vsub.f32 %v4692, %v4775
  %v4780 = vsub.f32 %v4770, %v4778
  %v4781 = vmul.f32 %v4779, 1.442695
  %v4782 = vpow.pop %v4781
  %v4783 = vmul.f32 %v4780, 1.442695
  %v4784 = vpow.pop %v4783
  %v4785 = vsel %vm259, %v4782, 0.0
  %4786 = vadd.xlane.f32.xlu0 %v4785
  %v4787 = vpop.xlane.xlu0 %4786
  %v4788 = vsel %vm259, %v4784, 0.0
  %4789 = vadd.xlane.f32.xlu0 %v4788
  %v4790 = vpop.xlane.xlu0 %4789
  %v4791 = vrcp.pop %v4787
  %v4792 = vmul.f32 %v4782, %v4791
  %v4793 = vrcp.pop %v4790
  %v4794 = vmul.f32 %v4784, %v4793
  %4795 = vrot.lane.b32.xlu0 %v3951, 48
  %v4796 = vpop.permute.xlu0 %4795
  %v4799 = vsel %vm259, %v4792, 0
  %4801 = vmatprep.subr.mxu0 0.0
  %4802 = vmatpush1.msra.mxu0 %v4796
  %4803 = vmatprep.subr.mxu0 0.0
  %4804 = vmatpush1.msra.mxu0 0.0
  %4805 = vmatprep.subr.mxu0 0.0
  %4806 = vmatpush1.msra.mxu0 0.0
  %4807 = vmatprep.subr.mxu0 0.0
  %4808 = vmatpush1.msra.mxu0 0.0
  %4809 = vmatprep.subr.mxu0 0.0
  %4810 = vmatpush1.msra.mxu0 0.0
  %4811 = vmatprep.subr.mxu0 0.0
  %4812 = vmatpush1.msra.mxu0 0.0
  %4813 = vmatprep.subr.mxu0 0.0
  %4814 = vmatpush1.msra.mxu0 0.0
  %4815 = vmatprep.subr.mxu0 0.0
  %4816 = vmatpush1.msra.mxu0 0.0
  %4817 = vmatprep.subr.mxu0 0.0
  %4818 = vmatpush1.msra.mxu0 0.0
  %4819 = vmatprep.subr.mxu0 0.0
  %4820 = vmatpush1.msra.mxu0 0.0
  %4821 = vmatprep.subr.mxu0 0.0
  %4822 = vmatpush1.msra.mxu0 0.0
  %4823 = vmatprep.subr.mxu0 0.0
  %4824 = vmatpush1.msra.mxu0 0.0
  %4825 = vmatprep.subr.mxu0 0.0
  %4826 = vmatpush1.msra.mxu0 0.0
  %4827 = vmatprep.subr.mxu0 0.0
  %4828 = vmatpush1.msra.mxu0 0.0
  %4829 = vmatprep.subr.mxu0 0.0
  %4830 = vmatpush1.msra.mxu0 0.0
  %4831 = vmatprep.subr.mxu0 0.0
  %4832 = vmatpush1.msra.mxu0 0.0
  %4833 = vmatprep.subr.mxu0 0.0
  %4834 = vmatpush1.msra.mxu0 0.0
  %4835 = vmatprep.subr.mxu0 0.0
  %4836 = vmatpush1.msra.mxu0 0.0
  %4837 = vmatprep.subr.mxu0 0.0
  %4838 = vmatpush1.msra.mxu0 0.0
  %4839 = vmatprep.subr.mxu0 0.0
  %4840 = vmatpush1.msra.mxu0 0.0
  %4841 = vmatprep.subr.mxu0 0.0
  %4842 = vmatpush1.msra.mxu0 0.0
  %4843 = vmatprep.subr.mxu0 0.0
  %4844 = vmatpush1.msra.mxu0 0.0
  %4845 = vmatprep.subr.mxu0 0.0
  %4846 = vmatpush1.msra.mxu0 0.0
  %4847 = vmatprep.subr.mxu0 0.0
  %4848 = vmatpush1.msra.mxu0 0.0
  %4849 = vmatprep.subr.mxu0 0.0
  %4850 = vmatpush1.msra.mxu0 0.0
  %4851 = vmatprep.subr.mxu0 0.0
  %4852 = vmatpush1.msra.mxu0 0.0
  %4853 = vmatprep.subr.mxu0 0.0
  %4854 = vmatpush1.msra.mxu0 0.0
  %4855 = vmatprep.subr.mxu0 0.0
  %4856 = vmatpush1.msra.mxu0 0.0
  %4857 = vmatprep.subr.mxu0 0.0
  %4858 = vmatpush1.msra.mxu0 0.0
  %4859 = vmatprep.subr.mxu0 0.0
  %4860 = vmatpush1.msra.mxu0 0.0
  %4861 = vmatprep.subr.mxu0 0.0
  %4862 = vmatpush1.msra.mxu0 0.0
  %4863 = vmatprep.subr.mxu0 0.0
  %4864 = vmatpush1.msra.mxu0 0.0
  %4865 = vmatprep.mubr.f32.mxu0 0.0
  %4866 = vmatmul.mubr.f32.gmra.mrb[0].mxu0 %v4799
  %v4867 = vpop.f32.mrb[0].mxu0
  %v4868 = vadd.f32 0.0, %v4867
  %v4869 = vpop.f32.mrb[0].mxu0
  %4870 = vdwg.mxu0
  %4871 = vrot.lane.b32.xlu0 %v3956, 48
  %v4872 = vpop.permute.xlu0 %4871
  %v4875 = vsel %vm259, %v4794, 0
  %4877 = vmatprep.subr.mxu0 0.0
  %4878 = vmatpush1.msra.mxu0 %v4872
  %4879 = vmatprep.subr.mxu0 0.0
  %4880 = vmatpush1.msra.mxu0 0.0
  %4881 = vmatprep.subr.mxu0 0.0
  %4882 = vmatpush1.msra.mxu0 0.0
  %4883 = vmatprep.subr.mxu0 0.0
  %4884 = vmatpush1.msra.mxu0 0.0
  %4885 = vmatprep.subr.mxu0 0.0
  %4886 = vmatpush1.msra.mxu0 0.0
  %4887 = vmatprep.subr.mxu0 0.0
  %4888 = vmatpush1.msra.mxu0 0.0
  %4889 = vmatprep.subr.mxu0 0.0
  %4890 = vmatpush1.msra.mxu0 0.0
  %4891 = vmatprep.subr.mxu0 0.0
  %4892 = vmatpush1.msra.mxu0 0.0
  %4893 = vmatprep.subr.mxu0 0.0
  %4894 = vmatpush1.msra.mxu0 0.0
  %4895 = vmatprep.subr.mxu0 0.0
  %4896 = vmatpush1.msra.mxu0 0.0
  %4897 = vmatprep.subr.mxu0 0.0
  %4898 = vmatpush1.msra.mxu0 0.0
  %4899 = vmatprep.subr.mxu0 0.0
  %4900 = vmatpush1.msra.mxu0 0.0
  %4901 = vmatprep.subr.mxu0 0.0
  %4902 = vmatpush1.msra.mxu0 0.0
  %4903 = vmatprep.subr.mxu0 0.0
  %4904 = vmatpush1.msra.mxu0 0.0
  %4905 = vmatprep.subr.mxu0 0.0
  %4906 = vmatpush1.msra.mxu0 0.0
  %4907 = vmatprep.subr.mxu0 0.0
  %4908 = vmatpush1.msra.mxu0 0.0
  %4909 = vmatprep.subr.mxu0 0.0
  %4910 = vmatpush1.msra.mxu0 0.0
  %4911 = vmatprep.subr.mxu0 0.0
  %4912 = vmatpush1.msra.mxu0 0.0
  %4913 = vmatprep.subr.mxu0 0.0
  %4914 = vmatpush1.msra.mxu0 0.0
  %4915 = vmatprep.subr.mxu0 0.0
  %4916 = vmatpush1.msra.mxu0 0.0
  %4917 = vmatprep.subr.mxu0 0.0
  %4918 = vmatpush1.msra.mxu0 0.0
  %4919 = vmatprep.subr.mxu0 0.0
  %4920 = vmatpush1.msra.mxu0 0.0
  %4921 = vmatprep.subr.mxu0 0.0
  %4922 = vmatpush1.msra.mxu0 0.0
  %4923 = vmatprep.subr.mxu0 0.0
  %4924 = vmatpush1.msra.mxu0 0.0
  %4925 = vmatprep.subr.mxu0 0.0
  %4926 = vmatpush1.msra.mxu0 0.0
  %4927 = vmatprep.subr.mxu0 0.0
  %4928 = vmatpush1.msra.mxu0 0.0
  %4929 = vmatprep.subr.mxu0 0.0
  %4930 = vmatpush1.msra.mxu0 0.0
  %4931 = vmatprep.subr.mxu0 0.0
  %4932 = vmatpush1.msra.mxu0 0.0
  %4933 = vmatprep.subr.mxu0 0.0
  %4934 = vmatpush1.msra.mxu0 0.0
  %4935 = vmatprep.subr.mxu0 0.0
  %4936 = vmatpush1.msra.mxu0 0.0
  %4937 = vmatprep.subr.mxu0 0.0
  %4938 = vmatpush1.msra.mxu0 0.0
  %4939 = vmatprep.subr.mxu0 0.0
  %4940 = vmatpush1.msra.mxu0 0.0
  %4941 = vmatprep.mubr.f32.mxu0 0.0
  %4942 = vmatmul.mubr.f32.gmra.mrb[0].mxu0 %v4875
  %v4943 = vpop.f32.mrb[0].mxu0
  %v4944 = vadd.f32 0.0, %v4943
  %v4945 = vpop.f32.mrb[0].mxu0
  %4946 = vdwg.mxu0
  %4947 = vrot.lane.b32.xlu0 %v3951, 104
  %v4948 = vpop.permute.xlu0 %4947
  %4949 = vrot.lane.b32.xlu0 %v3951, 72
  %v4950 = vpop.permute.xlu0 %4949
  %v4951 = vsel %vm259, %v4948, 0
  %v4953 = vsel %vm259, %v4950, 0
  %4955 = vmatprep.subr.mxu0 0.0
  %4956 = vmatpush1.xpose.msra.mxu0 %v4953
  %4957 = vmatprep.subr.mxu0 0.0
  %4958 = vmatpush1.xpose.msra.mxu0 0.0
  %4959 = vmatprep.subr.mxu0 0.0
  %4960 = vmatpush1.xpose.msra.mxu0 0.0
  %4961 = vmatprep.subr.mxu0 0.0
  %4962 = vmatpush1.xpose.msra.mxu0 0.0
  %4963 = vmatprep.subr.mxu0 0.0
  %4964 = vmatpush1.xpose.msra.mxu0 0.0
  %4965 = vmatprep.subr.mxu0 0.0
  %4966 = vmatpush1.xpose.msra.mxu0 0.0
  %4967 = vmatprep.subr.mxu0 0.0
  %4968 = vmatpush1.xpose.msra.mxu0 0.0
  %4969 = vmatprep.subr.mxu0 0.0
  %4970 = vmatpush1.xpose.msra.mxu0 0.0
  %4971 = vmatprep.subr.mxu0 0.0
  %4972 = vmatpush1.xpose.msra.mxu0 0.0
  %4973 = vmatprep.subr.mxu0 0.0
  %4974 = vmatpush1.xpose.msra.mxu0 0.0
  %4975 = vmatprep.subr.mxu0 0.0
  %4976 = vmatpush1.xpose.msra.mxu0 0.0
  %4977 = vmatprep.subr.mxu0 0.0
  %4978 = vmatpush1.xpose.msra.mxu0 0.0
  %4979 = vmatprep.subr.mxu0 0.0
  %4980 = vmatpush1.xpose.msra.mxu0 0.0
  %4981 = vmatprep.subr.mxu0 0.0
  %4982 = vmatpush1.xpose.msra.mxu0 0.0
  %4983 = vmatprep.subr.mxu0 0.0
  %4984 = vmatpush1.xpose.msra.mxu0 0.0
  %4985 = vmatprep.subr.mxu0 0.0
  %4986 = vmatpush1.xpose.msra.mxu0 0.0
  %4987 = vmatprep.subr.mxu0 0.0
  %4988 = vmatpush1.xpose.msra.mxu0 0.0
  %4989 = vmatprep.subr.mxu0 0.0
  %4990 = vmatpush1.xpose.msra.mxu0 0.0
  %4991 = vmatprep.subr.mxu0 0.0
  %4992 = vmatpush1.xpose.msra.mxu0 0.0
  %4993 = vmatprep.subr.mxu0 0.0
  %4994 = vmatpush1.xpose.msra.mxu0 0.0
  %4995 = vmatprep.subr.mxu0 0.0
  %4996 = vmatpush1.xpose.msra.mxu0 0.0
  %4997 = vmatprep.subr.mxu0 0.0
  %4998 = vmatpush1.xpose.msra.mxu0 0.0
  %4999 = vmatprep.subr.mxu0 0.0
  %5000 = vmatpush1.xpose.msra.mxu0 0.0
  %5001 = vmatprep.subr.mxu0 0.0
  %5002 = vmatpush1.xpose.msra.mxu0 0.0
  %5003 = vmatprep.subr.mxu0 0.0
  %5004 = vmatpush1.xpose.msra.mxu0 0.0
  %5005 = vmatprep.subr.mxu0 0.0
  %5006 = vmatpush1.xpose.msra.mxu0 0.0
  %5007 = vmatprep.subr.mxu0 0.0
  %5008 = vmatpush1.xpose.msra.mxu0 0.0
  %5009 = vmatprep.subr.mxu0 0.0
  %5010 = vmatpush1.xpose.msra.mxu0 0.0
  %5011 = vmatprep.subr.mxu0 0.0
  %5012 = vmatpush1.xpose.msra.mxu0 0.0
  %5013 = vmatprep.subr.mxu0 0.0
  %5014 = vmatpush1.xpose.msra.mxu0 0.0
  %5015 = vmatprep.subr.mxu0 0.0
  %5016 = vmatpush1.xpose.msra.mxu0 0.0
  %5017 = vmatprep.subr.mxu0 0.0
  %5018 = vmatpush1.xpose.msra.mxu0 0.0
  %5019 = vmatprep.mubr.f32.mxu0 0.0
  %5020 = vmatmul.mubr.f32.gmra.mrb[0].mxu0 %v4951
  %v5021 = vpop.f32.mrb[0].mxu0
  %v5022 = vadd.f32 0.0, %v5021
  %v5023 = vpop.f32.mrb[0].mxu0
  %5024 = vdwg.mxu0
  %5025 = vrot.lane.b32.xlu0 %v3956, 104
  %v5026 = vpop.permute.xlu0 %5025
  %5027 = vrot.lane.b32.xlu0 %v3956, 72
  %v5028 = vpop.permute.xlu0 %5027
  %v5029 = vsel %vm259, %v5026, 0
  %v5031 = vsel %vm259, %v5028, 0
  %5033 = vmatprep.subr.mxu0 0.0
  %5034 = vmatpush1.xpose.msra.mxu0 %v5031
  %5035 = vmatprep.subr.mxu0 0.0
  %5036 = vmatpush1.xpose.msra.mxu0 0.0
  %5037 = vmatprep.subr.mxu0 0.0
  %5038 = vmatpush1.xpose.msra.mxu0 0.0
  %5039 = vmatprep.subr.mxu0 0.0
  %5040 = vmatpush1.xpose.msra.mxu0 0.0
  %5041 = vmatprep.subr.mxu0 0.0
  %5042 = vmatpush1.xpose.msra.mxu0 0.0
  %5043 = vmatprep.subr.mxu0 0.0
  %5044 = vmatpush1.xpose.msra.mxu0 0.0
  %5045 = vmatprep.subr.mxu0 0.0
  %5046 = vmatpush1.xpose.msra.mxu0 0.0
  %5047 = vmatprep.subr.mxu0 0.0
  %5048 = vmatpush1.xpose.msra.mxu0 0.0
  %5049 = vmatprep.subr.mxu0 0.0
  %5050 = vmatpush1.xpose.msra.mxu0 0.0
  %5051 = vmatprep.subr.mxu0 0.0
  %5052 = vmatpush1.xpose.msra.mxu0 0.0
  %5053 = vmatprep.subr.mxu0 0.0
  %5054 = vmatpush1.xpose.msra.mxu0 0.0
  %5055 = vmatprep.subr.mxu0 0.0
  %5056 = vmatpush1.xpose.msra.mxu0 0.0
  %5057 = vmatprep.subr.mxu0 0.0
  %5058 = vmatpush1.xpose.msra.mxu0 0.0
  %5059 = vmatprep.subr.mxu0 0.0
  %5060 = vmatpush1.xpose.msra.mxu0 0.0
  %5061 = vmatprep.subr.mxu0 0.0
  %5062 = vmatpush1.xpose.msra.mxu0 0.0
  %5063 = vmatprep.subr.mxu0 0.0
  %5064 = vmatpush1.xpose.msra.mxu0 0.0
  %5065 = vmatprep.subr.mxu0 0.0
  %5066 = vmatpush1.xpose.msra.mxu0 0.0
  %5067 = vmatprep.subr.mxu0 0.0
  %5068 = vmatpush1.xpose.msra.mxu0 0.0
  %5069 = vmatprep.subr.mxu0 0.0
  %5070 = vmatpush1.xpose.msra.mxu0 0.0
  %5071 = vmatprep.subr.mxu0 0.0
  %5072 = vmatpush1.xpose.msra.mxu0 0.0
  %5073 = vmatprep.subr.mxu0 0.0
  %5074 = vmatpush1.xpose.msra.mxu0 0.0
  %5075 = vmatprep.subr.mxu0 0.0
  %5076 = vmatpush1.xpose.msra.mxu0 0.0
  %5077 = vmatprep.subr.mxu0 0.0
  %5078 = vmatpush1.xpose.msra.mxu0 0.0
  %5079 = vmatprep.subr.mxu0 0.0
  %5080 = vmatpush1.xpose.msra.mxu0 0.0
  %5081 = vmatprep.subr.mxu0 0.0
  %5082 = vmatpush1.xpose.msra.mxu0 0.0
  %5083 = vmatprep.subr.mxu0 0.0
  %5084 = vmatpush1.xpose.msra.mxu0 0.0
  %5085 = vmatprep.subr.mxu0 0.0
  %5086 = vmatpush1.xpose.msra.mxu0 0.0
  %5087 = vmatprep.subr.mxu0 0.0
  %5088 = vmatpush1.xpose.msra.mxu0 0.0
  %5089 = vmatprep.subr.mxu0 0.0
  %5090 = vmatpush1.xpose.msra.mxu0 0.0
  %5091 = vmatprep.subr.mxu0 0.0
  %5092 = vmatpush1.xpose.msra.mxu0 0.0
  %5093 = vmatprep.subr.mxu0 0.0
  %5094 = vmatpush1.xpose.msra.mxu0 0.0
  %5095 = vmatprep.subr.mxu0 0.0
  %5096 = vmatpush1.xpose.msra.mxu0 0.0
  %5097 = vmatprep.mubr.f32.mxu0 0.0
  %5098 = vmatmul.mubr.f32.gmra.mrb[0].mxu0 %v5029
  %v5099 = vpop.f32.mrb[0].mxu0
  %v5100 = vadd.f32 0.0, %v5099
  %v5101 = vpop.f32.mrb[0].mxu0
  %5102 = vdwg.mxu0
  %v5103 = vsel %vm259, %v5022, -inf
  %5104 = vmax.xlane.f32.xlu0 %v5103
  %v5105 = vpop.xlane.xlu0 %5104
  %v5106 = vsel %vm259, %v5100, -inf
  %5107 = vmax.xlane.f32.xlu0 %v5106
  %v5108 = vpop.xlane.xlu0 %5107
  %v5109 = vsub.f32 %v5022, %v5105
  %v5110 = vsub.f32 %v5100, %v5108
  %v5111 = vmul.f32 %v5109, 1.442695
  %v5112 = vpow.pop %v5111
  %v5113 = vmul.f32 %v5110, 1.442695
  %v5114 = vpow.pop %v5113
  %v5115 = vsel %vm259, %v5112, 0.0
  %5116 = vadd.xlane.f32.xlu0 %v5115
  %v5117 = vpop.xlane.xlu0 %5116
  %v5118 = vsel %vm259, %v5114, 0.0
  %5119 = vadd.xlane.f32.xlu0 %v5118
  %v5120 = vpop.xlane.xlu0 %5119
  %v5121 = vrcp.pop %v5117
  %v5122 = vmul.f32 %v5112, %v5121
  %v5123 = vrcp.pop %v5120
  %v5124 = vmul.f32 %v5114, %v5123
  %5125 = vrot.lane.b32.xlu0 %v3951, 40
  %v5126 = vpop.permute.xlu0 %5125
  %v5129 = vsel %vm259, %v5122, 0
  %5131 = vmatprep.subr.mxu0 0.0
  %5132 = vmatpush1.msra.mxu0 %v5126
  %5133 = vmatprep.subr.mxu0 0.0
  %5134 = vmatpush1.msra.mxu0 0.0
  %5135 = vmatprep.subr.mxu0 0.0
  %5136 = vmatpush1.msra.mxu0 0.0
  %5137 = vmatprep.subr.mxu0 0.0
  %5138 = vmatpush1.msra.mxu0 0.0
  %5139 = vmatprep.subr.mxu0 0.0
  %5140 = vmatpush1.msra.mxu0 0.0
  %5141 = vmatprep.subr.mxu0 0.0
  %5142 = vmatpush1.msra.mxu0 0.0
  %5143 = vmatprep.subr.mxu0 0.0
  %5144 = vmatpush1.msra.mxu0 0.0
  %5145 = vmatprep.subr.mxu0 0.0
  %5146 = vmatpush1.msra.mxu0 0.0
  %5147 = vmatprep.subr.mxu0 0.0
  %5148 = vmatpush1.msra.mxu0 0.0
  %5149 = vmatprep.subr.mxu0 0.0
  %5150 = vmatpush1.msra.mxu0 0.0
  %5151 = vmatprep.subr.mxu0 0.0
  %5152 = vmatpush1.msra.mxu0 0.0
  %5153 = vmatprep.subr.mxu0 0.0
  %5154 = vmatpush1.msra.mxu0 0.0
  %5155 = vmatprep.subr.mxu0 0.0
  %5156 = vmatpush1.msra.mxu0 0.0
  %5157 = vmatprep.subr.mxu0 0.0
  %5158 = vmatpush1.msra.mxu0 0.0
  %5159 = vmatprep.subr.mxu0 0.0
  %5160 = vmatpush1.msra.mxu0 0.0
  %5161 = vmatprep.subr.mxu0 0.0
  %5162 = vmatpush1.msra.mxu0 0.0
  %5163 = vmatprep.subr.mxu0 0.0
  %5164 = vmatpush1.msra.mxu0 0.0
  %5165 = vmatprep.subr.mxu0 0.0
  %5166 = vmatpush1.msra.mxu0 0.0
  %5167 = vmatprep.subr.mxu0 0.0
  %5168 = vmatpush1.msra.mxu0 0.0
  %5169 = vmatprep.subr.mxu0 0.0
  %5170 = vmatpush1.msra.mxu0 0.0
  %5171 = vmatprep.subr.mxu0 0.0
  %5172 = vmatpush1.msra.mxu0 0.0
  %5173 = vmatprep.subr.mxu0 0.0
  %5174 = vmatpush1.msra.mxu0 0.0
  %5175 = vmatprep.subr.mxu0 0.0
  %5176 = vmatpush1.msra.mxu0 0.0
  %5177 = vmatprep.subr.mxu0 0.0
  %5178 = vmatpush1.msra.mxu0 0.0
  %5179 = vmatprep.subr.mxu0 0.0
  %5180 = vmatpush1.msra.mxu0 0.0
  %5181 = vmatprep.subr.mxu0 0.0
  %5182 = vmatpush1.msra.mxu0 0.0
  %5183 = vmatprep.subr.mxu0 0.0
  %5184 = vmatpush1.msra.mxu0 0.0
  %5185 = vmatprep.subr.mxu0 0.0
  %5186 = vmatpush1.msra.mxu0 0.0
  %5187 = vmatprep.subr.mxu0 0.0
  %5188 = vmatpush1.msra.mxu0 0.0
  %5189 = vmatprep.subr.mxu0 0.0
  %5190 = vmatpush1.msra.mxu0 0.0
  %5191 = vmatprep.subr.mxu0 0.0
  %5192 = vmatpush1.msra.mxu0 0.0
  %5193 = vmatprep.subr.mxu0 0.0
  %5194 = vmatpush1.msra.mxu0 0.0
  %5195 = vmatprep.mubr.f32.mxu0 0.0
  %5196 = vmatmul.mubr.f32.gmra.mrb[0].mxu0 %v5129
  %v5197 = vpop.f32.mrb[0].mxu0
  %v5198 = vadd.f32 0.0, %v5197
  %v5199 = vpop.f32.mrb[0].mxu0
  %5200 = vdwg.mxu0
  %5201 = vrot.lane.b32.xlu0 %v3956, 40
  %v5202 = vpop.permute.xlu0 %5201
  %v5205 = vsel %vm259, %v5124, 0
  %5207 = vmatprep.subr.mxu0 0.0
  %5208 = vmatpush1.msra.mxu0 %v5202
  %5209 = vmatprep.subr.mxu0 0.0
  %5210 = vmatpush1.msra.mxu0 0.0
  %5211 = vmatprep.subr.mxu0 0.0
  %5212 = vmatpush1.msra.mxu0 0.0
  %5213 = vmatprep.subr.mxu0 0.0
  %5214 = vmatpush1.msra.mxu0 0.0
  %5215 = vmatprep.subr.mxu0 0.0
  %5216 = vmatpush1.msra.mxu0 0.0
  %5217 = vmatprep.subr.mxu0 0.0
  %5218 = vmatpush1.msra.mxu0 0.0
  %5219 = vmatprep.subr.mxu0 0.0
  %5220 = vmatpush1.msra.mxu0 0.0
  %5221 = vmatprep.subr.mxu0 0.0
  %5222 = vmatpush1.msra.mxu0 0.0
  %5223 = vmatprep.subr.mxu0 0.0
  %5224 = vmatpush1.msra.mxu0 0.0
  %5225 = vmatprep.subr.mxu0 0.0
  %5226 = vmatpush1.msra.mxu0 0.0
  %5227 = vmatprep.subr.mxu0 0.0
  %5228 = vmatpush1.msra.mxu0 0.0
  %5229 = vmatprep.subr.mxu0 0.0
  %5230 = vmatpush1.msra.mxu0 0.0
  %5231 = vmatprep.subr.mxu0 0.0
  %5232 = vmatpush1.msra.mxu0 0.0
  %5233 = vmatprep.subr.mxu0 0.0
  %5234 = vmatpush1.msra.mxu0 0.0
  %5235 = vmatprep.subr.mxu0 0.0
  %5236 = vmatpush1.msra.mxu0 0.0
  %5237 = vmatprep.subr.mxu0 0.0
  %5238 = vmatpush1.msra.mxu0 0.0
  %5239 = vmatprep.subr.mxu0 0.0
  %5240 = vmatpush1.msra.mxu0 0.0
  %5241 = vmatprep.subr.mxu0 0.0
  %5242 = vmatpush1.msra.mxu0 0.0
  %5243 = vmatprep.subr.mxu0 0.0
  %5244 = vmatpush1.msra.mxu0 0.0
  %5245 = vmatprep.subr.mxu0 0.0
  %5246 = vmatpush1.msra.mxu0 0.0
  %5247 = vmatprep.subr.mxu0 0.0
  %5248 = vmatpush1.msra.mxu0 0.0
  %5249 = vmatprep.subr.mxu0 0.0
  %5250 = vmatpush1.msra.mxu0 0.0
  %5251 = vmatprep.subr.mxu0 0.0
  %5252 = vmatpush1.msra.mxu0 0.0
  %5253 = vmatprep.subr.mxu0 0.0
  %5254 = vmatpush1.msra.mxu0 0.0
  %5255 = vmatprep.subr.mxu0 0.0
  %5256 = vmatpush1.msra.mxu0 0.0
  %5257 = vmatprep.subr.mxu0 0.0
  %5258 = vmatpush1.msra.mxu0 0.0
  %5259 = vmatprep.subr.mxu0 0.0
  %5260 = vmatpush1.msra.mxu0 0.0
  %5261 = vmatprep.subr.mxu0 0.0
  %5262 = vmatpush1.msra.mxu0 0.0
  %5263 = vmatprep.subr.mxu0 0.0
  %5264 = vmatpush1.msra.mxu0 0.0
  %5265 = vmatprep.subr.mxu0 0.0
  %5266 = vmatpush1.msra.mxu0 0.0
  %5267 = vmatprep.subr.mxu0 0.0
  %5268 = vmatpush1.msra.mxu0 0.0
  %5269 = vmatprep.subr.mxu0 0.0
  %5270 = vmatpush1.msra.mxu0 0.0
  %5271 = vmatprep.mubr.f32.mxu0 0.0
  %5272 = vmatmul.mubr.f32.gmra.mrb[0].mxu0 %v5205
  %v5273 = vpop.f32.mrb[0].mxu0
  %v5274 = vadd.f32 0.0, %v5273
  %v5275 = vpop.f32.mrb[0].mxu0
  %5276 = vdwg.mxu0
  %5279 = vrot.lane.b32.xlu0 %v4538, 8
  %v5280 = vpop.permute.xlu0 %5279
  %5281 = vrot.lane.b32.xlu0 %v4614, 8
  %v5282 = vpop.permute.xlu0 %5281
  %5287 = vrot.lane.b32.xlu0 %v4868, 16
  %v5288 = vpop.permute.xlu0 %5287
  %5289 = vrot.lane.b32.xlu0 %v4944, 16
  %v5290 = vpop.permute.xlu0 %5289
  %5295 = vrot.lane.b32.xlu0 %v5198, 24
  %v5296 = vpop.permute.xlu0 %5295
  %5297 = vrot.lane.b32.xlu0 %v5274, 24
  %v5298 = vpop.permute.xlu0 %5297
  %v5301 = vsel %vm259, %v4208, %v5280
  %v5302 = vsel %vm259, %v4284, %v5282
  %v5303 = vsel %vm1601, %v5301, %v5288
  %v5304 = vsel %vm1601, %v5302, %v5290
  %v5305 = vsel %vm1604, %v5303, %v5296
  %v5306 = vsel %vm1604, %v5304, %v5298
  %v5307 = vld [vmem:[%s37] sm:$0xff]
  %v5308 = vld [vmem:[%s37 + $0x8] sm:$0xff]
  %v5309 = vld [vmem:[%s37 + $0x10] sm:$0xff]
  %v5310 = vld [vmem:[%s37 + $0x18] sm:$0xff]
  %v5311 = vld [vmem:[%s39] sm:$0x1]
  %v5313 = vlaneseq
  %v5314 = vshrl.u32 %v5313, 7
  %v5315 = vsub.s32 0, %v5314
  %v5316 = vrot.slane %v5311, %v5315
  %v5319 = vsel %vm174, %v5305, 0
  %v5322 = vsel %vm174, %v5306, 0
  %5324 = vmatprep.subr.mxu0 0.0
  %5325 = vmatpush1.msra.mxu0 %v5307
  %5326 = vmatprep.subr.mxu0 0.0
  %5327 = vmatpush1.msra.mxu0 %v5308
  %5328 = vmatprep.subr.mxu0 0.0
  %5329 = vmatpush1.msra.mxu0 %v5309
  %5330 = vmatprep.subr.mxu0 0.0
  %5331 = vmatpush1.msra.mxu0 %v5310
  %5332 = vmatprep.subr.mxu0 0.0
  %5333 = vmatpush1.msra.mxu0 0.0
  %5334 = vmatprep.subr.mxu0 0.0
  %5335 = vmatpush1.msra.mxu0 0.0
  %5336 = vmatprep.subr.mxu0 0.0
  %5337 = vmatpush1.msra.mxu0 0.0
  %5338 = vmatprep.subr.mxu0 0.0
  %5339 = vmatpush1.msra.mxu0 0.0
  %5340 = vmatprep.subr.mxu0 0.0
  %5341 = vmatpush1.msra.mxu0 0.0
  %5342 = vmatprep.subr.mxu0 0.0
  %5343 = vmatpush1.msra.mxu0 0.0
  %5344 = vmatprep.subr.mxu0 0.0
  %5345 = vmatpush1.msra.mxu0 0.0
  %5346 = vmatprep.subr.mxu0 0.0
  %5347 = vmatpush1.msra.mxu0 0.0
  %5348 = vmatprep.subr.mxu0 0.0
  %5349 = vmatpush1.msra.mxu0 0.0
  %5350 = vmatprep.subr.mxu0 0.0
  %5351 = vmatpush1.msra.mxu0 0.0
  %5352 = vmatprep.subr.mxu0 0.0
  %5353 = vmatpush1.msra.mxu0 0.0
  %5354 = vmatprep.subr.mxu0 0.0
  %5355 = vmatpush1.msra.mxu0 0.0
  %5356 = vmatprep.subr.mxu0 0.0
  %5357 = vmatpush1.msra.mxu0 0.0
  %5358 = vmatprep.subr.mxu0 0.0
  %5359 = vmatpush1.msra.mxu0 0.0
  %5360 = vmatprep.subr.mxu0 0.0
  %5361 = vmatpush1.msra.mxu0 0.0
  %5362 = vmatprep.subr.mxu0 0.0
  %5363 = vmatpush1.msra.mxu0 0.0
  %5364 = vmatprep.subr.mxu0 0.0
  %5365 = vmatpush1.msra.mxu0 0.0
  %5366 = vmatprep.subr.mxu0 0.0
  %5367 = vmatpush1.msra.mxu0 0.0
  %5368 = vmatprep.subr.mxu0 0.0
  %5369 = vmatpush1.msra.mxu0 0.0
  %5370 = vmatprep.subr.mxu0 0.0
  %5371 = vmatpush1.msra.mxu0 0.0
  %5372 = vmatprep.subr.mxu0 0.0
  %5373 = vmatpush1.msra.mxu0 0.0
  %5374 = vmatprep.subr.mxu0 0.0
  %5375 = vmatpush1.msra.mxu0 0.0
  %5376 = vmatprep.subr.mxu0 0.0
  %5377 = vmatpush1.msra.mxu0 0.0
  %5378 = vmatprep.subr.mxu0 0.0
  %5379 = vmatpush1.msra.mxu0 0.0
  %5380 = vmatprep.subr.mxu0 0.0
  %5381 = vmatpush1.msra.mxu0 0.0
  %5382 = vmatprep.subr.mxu0 0.0
  %5383 = vmatpush1.msra.mxu0 0.0
  %5384 = vmatprep.subr.mxu0 0.0
  %5385 = vmatpush1.msra.mxu0 0.0
  %5386 = vmatprep.subr.mxu0 0.0
  %5387 = vmatpush1.msra.mxu0 0.0
  %5388 = vmatprep.mubr.f32.mxu0 0.0
  %5389 = vmatmul.mubr.f32.gmra.mrb[0].mxu0 %v5319
  %v5390 = vpop.f32.mrb[0].mxu0
  %v5391 = vadd.f32 %v5316, %v5390
  %v5392 = vpop.f32.mrb[0].mxu0
  %5393 = vmatprep.mubr.f32.mxu0 0.0
  %5394 = vmatmul.mubr.f32.gmra.mrb[0].mxu0 %v5322
  %v5395 = vpop.f32.mrb[0].mxu0
  %v5396 = vadd.f32 %v5316, %v5395
  %v5397 = vpop.f32.mrb[0].mxu0
  %5398 = vdwg.mxu0
  %v5399 = vadd.f32 %v161, %v5391
  %v5400 = vadd.f32 %v162, %v5396
  %v5401 = vsel %vm174, %v5399, 0.0
  %5402 = vadd.xlane.f32.xlu0 %v5401
  %v5403 = vpop.xlane.xlu0 %5402
  %v5404 = vsel %vm174, %v5400, 0.0
  %5405 = vadd.xlane.f32.xlu0 %v5404
  %v5406 = vpop.xlane.xlu0 %5405
  %v5407 = vmul.f32 %v5403, %v1707
  %v5408 = vmul.f32 %v5406, %v1707
  %v5409 = vsub.f32 %v5399, %v5407
  %v5410 = vsub.f32 %v5400, %v5408
  %v5411 = vmul.f32 %v5409, %v5409
  %v5412 = vmul.f32 %v5410, %v5410
  %v5413 = vsel %vm174, %v5411, 0.0
  %5414 = vadd.xlane.f32.xlu0 %v5413
  %v5415 = vpop.xlane.xlu0 %5414
  %v5416 = vsel %vm174, %v5412, 0.0
  %5417 = vadd.xlane.f32.xlu0 %v5416
  %v5418 = vpop.xlane.xlu0 %5417
  %v5419 = vmul.f32 %v5415, %v1707
  %v5420 = vmul.f32 %v5418, %v1707
  %v5421 = vadd.f32 %v5419, 1e-05
  %v5422 = vadd.f32 %v5420, 1e-05
  %v5423 = vrsqrt.pop %v5421
  %v5424 = vrsqrt.pop %v5422
  %v5425 = vmul.f32 %v5409, %v5423
  %v5426 = vmul.f32 %v5410, %v5424
  %v5427 = vld [vmem:[%s41] sm:$0x1]
  %v5429 = vlaneseq
  %v5430 = vshrl.u32 %v5429, 7
  %v5431 = vsub.s32 0, %v5430
  %v5432 = vrot.slane %v5427, %v5431
  %v5434 = vmul.f32 %v5425, %v5432
  %v5435 = vmul.f32 %v5426, %v5432
  %v5436 = vld [vmem:[%s43] sm:$0x1]
  %v5438 = vlaneseq
  %v5439 = vshrl.u32 %v5438, 7
  %v5440 = vsub.s32 0, %v5439
  %v5441 = vrot.slane %v5436, %v5440
  %v5443 = vadd.f32 %v5434, %v5441
  %v5444 = vadd.f32 %v5435, %v5441
  %v5445 = vld [vmem:[%s45] sm:$0xff]
  %v5446 = vld [vmem:[%s45 + $0x8] sm:$0xff]
  %v5447 = vld [vmem:[%s45 + $0x10] sm:$0xff]
  %v5448 = vld [vmem:[%s45 + $0x18] sm:$0xff]
  %v5449 = vld [vmem:[%s47] sm:$0x1]
  %v5451 = vlaneseq
  %v5452 = vshrl.u32 %v5451, 7
  %v5453 = vsub.s32 0, %v5452
  %v5454 = vrot.slane %v5449, %v5453
  %v5457 = vsel %vm174, %v5443, 0
  %v5460 = vsel %vm174, %v5444, 0
  %5462 = vmatprep.subr.mxu0 0.0
  %5463 = vmatpush1.msra.mxu0 %v5445
  %5464 = vmatprep.subr.mxu0 0.0
  %5465 = vmatpush1.msra.mxu0 %v5446
  %5466 = vmatprep.subr.mxu0 0.0
  %5467 = vmatpush1.msra.mxu0 %v5447
  %5468 = vmatprep.subr.mxu0 0.0
  %5469 = vmatpush1.msra.mxu0 %v5448
  %5470 = vmatprep.subr.mxu0 0.0
  %5471 = vmatpush1.msra.mxu0 0.0
  %5472 = vmatprep.subr.mxu0 0.0
  %5473 = vmatpush1.msra.mxu0 0.0
  %5474 = vmatprep.subr.mxu0 0.0
  %5475 = vmatpush1.msra.mxu0 0.0
  %5476 = vmatprep.subr.mxu0 0.0
  %5477 = vmatpush1.msra.mxu0 0.0
  %5478 = vmatprep.subr.mxu0 0.0
  %5479 = vmatpush1.msra.mxu0 0.0
  %5480 = vmatprep.subr.mxu0 0.0
  %5481 = vmatpush1.msra.mxu0 0.0
  %5482 = vmatprep.subr.mxu0 0.0
  %5483 = vmatpush1.msra.mxu0 0.0
  %5484 = vmatprep.subr.mxu0 0.0
  %5485 = vmatpush1.msra.mxu0 0.0
  %5486 = vmatprep.subr.mxu0 0.0
  %5487 = vmatpush1.msra.mxu0 0.0
  %5488 = vmatprep.subr.mxu0 0.0
  %5489 = vmatpush1.msra.mxu0 0.0
  %5490 = vmatprep.subr.mxu0 0.0
  %5491 = vmatpush1.msra.mxu0 0.0
  %5492 = vmatprep.subr.mxu0 0.0
  %5493 = vmatpush1.msra.mxu0 0.0
  %5494 = vmatprep.subr.mxu0 0.0
  %5495 = vmatpush1.msra.mxu0 0.0
  %5496 = vmatprep.subr.mxu0 0.0
  %5497 = vmatpush1.msra.mxu0 0.0
  %5498 = vmatprep.subr.mxu0 0.0
  %5499 = vmatpush1.msra.mxu0 0.0
  %5500 = vmatprep.subr.mxu0 0.0
  %5501 = vmatpush1.msra.mxu0 0.0
  %5502 = vmatprep.subr.mxu0 0.0
  %5503 = vmatpush1.msra.mxu0 0.0
  %5504 = vmatprep.subr.mxu0 0.0
  %5505 = vmatpush1.msra.mxu0 0.0
  %5506 = vmatprep.subr.mxu0 0.0
  %5507 = vmatpush1.msra.mxu0 0.0
  %5508 = vmatprep.subr.mxu0 0.0
  %5509 = vmatpush1.msra.mxu0 0.0
  %5510 = vmatprep.subr.mxu0 0.0
  %5511 = vmatpush1.msra.mxu0 0.0
  %5512 = vmatprep.subr.mxu0 0.0
  %5513 = vmatpush1.msra.mxu0 0.0
  %5514 = vmatprep.subr.mxu0 0.0
  %5515 = vmatpush1.msra.mxu0 0.0
  %5516 = vmatprep.subr.mxu0 0.0
  %5517 = vmatpush1.msra.mxu0 0.0
  %5518 = vmatprep.subr.mxu0 0.0
  %5519 = vmatpush1.msra.mxu0 0.0
  %5520 = vmatprep.subr.mxu0 0.0
  %5521 = vmatpush1.msra.mxu0 0.0
  %5522 = vmatprep.subr.mxu0 0.0
  %5523 = vmatpush1.msra.mxu0 0.0
  %5524 = vmatprep.subr.mxu0 0.0
  %5525 = vmatpush1.msra.mxu0 0.0
  %5526 = vmatprep.mubr.f32.mxu0 0.0
  %5527 = vmatmul.mubr.f32.gmra.mrb[0].mxu0 %v5457
  %v5528 = vpop.f32.mrb[0].mxu0
  %v5529 = vadd.f32 %v5454, %v5528
  %v5530 = vpop.f32.mrb[0].mxu0
  %5531 = vmatprep.mubr.f32.mxu0 0.0
  %5532 = vmatmul.mubr.f32.gmra.mrb[0].mxu0 %v5460
  %v5533 = vpop.f32.mrb[0].mxu0
  %v5534 = vadd.f32 %v5454, %v5533
  %v5535 = vpop.f32.mrb[0].mxu0
  %5536 = vdwg.mxu0
  %v5537 = vld [vmem:[%s49] sm:$0xff]
  %v5538 = vld [vmem:[%s49 + $0x8] sm:$0xff]
  %v5539 = vld [vmem:[%s49 + $0x10] sm:$0xff]
  %v5540 = vld [vmem:[%s49 + $0x18] sm:$0xff]
  %v5541 = vld [vmem:[%s51] sm:$0x1]
  %v5543 = vlaneseq
  %v5544 = vshrl.u32 %v5543, 7
  %v5545 = vsub.s32 0, %v5544
  %v5546 = vrot.slane %v5541, %v5545
  %v5549 = vsel %vm174, %v3865, 0
  %v5552 = vsel %vm174, %v3866, 0
  %5554 = vmatprep.subr.mxu0 0.0
  %5555 = vmatpush1.msra.mxu0 %v5537
  %5556 = vmatprep.subr.mxu0 0.0
  %5557 = vmatpush1.msra.mxu0 %v5538
  %5558 = vmatprep.subr.mxu0 0.0
  %5559 = vmatpush1.msra.mxu0 %v5539
  %5560 = vmatprep.subr.mxu0 0.0
  %5561 = vmatpush1.msra.mxu0 %v5540
  %5562 = vmatprep.subr.mxu0 0.0
  %5563 = vmatpush1.msra.mxu0 0.0
  %5564 = vmatprep.subr.mxu0 0.0
  %5565 = vmatpush1.msra.mxu0 0.0
  %5566 = vmatprep.subr.mxu0 0.0
  %5567 = vmatpush1.msra.mxu0 0.0
  %5568 = vmatprep.subr.mxu0 0.0
  %5569 = vmatpush1.msra.mxu0 0.0
  %5570 = vmatprep.subr.mxu0 0.0
  %5571 = vmatpush1.msra.mxu0 0.0
  %5572 = vmatprep.subr.mxu0 0.0
  %5573 = vmatpush1.msra.mxu0 0.0
  %5574 = vmatprep.subr.mxu0 0.0
  %5575 = vmatpush1.msra.mxu0 0.0
  %5576 = vmatprep.subr.mxu0 0.0
  %5577 = vmatpush1.msra.mxu0 0.0
  %5578 = vmatprep.subr.mxu0 0.0
  %5579 = vmatpush1.msra.mxu0 0.0
  %5580 = vmatprep.subr.mxu0 0.0
  %5581 = vmatpush1.msra.mxu0 0.0
  %5582 = vmatprep.subr.mxu0 0.0
  %5583 = vmatpush1.msra.mxu0 0.0
  %5584 = vmatprep.subr.mxu0 0.0
  %5585 = vmatpush1.msra.mxu0 0.0
  %5586 = vmatprep.subr.mxu0 0.0
  %5587 = vmatpush1.msra.mxu0 0.0
  %5588 = vmatprep.subr.mxu0 0.0
  %5589 = vmatpush1.msra.mxu0 0.0
  %5590 = vmatprep.subr.mxu0 0.0
  %5591 = vmatpush1.msra.mxu0 0.0
  %5592 = vmatprep.subr.mxu0 0.0
  %5593 = vmatpush1.msra.mxu0 0.0
  %5594 = vmatprep.subr.mxu0 0.0
  %5595 = vmatpush1.msra.mxu0 0.0
  %5596 = vmatprep.subr.mxu0 0.0
  %5597 = vmatpush1.msra.mxu0 0.0
  %5598 = vmatprep.subr.mxu0 0.0
  %5599 = vmatpush1.msra.mxu0 0.0
  %5600 = vmatprep.subr.mxu0 0.0
  %5601 = vmatpush1.msra.mxu0 0.0
  %5602 = vmatprep.subr.mxu0 0.0
  %5603 = vmatpush1.msra.mxu0 0.0
  %5604 = vmatprep.subr.mxu0 0.0
  %5605 = vmatpush1.msra.mxu0 0.0
  %5606 = vmatprep.subr.mxu0 0.0
  %5607 = vmatpush1.msra.mxu0 0.0
  %5608 = vmatprep.subr.mxu0 0.0
  %5609 = vmatpush1.msra.mxu0 0.0
  %5610 = vmatprep.subr.mxu0 0.0
  %5611 = vmatpush1.msra.mxu0 0.0
  %5612 = vmatprep.subr.mxu0 0.0
  %5613 = vmatpush1.msra.mxu0 0.0
  %5614 = vmatprep.subr.mxu0 0.0
  %5615 = vmatpush1.msra.mxu0 0.0
  %5616 = vmatprep.subr.mxu0 0.0
  %5617 = vmatpush1.msra.mxu0 0.0
  %5618 = vmatprep.mubr.f32.mxu0 0.0
  %5619 = vmatmul.mubr.f32.gmra.mrb[0].mxu0 %v5549
  %v5620 = vpop.f32.mrb[0].mxu0
  %v5621 = vadd.f32 %v5546, %v5620
  %v5622 = vpop.f32.mrb[0].mxu0
  %5623 = vmatprep.mubr.f32.mxu0 0.0
  %5624 = vmatmul.mubr.f32.gmra.mrb[0].mxu0 %v5552
  %v5625 = vpop.f32.mrb[0].mxu0
  %v5626 = vadd.f32 %v5546, %v5625
  %v5627 = vpop.f32.mrb[0].mxu0
  %5628 = vdwg.mxu0
  %v5630 = vsel %vm259, %v5529, 0
  %v5633 = vsel %vm259, %v5621, 0
  %5635 = vmatprep.subr.mxu0 0.0
  %5636 = vmatpush1.xpose.msra.mxu0 %v5633
  %5637 = vmatprep.subr.mxu0 0.0
  %5638 = vmatpush1.xpose.msra.mxu0 0.0
  %5639 = vmatprep.subr.mxu0 0.0
  %5640 = vmatpush1.xpose.msra.mxu0 0.0
  %5641 = vmatprep.subr.mxu0 0.0
  %5642 = vmatpush1.xpose.msra.mxu0 0.0
  %5643 = vmatprep.subr.mxu0 0.0
  %5644 = vmatpush1.xpose.msra.mxu0 0.0
  %5645 = vmatprep.subr.mxu0 0.0
  %5646 = vmatpush1.xpose.msra.mxu0 0.0
  %5647 = vmatprep.subr.mxu0 0.0
  %5648 = vmatpush1.xpose.msra.mxu0 0.0
  %5649 = vmatprep.subr.mxu0 0.0
  %5650 = vmatpush1.xpose.msra.mxu0 0.0
  %5651 = vmatprep.subr.mxu0 0.0
  %5652 = vmatpush1.xpose.msra.mxu0 0.0
  %5653 = vmatprep.subr.mxu0 0.0
  %5654 = vmatpush1.xpose.msra.mxu0 0.0
  %5655 = vmatprep.subr.mxu0 0.0
  %5656 = vmatpush1.xpose.msra.mxu0 0.0
  %5657 = vmatprep.subr.mxu0 0.0
  %5658 = vmatpush1.xpose.msra.mxu0 0.0
  %5659 = vmatprep.subr.mxu0 0.0
  %5660 = vmatpush1.xpose.msra.mxu0 0.0
  %5661 = vmatprep.subr.mxu0 0.0
  %5662 = vmatpush1.xpose.msra.mxu0 0.0
  %5663 = vmatprep.subr.mxu0 0.0
  %5664 = vmatpush1.xpose.msra.mxu0 0.0
  %5665 = vmatprep.subr.mxu0 0.0
  %5666 = vmatpush1.xpose.msra.mxu0 0.0
  %5667 = vmatprep.subr.mxu0 0.0
  %5668 = vmatpush1.xpose.msra.mxu0 0.0
  %5669 = vmatprep.subr.mxu0 0.0
  %5670 = vmatpush1.xpose.msra.mxu0 0.0
  %5671 = vmatprep.subr.mxu0 0.0
  %5672 = vmatpush1.xpose.msra.mxu0 0.0
  %5673 = vmatprep.subr.mxu0 0.0
  %5674 = vmatpush1.xpose.msra.mxu0 0.0
  %5675 = vmatprep.subr.mxu0 0.0
  %5676 = vmatpush1.xpose.msra.mxu0 0.0
  %5677 = vmatprep.subr.mxu0 0.0
  %5678 = vmatpush1.xpose.msra.mxu0 0.0
  %5679 = vmatprep.subr.mxu0 0.0
  %5680 = vmatpush1.xpose.msra.mxu0 0.0
  %5681 = vmatprep.subr.mxu0 0.0
  %5682 = vmatpush1.xpose.msra.mxu0 0.0
  %5683 = vmatprep.subr.mxu0 0.0
  %5684 = vmatpush1.xpose.msra.mxu0 0.0
  %5685 = vmatprep.subr.mxu0 0.0
  %5686 = vmatpush1.xpose.msra.mxu0 0.0
  %5687 = vmatprep.subr.mxu0 0.0
  %5688 = vmatpush1.xpose.msra.mxu0 0.0
  %5689 = vmatprep.subr.mxu0 0.0
  %5690 = vmatpush1.xpose.msra.mxu0 0.0
  %5691 = vmatprep.subr.mxu0 0.0
  %5692 = vmatpush1.xpose.msra.mxu0 0.0
  %5693 = vmatprep.subr.mxu0 0.0
  %5694 = vmatpush1.xpose.msra.mxu0 0.0
  %5695 = vmatprep.subr.mxu0 0.0
  %5696 = vmatpush1.xpose.msra.mxu0 0.0
  %5697 = vmatprep.subr.mxu0 0.0
  %5698 = vmatpush1.xpose.msra.mxu0 0.0
  %5699 = vmatprep.mubr.f32.mxu0 0.0
  %5700 = vmatmul.mubr.f32.gmra.mrb[0].mxu0 %v5630
  %v5701 = vpop.f32.mrb[0].mxu0
  %v5702 = vadd.f32 0.0, %v5701
  %v5703 = vpop.f32.mrb[0].mxu0
  %5704 = vdwg.mxu0
  %v5706 = vsel %vm259, %v5534, 0
  %v5709 = vsel %vm259, %v5626, 0
  %5711 = vmatprep.subr.mxu0 0.0
  %5712 = vmatpush1.xpose.msra.mxu0 %v5709
  %5713 = vmatprep.subr.mxu0 0.0
  %5714 = vmatpush1.xpose.msra.mxu0 0.0
  %5715 = vmatprep.subr.mxu0 0.0
  %5716 = vmatpush1.xpose.msra.mxu0 0.0
  %5717 = vmatprep.subr.mxu0 0.0
  %5718 = vmatpush1.xpose.msra.mxu0 0.0
  %5719 = vmatprep.subr.mxu0 0.0
  %5720 = vmatpush1.xpose.msra.mxu0 0.0
  %5721 = vmatprep.subr.mxu0 0.0
  %5722 = vmatpush1.xpose.msra.mxu0 0.0
  %5723 = vmatprep.subr.mxu0 0.0
  %5724 = vmatpush1.xpose.msra.mxu0 0.0
  %5725 = vmatprep.subr.mxu0 0.0
  %5726 = vmatpush1.xpose.msra.mxu0 0.0
  %5727 = vmatprep.subr.mxu0 0.0
  %5728 = vmatpush1.xpose.msra.mxu0 0.0
  %5729 = vmatprep.subr.mxu0 0.0
  %5730 = vmatpush1.xpose.msra.mxu0 0.0
  %5731 = vmatprep.subr.mxu0 0.0
  %5732 = vmatpush1.xpose.msra.mxu0 0.0
  %5733 = vmatprep.subr.mxu0 0.0
  %5734 = vmatpush1.xpose.msra.mxu0 0.0
  %5735 = vmatprep.subr.mxu0 0.0
  %5736 = vmatpush1.xpose.msra.mxu0 0.0
  %5737 = vmatprep.subr.mxu0 0.0
  %5738 = vmatpush1.xpose.msra.mxu0 0.0
  %5739 = vmatprep.subr.mxu0 0.0
  %5740 = vmatpush1.xpose.msra.mxu0 0.0
  %5741 = vmatprep.subr.mxu0 0.0
  %5742 = vmatpush1.xpose.msra.mxu0 0.0
  %5743 = vmatprep.subr.mxu0 0.0
  %5744 = vmatpush1.xpose.msra.mxu0 0.0
  %5745 = vmatprep.subr.mxu0 0.0
  %5746 = vmatpush1.xpose.msra.mxu0 0.0
  %5747 = vmatprep.subr.mxu0 0.0
  %5748 = vmatpush1.xpose.msra.mxu0 0.0
  %5749 = vmatprep.subr.mxu0 0.0
  %5750 = vmatpush1.xpose.msra.mxu0 0.0
  %5751 = vmatprep.subr.mxu0 0.0
  %5752 = vmatpush1.xpose.msra.mxu0 0.0
  %5753 = vmatprep.subr.mxu0 0.0
  %5754 = vmatpush1.xpose.msra.mxu0 0.0
  %5755 = vmatprep.subr.mxu0 0.0
  %5756 = vmatpush1.xpose.msra.mxu0 0.0
  %5757 = vmatprep.subr.mxu0 0.0
  %5758 = vmatpush1.xpose.msra.mxu0 0.0
  %5759 = vmatprep.subr.mxu0 0.0
  %5760 = vmatpush1.xpose.msra.mxu0 0.0
  %5761 = vmatprep.subr.mxu0 0.0
  %5762 = vmatpush1.xpose.msra.mxu0 0.0
  %5763 = vmatprep.subr.mxu0 0.0
  %5764 = vmatpush1.xpose.msra.mxu0 0.0
  %5765 = vmatprep.subr.mxu0 0.0
  %5766 = vmatpush1.xpose.msra.mxu0 0.0
  %5767 = vmatprep.subr.mxu0 0.0
  %5768 = vmatpush1.xpose.msra.mxu0 0.0
  %5769 = vmatprep.subr.mxu0 0.0
  %5770 = vmatpush1.xpose.msra.mxu0 0.0
  %5771 = vmatprep.subr.mxu0 0.0
  %5772 = vmatpush1.xpose.msra.mxu0 0.0
  %5773 = vmatprep.subr.mxu0 0.0
  %5774 = vmatpush1.xpose.msra.mxu0 0.0
  %5775 = vmatprep.mubr.f32.mxu0 0.0
  %5776 = vmatmul.mubr.f32.gmra.mrb[0].mxu0 %v5706
  %v5777 = vpop.f32.mrb[0].mxu0
  %v5778 = vadd.f32 0.0, %v5777
  %v5779 = vpop.f32.mrb[0].mxu0
  %5780 = vdwg.mxu0
  %v5781 = vsel %vm259, %v5702, -inf
  %5782 = vmax.xlane.f32.xlu0 %v5781
  %v5783 = vpop.xlane.xlu0 %5782
  %v5784 = vsel %vm259, %v5778, -inf
  %5785 = vmax.xlane.f32.xlu0 %v5784
  %v5786 = vpop.xlane.xlu0 %5785
  %v5787 = vsub.f32 %v5702, %v5783
  %v5788 = vsub.f32 %v5778, %v5786
  %v5789 = vmul.f32 %v5787, 1.442695
  %v5790 = vpow.pop %v5789
  %v5791 = vmul.f32 %v5788, 1.442695
  %v5792 = vpow.pop %v5791
  %v5793 = vsel %vm259, %v5790, 0.0
  %5794 = vadd.xlane.f32.xlu0 %v5793
  %v5795 = vpop.xlane.xlu0 %5794
  %v5796 = vsel %vm259, %v5792, 0.0
  %5797 = vadd.xlane.f32.xlu0 %v5796
  %v5798 = vpop.xlane.xlu0 %5797
  %v5799 = vrcp.pop %v5795
  %v5800 = vmul.f32 %v5790, %v5799
  %v5801 = vrcp.pop %v5798
  %v5802 = vmul.f32 %v5792, %v5801
  %5803 = vrot.lane.b32.xlu0 %v5621, 96
  %v5804 = vpop.permute.xlu0 %5803
  %v5807 = vsel %vm259, %v5800, 0
  %5809 = vmatprep.subr.mxu0 0.0
  %5810 = vmatpush1.msra.mxu0 %v5804
  %5811 = vmatprep.subr.mxu0 0.0
  %5812 = vmatpush1.msra.mxu0 0.0
  %5813 = vmatprep.subr.mxu0 0.0
  %5814 = vmatpush1.msra.mxu0 0.0
  %5815 = vmatprep.subr.mxu0 0.0
  %5816 = vmatpush1.msra.mxu0 0.0
  %5817 = vmatprep.subr.mxu0 0.0
  %5818 = vmatpush1.msra.mxu0 0.0
  %5819 = vmatprep.subr.mxu0 0.0
  %5820 = vmatpush1.msra.mxu0 0.0
  %5821 = vmatprep.subr.mxu0 0.0
  %5822 = vmatpush1.msra.mxu0 0.0
  %5823 = vmatprep.subr.mxu0 0.0
  %5824 = vmatpush1.msra.mxu0 0.0
  %5825 = vmatprep.subr.mxu0 0.0
  %5826 = vmatpush1.msra.mxu0 0.0
  %5827 = vmatprep.subr.mxu0 0.0
  %5828 = vmatpush1.msra.mxu0 0.0
  %5829 = vmatprep.subr.mxu0 0.0
  %5830 = vmatpush1.msra.mxu0 0.0
  %5831 = vmatprep.subr.mxu0 0.0
  %5832 = vmatpush1.msra.mxu0 0.0
  %5833 = vmatprep.subr.mxu0 0.0
  %5834 = vmatpush1.msra.mxu0 0.0
  %5835 = vmatprep.subr.mxu0 0.0
  %5836 = vmatpush1.msra.mxu0 0.0
  %5837 = vmatprep.subr.mxu0 0.0
  %5838 = vmatpush1.msra.mxu0 0.0
  %5839 = vmatprep.subr.mxu0 0.0
  %5840 = vmatpush1.msra.mxu0 0.0
  %5841 = vmatprep.subr.mxu0 0.0
  %5842 = vmatpush1.msra.mxu0 0.0
  %5843 = vmatprep.subr.mxu0 0.0
  %5844 = vmatpush1.msra.mxu0 0.0
  %5845 = vmatprep.subr.mxu0 0.0
  %5846 = vmatpush1.msra.mxu0 0.0
  %5847 = vmatprep.subr.mxu0 0.0
  %5848 = vmatpush1.msra.mxu0 0.0
  %5849 = vmatprep.subr.mxu0 0.0
  %5850 = vmatpush1.msra.mxu0 0.0
  %5851 = vmatprep.subr.mxu0 0.0
  %5852 = vmatpush1.msra.mxu0 0.0
  %5853 = vmatprep.subr.mxu0 0.0
  %5854 = vmatpush1.msra.mxu0 0.0
  %5855 = vmatprep.subr.mxu0 0.0
  %5856 = vmatpush1.msra.mxu0 0.0
  %5857 = vmatprep.subr.mxu0 0.0
  %5858 = vmatpush1.msra.mxu0 0.0
  %5859 = vmatprep.subr.mxu0 0.0
  %5860 = vmatpush1.msra.mxu0 0.0
  %5861 = vmatprep.subr.mxu0 0.0
  %5862 = vmatpush1.msra.mxu0 0.0
  %5863 = vmatprep.subr.mxu0 0.0
  %5864 = vmatpush1.msra.mxu0 0.0
  %5865 = vmatprep.subr.mxu0 0.0
  %5866 = vmatpush1.msra.mxu0 0.0
  %5867 = vmatprep.subr.mxu0 0.0
  %5868 = vmatpush1.msra.mxu0 0.0
  %5869 = vmatprep.subr.mxu0 0.0
  %5870 = vmatpush1.msra.mxu0 0.0
  %5871 = vmatprep.subr.mxu0 0.0
  %5872 = vmatpush1.msra.mxu0 0.0
  %5873 = vmatprep.mubr.f32.mxu0 0.0
  %5874 = vmatmul.mubr.f32.gmra.mrb[0].mxu0 %v5807
  %v5875 = vpop.f32.mrb[0].mxu0
  %v5876 = vadd.f32 0.0, %v5875
  %v5877 = vpop.f32.mrb[0].mxu0
  %5878 = vdwg.mxu0
  %5879 = vrot.lane.b32.xlu0 %v5626, 96
  %v5880 = vpop.permute.xlu0 %5879
  %v5883 = vsel %vm259, %v5802, 0
  %5885 = vmatprep.subr.mxu0 0.0
  %5886 = vmatpush1.msra.mxu0 %v5880
  %5887 = vmatprep.subr.mxu0 0.0
  %5888 = vmatpush1.msra.mxu0 0.0
  %5889 = vmatprep.subr.mxu0 0.0
  %5890 = vmatpush1.msra.mxu0 0.0
  %5891 = vmatprep.subr.mxu0 0.0
  %5892 = vmatpush1.msra.mxu0 0.0
  %5893 = vmatprep.subr.mxu0 0.0
  %5894 = vmatpush1.msra.mxu0 0.0
  %5895 = vmatprep.subr.mxu0 0.0
  %5896 = vmatpush1.msra.mxu0 0.0
  %5897 = vmatprep.subr.mxu0 0.0
  %5898 = vmatpush1.msra.mxu0 0.0
  %5899 = vmatprep.subr.mxu0 0.0
  %5900 = vmatpush1.msra.mxu0 0.0
  %5901 = vmatprep.subr.mxu0 0.0
  %5902 = vmatpush1.msra.mxu0 0.0
  %5903 = vmatprep.subr.mxu0 0.0
  %5904 = vmatpush1.msra.mxu0 0.0
  %5905 = vmatprep.subr.mxu0 0.0
  %5906 = vmatpush1.msra.mxu0 0.0
  %5907 = vmatprep.subr.mxu0 0.0
  %5908 = vmatpush1.msra.mxu0 0.0
  %5909 = vmatprep.subr.mxu0 0.0
  %5910 = vmatpush1.msra.mxu0 0.0
  %5911 = vmatprep.subr.mxu0 0.0
  %5912 = vmatpush1.msra.mxu0 0.0
  %5913 = vmatprep.subr.mxu0 0.0
  %5914 = vmatpush1.msra.mxu0 0.0
  %5915 = vmatprep.subr.mxu0 0.0
  %5916 = vmatpush1.msra.mxu0 0.0
  %5917 = vmatprep.subr.mxu0 0.0
  %5918 = vmatpush1.msra.mxu0 0.0
  %5919 = vmatprep.subr.mxu0 0.0
  %5920 = vmatpush1.msra.mxu0 0.0
  %5921 = vmatprep.subr.mxu0 0.0
  %5922 = vmatpush1.msra.mxu0 0.0
  %5923 = vmatprep.subr.mxu0 0.0
  %5924 = vmatpush1.msra.mxu0 0.0
  %5925 = vmatprep.subr.mxu0 0.0
  %5926 = vmatpush1.msra.mxu0 0.0
  %5927 = vmatprep.subr.mxu0 0.0
  %5928 = vmatpush1.msra.mxu0 0.0
  %5929 = vmatprep.subr.mxu0 0.0
  %5930 = vmatpush1.msra.mxu0 0.0
  %5931 = vmatprep.subr.mxu0 0.0
  %5932 = vmatpush1.msra.mxu0 0.0
  %5933 = vmatprep.subr.mxu0 0.0
  %5934 = vmatpush1.msra.mxu0 0.0
  %5935 = vmatprep.subr.mxu0 0.0
  %5936 = vmatpush1.msra.mxu0 0.0
  %5937 = vmatprep.subr.mxu0 0.0
  %5938 = vmatpush1.msra.mxu0 0.0
  %5939 = vmatprep.subr.mxu0 0.0
  %5940 = vmatpush1.msra.mxu0 0.0
  %5941 = vmatprep.subr.mxu0 0.0
  %5942 = vmatpush1.msra.mxu0 0.0
  %5943 = vmatprep.subr.mxu0 0.0
  %5944 = vmatpush1.msra.mxu0 0.0
  %5945 = vmatprep.subr.mxu0 0.0
  %5946 = vmatpush1.msra.mxu0 0.0
  %5947 = vmatprep.subr.mxu0 0.0
  %5948 = vmatpush1.msra.mxu0 0.0
  %5949 = vmatprep.mubr.f32.mxu0 0.0
  %5950 = vmatmul.mubr.f32.gmra.mrb[0].mxu0 %v5883
  %v5951 = vpop.f32.mrb[0].mxu0
  %v5952 = vadd.f32 0.0, %v5951
  %v5953 = vpop.f32.mrb[0].mxu0
  %5954 = vdwg.mxu0
  %5955 = vrot.lane.b32.xlu0 %v5529, 120
  %v5956 = vpop.permute.xlu0 %5955
  %5957 = vrot.lane.b32.xlu0 %v5621, 120
  %v5958 = vpop.permute.xlu0 %5957
  %v5959 = vsel %vm259, %v5956, 0
  %v5961 = vsel %vm259, %v5958, 0
  %5963 = vmatprep.subr.mxu0 0.0
  %5964 = vmatpush1.xpose.msra.mxu0 %v5961
  %5965 = vmatprep.subr.mxu0 0.0
  %5966 = vmatpush1.xpose.msra.mxu0 0.0
  %5967 = vmatprep.subr.mxu0 0.0
  %5968 = vmatpush1.xpose.msra.mxu0 0.0
  %5969 = vmatprep.subr.mxu0 0.0
  %5970 = vmatpush1.xpose.msra.mxu0 0.0
  %5971 = vmatprep.subr.mxu0 0.0
  %5972 = vmatpush1.xpose.msra.mxu0 0.0
  %5973 = vmatprep.subr.mxu0 0.0
  %5974 = vmatpush1.xpose.msra.mxu0 0.0
  %5975 = vmatprep.subr.mxu0 0.0
  %5976 = vmatpush1.xpose.msra.mxu0 0.0
  %5977 = vmatprep.subr.mxu0 0.0
  %5978 = vmatpush1.xpose.msra.mxu0 0.0
  %5979 = vmatprep.subr.mxu0 0.0
  %5980 = vmatpush1.xpose.msra.mxu0 0.0
  %5981 = vmatprep.subr.mxu0 0.0
  %5982 = vmatpush1.xpose.msra.mxu0 0.0
  %5983 = vmatprep.subr.mxu0 0.0
  %5984 = vmatpush1.xpose.msra.mxu0 0.0
  %5985 = vmatprep.subr.mxu0 0.0
  %5986 = vmatpush1.xpose.msra.mxu0 0.0
  %5987 = vmatprep.subr.mxu0 0.0
  %5988 = vmatpush1.xpose.msra.mxu0 0.0
  %5989 = vmatprep.subr.mxu0 0.0
  %5990 = vmatpush1.xpose.msra.mxu0 0.0
  %5991 = vmatprep.subr.mxu0 0.0
  %5992 = vmatpush1.xpose.msra.mxu0 0.0
  %5993 = vmatprep.subr.mxu0 0.0
  %5994 = vmatpush1.xpose.msra.mxu0 0.0
  %5995 = vmatprep.subr.mxu0 0.0
  %5996 = vmatpush1.xpose.msra.mxu0 0.0
  %5997 = vmatprep.subr.mxu0 0.0
  %5998 = vmatpush1.xpose.msra.mxu0 0.0
  %5999 = vmatprep.subr.mxu0 0.0
  %6000 = vmatpush1.xpose.msra.mxu0 0.0
  %6001 = vmatprep.subr.mxu0 0.0
  %6002 = vmatpush1.xpose.msra.mxu0 0.0
  %6003 = vmatprep.subr.mxu0 0.0
  %6004 = vmatpush1.xpose.msra.mxu0 0.0
  %6005 = vmatprep.subr.mxu0 0.0
  %6006 = vmatpush1.xpose.msra.mxu0 0.0
  %6007 = vmatprep.subr.mxu0 0.0
  %6008 = vmatpush1.xpose.msra.mxu0 0.0
  %6009 = vmatprep.subr.mxu0 0.0
  %6010 = vmatpush1.xpose.msra.mxu0 0.0
  %6011 = vmatprep.subr.mxu0 0.0
  %6012 = vmatpush1.xpose.msra.mxu0 0.0
  %6013 = vmatprep.subr.mxu0 0.0
  %6014 = vmatpush1.xpose.msra.mxu0 0.0
  %6015 = vmatprep.subr.mxu0 0.0
  %6016 = vmatpush1.xpose.msra.mxu0 0.0
  %6017 = vmatprep.subr.mxu0 0.0
  %6018 = vmatpush1.xpose.msra.mxu0 0.0
  %6019 = vmatprep.subr.mxu0 0.0
  %6020 = vmatpush1.xpose.msra.mxu0 0.0
  %6021 = vmatprep.subr.mxu0 0.0
  %6022 = vmatpush1.xpose.msra.mxu0 0.0
  %6023 = vmatprep.subr.mxu0 0.0
  %6024 = vmatpush1.xpose.msra.mxu0 0.0
  %6025 = vmatprep.subr.mxu0 0.0
  %6026 = vmatpush1.xpose.msra.mxu0 0.0
  %6027 = vmatprep.mubr.f32.mxu0 0.0
  %6028 = vmatmul.mubr.f32.gmra.mrb[0].mxu0 %v5959
  %v6029 = vpop.f32.mrb[0].mxu0
  %v6030 = vadd.f32 0.0, %v6029
  %v6031 = vpop.f32.mrb[0].mxu0
  %6032 = vdwg.mxu0
  %6033 = vrot.lane.b32.xlu0 %v5534, 120
  %v6034 = vpop.permute.xlu0 %6033
  %6035 = vrot.lane.b32.xlu0 %v5626, 120
  %v6036 = vpop.permute.xlu0 %6035
  %v6037 = vsel %vm259, %v6034, 0
  %v6039 = vsel %vm259, %v6036, 0
  %6041 = vmatprep.subr.mxu0 0.0
  %6042 = vmatpush1.xpose.msra.mxu0 %v6039
  %6043 = vmatprep.subr.mxu0 0.0
  %6044 = vmatpush1.xpose.msra.mxu0 0.0
  %6045 = vmatprep.subr.mxu0 0.0
  %6046 = vmatpush1.xpose.msra.mxu0 0.0
  %6047 = vmatprep.subr.mxu0 0.0
  %6048 = vmatpush1.xpose.msra.mxu0 0.0
  %6049 = vmatprep.subr.mxu0 0.0
  %6050 = vmatpush1.xpose.msra.mxu0 0.0
  %6051 = vmatprep.subr.mxu0 0.0
  %6052 = vmatpush1.xpose.msra.mxu0 0.0
  %6053 = vmatprep.subr.mxu0 0.0
  %6054 = vmatpush1.xpose.msra.mxu0 0.0
  %6055 = vmatprep.subr.mxu0 0.0
  %6056 = vmatpush1.xpose.msra.mxu0 0.0
  %6057 = vmatprep.subr.mxu0 0.0
  %6058 = vmatpush1.xpose.msra.mxu0 0.0
  %6059 = vmatprep.subr.mxu0 0.0
  %6060 = vmatpush1.xpose.msra.mxu0 0.0
  %6061 = vmatprep.subr.mxu0 0.0
  %6062 = vmatpush1.xpose.msra.mxu0 0.0
  %6063 = vmatprep.subr.mxu0 0.0
  %6064 = vmatpush1.xpose.msra.mxu0 0.0
  %6065 = vmatprep.subr.mxu0 0.0
  %6066 = vmatpush1.xpose.msra.mxu0 0.0
  %6067 = vmatprep.subr.mxu0 0.0
  %6068 = vmatpush1.xpose.msra.mxu0 0.0
  %6069 = vmatprep.subr.mxu0 0.0
  %6070 = vmatpush1.xpose.msra.mxu0 0.0
  %6071 = vmatprep.subr.mxu0 0.0
  %6072 = vmatpush1.xpose.msra.mxu0 0.0
  %6073 = vmatprep.subr.mxu0 0.0
  %6074 = vmatpush1.xpose.msra.mxu0 0.0
  %6075 = vmatprep.subr.mxu0 0.0
  %6076 = vmatpush1.xpose.msra.mxu0 0.0
  %6077 = vmatprep.subr.mxu0 0.0
  %6078 = vmatpush1.xpose.msra.mxu0 0.0
  %6079 = vmatprep.subr.mxu0 0.0
  %6080 = vmatpush1.xpose.msra.mxu0 0.0
  %6081 = vmatprep.subr.mxu0 0.0
  %6082 = vmatpush1.xpose.msra.mxu0 0.0
  %6083 = vmatprep.subr.mxu0 0.0
  %6084 = vmatpush1.xpose.msra.mxu0 0.0
  %6085 = vmatprep.subr.mxu0 0.0
  %6086 = vmatpush1.xpose.msra.mxu0 0.0
  %6087 = vmatprep.subr.mxu0 0.0
  %6088 = vmatpush1.xpose.msra.mxu0 0.0
  %6089 = vmatprep.subr.mxu0 0.0
  %6090 = vmatpush1.xpose.msra.mxu0 0.0
  %6091 = vmatprep.subr.mxu0 0.0
  %6092 = vmatpush1.xpose.msra.mxu0 0.0
  %6093 = vmatprep.subr.mxu0 0.0
  %6094 = vmatpush1.xpose.msra.mxu0 0.0
  %6095 = vmatprep.subr.mxu0 0.0
  %6096 = vmatpush1.xpose.msra.mxu0 0.0
  %6097 = vmatprep.subr.mxu0 0.0
  %6098 = vmatpush1.xpose.msra.mxu0 0.0
  %6099 = vmatprep.subr.mxu0 0.0
  %6100 = vmatpush1.xpose.msra.mxu0 0.0
  %6101 = vmatprep.subr.mxu0 0.0
  %6102 = vmatpush1.xpose.msra.mxu0 0.0
  %6103 = vmatprep.subr.mxu0 0.0
  %6104 = vmatpush1.xpose.msra.mxu0 0.0
  %6105 = vmatprep.mubr.f32.mxu0 0.0
  %6106 = vmatmul.mubr.f32.gmra.mrb[0].mxu0 %v6037
  %v6107 = vpop.f32.mrb[0].mxu0
  %v6108 = vadd.f32 0.0, %v6107
  %v6109 = vpop.f32.mrb[0].mxu0
  %6110 = vdwg.mxu0
  %v6111 = vsel %vm259, %v6030, -inf
  %6112 = vmax.xlane.f32.xlu0 %v6111
  %v6113 = vpop.xlane.xlu0 %6112
  %v6114 = vsel %vm259, %v6108, -inf
  %6115 = vmax.xlane.f32.xlu0 %v6114
  %v6116 = vpop.xlane.xlu0 %6115
  %v6117 = vsub.f32 %v6030, %v6113
  %v6118 = vsub.f32 %v6108, %v6116
  %v6119 = vmul.f32 %v6117, 1.442695
  %v6120 = vpow.pop %v6119
  %v6121 = vmul.f32 %v6118, 1.442695
  %v6122 = vpow.pop %v6121
  %v6123 = vsel %vm259, %v6120, 0.0
  %6124 = vadd.xlane.f32.xlu0 %v6123
  %v6125 = vpop.xlane.xlu0 %6124
  %v6126 = vsel %vm259, %v6122, 0.0
  %6127 = vadd.xlane.f32.xlu0 %v6126
  %v6128 = vpop.xlane.xlu0 %6127
  %v6129 = vrcp.pop %v6125
  %v6130 = vmul.f32 %v6120, %v6129
  %v6131 = vrcp.pop %v6128
  %v6132 = vmul.f32 %v6122, %v6131
  %6133 = vrot.lane.b32.xlu0 %v5621, 88
  %v6134 = vpop.permute.xlu0 %6133
  %v6137 = vsel %vm259, %v6130, 0
  %6139 = vmatprep.subr.mxu0 0.0
  %6140 = vmatpush1.msra.mxu0 %v6134
  %6141 = vmatprep.subr.mxu0 0.0
  %6142 = vmatpush1.msra.mxu0 0.0
  %6143 = vmatprep.subr.mxu0 0.0
  %6144 = vmatpush1.msra.mxu0 0.0
  %6145 = vmatprep.subr.mxu0 0.0
  %6146 = vmatpush1.msra.mxu0 0.0
  %6147 = vmatprep.subr.mxu0 0.0
  %6148 = vmatpush1.msra.mxu0 0.0
  %6149 = vmatprep.subr.mxu0 0.0
  %6150 = vmatpush1.msra.mxu0 0.0
  %6151 = vmatprep.subr.mxu0 0.0
  %6152 = vmatpush1.msra.mxu0 0.0
  %6153 = vmatprep.subr.mxu0 0.0
  %6154 = vmatpush1.msra.mxu0 0.0
  %6155 = vmatprep.subr.mxu0 0.0
  %6156 = vmatpush1.msra.mxu0 0.0
  %6157 = vmatprep.subr.mxu0 0.0
  %6158 = vmatpush1.msra.mxu0 0.0
  %6159 = vmatprep.subr.mxu0 0.0
  %6160 = vmatpush1.msra.mxu0 0.0
  %6161 = vmatprep.subr.mxu0 0.0
  %6162 = vmatpush1.msra.mxu0 0.0
  %6163 = vmatprep.subr.mxu0 0.0
  %6164 = vmatpush1.msra.mxu0 0.0
  %6165 = vmatprep.subr.mxu0 0.0
  %6166 = vmatpush1.msra.mxu0 0.0
  %6167 = vmatprep.subr.mxu0 0.0
  %6168 = vmatpush1.msra.mxu0 0.0
  %6169 = vmatprep.subr.mxu0 0.0
  %6170 = vmatpush1.msra.mxu0 0.0
  %6171 = vmatprep.subr.mxu0 0.0
  %6172 = vmatpush1.msra.mxu0 0.0
  %6173 = vmatprep.subr.mxu0 0.0
  %6174 = vmatpush1.msra.mxu0 0.0
  %6175 = vmatprep.subr.mxu0 0.0
  %6176 = vmatpush1.msra.mxu0 0.0
  %6177 = vmatprep.subr.mxu0 0.0
  %6178 = vmatpush1.msra.mxu0 0.0
  %6179 = vmatprep.subr.mxu0 0.0
  %6180 = vmatpush1.msra.mxu0 0.0
  %6181 = vmatprep.subr.mxu0 0.0
  %6182 = vmatpush1.msra.mxu0 0.0
  %6183 = vmatprep.subr.mxu0 0.0
  %6184 = vmatpush1.msra.mxu0 0.0
  %6185 = vmatprep.subr.mxu0 0.0
  %6186 = vmatpush1.msra.mxu0 0.0
  %6187 = vmatprep.subr.mxu0 0.0
  %6188 = vmatpush1.msra.mxu0 0.0
  %6189 = vmatprep.subr.mxu0 0.0
  %6190 = vmatpush1.msra.mxu0 0.0
  %6191 = vmatprep.subr.mxu0 0.0
  %6192 = vmatpush1.msra.mxu0 0.0
  %6193 = vmatprep.subr.mxu0 0.0
  %6194 = vmatpush1.msra.mxu0 0.0
  %6195 = vmatprep.subr.mxu0 0.0
  %6196 = vmatpush1.msra.mxu0 0.0
  %6197 = vmatprep.subr.mxu0 0.0
  %6198 = vmatpush1.msra.mxu0 0.0
  %6199 = vmatprep.subr.mxu0 0.0
  %6200 = vmatpush1.msra.mxu0 0.0
  %6201 = vmatprep.subr.mxu0 0.0
  %6202 = vmatpush1.msra.mxu0 0.0
  %6203 = vmatprep.mubr.f32.mxu0 0.0
  %6204 = vmatmul.mubr.f32.gmra.mrb[0].mxu0 %v6137
  %v6205 = vpop.f32.mrb[0].mxu0
  %v6206 = vadd.f32 0.0, %v6205
  %v6207 = vpop.f32.mrb[0].mxu0
  %6208 = vdwg.mxu0
  %6209 = vrot.lane.b32.xlu0 %v5626, 88
  %v6210 = vpop.permute.xlu0 %6209
  %v6213 = vsel %vm259, %v6132, 0
  %6215 = vmatprep.subr.mxu0 0.0
  %6216 = vmatpush1.msra.mxu0 %v6210
  %6217 = vmatprep.subr.mxu0 0.0
  %6218 = vmatpush1.msra.mxu0 0.0
  %6219 = vmatprep.subr.mxu0 0.0
  %6220 = vmatpush1.msra.mxu0 0.0
  %6221 = vmatprep.subr.mxu0 0.0
  %6222 = vmatpush1.msra.mxu0 0.0
  %6223 = vmatprep.subr.mxu0 0.0
  %6224 = vmatpush1.msra.mxu0 0.0
  %6225 = vmatprep.subr.mxu0 0.0
  %6226 = vmatpush1.msra.mxu0 0.0
  %6227 = vmatprep.subr.mxu0 0.0
  %6228 = vmatpush1.msra.mxu0 0.0
  %6229 = vmatprep.subr.mxu0 0.0
  %6230 = vmatpush1.msra.mxu0 0.0
  %6231 = vmatprep.subr.mxu0 0.0
  %6232 = vmatpush1.msra.mxu0 0.0
  %6233 = vmatprep.subr.mxu0 0.0
  %6234 = vmatpush1.msra.mxu0 0.0
  %6235 = vmatprep.subr.mxu0 0.0
  %6236 = vmatpush1.msra.mxu0 0.0
  %6237 = vmatprep.subr.mxu0 0.0
  %6238 = vmatpush1.msra.mxu0 0.0
  %6239 = vmatprep.subr.mxu0 0.0
  %6240 = vmatpush1.msra.mxu0 0.0
  %6241 = vmatprep.subr.mxu0 0.0
  %6242 = vmatpush1.msra.mxu0 0.0
  %6243 = vmatprep.subr.mxu0 0.0
  %6244 = vmatpush1.msra.mxu0 0.0
  %6245 = vmatprep.subr.mxu0 0.0
  %6246 = vmatpush1.msra.mxu0 0.0
  %6247 = vmatprep.subr.mxu0 0.0
  %6248 = vmatpush1.msra.mxu0 0.0
  %6249 = vmatprep.subr.mxu0 0.0
  %6250 = vmatpush1.msra.mxu0 0.0
  %6251 = vmatprep.subr.mxu0 0.0
  %6252 = vmatpush1.msra.mxu0 0.0
  %6253 = vmatprep.subr.mxu0 0.0
  %6254 = vmatpush1.msra.mxu0 0.0
  %6255 = vmatprep.subr.mxu0 0.0
  %6256 = vmatpush1.msra.mxu0 0.0
  %6257 = vmatprep.subr.mxu0 0.0
  %6258 = vmatpush1.msra.mxu0 0.0
  %6259 = vmatprep.subr.mxu0 0.0
  %6260 = vmatpush1.msra.mxu0 0.0
  %6261 = vmatprep.subr.mxu0 0.0
  %6262 = vmatpush1.msra.mxu0 0.0
  %6263 = vmatprep.subr.mxu0 0.0
  %6264 = vmatpush1.msra.mxu0 0.0
  %6265 = vmatprep.subr.mxu0 0.0
  %6266 = vmatpush1.msra.mxu0 0.0
  %6267 = vmatprep.subr.mxu0 0.0
  %6268 = vmatpush1.msra.mxu0 0.0
  %6269 = vmatprep.subr.mxu0 0.0
  %6270 = vmatpush1.msra.mxu0 0.0
  %6271 = vmatprep.subr.mxu0 0.0
  %6272 = vmatpush1.msra.mxu0 0.0
  %6273 = vmatprep.subr.mxu0 0.0
  %6274 = vmatpush1.msra.mxu0 0.0
  %6275 = vmatprep.subr.mxu0 0.0
  %6276 = vmatpush1.msra.mxu0 0.0
  %6277 = vmatprep.subr.mxu0 0.0
  %6278 = vmatpush1.msra.mxu0 0.0
  %6279 = vmatprep.mubr.f32.mxu0 0.0
  %6280 = vmatmul.mubr.f32.gmra.mrb[0].mxu0 %v6213
  %v6281 = vpop.f32.mrb[0].mxu0
  %v6282 = vadd.f32 0.0, %v6281
  %v6283 = vpop.f32.mrb[0].mxu0
  %6284 = vdwg.mxu0
  %6285 = vrot.lane.b32.xlu0 %v5529, 112
  %v6286 = vpop.permute.xlu0 %6285
  %6287 = vrot.lane.b32.xlu0 %v5621, 112
  %v6288 = vpop.permute.xlu0 %6287
  %v6289 = vsel %vm259, %v6286, 0
  %v6291 = vsel %vm259, %v6288, 0
  %6293 = vmatprep.subr.mxu0 0.0
  %6294 = vmatpush1.xpose.msra.mxu0 %v6291
  %6295 = vmatprep.subr.mxu0 0.0
  %6296 = vmatpush1.xpose.msra.mxu0 0.0
  %6297 = vmatprep.subr.mxu0 0.0
  %6298 = vmatpush1.xpose.msra.mxu0 0.0
  %6299 = vmatprep.subr.mxu0 0.0
  %6300 = vmatpush1.xpose.msra.mxu0 0.0
  %6301 = vmatprep.subr.mxu0 0.0
  %6302 = vmatpush1.xpose.msra.mxu0 0.0
  %6303 = vmatprep.subr.mxu0 0.0
  %6304 = vmatpush1.xpose.msra.mxu0 0.0
  %6305 = vmatprep.subr.mxu0 0.0
  %6306 = vmatpush1.xpose.msra.mxu0 0.0
  %6307 = vmatprep.subr.mxu0 0.0
  %6308 = vmatpush1.xpose.msra.mxu0 0.0
  %6309 = vmatprep.subr.mxu0 0.0
  %6310 = vmatpush1.xpose.msra.mxu0 0.0
  %6311 = vmatprep.subr.mxu0 0.0
  %6312 = vmatpush1.xpose.msra.mxu0 0.0
  %6313 = vmatprep.subr.mxu0 0.0
  %6314 = vmatpush1.xpose.msra.mxu0 0.0
  %6315 = vmatprep.subr.mxu0 0.0
  %6316 = vmatpush1.xpose.msra.mxu0 0.0
  %6317 = vmatprep.subr.mxu0 0.0
  %6318 = vmatpush1.xpose.msra.mxu0 0.0
  %6319 = vmatprep.subr.mxu0 0.0
  %6320 = vmatpush1.xpose.msra.mxu0 0.0
  %6321 = vmatprep.subr.mxu0 0.0
  %6322 = vmatpush1.xpose.msra.mxu0 0.0
  %6323 = vmatprep.subr.mxu0 0.0
  %6324 = vmatpush1.xpose.msra.mxu0 0.0
  %6325 = vmatprep.subr.mxu0 0.0
  %6326 = vmatpush1.xpose.msra.mxu0 0.0
  %6327 = vmatprep.subr.mxu0 0.0
  %6328 = vmatpush1.xpose.msra.mxu0 0.0
  %6329 = vmatprep.subr.mxu0 0.0
  %6330 = vmatpush1.xpose.msra.mxu0 0.0
  %6331 = vmatprep.subr.mxu0 0.0
  %6332 = vmatpush1.xpose.msra.mxu0 0.0
  %6333 = vmatprep.subr.mxu0 0.0
  %6334 = vmatpush1.xpose.msra.mxu0 0.0
  %6335 = vmatprep.subr.mxu0 0.0
  %6336 = vmatpush1.xpose.msra.mxu0 0.0
  %6337 = vmatprep.subr.mxu0 0.0
  %6338 = vmatpush1.xpose.msra.mxu0 0.0
  %6339 = vmatprep.subr.mxu0 0.0
  %6340 = vmatpush1.xpose.msra.mxu0 0.0
  %6341 = vmatprep.subr.mxu0 0.0
  %6342 = vmatpush1.xpose.msra.mxu0 0.0
  %6343 = vmatprep.subr.mxu0 0.0
  %6344 = vmatpush1.xpose.msra.mxu0 0.0
  %6345 = vmatprep.subr.mxu0 0.0
  %6346 = vmatpush1.xpose.msra.mxu0 0.0
  %6347 = vmatprep.subr.mxu0 0.0
  %6348 = vmatpush1.xpose.msra.mxu0 0.0
  %6349 = vmatprep.subr.mxu0 0.0
  %6350 = vmatpush1.xpose.msra.mxu0 0.0
  %6351 = vmatprep.subr.mxu0 0.0
  %6352 = vmatpush1.xpose.msra.mxu0 0.0
  %6353 = vmatprep.subr.mxu0 0.0
  %6354 = vmatpush1.xpose.msra.mxu0 0.0
  %6355 = vmatprep.subr.mxu0 0.0
  %6356 = vmatpush1.xpose.msra.mxu0 0.0
  %6357 = vmatprep.mubr.f32.mxu0 0.0
  %6358 = vmatmul.mubr.f32.gmra.mrb[0].mxu0 %v6289
  %v6359 = vpop.f32.mrb[0].mxu0
  %v6360 = vadd.f32 0.0, %v6359
  %v6361 = vpop.f32.mrb[0].mxu0
  %6362 = vdwg.mxu0
  %6363 = vrot.lane.b32.xlu0 %v5534, 112
  %v6364 = vpop.permute.xlu0 %6363
  %6365 = vrot.lane.b32.xlu0 %v5626, 112
  %v6366 = vpop.permute.xlu0 %6365
  %v6367 = vsel %vm259, %v6364, 0
  %v6369 = vsel %vm259, %v6366, 0
  %6371 = vmatprep.subr.mxu0 0.0
  %6372 = vmatpush1.xpose.msra.mxu0 %v6369
  %6373 = vmatprep.subr.mxu0 0.0
  %6374 = vmatpush1.xpose.msra.mxu0 0.0
  %6375 = vmatprep.subr.mxu0 0.0
  %6376 = vmatpush1.xpose.msra.mxu0 0.0
  %6377 = vmatprep.subr.mxu0 0.0
  %6378 = vmatpush1.xpose.msra.mxu0 0.0
  %6379 = vmatprep.subr.mxu0 0.0
  %6380 = vmatpush1.xpose.msra.mxu0 0.0
  %6381 = vmatprep.subr.mxu0 0.0
  %6382 = vmatpush1.xpose.msra.mxu0 0.0
  %6383 = vmatprep.subr.mxu0 0.0
  %6384 = vmatpush1.xpose.msra.mxu0 0.0
  %6385 = vmatprep.subr.mxu0 0.0
  %6386 = vmatpush1.xpose.msra.mxu0 0.0
  %6387 = vmatprep.subr.mxu0 0.0
  %6388 = vmatpush1.xpose.msra.mxu0 0.0
  %6389 = vmatprep.subr.mxu0 0.0
  %6390 = vmatpush1.xpose.msra.mxu0 0.0
  %6391 = vmatprep.subr.mxu0 0.0
  %6392 = vmatpush1.xpose.msra.mxu0 0.0
  %6393 = vmatprep.subr.mxu0 0.0
  %6394 = vmatpush1.xpose.msra.mxu0 0.0
  %6395 = vmatprep.subr.mxu0 0.0
  %6396 = vmatpush1.xpose.msra.mxu0 0.0
  %6397 = vmatprep.subr.mxu0 0.0
  %6398 = vmatpush1.xpose.msra.mxu0 0.0
  %6399 = vmatprep.subr.mxu0 0.0
  %6400 = vmatpush1.xpose.msra.mxu0 0.0
  %6401 = vmatprep.subr.mxu0 0.0
  %6402 = vmatpush1.xpose.msra.mxu0 0.0
  %6403 = vmatprep.subr.mxu0 0.0
  %6404 = vmatpush1.xpose.msra.mxu0 0.0
  %6405 = vmatprep.subr.mxu0 0.0
  %6406 = vmatpush1.xpose.msra.mxu0 0.0
  %6407 = vmatprep.subr.mxu0 0.0
  %6408 = vmatpush1.xpose.msra.mxu0 0.0
  %6409 = vmatprep.subr.mxu0 0.0
  %6410 = vmatpush1.xpose.msra.mxu0 0.0
  %6411 = vmatprep.subr.mxu0 0.0
  %6412 = vmatpush1.xpose.msra.mxu0 0.0
  %6413 = vmatprep.subr.mxu0 0.0
  %6414 = vmatpush1.xpose.msra.mxu0 0.0
  %6415 = vmatprep.subr.mxu0 0.0
  %6416 = vmatpush1.xpose.msra.mxu0 0.0
  %6417 = vmatprep.subr.mxu0 0.0
  %6418 = vmatpush1.xpose.msra.mxu0 0.0
  %6419 = vmatprep.subr.mxu0 0.0
  %6420 = vmatpush1.xpose.msra.mxu0 0.0
  %6421 = vmatprep.subr.mxu0 0.0
  %6422 = vmatpush1.xpose.msra.mxu0 0.0
  %6423 = vmatprep.subr.mxu0 0.0
  %6424 = vmatpush1.xpose.msra.mxu0 0.0
  %6425 = vmatprep.subr.mxu0 0.0
  %6426 = vmatpush1.xpose.msra.mxu0 0.0
  %6427 = vmatprep.subr.mxu0 0.0
  %6428 = vmatpush1.xpose.msra.mxu0 0.0
  %6429 = vmatprep.subr.mxu0 0.0
  %6430 = vmatpush1.xpose.msra.mxu0 0.0
  %6431 = vmatprep.subr.mxu0 0.0
  %6432 = vmatpush1.xpose.msra.mxu0 0.0
  %6433 = vmatprep.subr.mxu0 0.0
  %6434 = vmatpush1.xpose.msra.mxu0 0.0
  %6435 = vmatprep.mubr.f32.mxu0 0.0
  %6436 = vmatmul.mubr.f32.gmra.mrb[0].mxu0 %v6367
  %v6437 = vpop.f32.mrb[0].mxu0
  %v6438 = vadd.f32 0.0, %v6437
  %v6439 = vpop.f32.mrb[0].mxu0
  %6440 = vdwg.mxu0
  %v6441 = vsel %vm259, %v6360, -inf
  %6442 = vmax.xlane.f32.xlu0 %v6441
  %v6443 = vpop.xlane.xlu0 %6442
  %v6444 = vsel %vm259, %v6438, -inf
  %6445 = vmax.xlane.f32.xlu0 %v6444
  %v6446 = vpop.xlane.xlu0 %6445
  %v6447 = vsub.f32 %v6360, %v6443
  %v6448 = vsub.f32 %v6438, %v6446
  %v6449 = vmul.f32 %v6447, 1.442695
  %v6450 = vpow.pop %v6449
  %v6451 = vmul.f32 %v6448, 1.442695
  %v6452 = vpow.pop %v6451
  %v6453 = vsel %vm259, %v6450, 0.0
  %6454 = vadd.xlane.f32.xlu0 %v6453
  %v6455 = vpop.xlane.xlu0 %6454
  %v6456 = vsel %vm259, %v6452, 0.0
  %6457 = vadd.xlane.f32.xlu0 %v6456
  %v6458 = vpop.xlane.xlu0 %6457
  %v6459 = vrcp.pop %v6455
  %v6460 = vmul.f32 %v6450, %v6459
  %v6461 = vrcp.pop %v6458
  %v6462 = vmul.f32 %v6452, %v6461
  %6463 = vrot.lane.b32.xlu0 %v5621, 80
  %v6464 = vpop.permute.xlu0 %6463
  %v6467 = vsel %vm259, %v6460, 0
  %6469 = vmatprep.subr.mxu0 0.0
  %6470 = vmatpush1.msra.mxu0 %v6464
  %6471 = vmatprep.subr.mxu0 0.0
  %6472 = vmatpush1.msra.mxu0 0.0
  %6473 = vmatprep.subr.mxu0 0.0
  %6474 = vmatpush1.msra.mxu0 0.0
  %6475 = vmatprep.subr.mxu0 0.0
  %6476 = vmatpush1.msra.mxu0 0.0
  %6477 = vmatprep.subr.mxu0 0.0
  %6478 = vmatpush1.msra.mxu0 0.0
  %6479 = vmatprep.subr.mxu0 0.0
  %6480 = vmatpush1.msra.mxu0 0.0
  %6481 = vmatprep.subr.mxu0 0.0
  %6482 = vmatpush1.msra.mxu0 0.0
  %6483 = vmatprep.subr.mxu0 0.0
  %6484 = vmatpush1.msra.mxu0 0.0
  %6485 = vmatprep.subr.mxu0 0.0
  %6486 = vmatpush1.msra.mxu0 0.0
  %6487 = vmatprep.subr.mxu0 0.0
  %6488 = vmatpush1.msra.mxu0 0.0
  %6489 = vmatprep.subr.mxu0 0.0
  %6490 = vmatpush1.msra.mxu0 0.0
  %6491 = vmatprep.subr.mxu0 0.0
  %6492 = vmatpush1.msra.mxu0 0.0
  %6493 = vmatprep.subr.mxu0 0.0
  %6494 = vmatpush1.msra.mxu0 0.0
  %6495 = vmatprep.subr.mxu0 0.0
  %6496 = vmatpush1.msra.mxu0 0.0
  %6497 = vmatprep.subr.mxu0 0.0
  %6498 = vmatpush1.msra.mxu0 0.0
  %6499 = vmatprep.subr.mxu0 0.0
  %6500 = vmatpush1.msra.mxu0 0.0
  %6501 = vmatprep.subr.mxu0 0.0
  %6502 = vmatpush1.msra.mxu0 0.0
  %6503 = vmatprep.subr.mxu0 0.0
  %6504 = vmatpush1.msra.mxu0 0.0
  %6505 = vmatprep.subr.mxu0 0.0
  %6506 = vmatpush1.msra.mxu0 0.0
  %6507 = vmatprep.subr.mxu0 0.0
  %6508 = vmatpush1.msra.mxu0 0.0
  %6509 = vmatprep.subr.mxu0 0.0
  %6510 = vmatpush1.msra.mxu0 0.0
  %6511 = vmatprep.subr.mxu0 0.0
  %6512 = vmatpush1.msra.mxu0 0.0
  %6513 = vmatprep.subr.mxu0 0.0
  %6514 = vmatpush1.msra.mxu0 0.0
  %6515 = vmatprep.subr.mxu0 0.0
  %6516 = vmatpush1.msra.mxu0 0.0
  %6517 = vmatprep.subr.mxu0 0.0
  %6518 = vmatpush1.msra.mxu0 0.0
  %6519 = vmatprep.subr.mxu0 0.0
  %6520 = vmatpush1.msra.mxu0 0.0
  %6521 = vmatprep.subr.mxu0 0.0
  %6522 = vmatpush1.msra.mxu0 0.0
  %6523 = vmatprep.subr.mxu0 0.0
  %6524 = vmatpush1.msra.mxu0 0.0
  %6525 = vmatprep.subr.mxu0 0.0
  %6526 = vmatpush1.msra.mxu0 0.0
  %6527 = vmatprep.subr.mxu0 0.0
  %6528 = vmatpush1.msra.mxu0 0.0
  %6529 = vmatprep.subr.mxu0 0.0
  %6530 = vmatpush1.msra.mxu0 0.0
  %6531 = vmatprep.subr.mxu0 0.0
  %6532 = vmatpush1.msra.mxu0 0.0
  %6533 = vmatprep.mubr.f32.mxu0 0.0
  %6534 = vmatmul.mubr.f32.gmra.mrb[0].mxu0 %v6467
  %v6535 = vpop.f32.mrb[0].mxu0
  %v6536 = vadd.f32 0.0, %v6535
  %v6537 = vpop.f32.mrb[0].mxu0
  %6538 = vdwg.mxu0
  %6539 = vrot.lane.b32.xlu0 %v5626, 80
  %v6540 = vpop.permute.xlu0 %6539
  %v6543 = vsel %vm259, %v6462, 0
  %6545 = vmatprep.subr.mxu0 0.0
  %6546 = vmatpush1.msra.mxu0 %v6540
  %6547 = vmatprep.subr.mxu0 0.0
  %6548 = vmatpush1.msra.mxu0 0.0
  %6549 = vmatprep.subr.mxu0 0.0
  %6550 = vmatpush1.msra.mxu0 0.0
  %6551 = vmatprep.subr.mxu0 0.0
  %6552 = vmatpush1.msra.mxu0 0.0
  %6553 = vmatprep.subr.mxu0 0.0
  %6554 = vmatpush1.msra.mxu0 0.0
  %6555 = vmatprep.subr.mxu0 0.0
  %6556 = vmatpush1.msra.mxu0 0.0
  %6557 = vmatprep.subr.mxu0 0.0
  %6558 = vmatpush1.msra.mxu0 0.0
  %6559 = vmatprep.subr.mxu0 0.0
  %6560 = vmatpush1.msra.mxu0 0.0
  %6561 = vmatprep.subr.mxu0 0.0
  %6562 = vmatpush1.msra.mxu0 0.0
  %6563 = vmatprep.subr.mxu0 0.0
  %6564 = vmatpush1.msra.mxu0 0.0
  %6565 = vmatprep.subr.mxu0 0.0
  %6566 = vmatpush1.msra.mxu0 0.0
  %6567 = vmatprep.subr.mxu0 0.0
  %6568 = vmatpush1.msra.mxu0 0.0
  %6569 = vmatprep.subr.mxu0 0.0
  %6570 = vmatpush1.msra.mxu0 0.0
  %6571 = vmatprep.subr.mxu0 0.0
  %6572 = vmatpush1.msra.mxu0 0.0
  %6573 = vmatprep.subr.mxu0 0.0
  %6574 = vmatpush1.msra.mxu0 0.0
  %6575 = vmatprep.subr.mxu0 0.0
  %6576 = vmatpush1.msra.mxu0 0.0
  %6577 = vmatprep.subr.mxu0 0.0
  %6578 = vmatpush1.msra.mxu0 0.0
  %6579 = vmatprep.subr.mxu0 0.0
  %6580 = vmatpush1.msra.mxu0 0.0
  %6581 = vmatprep.subr.mxu0 0.0
  %6582 = vmatpush1.msra.mxu0 0.0
  %6583 = vmatprep.subr.mxu0 0.0
  %6584 = vmatpush1.msra.mxu0 0.0
  %6585 = vmatprep.subr.mxu0 0.0
  %6586 = vmatpush1.msra.mxu0 0.0
  %6587 = vmatprep.subr.mxu0 0.0
  %6588 = vmatpush1.msra.mxu0 0.0
  %6589 = vmatprep.subr.mxu0 0.0
  %6590 = vmatpush1.msra.mxu0 0.0
  %6591 = vmatprep.subr.mxu0 0.0
  %6592 = vmatpush1.msra.mxu0 0.0
  %6593 = vmatprep.subr.mxu0 0.0
  %6594 = vmatpush1.msra.mxu0 0.0
  %6595 = vmatprep.subr.mxu0 0.0
  %6596 = vmatpush1.msra.mxu0 0.0
  %6597 = vmatprep.subr.mxu0 0.0
  %6598 = vmatpush1.msra.mxu0 0.0
  %6599 = vmatprep.subr.mxu0 0.0
  %6600 = vmatpush1.msra.mxu0 0.0
  %6601 = vmatprep.subr.mxu0 0.0
  %6602 = vmatpush1.msra.mxu0 0.0
  %6603 = vmatprep.subr.mxu0 0.0
  %6604 = vmatpush1.msra.mxu0 0.0
  %6605 = vmatprep.subr.mxu0 0.0
  %6606 = vmatpush1.msra.mxu0 0.0
  %6607 = vmatprep.subr.mxu0 0.0
  %6608 = vmatpush1.msra.mxu0 0.0
  %6609 = vmatprep.mubr.f32.mxu0 0.0
  %6610 = vmatmul.mubr.f32.gmra.mrb[0].mxu0 %v6543
  %v6611 = vpop.f32.mrb[0].mxu0
  %v6612 = vadd.f32 0.0, %v6611
  %v6613 = vpop.f32.mrb[0].mxu0
  %6614 = vdwg.mxu0
  %6615 = vrot.lane.b32.xlu0 %v5529, 104
  %v6616 = vpop.permute.xlu0 %6615
  %6617 = vrot.lane.b32.xlu0 %v5621, 104
  %v6618 = vpop.permute.xlu0 %6617
  %v6619 = vsel %vm259, %v6616, 0
  %v6621 = vsel %vm259, %v6618, 0
  %6623 = vmatprep.subr.mxu0 0.0
  %6624 = vmatpush1.xpose.msra.mxu0 %v6621
  %6625 = vmatprep.subr.mxu0 0.0
  %6626 = vmatpush1.xpose.msra.mxu0 0.0
  %6627 = vmatprep.subr.mxu0 0.0
  %6628 = vmatpush1.xpose.msra.mxu0 0.0
  %6629 = vmatprep.subr.mxu0 0.0
  %6630 = vmatpush1.xpose.msra.mxu0 0.0
  %6631 = vmatprep.subr.mxu0 0.0
  %6632 = vmatpush1.xpose.msra.mxu0 0.0
  %6633 = vmatprep.subr.mxu0 0.0
  %6634 = vmatpush1.xpose.msra.mxu0 0.0
  %6635 = vmatprep.subr.mxu0 0.0
  %6636 = vmatpush1.xpose.msra.mxu0 0.0
  %6637 = vmatprep.subr.mxu0 0.0
  %6638 = vmatpush1.xpose.msra.mxu0 0.0
  %6639 = vmatprep.subr.mxu0 0.0
  %6640 = vmatpush1.xpose.msra.mxu0 0.0
  %6641 = vmatprep.subr.mxu0 0.0
  %6642 = vmatpush1.xpose.msra.mxu0 0.0
  %6643 = vmatprep.subr.mxu0 0.0
  %6644 = vmatpush1.xpose.msra.mxu0 0.0
  %6645 = vmatprep.subr.mxu0 0.0
  %6646 = vmatpush1.xpose.msra.mxu0 0.0
  %6647 = vmatprep.subr.mxu0 0.0
  %6648 = vmatpush1.xpose.msra.mxu0 0.0
  %6649 = vmatprep.subr.mxu0 0.0
  %6650 = vmatpush1.xpose.msra.mxu0 0.0
  %6651 = vmatprep.subr.mxu0 0.0
  %6652 = vmatpush1.xpose.msra.mxu0 0.0
  %6653 = vmatprep.subr.mxu0 0.0
  %6654 = vmatpush1.xpose.msra.mxu0 0.0
  %6655 = vmatprep.subr.mxu0 0.0
  %6656 = vmatpush1.xpose.msra.mxu0 0.0
  %6657 = vmatprep.subr.mxu0 0.0
  %6658 = vmatpush1.xpose.msra.mxu0 0.0
  %6659 = vmatprep.subr.mxu0 0.0
  %6660 = vmatpush1.xpose.msra.mxu0 0.0
  %6661 = vmatprep.subr.mxu0 0.0
  %6662 = vmatpush1.xpose.msra.mxu0 0.0
  %6663 = vmatprep.subr.mxu0 0.0
  %6664 = vmatpush1.xpose.msra.mxu0 0.0
  %6665 = vmatprep.subr.mxu0 0.0
  %6666 = vmatpush1.xpose.msra.mxu0 0.0
  %6667 = vmatprep.subr.mxu0 0.0
  %6668 = vmatpush1.xpose.msra.mxu0 0.0
  %6669 = vmatprep.subr.mxu0 0.0
  %6670 = vmatpush1.xpose.msra.mxu0 0.0
  %6671 = vmatprep.subr.mxu0 0.0
  %6672 = vmatpush1.xpose.msra.mxu0 0.0
  %6673 = vmatprep.subr.mxu0 0.0
  %6674 = vmatpush1.xpose.msra.mxu0 0.0
  %6675 = vmatprep.subr.mxu0 0.0
  %6676 = vmatpush1.xpose.msra.mxu0 0.0
  %6677 = vmatprep.subr.mxu0 0.0
  %6678 = vmatpush1.xpose.msra.mxu0 0.0
  %6679 = vmatprep.subr.mxu0 0.0
  %6680 = vmatpush1.xpose.msra.mxu0 0.0
  %6681 = vmatprep.subr.mxu0 0.0
  %6682 = vmatpush1.xpose.msra.mxu0 0.0
  %6683 = vmatprep.subr.mxu0 0.0
  %6684 = vmatpush1.xpose.msra.mxu0 0.0
  %6685 = vmatprep.subr.mxu0 0.0
  %6686 = vmatpush1.xpose.msra.mxu0 0.0
  %6687 = vmatprep.mubr.f32.mxu0 0.0
  %6688 = vmatmul.mubr.f32.gmra.mrb[0].mxu0 %v6619
  %v6689 = vpop.f32.mrb[0].mxu0
  %v6690 = vadd.f32 0.0, %v6689
  %v6691 = vpop.f32.mrb[0].mxu0
  %6692 = vdwg.mxu0
  %6693 = vrot.lane.b32.xlu0 %v5534, 104
  %v6694 = vpop.permute.xlu0 %6693
  %6695 = vrot.lane.b32.xlu0 %v5626, 104
  %v6696 = vpop.permute.xlu0 %6695
  %v6697 = vsel %vm259, %v6694, 0
  %v6699 = vsel %vm259, %v6696, 0
  %6701 = vmatprep.subr.mxu0 0.0
  %6702 = vmatpush1.xpose.msra.mxu0 %v6699
  %6703 = vmatprep.subr.mxu0 0.0
  %6704 = vmatpush1.xpose.msra.mxu0 0.0
  %6705 = vmatprep.subr.mxu0 0.0
  %6706 = vmatpush1.xpose.msra.mxu0 0.0
  %6707 = vmatprep.subr.mxu0 0.0
  %6708 = vmatpush1.xpose.msra.mxu0 0.0
  %6709 = vmatprep.subr.mxu0 0.0
  %6710 = vmatpush1.xpose.msra.mxu0 0.0
  %6711 = vmatprep.subr.mxu0 0.0
  %6712 = vmatpush1.xpose.msra.mxu0 0.0
  %6713 = vmatprep.subr.mxu0 0.0
  %6714 = vmatpush1.xpose.msra.mxu0 0.0
  %6715 = vmatprep.subr.mxu0 0.0
  %6716 = vmatpush1.xpose.msra.mxu0 0.0
  %6717 = vmatprep.subr.mxu0 0.0
  %6718 = vmatpush1.xpose.msra.mxu0 0.0
  %6719 = vmatprep.subr.mxu0 0.0
  %6720 = vmatpush1.xpose.msra.mxu0 0.0
  %6721 = vmatprep.subr.mxu0 0.0
  %6722 = vmatpush1.xpose.msra.mxu0 0.0
  %6723 = vmatprep.subr.mxu0 0.0
  %6724 = vmatpush1.xpose.msra.mxu0 0.0
  %6725 = vmatprep.subr.mxu0 0.0
  %6726 = vmatpush1.xpose.msra.mxu0 0.0
  %6727 = vmatprep.subr.mxu0 0.0
  %6728 = vmatpush1.xpose.msra.mxu0 0.0
  %6729 = vmatprep.subr.mxu0 0.0
  %6730 = vmatpush1.xpose.msra.mxu0 0.0
  %6731 = vmatprep.subr.mxu0 0.0
  %6732 = vmatpush1.xpose.msra.mxu0 0.0
  %6733 = vmatprep.subr.mxu0 0.0
  %6734 = vmatpush1.xpose.msra.mxu0 0.0
  %6735 = vmatprep.subr.mxu0 0.0
  %6736 = vmatpush1.xpose.msra.mxu0 0.0
  %6737 = vmatprep.subr.mxu0 0.0
  %6738 = vmatpush1.xpose.msra.mxu0 0.0
  %6739 = vmatprep.subr.mxu0 0.0
  %6740 = vmatpush1.xpose.msra.mxu0 0.0
  %6741 = vmatprep.subr.mxu0 0.0
  %6742 = vmatpush1.xpose.msra.mxu0 0.0
  %6743 = vmatprep.subr.mxu0 0.0
  %6744 = vmatpush1.xpose.msra.mxu0 0.0
  %6745 = vmatprep.subr.mxu0 0.0
  %6746 = vmatpush1.xpose.msra.mxu0 0.0
  %6747 = vmatprep.subr.mxu0 0.0
  %6748 = vmatpush1.xpose.msra.mxu0 0.0
  %6749 = vmatprep.subr.mxu0 0.0
  %6750 = vmatpush1.xpose.msra.mxu0 0.0
  %6751 = vmatprep.subr.mxu0 0.0
  %6752 = vmatpush1.xpose.msra.mxu0 0.0
  %6753 = vmatprep.subr.mxu0 0.0
  %6754 = vmatpush1.xpose.msra.mxu0 0.0
  %6755 = vmatprep.subr.mxu0 0.0
  %6756 = vmatpush1.xpose.msra.mxu0 0.0
  %6757 = vmatprep.subr.mxu0 0.0
  %6758 = vmatpush1.xpose.msra.mxu0 0.0
  %6759 = vmatprep.subr.mxu0 0.0
  %6760 = vmatpush1.xpose.msra.mxu0 0.0
  %6761 = vmatprep.subr.mxu0 0.0
  %6762 = vmatpush1.xpose.msra.mxu0 0.0
  %6763 = vmatprep.subr.mxu0 0.0
  %6764 = vmatpush1.xpose.msra.mxu0 0.0
  %6765 = vmatprep.mubr.f32.mxu0 0.0
  %6766 = vmatmul.mubr.f32.gmra.mrb[0].mxu0 %v6697
  %v6767 = vpop.f32.mrb[0].mxu0
  %v6768 = vadd.f32 0.0, %v6767
  %v6769 = vpop.f32.mrb[0].mxu0
  %6770 = vdwg.mxu0
  %v6771 = vsel %vm259, %v6690, -inf
  %6772 = vmax.xlane.f32.xlu0 %v6771
  %v6773 = vpop.xlane.xlu0 %6772
  %v6774 = vsel %vm259, %v6768, -inf
  %6775 = vmax.xlane.f32.xlu0 %v6774
  %v6776 = vpop.xlane.xlu0 %6775
  %v6777 = vsub.f32 %v6690, %v6773
  %v6778 = vsub.f32 %v6768, %v6776
  %v6779 = vmul.f32 %v6777, 1.442695
  %v6780 = vpow.pop %v6779
  %v6781 = vmul.f32 %v6778, 1.442695
  %v6782 = vpow.pop %v6781
  %v6783 = vsel %vm259, %v6780, 0.0
  %6784 = vadd.xlane.f32.xlu0 %v6783
  %v6785 = vpop.xlane.xlu0 %6784
  %v6786 = vsel %vm259, %v6782, 0.0
  %6787 = vadd.xlane.f32.xlu0 %v6786
  %v6788 = vpop.xlane.xlu0 %6787
  %v6789 = vrcp.pop %v6785
  %v6790 = vmul.f32 %v6780, %v6789
  %v6791 = vrcp.pop %v6788
  %v6792 = vmul.f32 %v6782, %v6791
  %6793 = vrot.lane.b32.xlu0 %v5621, 72
  %v6794 = vpop.permute.xlu0 %6793
  %v6797 = vsel %vm259, %v6790, 0
  %6799 = vmatprep.subr.mxu0 0.0
  %6800 = vmatpush1.msra.mxu0 %v6794
  %6801 = vmatprep.subr.mxu0 0.0
  %6802 = vmatpush1.msra.mxu0 0.0
  %6803 = vmatprep.subr.mxu0 0.0
  %6804 = vmatpush1.msra.mxu0 0.0
  %6805 = vmatprep.subr.mxu0 0.0
  %6806 = vmatpush1.msra.mxu0 0.0
  %6807 = vmatprep.subr.mxu0 0.0
  %6808 = vmatpush1.msra.mxu0 0.0
  %6809 = vmatprep.subr.mxu0 0.0
  %6810 = vmatpush1.msra.mxu0 0.0
  %6811 = vmatprep.subr.mxu0 0.0
  %6812 = vmatpush1.msra.mxu0 0.0
  %6813 = vmatprep.subr.mxu0 0.0
  %6814 = vmatpush1.msra.mxu0 0.0
  %6815 = vmatprep.subr.mxu0 0.0
  %6816 = vmatpush1.msra.mxu0 0.0
  %6817 = vmatprep.subr.mxu0 0.0
  %6818 = vmatpush1.msra.mxu0 0.0
  %6819 = vmatprep.subr.mxu0 0.0
  %6820 = vmatpush1.msra.mxu0 0.0
  %6821 = vmatprep.subr.mxu0 0.0
  %6822 = vmatpush1.msra.mxu0 0.0
  %6823 = vmatprep.subr.mxu0 0.0
  %6824 = vmatpush1.msra.mxu0 0.0
  %6825 = vmatprep.subr.mxu0 0.0
  %6826 = vmatpush1.msra.mxu0 0.0
  %6827 = vmatprep.subr.mxu0 0.0
  %6828 = vmatpush1.msra.mxu0 0.0
  %6829 = vmatprep.subr.mxu0 0.0
  %6830 = vmatpush1.msra.mxu0 0.0
  %6831 = vmatprep.subr.mxu0 0.0
  %6832 = vmatpush1.msra.mxu0 0.0
  %6833 = vmatprep.subr.mxu0 0.0
  %6834 = vmatpush1.msra.mxu0 0.0
  %6835 = vmatprep.subr.mxu0 0.0
  %6836 = vmatpush1.msra.mxu0 0.0
  %6837 = vmatprep.subr.mxu0 0.0
  %6838 = vmatpush1.msra.mxu0 0.0
  %6839 = vmatprep.subr.mxu0 0.0
  %6840 = vmatpush1.msra.mxu0 0.0
  %6841 = vmatprep.subr.mxu0 0.0
  %6842 = vmatpush1.msra.mxu0 0.0
  %6843 = vmatprep.subr.mxu0 0.0
  %6844 = vmatpush1.msra.mxu0 0.0
  %6845 = vmatprep.subr.mxu0 0.0
  %6846 = vmatpush1.msra.mxu0 0.0
  %6847 = vmatprep.subr.mxu0 0.0
  %6848 = vmatpush1.msra.mxu0 0.0
  %6849 = vmatprep.subr.mxu0 0.0
  %6850 = vmatpush1.msra.mxu0 0.0
  %6851 = vmatprep.subr.mxu0 0.0
  %6852 = vmatpush1.msra.mxu0 0.0
  %6853 = vmatprep.subr.mxu0 0.0
  %6854 = vmatpush1.msra.mxu0 0.0
  %6855 = vmatprep.subr.mxu0 0.0
  %6856 = vmatpush1.msra.mxu0 0.0
  %6857 = vmatprep.subr.mxu0 0.0
  %6858 = vmatpush1.msra.mxu0 0.0
  %6859 = vmatprep.subr.mxu0 0.0
  %6860 = vmatpush1.msra.mxu0 0.0
  %6861 = vmatprep.subr.mxu0 0.0
  %6862 = vmatpush1.msra.mxu0 0.0
  %6863 = vmatprep.mubr.f32.mxu0 0.0
  %6864 = vmatmul.mubr.f32.gmra.mrb[0].mxu0 %v6797
  %v6865 = vpop.f32.mrb[0].mxu0
  %v6866 = vadd.f32 0.0, %v6865
  %v6867 = vpop.f32.mrb[0].mxu0
  %6868 = vdwg.mxu0
  %6869 = vrot.lane.b32.xlu0 %v5626, 72
  %v6870 = vpop.permute.xlu0 %6869
  %v6873 = vsel %vm259, %v6792, 0
  %6875 = vmatprep.subr.mxu0 0.0
  %6876 = vmatpush1.msra.mxu0 %v6870
  %6877 = vmatprep.subr.mxu0 0.0
  %6878 = vmatpush1.msra.mxu0 0.0
  %6879 = vmatprep.subr.mxu0 0.0
  %6880 = vmatpush1.msra.mxu0 0.0
  %6881 = vmatprep.subr.mxu0 0.0
  %6882 = vmatpush1.msra.mxu0 0.0
  %6883 = vmatprep.subr.mxu0 0.0
  %6884 = vmatpush1.msra.mxu0 0.0
  %6885 = vmatprep.subr.mxu0 0.0
  %6886 = vmatpush1.msra.mxu0 0.0
  %6887 = vmatprep.subr.mxu0 0.0
  %6888 = vmatpush1.msra.mxu0 0.0
  %6889 = vmatprep.subr.mxu0 0.0
  %6890 = vmatpush1.msra.mxu0 0.0
  %6891 = vmatprep.subr.mxu0 0.0
  %6892 = vmatpush1.msra.mxu0 0.0
  %6893 = vmatprep.subr.mxu0 0.0
  %6894 = vmatpush1.msra.mxu0 0.0
  %6895 = vmatprep.subr.mxu0 0.0
  %6896 = vmatpush1.msra.mxu0 0.0
  %6897 = vmatprep.subr.mxu0 0.0
  %6898 = vmatpush1.msra.mxu0 0.0
  %6899 = vmatprep.subr.mxu0 0.0
  %6900 = vmatpush1.msra.mxu0 0.0
  %6901 = vmatprep.subr.mxu0 0.0
  %6902 = vmatpush1.msra.mxu0 0.0
  %6903 = vmatprep.subr.mxu0 0.0
  %6904 = vmatpush1.msra.mxu0 0.0
  %6905 = vmatprep.subr.mxu0 0.0
  %6906 = vmatpush1.msra.mxu0 0.0
  %6907 = vmatprep.subr.mxu0 0.0
  %6908 = vmatpush1.msra.mxu0 0.0
  %6909 = vmatprep.subr.mxu0 0.0
  %6910 = vmatpush1.msra.mxu0 0.0
  %6911 = vmatprep.subr.mxu0 0.0
  %6912 = vmatpush1.msra.mxu0 0.0
  %6913 = vmatprep.subr.mxu0 0.0
  %6914 = vmatpush1.msra.mxu0 0.0
  %6915 = vmatprep.subr.mxu0 0.0
  %6916 = vmatpush1.msra.mxu0 0.0
  %6917 = vmatprep.subr.mxu0 0.0
  %6918 = vmatpush1.msra.mxu0 0.0
  %6919 = vmatprep.subr.mxu0 0.0
  %6920 = vmatpush1.msra.mxu0 0.0
  %6921 = vmatprep.subr.mxu0 0.0
  %6922 = vmatpush1.msra.mxu0 0.0
  %6923 = vmatprep.subr.mxu0 0.0
  %6924 = vmatpush1.msra.mxu0 0.0
  %6925 = vmatprep.subr.mxu0 0.0
  %6926 = vmatpush1.msra.mxu0 0.0
  %6927 = vmatprep.subr.mxu0 0.0
  %6928 = vmatpush1.msra.mxu0 0.0
  %6929 = vmatprep.subr.mxu0 0.0
  %6930 = vmatpush1.msra.mxu0 0.0
  %6931 = vmatprep.subr.mxu0 0.0
  %6932 = vmatpush1.msra.mxu0 0.0
  %6933 = vmatprep.subr.mxu0 0.0
  %6934 = vmatpush1.msra.mxu0 0.0
  %6935 = vmatprep.subr.mxu0 0.0
  %6936 = vmatpush1.msra.mxu0 0.0
  %6937 = vmatprep.subr.mxu0 0.0
  %6938 = vmatpush1.msra.mxu0 0.0
  %6939 = vmatprep.mubr.f32.mxu0 0.0
  %6940 = vmatmul.mubr.f32.gmra.mrb[0].mxu0 %v6873
  %v6941 = vpop.f32.mrb[0].mxu0
  %v6942 = vadd.f32 0.0, %v6941
  %v6943 = vpop.f32.mrb[0].mxu0
  %6944 = vdwg.mxu0
  %6947 = vrot.lane.b32.xlu0 %v6206, 8
  %v6948 = vpop.permute.xlu0 %6947
  %6949 = vrot.lane.b32.xlu0 %v6282, 8
  %v6950 = vpop.permute.xlu0 %6949
  %6955 = vrot.lane.b32.xlu0 %v6536, 16
  %v6956 = vpop.permute.xlu0 %6955
  %6957 = vrot.lane.b32.xlu0 %v6612, 16
  %v6958 = vpop.permute.xlu0 %6957
  %6963 = vrot.lane.b32.xlu0 %v6866, 24
  %v6964 = vpop.permute.xlu0 %6963
  %6965 = vrot.lane.b32.xlu0 %v6942, 24
  %v6966 = vpop.permute.xlu0 %6965
  %v6969 = vsel %vm259, %v5876, %v6948
  %v6970 = vsel %vm259, %v5952, %v6950
  %v6971 = vsel %vm1601, %v6969, %v6956
  %v6972 = vsel %vm1601, %v6970, %v6958
  %v6973 = vsel %vm1604, %v6971, %v6964
  %v6974 = vsel %vm1604, %v6972, %v6966
  %v6975 = vld [vmem:[%s53] sm:$0xff]
  %v6976 = vld [vmem:[%s53 + $0x8] sm:$0xff]
  %v6977 = vld [vmem:[%s53 + $0x10] sm:$0xff]
  %v6978 = vld [vmem:[%s53 + $0x18] sm:$0xff]
  %v6979 = vld [vmem:[%s55] sm:$0x1]
  %v6981 = vlaneseq
  %v6982 = vshrl.u32 %v6981, 7
  %v6983 = vsub.s32 0, %v6982
  %v6984 = vrot.slane %v6979, %v6983
  %v6987 = vsel %vm174, %v6973, 0
  %v6990 = vsel %vm174, %v6974, 0
  %6992 = vmatprep.subr.mxu0 0.0
  %6993 = vmatpush1.msra.mxu0 %v6975
  %6994 = vmatprep.subr.mxu0 0.0
  %6995 = vmatpush1.msra.mxu0 %v6976
  %6996 = vmatprep.subr.mxu0 0.0
  %6997 = vmatpush1.msra.mxu0 %v6977
  %6998 = vmatprep.subr.mxu0 0.0
  %6999 = vmatpush1.msra.mxu0 %v6978
  %7000 = vmatprep.subr.mxu0 0.0
  %7001 = vmatpush1.msra.mxu0 0.0
  %7002 = vmatprep.subr.mxu0 0.0
  %7003 = vmatpush1.msra.mxu0 0.0
  %7004 = vmatprep.subr.mxu0 0.0
  %7005 = vmatpush1.msra.mxu0 0.0
  %7006 = vmatprep.subr.mxu0 0.0
  %7007 = vmatpush1.msra.mxu0 0.0
  %7008 = vmatprep.subr.mxu0 0.0
  %7009 = vmatpush1.msra.mxu0 0.0
  %7010 = vmatprep.subr.mxu0 0.0
  %7011 = vmatpush1.msra.mxu0 0.0
  %7012 = vmatprep.subr.mxu0 0.0
  %7013 = vmatpush1.msra.mxu0 0.0
  %7014 = vmatprep.subr.mxu0 0.0
  %7015 = vmatpush1.msra.mxu0 0.0
  %7016 = vmatprep.subr.mxu0 0.0
  %7017 = vmatpush1.msra.mxu0 0.0
  %7018 = vmatprep.subr.mxu0 0.0
  %7019 = vmatpush1.msra.mxu0 0.0
  %7020 = vmatprep.subr.mxu0 0.0
  %7021 = vmatpush1.msra.mxu0 0.0
  %7022 = vmatprep.subr.mxu0 0.0
  %7023 = vmatpush1.msra.mxu0 0.0
  %7024 = vmatprep.subr.mxu0 0.0
  %7025 = vmatpush1.msra.mxu0 0.0
  %7026 = vmatprep.subr.mxu0 0.0
  %7027 = vmatpush1.msra.mxu0 0.0
  %7028 = vmatprep.subr.mxu0 0.0
  %7029 = vmatpush1.msra.mxu0 0.0
  %7030 = vmatprep.subr.mxu0 0.0
  %7031 = vmatpush1.msra.mxu0 0.0
  %7032 = vmatprep.subr.mxu0 0.0
  %7033 = vmatpush1.msra.mxu0 0.0
  %7034 = vmatprep.subr.mxu0 0.0
  %7035 = vmatpush1.msra.mxu0 0.0
  %7036 = vmatprep.subr.mxu0 0.0
  %7037 = vmatpush1.msra.mxu0 0.0
  %7038 = vmatprep.subr.mxu0 0.0
  %7039 = vmatpush1.msra.mxu0 0.0
  %7040 = vmatprep.subr.mxu0 0.0
  %7041 = vmatpush1.msra.mxu0 0.0
  %7042 = vmatprep.subr.mxu0 0.0
  %7043 = vmatpush1.msra.mxu0 0.0
  %7044 = vmatprep.subr.mxu0 0.0
  %7045 = vmatpush1.msra.mxu0 0.0
  %7046 = vmatprep.subr.mxu0 0.0
  %7047 = vmatpush1.msra.mxu0 0.0
  %7048 = vmatprep.subr.mxu0 0.0
  %7049 = vmatpush1.msra.mxu0 0.0
  %7050 = vmatprep.subr.mxu0 0.0
  %7051 = vmatpush1.msra.mxu0 0.0
  %7052 = vmatprep.subr.mxu0 0.0
  %7053 = vmatpush1.msra.mxu0 0.0
  %7054 = vmatprep.subr.mxu0 0.0
  %7055 = vmatpush1.msra.mxu0 0.0
  %7056 = vmatprep.mubr.f32.mxu0 0.0
  %7057 = vmatmul.mubr.f32.gmra.mrb[0].mxu0 %v6987
  %v7058 = vpop.f32.mrb[0].mxu0
  %v7059 = vadd.f32 %v6984, %v7058
  %v7060 = vpop.f32.mrb[0].mxu0
  %7061 = vmatprep.mubr.f32.mxu0 0.0
  %7062 = vmatmul.mubr.f32.gmra.mrb[0].mxu0 %v6990
  %v7063 = vpop.f32.mrb[0].mxu0
  %v7064 = vadd.f32 %v6984, %v7063
  %v7065 = vpop.f32.mrb[0].mxu0
  %7066 = vdwg.mxu0
  %v7067 = vadd.f32 %v5443, %v7059
  %v7068 = vadd.f32 %v5444, %v7064
  %v7069 = vsel %vm174, %v7067, 0.0
  %7070 = vadd.xlane.f32.xlu0 %v7069
  %v7071 = vpop.xlane.xlu0 %7070
  %v7072 = vsel %vm174, %v7068, 0.0
  %7073 = vadd.xlane.f32.xlu0 %v7072
  %v7074 = vpop.xlane.xlu0 %7073
  %v7075 = vmul.f32 %v7071, %v1707
  %v7076 = vmul.f32 %v7074, %v1707
  %v7077 = vsub.f32 %v7067, %v7075
  %v7078 = vsub.f32 %v7068, %v7076
  %v7079 = vmul.f32 %v7077, %v7077
  %v7080 = vmul.f32 %v7078, %v7078
  %v7081 = vsel %vm174, %v7079, 0.0
  %7082 = vadd.xlane.f32.xlu0 %v7081
  %v7083 = vpop.xlane.xlu0 %7082
  %v7084 = vsel %vm174, %v7080, 0.0
  %7085 = vadd.xlane.f32.xlu0 %v7084
  %v7086 = vpop.xlane.xlu0 %7085
  %v7087 = vmul.f32 %v7083, %v1707
  %v7088 = vmul.f32 %v7086, %v1707
  %v7089 = vadd.f32 %v7087, 1e-05
  %v7090 = vadd.f32 %v7088, 1e-05
  %v7091 = vrsqrt.pop %v7089
  %v7092 = vrsqrt.pop %v7090
  %v7093 = vmul.f32 %v7077, %v7091
  %v7094 = vmul.f32 %v7078, %v7092
  %v7095 = vld [vmem:[%s57] sm:$0x1]
  %v7097 = vlaneseq
  %v7098 = vshrl.u32 %v7097, 7
  %v7099 = vsub.s32 0, %v7098
  %v7100 = vrot.slane %v7095, %v7099
  %v7102 = vmul.f32 %v7093, %v7100
  %v7103 = vmul.f32 %v7094, %v7100
  %v7104 = vld [vmem:[%s59] sm:$0x1]
  %v7106 = vlaneseq
  %v7107 = vshrl.u32 %v7106, 7
  %v7108 = vsub.s32 0, %v7107
  %v7109 = vrot.slane %v7104, %v7108
  %v7111 = vadd.f32 %v7102, %v7109
  %v7112 = vadd.f32 %v7103, %v7109
  %v7113 = vpack.c.bf16 %v7112, %v7111
  %v7114 = vld [vmem:[%s61] sm:$0xff]
  %v7115 = vld [vmem:[%s61 + $0x8] sm:$0xff]
  %v7116 = vld [vmem:[%s61 + $0x10] sm:$0xff]
  %v7117 = vld [vmem:[%s61 + $0x18] sm:$0xff]
  %v7118 = vld [vmem:[%s61 + $0x20] sm:$0xff]
  %v7119 = vld [vmem:[%s61 + $0x28] sm:$0xff]
  %v7120 = vld [vmem:[%s61 + $0x30] sm:$0xff]
  %v7121 = vld [vmem:[%s61 + $0x38] sm:$0xff]
  %v7122 = vld [vmem:[%s61 + $0x40] sm:$0xff]
  %v7123 = vld [vmem:[%s61 + $0x48] sm:$0xff]
  %v7124 = vld [vmem:[%s61 + $0x50] sm:$0xff]
  %v7125 = vld [vmem:[%s61 + $0x58] sm:$0xff]
  %v7126 = vld [vmem:[%s61 + $0x60] sm:$0xff]
  %v7127 = vld [vmem:[%s61 + $0x68] sm:$0xff]
  %v7128 = vld [vmem:[%s61 + $0x70] sm:$0xff]
  %v7129 = vld [vmem:[%s61 + $0x78] sm:$0xff]
  %v7130 = vld [vmem:[%s61 + $0x80] sm:$0xff]
  %v7131 = vld [vmem:[%s61 + $0x88] sm:$0xff]
  %v7132 = vld [vmem:[%s61 + $0x90] sm:$0xff]
  %v7133 = vld [vmem:[%s61 + $0x98] sm:$0xff]
  %v7134 = vld [vmem:[%s61 + $0xa0] sm:$0xff]
  %v7135 = vld [vmem:[%s61 + $0xa8] sm:$0xff]
  %v7136 = vld [vmem:[%s61 + $0xb0] sm:$0xff]
  %v7137 = vld [vmem:[%s61 + $0xb8] sm:$0xff]
  %v7138 = vld [vmem:[%s61 + $0xc0] sm:$0xff]
  %v7139 = vld [vmem:[%s61 + $0xc8] sm:$0xff]
  %v7140 = vld [vmem:[%s61 + $0xd0] sm:$0xff]
  %v7141 = vld [vmem:[%s61 + $0xd8] sm:$0xff]
  %v7142 = vld [vmem:[%s61 + $0xe0] sm:$0xff]
  %v7143 = vld [vmem:[%s61 + $0xe8] sm:$0xff]
  %v7144 = vld [vmem:[%s61 + $0xf0] sm:$0xff]
  %v7145 = vld [vmem:[%s61 + $0xf8] sm:$0xff]
  %v7146 = vld [vmem:[%s63] sm:$0xff]
  %v7147 = vld [vmem:[%s63 + $0x8] sm:$0xff]
  %v7150 = vlaneseq
  %v7151 = vshrl.u32 %v7150, 7
  %v7152 = vsub.s32 0, %v7151
  %v7153 = vrot.slane %v7146, %v7152
  %v7154 = vlaneseq
  %v7155 = vshrl.u32 %v7154, 7
  %v7156 = vsub.s32 1, %v7155
  %v7157 = vrot.slane %v7146, %v7156
  %v7158 = vlaneseq
  %v7159 = vshrl.u32 %v7158, 7
  %v7160 = vsub.s32 2, %v7159
  %v7161 = vrot.slane %v7146, %v7160
  %v7162 = vlaneseq
  %v7163 = vshrl.u32 %v7162, 7
  %v7164 = vsub.s32 3, %v7163
  %v7165 = vrot.slane %v7146, %v7164
  %v7166 = vlaneseq
  %v7167 = vshrl.u32 %v7166, 7
  %v7168 = vsub.s32 4, %v7167
  %v7169 = vrot.slane %v7146, %v7168
  %v7170 = vlaneseq
  %v7171 = vshrl.u32 %v7170, 7
  %v7172 = vsub.s32 5, %v7171
  %v7173 = vrot.slane %v7146, %v7172
  %v7174 = vlaneseq
  %v7175 = vshrl.u32 %v7174, 7
  %v7176 = vsub.s32 6, %v7175
  %v7177 = vrot.slane %v7146, %v7176
  %v7178 = vlaneseq
  %v7179 = vshrl.u32 %v7178, 7
  %v7180 = vsub.s32 7, %v7179
  %v7181 = vrot.slane %v7146, %v7180
  %v7182 = vlaneseq
  %v7183 = vshrl.u32 %v7182, 7
  %v7184 = vsub.s32 0, %v7183
  %v7185 = vrot.slane %v7147, %v7184
  %v7186 = vlaneseq
  %v7187 = vshrl.u32 %v7186, 7
  %v7188 = vsub.s32 1, %v7187
  %v7189 = vrot.slane %v7147, %v7188
  %v7190 = vlaneseq
  %v7191 = vshrl.u32 %v7190, 7
  %v7192 = vsub.s32 2, %v7191
  %v7193 = vrot.slane %v7147, %v7192
  %v7194 = vlaneseq
  %v7195 = vshrl.u32 %v7194, 7
  %v7196 = vsub.s32 3, %v7195
  %v7197 = vrot.slane %v7147, %v7196
  %v7198 = vlaneseq
  %v7199 = vshrl.u32 %v7198, 7
  %v7200 = vsub.s32 4, %v7199
  %v7201 = vrot.slane %v7147, %v7200
  %v7202 = vlaneseq
  %v7203 = vshrl.u32 %v7202, 7
  %v7204 = vsub.s32 5, %v7203
  %v7205 = vrot.slane %v7147, %v7204
  %v7206 = vlaneseq
  %v7207 = vshrl.u32 %v7206, 7
  %v7208 = vsub.s32 6, %v7207
  %v7209 = vrot.slane %v7147, %v7208
  %v7210 = vlaneseq
  %v7211 = vshrl.u32 %v7210, 7
  %v7212 = vsub.s32 7, %v7211
  %v7213 = vrot.slane %v7147, %v7212
  %v7262 = vunpack.c.l.b16 %v7114
  %v7263 = vunpack.c.h.b16 %v7114
  %v7264 = vunpack.c.l.b16 %v7115
  %v7265 = vunpack.c.h.b16 %v7115
  %v7266 = vunpack.c.l.b16 %v7116
  %v7267 = vunpack.c.h.b16 %v7116
  %v7268 = vunpack.c.l.b16 %v7117
  %v7269 = vunpack.c.h.b16 %v7117
  %v7270 = vunpack.c.l.b16 %v7118
  %v7271 = vunpack.c.h.b16 %v7118
  %v7272 = vunpack.c.l.b16 %v7119
  %v7273 = vunpack.c.h.b16 %v7119
  %v7274 = vunpack.c.l.b16 %v7120
  %v7275 = vunpack.c.h.b16 %v7120
  %v7276 = vunpack.c.l.b16 %v7121
  %v7277 = vunpack.c.h.b16 %v7121
  %v7278 = vunpack.c.l.b16 %v7122
  %v7279 = vunpack.c.h.b16 %v7122
  %v7280 = vunpack.c.l.b16 %v7123
  %v7281 = vunpack.c.h.b16 %v7123
  %v7282 = vunpack.c.l.b16 %v7124
  %v7283 = vunpack.c.h.b16 %v7124
  %v7284 = vunpack.c.l.b16 %v7125
  %v7285 = vunpack.c.h.b16 %v7125
  %v7286 = vunpack.c.l.b16 %v7126
  %v7287 = vunpack.c.h.b16 %v7126
  %v7288 = vunpack.c.l.b16 %v7127
  %v7289 = vunpack.c.h.b16 %v7127
  %v7290 = vunpack.c.l.b16 %v7128
  %v7291 = vunpack.c.h.b16 %v7128
  %v7292 = vunpack.c.l.b16 %v7129
  %v7293 = vunpack.c.h.b16 %v7129
  %v7294 = vunpack.c.l.b16 %v7130
  %v7295 = vunpack.c.h.b16 %v7130
  %v7296 = vunpack.c.l.b16 %v7131
  %v7297 = vunpack.c.h.b16 %v7131
  %v7298 = vunpack.c.l.b16 %v7132
  %v7299 = vunpack.c.h.b16 %v7132
  %v7300 = vunpack.c.l.b16 %v7133
  %v7301 = vunpack.c.h.b16 %v7133
  %v7302 = vunpack.c.l.b16 %v7134
  %v7303 = vunpack.c.h.b16 %v7134
  %v7304 = vunpack.c.l.b16 %v7135
  %v7305 = vunpack.c.h.b16 %v7135
  %v7306 = vunpack.c.l.b16 %v7136
  %v7307 = vunpack.c.h.b16 %v7136
  %v7308 = vunpack.c.l.b16 %v7137
  %v7309 = vunpack.c.h.b16 %v7137
  %v7310 = vunpack.c.l.b16 %v7138
  %v7311 = vunpack.c.h.b16 %v7138
  %v7312 = vunpack.c.l.b16 %v7139
  %v7313 = vunpack.c.h.b16 %v7139
  %v7314 = vunpack.c.l.b16 %v7140
  %v7315 = vunpack.c.h.b16 %v7140
  %v7316 = vunpack.c.l.b16 %v7141
  %v7317 = vunpack.c.h.b16 %v7141
  %v7318 = vunpack.c.l.b16 %v7142
  %v7319 = vunpack.c.h.b16 %v7142
  %v7320 = vunpack.c.l.b16 %v7143
  %v7321 = vunpack.c.h.b16 %v7143
  %v7322 = vunpack.c.l.b16 %v7144
  %v7323 = vunpack.c.h.b16 %v7144
  %v7324 = vunpack.c.l.b16 %v7145
  %v7325 = vunpack.c.h.b16 %v7145
  %v7326 = vpack.c.b16 %v7278, %v7262
  %v7327 = vpack.c.b16 %v7279, %v7263
  %v7328 = vpack.c.b16 %v7280, %v7264
  %v7329 = vpack.c.b16 %v7281, %v7265
  %v7330 = vpack.c.b16 %v7282, %v7266
  %v7331 = vpack.c.b16 %v7283, %v7267
  %v7332 = vpack.c.b16 %v7284, %v7268
  %v7333 = vpack.c.b16 %v7285, %v7269
  %v7334 = vpack.c.b16 %v7286, %v7270
  %v7335 = vpack.c.b16 %v7287, %v7271
  %v7336 = vpack.c.b16 %v7288, %v7272
  %v7337 = vpack.c.b16 %v7289, %v7273
  %v7338 = vpack.c.b16 %v7290, %v7274
  %v7339 = vpack.c.b16 %v7291, %v7275
  %v7340 = vpack.c.b16 %v7292, %v7276
  %v7341 = vpack.c.b16 %v7293, %v7277
  %v7342 = vpack.c.b16 %v7310, %v7294
  %v7343 = vpack.c.b16 %v7311, %v7295
  %v7344 = vpack.c.b16 %v7312, %v7296
  %v7345 = vpack.c.b16 %v7313, %v7297
  %v7346 = vpack.c.b16 %v7314, %v7298
  %v7347 = vpack.c.b16 %v7315, %v7299
  %v7348 = vpack.c.b16 %v7316, %v7300
  %v7349 = vpack.c.b16 %v7317, %v7301
  %v7350 = vpack.c.b16 %v7318, %v7302
  %v7351 = vpack.c.b16 %v7319, %v7303
  %v7352 = vpack.c.b16 %v7320, %v7304
  %v7353 = vpack.c.b16 %v7321, %v7305
  %v7354 = vpack.c.b16 %v7322, %v7306
  %v7355 = vpack.c.b16 %v7323, %v7307
  %v7356 = vpack.c.b16 %v7324, %v7308
  %v7357 = vpack.c.b16 %v7325, %v7309
  %v7391 = vsel %vm174, %v7113, 0
  %7393 = vmatprep.subr.bf16.mxu0 %v7327
  %7394 = vmatpush1.bf16.msra.mxu0 %v7326
  %7395 = vmatprep.subr.bf16.mxu0 %v7343
  %7396 = vmatpush1.bf16.msra.mxu0 %v7342
  %7397 = vmatprep.subr.bf16.mxu0 0
  %7398 = vmatpush1.bf16.msra.mxu0 0
  %7399 = vmatprep.subr.bf16.mxu0 0
  %7400 = vmatpush1.bf16.msra.mxu0 0
  %7401 = vmatprep.subr.bf16.mxu0 0
  %7402 = vmatpush1.bf16.msra.mxu0 0
  %7403 = vmatprep.subr.bf16.mxu0 0
  %7404 = vmatpush1.bf16.msra.mxu0 0
  %7405 = vmatprep.subr.bf16.mxu0 0
  %7406 = vmatpush1.bf16.msra.mxu0 0
  %7407 = vmatprep.subr.bf16.mxu0 0
  %7408 = vmatpush1.bf16.msra.mxu0 0
  %7409 = vmatprep.subr.bf16.mxu0 0
  %7410 = vmatpush1.bf16.msra.mxu0 0
  %7411 = vmatprep.subr.bf16.mxu0 0
  %7412 = vmatpush1.bf16.msra.mxu0 0
  %7413 = vmatprep.subr.bf16.mxu0 0
  %7414 = vmatpush1.bf16.msra.mxu0 0
  %7415 = vmatprep.subr.bf16.mxu0 0
  %7416 = vmatpush1.bf16.msra.mxu0 0
  %7417 = vmatprep.subr.bf16.mxu0 0
  %7418 = vmatpush1.bf16.msra.mxu0 0
  %7419 = vmatprep.subr.bf16.mxu0 0
  %7420 = vmatpush1.bf16.msra.mxu0 0
  %7421 = vmatprep.subr.bf16.mxu0 0
  %7422 = vmatpush1.bf16.msra.mxu0 0
  %7423 = vmatprep.subr.bf16.mxu0 0
  %7424 = vmatpush1.bf16.msra.mxu0 0
  %7425 = vmatprep.mubr.bf16.mxu0 0
  %7426 = vmatmul.mubr.bf16.gmra.mrb[0].mxu0 %v7391
  %v7427 = vpop.f32.mrb[0].mxu0
  %v7428 = vadd.f32 %v7153, %v7427
  %v7429 = vpop.f32.mrb[0].mxu0
  %v7430 = vadd.f32 %v7157, %v7429
  %v7431 = vpop.f32.mrb[0].mxu0
  %v7432 = vadd.f32 %v7153, %v7431
  %v7433 = vpop.f32.mrb[0].mxu0
  %v7434 = vadd.f32 %v7157, %v7433
  %7435 = vdwg.mxu0
  %7436 = vmatprep.subr.bf16.mxu0 %v7329
  %7437 = vmatpush1.bf16.msra.mxu0 %v7328
  %7438 = vmatprep.subr.bf16.mxu0 %v7345
  %7439 = vmatpush1.bf16.msra.mxu0 %v7344
  %7440 = vmatprep.subr.bf16.mxu0 0
  %7441 = vmatpush1.bf16.msra.mxu0 0
  %7442 = vmatprep.subr.bf16.mxu0 0
  %7443 = vmatpush1.bf16.msra.mxu0 0
  %7444 = vmatprep.subr.bf16.mxu0 0
  %7445 = vmatpush1.bf16.msra.mxu0 0
  %7446 = vmatprep.subr.bf16.mxu0 0
  %7447 = vmatpush1.bf16.msra.mxu0 0
  %7448 = vmatprep.subr.bf16.mxu0 0
  %7449 = vmatpush1.bf16.msra.mxu0 0
  %7450 = vmatprep.subr.bf16.mxu0 0
  %7451 = vmatpush1.bf16.msra.mxu0 0
  %7452 = vmatprep.subr.bf16.mxu0 0
  %7453 = vmatpush1.bf16.msra.mxu0 0
  %7454 = vmatprep.subr.bf16.mxu0 0
  %7455 = vmatpush1.bf16.msra.mxu0 0
  %7456 = vmatprep.subr.bf16.mxu0 0
  %7457 = vmatpush1.bf16.msra.mxu0 0
  %7458 = vmatprep.subr.bf16.mxu0 0
  %7459 = vmatpush1.bf16.msra.mxu0 0
  %7460 = vmatprep.subr.bf16.mxu0 0
  %7461 = vmatpush1.bf16.msra.mxu0 0
  %7462 = vmatprep.subr.bf16.mxu0 0
  %7463 = vmatpush1.bf16.msra.mxu0 0
  %7464 = vmatprep.subr.bf16.mxu0 0
  %7465 = vmatpush1.bf16.msra.mxu0 0
  %7466 = vmatprep.subr.bf16.mxu0 0
  %7467 = vmatpush1.bf16.msra.mxu0 0
  %7468 = vmatprep.mubr.bf16.mxu0 0
  %7469 = vmatmul.mubr.bf16.gmra.mrb[0].mxu0 %v7391
  %v7470 = vpop.f32.mrb[0].mxu0
  %v7471 = vadd.f32 %v7161, %v7470
  %v7472 = vpop.f32.mrb[0].mxu0
  %v7473 = vadd.f32 %v7165, %v7472
  %v7474 = vpop.f32.mrb[0].mxu0
  %v7475 = vadd.f32 %v7161, %v7474
  %v7476 = vpop.f32.mrb[0].mxu0
  %v7477 = vadd.f32 %v7165, %v7476
  %7478 = vdwg.mxu0
  %7479 = vmatprep.subr.bf16.mxu0 %v7331
  %7480 = vmatpush1.bf16.msra.mxu0 %v7330
  %7481 = vmatprep.subr.bf16.mxu0 %v7347
  %7482 = vmatpush1.bf16.msra.mxu0 %v7346
  %7483 = vmatprep.subr.bf16.mxu0 0
  %7484 = vmatpush1.bf16.msra.mxu0 0
  %7485 = vmatprep.subr.bf16.mxu0 0
  %7486 = vmatpush1.bf16.msra.mxu0 0
  %7487 = vmatprep.subr.bf16.mxu0 0
  %7488 = vmatpush1.bf16.msra.mxu0 0
  %7489 = vmatprep.subr.bf16.mxu0 0
  %7490 = vmatpush1.bf16.msra.mxu0 0
  %7491 = vmatprep.subr.bf16.mxu0 0
  %7492 = vmatpush1.bf16.msra.mxu0 0
  %7493 = vmatprep.subr.bf16.mxu0 0
  %7494 = vmatpush1.bf16.msra.mxu0 0
  %7495 = vmatprep.subr.bf16.mxu0 0
  %7496 = vmatpush1.bf16.msra.mxu0 0
  %7497 = vmatprep.subr.bf16.mxu0 0
  %7498 = vmatpush1.bf16.msra.mxu0 0
  %7499 = vmatprep.subr.bf16.mxu0 0
  %7500 = vmatpush1.bf16.msra.mxu0 0
  %7501 = vmatprep.subr.bf16.mxu0 0
  %7502 = vmatpush1.bf16.msra.mxu0 0
  %7503 = vmatprep.subr.bf16.mxu0 0
  %7504 = vmatpush1.bf16.msra.mxu0 0
  %7505 = vmatprep.subr.bf16.mxu0 0
  %7506 = vmatpush1.bf16.msra.mxu0 0
  %7507 = vmatprep.subr.bf16.mxu0 0
  %7508 = vmatpush1.bf16.msra.mxu0 0
  %7509 = vmatprep.subr.bf16.mxu0 0
  %7510 = vmatpush1.bf16.msra.mxu0 0
  %7511 = vmatprep.mubr.bf16.mxu0 0
  %7512 = vmatmul.mubr.bf16.gmra.mrb[0].mxu0 %v7391
  %v7513 = vpop.f32.mrb[0].mxu0
  %v7514 = vadd.f32 %v7169, %v7513
  %v7515 = vpop.f32.mrb[0].mxu0
  %v7516 = vadd.f32 %v7173, %v7515
  %v7517 = vpop.f32.mrb[0].mxu0
  %v7518 = vadd.f32 %v7169, %v7517
  %v7519 = vpop.f32.mrb[0].mxu0
  %v7520 = vadd.f32 %v7173, %v7519
  %7521 = vdwg.mxu0
  %7522 = vmatprep.subr.bf16.mxu0 %v7333
  %7523 = vmatpush1.bf16.msra.mxu0 %v7332
  %7524 = vmatprep.subr.bf16.mxu0 %v7349
  %7525 = vmatpush1.bf16.msra.mxu0 %v7348
  %7526 = vmatprep.subr.bf16.mxu0 0
  %7527 = vmatpush1.bf16.msra.mxu0 0
  %7528 = vmatprep.subr.bf16.mxu0 0
  %7529 = vmatpush1.bf16.msra.mxu0 0
  %7530 = vmatprep.subr.bf16.mxu0 0
  %7531 = vmatpush1.bf16.msra.mxu0 0
  %7532 = vmatprep.subr.bf16.mxu0 0
  %7533 = vmatpush1.bf16.msra.mxu0 0
  %7534 = vmatprep.subr.bf16.mxu0 0
  %7535 = vmatpush1.bf16.msra.mxu0 0
  %7536 = vmatprep.subr.bf16.mxu0 0
  %7537 = vmatpush1.bf16.msra.mxu0 0
  %7538 = vmatprep.subr.bf16.mxu0 0
  %7539 = vmatpush1.bf16.msra.mxu0 0
  %7540 = vmatprep.subr.bf16.mxu0 0
  %7541 = vmatpush1.bf16.msra.mxu0 0
  %7542 = vmatprep.subr.bf16.mxu0 0
  %7543 = vmatpush1.bf16.msra.mxu0 0
  %7544 = vmatprep.subr.bf16.mxu0 0
  %7545 = vmatpush1.bf16.msra.mxu0 0
  %7546 = vmatprep.subr.bf16.mxu0 0
  %7547 = vmatpush1.bf16.msra.mxu0 0
  %7548 = vmatprep.subr.bf16.mxu0 0
  %7549 = vmatpush1.bf16.msra.mxu0 0
  %7550 = vmatprep.subr.bf16.mxu0 0
  %7551 = vmatpush1.bf16.msra.mxu0 0
  %7552 = vmatprep.subr.bf16.mxu0 0
  %7553 = vmatpush1.bf16.msra.mxu0 0
  %7554 = vmatprep.mubr.bf16.mxu0 0
  %7555 = vmatmul.mubr.bf16.gmra.mrb[0].mxu0 %v7391
  %v7556 = vpop.f32.mrb[0].mxu0
  %v7557 = vadd.f32 %v7177, %v7556
  %v7558 = vpop.f32.mrb[0].mxu0
  %v7559 = vadd.f32 %v7181, %v7558
  %v7560 = vpop.f32.mrb[0].mxu0
  %v7561 = vadd.f32 %v7177, %v7560
  %v7562 = vpop.f32.mrb[0].mxu0
  %v7563 = vadd.f32 %v7181, %v7562
  %7564 = vdwg.mxu0
  %7565 = vmatprep.subr.bf16.mxu0 %v7335
  %7566 = vmatpush1.bf16.msra.mxu0 %v7334
  %7567 = vmatprep.subr.bf16.mxu0 %v7351
  %7568 = vmatpush1.bf16.msra.mxu0 %v7350
  %7569 = vmatprep.subr.bf16.mxu0 0
  %7570 = vmatpush1.bf16.msra.mxu0 0
  %7571 = vmatprep.subr.bf16.mxu0 0
  %7572 = vmatpush1.bf16.msra.mxu0 0
  %7573 = vmatprep.subr.bf16.mxu0 0
  %7574 = vmatpush1.bf16.msra.mxu0 0
  %7575 = vmatprep.subr.bf16.mxu0 0
  %7576 = vmatpush1.bf16.msra.mxu0 0
  %7577 = vmatprep.subr.bf16.mxu0 0
  %7578 = vmatpush1.bf16.msra.mxu0 0
  %7579 = vmatprep.subr.bf16.mxu0 0
  %7580 = vmatpush1.bf16.msra.mxu0 0
  %7581 = vmatprep.subr.bf16.mxu0 0
  %7582 = vmatpush1.bf16.msra.mxu0 0
  %7583 = vmatprep.subr.bf16.mxu0 0
  %7584 = vmatpush1.bf16.msra.mxu0 0
  %7585 = vmatprep.subr.bf16.mxu0 0
  %7586 = vmatpush1.bf16.msra.mxu0 0
  %7587 = vmatprep.subr.bf16.mxu0 0
  %7588 = vmatpush1.bf16.msra.mxu0 0
  %7589 = vmatprep.subr.bf16.mxu0 0
  %7590 = vmatpush1.bf16.msra.mxu0 0
  %7591 = vmatprep.subr.bf16.mxu0 0
  %7592 = vmatpush1.bf16.msra.mxu0 0
  %7593 = vmatprep.subr.bf16.mxu0 0
  %7594 = vmatpush1.bf16.msra.mxu0 0
  %7595 = vmatprep.subr.bf16.mxu0 0
  %7596 = vmatpush1.bf16.msra.mxu0 0
  %7597 = vmatprep.mubr.bf16.mxu0 0
  %7598 = vmatmul.mubr.bf16.gmra.mrb[0].mxu0 %v7391
  %v7599 = vpop.f32.mrb[0].mxu0
  %v7600 = vadd.f32 %v7185, %v7599
  %v7601 = vpop.f32.mrb[0].mxu0
  %v7602 = vadd.f32 %v7189, %v7601
  %v7603 = vpop.f32.mrb[0].mxu0
  %v7604 = vadd.f32 %v7185, %v7603
  %v7605 = vpop.f32.mrb[0].mxu0
  %v7606 = vadd.f32 %v7189, %v7605
  %7607 = vdwg.mxu0
  %7608 = vmatprep.subr.bf16.mxu0 %v7337
  %7609 = vmatpush1.bf16.msra.mxu0 %v7336
  %7610 = vmatprep.subr.bf16.mxu0 %v7353
  %7611 = vmatpush1.bf16.msra.mxu0 %v7352
  %7612 = vmatprep.subr.bf16.mxu0 0
  %7613 = vmatpush1.bf16.msra.mxu0 0
  %7614 = vmatprep.subr.bf16.mxu0 0
  %7615 = vmatpush1.bf16.msra.mxu0 0
  %7616 = vmatprep.subr.bf16.mxu0 0
  %7617 = vmatpush1.bf16.msra.mxu0 0
  %7618 = vmatprep.subr.bf16.mxu0 0
  %7619 = vmatpush1.bf16.msra.mxu0 0
  %7620 = vmatprep.subr.bf16.mxu0 0
  %7621 = vmatpush1.bf16.msra.mxu0 0
  %7622 = vmatprep.subr.bf16.mxu0 0
  %7623 = vmatpush1.bf16.msra.mxu0 0
  %7624 = vmatprep.subr.bf16.mxu0 0
  %7625 = vmatpush1.bf16.msra.mxu0 0
  %7626 = vmatprep.subr.bf16.mxu0 0
  %7627 = vmatpush1.bf16.msra.mxu0 0
  %7628 = vmatprep.subr.bf16.mxu0 0
  %7629 = vmatpush1.bf16.msra.mxu0 0
  %7630 = vmatprep.subr.bf16.mxu0 0
  %7631 = vmatpush1.bf16.msra.mxu0 0
  %7632 = vmatprep.subr.bf16.mxu0 0
  %7633 = vmatpush1.bf16.msra.mxu0 0
  %7634 = vmatprep.subr.bf16.mxu0 0
  %7635 = vmatpush1.bf16.msra.mxu0 0
  %7636 = vmatprep.subr.bf16.mxu0 0
  %7637 = vmatpush1.bf16.msra.mxu0 0
  %7638 = vmatprep.subr.bf16.mxu0 0
  %7639 = vmatpush1.bf16.msra.mxu0 0
  %7640 = vmatprep.mubr.bf16.mxu0 0
  %7641 = vmatmul.mubr.bf16.gmra.mrb[0].mxu0 %v7391
  %v7642 = vpop.f32.mrb[0].mxu0
  %v7643 = vadd.f32 %v7193, %v7642
  %v7644 = vpop.f32.mrb[0].mxu0
  %v7645 = vadd.f32 %v7197, %v7644
  %v7646 = vpop.f32.mrb[0].mxu0
  %v7647 = vadd.f32 %v7193, %v7646
  %v7648 = vpop.f32.mrb[0].mxu0
  %v7649 = vadd.f32 %v7197, %v7648
  %7650 = vdwg.mxu0
  %7651 = vmatprep.subr.bf16.mxu0 %v7339
  %7652 = vmatpush1.bf16.msra.mxu0 %v7338
  %7653 = vmatprep.subr.bf16.mxu0 %v7355
  %7654 = vmatpush1.bf16.msra.mxu0 %v7354
  %7655 = vmatprep.subr.bf16.mxu0 0
  %7656 = vmatpush1.bf16.msra.mxu0 0
  %7657 = vmatprep.subr.bf16.mxu0 0
  %7658 = vmatpush1.bf16.msra.mxu0 0
  %7659 = vmatprep.subr.bf16.mxu0 0
  %7660 = vmatpush1.bf16.msra.mxu0 0
  %7661 = vmatprep.subr.bf16.mxu0 0
  %7662 = vmatpush1.bf16.msra.mxu0 0
  %7663 = vmatprep.subr.bf16.mxu0 0
  %7664 = vmatpush1.bf16.msra.mxu0 0
  %7665 = vmatprep.subr.bf16.mxu0 0
  %7666 = vmatpush1.bf16.msra.mxu0 0
  %7667 = vmatprep.subr.bf16.mxu0 0
  %7668 = vmatpush1.bf16.msra.mxu0 0
  %7669 = vmatprep.subr.bf16.mxu0 0
  %7670 = vmatpush1.bf16.msra.mxu0 0
  %7671 = vmatprep.subr.bf16.mxu0 0
  %7672 = vmatpush1.bf16.msra.mxu0 0
  %7673 = vmatprep.subr.bf16.mxu0 0
  %7674 = vmatpush1.bf16.msra.mxu0 0
  %7675 = vmatprep.subr.bf16.mxu0 0
  %7676 = vmatpush1.bf16.msra.mxu0 0
  %7677 = vmatprep.subr.bf16.mxu0 0
  %7678 = vmatpush1.bf16.msra.mxu0 0
  %7679 = vmatprep.subr.bf16.mxu0 0
  %7680 = vmatpush1.bf16.msra.mxu0 0
  %7681 = vmatprep.subr.bf16.mxu0 0
  %7682 = vmatpush1.bf16.msra.mxu0 0
  %7683 = vmatprep.mubr.bf16.mxu0 0
  %7684 = vmatmul.mubr.bf16.gmra.mrb[0].mxu0 %v7391
  %v7685 = vpop.f32.mrb[0].mxu0
  %v7686 = vadd.f32 %v7201, %v7685
  %v7687 = vpop.f32.mrb[0].mxu0
  %v7688 = vadd.f32 %v7205, %v7687
  %v7689 = vpop.f32.mrb[0].mxu0
  %v7690 = vadd.f32 %v7201, %v7689
  %v7691 = vpop.f32.mrb[0].mxu0
  %v7692 = vadd.f32 %v7205, %v7691
  %7693 = vdwg.mxu0
  %7694 = vmatprep.subr.bf16.mxu0 %v7341
  %7695 = vmatpush1.bf16.msra.mxu0 %v7340
  %7696 = vmatprep.subr.bf16.mxu0 %v7357
  %7697 = vmatpush1.bf16.msra.mxu0 %v7356
  %7698 = vmatprep.subr.bf16.mxu0 0
  %7699 = vmatpush1.bf16.msra.mxu0 0
  %7700 = vmatprep.subr.bf16.mxu0 0
  %7701 = vmatpush1.bf16.msra.mxu0 0
  %7702 = vmatprep.subr.bf16.mxu0 0
  %7703 = vmatpush1.bf16.msra.mxu0 0
  %7704 = vmatprep.subr.bf16.mxu0 0
  %7705 = vmatpush1.bf16.msra.mxu0 0
  %7706 = vmatprep.subr.bf16.mxu0 0
  %7707 = vmatpush1.bf16.msra.mxu0 0
  %7708 = vmatprep.subr.bf16.mxu0 0
  %7709 = vmatpush1.bf16.msra.mxu0 0
  %7710 = vmatprep.subr.bf16.mxu0 0
  %7711 = vmatpush1.bf16.msra.mxu0 0
  %7712 = vmatprep.subr.bf16.mxu0 0
  %7713 = vmatpush1.bf16.msra.mxu0 0
  %7714 = vmatprep.subr.bf16.mxu0 0
  %7715 = vmatpush1.bf16.msra.mxu0 0
  %7716 = vmatprep.subr.bf16.mxu0 0
  %7717 = vmatpush1.bf16.msra.mxu0 0
  %7718 = vmatprep.subr.bf16.mxu0 0
  %7719 = vmatpush1.bf16.msra.mxu0 0
  %7720 = vmatprep.subr.bf16.mxu0 0
  %7721 = vmatpush1.bf16.msra.mxu0 0
  %7722 = vmatprep.subr.bf16.mxu0 0
  %7723 = vmatpush1.bf16.msra.mxu0 0
  %7724 = vmatprep.subr.bf16.mxu0 0
  %7725 = vmatpush1.bf16.msra.mxu0 0
  %7726 = vmatprep.mubr.bf16.mxu0 0
  %7727 = vmatmul.mubr.bf16.gmra.mrb[0].mxu0 %v7391
  %v7728 = vpop.f32.mrb[0].mxu0
  %v7729 = vadd.f32 %v7209, %v7728
  %v7730 = vpop.f32.mrb[0].mxu0
  %v7731 = vadd.f32 %v7213, %v7730
  %v7732 = vpop.f32.mrb[0].mxu0
  %v7733 = vadd.f32 %v7209, %v7732
  %v7734 = vpop.f32.mrb[0].mxu0
  %v7735 = vadd.f32 %v7213, %v7734
  %7736 = vdwg.mxu0
  %v7737 = vmax.f32 %v7428, 0.0
  %v7738 = vmax.f32 %v7430, 0.0
  %v7739 = vmax.f32 %v7471, 0.0
  %v7740 = vmax.f32 %v7473, 0.0
  %v7741 = vmax.f32 %v7514, 0.0
  %v7742 = vmax.f32 %v7516, 0.0
  %v7743 = vmax.f32 %v7557, 0.0
  %v7744 = vmax.f32 %v7559, 0.0
  %v7745 = vmax.f32 %v7600, 0.0
  %v7746 = vmax.f32 %v7602, 0.0
  %v7747 = vmax.f32 %v7643, 0.0
  %v7748 = vmax.f32 %v7645, 0.0
  %v7749 = vmax.f32 %v7686, 0.0
  %v7750 = vmax.f32 %v7688, 0.0
  %v7751 = vmax.f32 %v7729, 0.0
  %v7752 = vmax.f32 %v7731, 0.0
  %v7753 = vmax.f32 %v7432, 0.0
  %v7754 = vmax.f32 %v7434, 0.0
  %v7755 = vmax.f32 %v7475, 0.0
  %v7756 = vmax.f32 %v7477, 0.0
  %v7757 = vmax.f32 %v7518, 0.0
  %v7758 = vmax.f32 %v7520, 0.0
  %v7759 = vmax.f32 %v7561, 0.0
  %v7760 = vmax.f32 %v7563, 0.0
  %v7761 = vmax.f32 %v7604, 0.0
  %v7762 = vmax.f32 %v7606, 0.0
  %v7763 = vmax.f32 %v7647, 0.0
  %v7764 = vmax.f32 %v7649, 0.0
  %v7765 = vmax.f32 %v7690, 0.0
  %v7766 = vmax.f32 %v7692, 0.0
  %v7767 = vmax.f32 %v7733, 0.0
  %v7768 = vmax.f32 %v7735, 0.0
  %v7769 = vpack.c.bf16 %v7753, %v7737
  %v7770 = vpack.c.bf16 %v7754, %v7738
  %v7771 = vpack.c.bf16 %v7755, %v7739
  %v7772 = vpack.c.bf16 %v7756, %v7740
  %v7773 = vpack.c.bf16 %v7757, %v7741
  %v7774 = vpack.c.bf16 %v7758, %v7742
  %v7775 = vpack.c.bf16 %v7759, %v7743
  %v7776 = vpack.c.bf16 %v7760, %v7744
  %v7777 = vpack.c.bf16 %v7761, %v7745
  %v7778 = vpack.c.bf16 %v7762, %v7746
  %v7779 = vpack.c.bf16 %v7763, %v7747
  %v7780 = vpack.c.bf16 %v7764, %v7748
  %v7781 = vpack.c.bf16 %v7765, %v7749
  %v7782 = vpack.c.bf16 %v7766, %v7750
  %v7783 = vpack.c.bf16 %v7767, %v7751
  %v7784 = vpack.c.bf16 %v7768, %v7752
  %v7785 = vld [vmem:[%s65] sm:$0xf]
  %v7786 = vld [vmem:[%s65 + $0x4] sm:$0xf]
  %v7787 = vld [vmem:[%s65 + $0x8] sm:$0xf]
  %v7788 = vld [vmem:[%s65 + $0xc] sm:$0xf]
  %v7789 = vld [vmem:[%s65 + $0x10] sm:$0xf]
  %v7790 = vld [vmem:[%s65 + $0x14] sm:$0xf]
  %v7791 = vld [vmem:[%s65 + $0x18] sm:$0xf]
  %v7792 = vld [vmem:[%s65 + $0x1c] sm:$0xf]
  %v7793 = vld [vmem:[%s65 + $0x20] sm:$0xf]
  %v7794 = vld [vmem:[%s65 + $0x24] sm:$0xf]
  %v7795 = vld [vmem:[%s65 + $0x28] sm:$0xf]
  %v7796 = vld [vmem:[%s65 + $0x2c] sm:$0xf]
  %v7797 = vld [vmem:[%s65 + $0x30] sm:$0xf]
  %v7798 = vld [vmem:[%s65 + $0x34] sm:$0xf]
  %v7799 = vld [vmem:[%s65 + $0x38] sm:$0xf]
  %v7800 = vld [vmem:[%s65 + $0x3c] sm:$0xf]
  %v7801 = vld [vmem:[%s65 + $0x40] sm:$0xf]
  %v7802 = vld [vmem:[%s65 + $0x44] sm:$0xf]
  %v7803 = vld [vmem:[%s65 + $0x48] sm:$0xf]
  %v7804 = vld [vmem:[%s65 + $0x4c] sm:$0xf]
  %v7805 = vld [vmem:[%s65 + $0x50] sm:$0xf]
  %v7806 = vld [vmem:[%s65 + $0x54] sm:$0xf]
  %v7807 = vld [vmem:[%s65 + $0x58] sm:$0xf]
  %v7808 = vld [vmem:[%s65 + $0x5c] sm:$0xf]
  %v7809 = vld [vmem:[%s65 + $0x60] sm:$0xf]
  %v7810 = vld [vmem:[%s65 + $0x64] sm:$0xf]
  %v7811 = vld [vmem:[%s65 + $0x68] sm:$0xf]
  %v7812 = vld [vmem:[%s65 + $0x6c] sm:$0xf]
  %v7813 = vld [vmem:[%s65 + $0x70] sm:$0xf]
  %v7814 = vld [vmem:[%s65 + $0x74] sm:$0xf]
  %v7815 = vld [vmem:[%s65 + $0x78] sm:$0xf]
  %v7816 = vld [vmem:[%s65 + $0x7c] sm:$0xf]
  %v7817 = vld [vmem:[%s65 + $0x80] sm:$0xf]
  %v7818 = vld [vmem:[%s65 + $0x84] sm:$0xf]
  %v7819 = vld [vmem:[%s65 + $0x88] sm:$0xf]
  %v7820 = vld [vmem:[%s65 + $0x8c] sm:$0xf]
  %v7821 = vld [vmem:[%s65 + $0x90] sm:$0xf]
  %v7822 = vld [vmem:[%s65 + $0x94] sm:$0xf]
  %v7823 = vld [vmem:[%s65 + $0x98] sm:$0xf]
  %v7824 = vld [vmem:[%s65 + $0x9c] sm:$0xf]
  %v7825 = vld [vmem:[%s65 + $0xa0] sm:$0xf]
  %v7826 = vld [vmem:[%s65 + $0xa4] sm:$0xf]
  %v7827 = vld [vmem:[%s65 + $0xa8] sm:$0xf]
  %v7828 = vld [vmem:[%s65 + $0xac] sm:$0xf]
  %v7829 = vld [vmem:[%s65 + $0xb0] sm:$0xf]
  %v7830 = vld [vmem:[%s65 + $0xb4] sm:$0xf]
  %v7831 = vld [vmem:[%s65 + $0xb8] sm:$0xf]
  %v7832 = vld [vmem:[%s65 + $0xbc] sm:$0xf]
  %v7833 = vld [vmem:[%s65 + $0xc0] sm:$0xf]
  %v7834 = vld [vmem:[%s65 + $0xc4] sm:$0xf]
  %v7835 = vld [vmem:[%s65 + $0xc8] sm:$0xf]
  %v7836 = vld [vmem:[%s65 + $0xcc] sm:$0xf]
  %v7837 = vld [vmem:[%s65 + $0xd0] sm:$0xf]
  %v7838 = vld [vmem:[%s65 + $0xd4] sm:$0xf]
  %v7839 = vld [vmem:[%s65 + $0xd8] sm:$0xf]
  %v7840 = vld [vmem:[%s65 + $0xdc] sm:$0xf]
  %v7841 = vld [vmem:[%s65 + $0xe0] sm:$0xf]
  %v7842 = vld [vmem:[%s65 + $0xe4] sm:$0xf]
  %v7843 = vld [vmem:[%s65 + $0xe8] sm:$0xf]
  %v7844 = vld [vmem:[%s65 + $0xec] sm:$0xf]
  %v7845 = vld [vmem:[%s65 + $0xf0] sm:$0xf]
  %v7846 = vld [vmem:[%s65 + $0xf4] sm:$0xf]
  %v7847 = vld [vmem:[%s65 + $0xf8] sm:$0xf]
  %v7848 = vld [vmem:[%s65 + $0xfc] sm:$0xf]
  %v7849 = vld [vmem:[%s65 + $0x100] sm:$0xf]
  %v7850 = vld [vmem:[%s65 + $0x104] sm:$0xf]
  %v7851 = vld [vmem:[%s65 + $0x108] sm:$0xf]
  %v7852 = vld [vmem:[%s65 + $0x10c] sm:$0xf]
  %v7853 = vld [vmem:[%s65 + $0x110] sm:$0xf]
  %v7854 = vld [vmem:[%s65 + $0x114] sm:$0xf]
  %v7855 = vld [vmem:[%s65 + $0x118] sm:$0xf]
  %v7856 = vld [vmem:[%s65 + $0x11c] sm:$0xf]
  %v7857 = vld [vmem:[%s65 + $0x120] sm:$0xf]
  %v7858 = vld [vmem:[%s65 + $0x124] sm:$0xf]
  %v7859 = vld [vmem:[%s65 + $0x128] sm:$0xf]
  %v7860 = vld [vmem:[%s65 + $0x12c] sm:$0xf]
  %v7861 = vld [vmem:[%s65 + $0x130] sm:$0xf]
  %v7862 = vld [vmem:[%s65 + $0x134] sm:$0xf]
  %v7863 = vld [vmem:[%s65 + $0x138] sm:$0xf]
  %v7864 = vld [vmem:[%s65 + $0x13c] sm:$0xf]
  %v7865 = vld [vmem:[%s65 + $0x140] sm:$0xf]
  %v7866 = vld [vmem:[%s65 + $0x144] sm:$0xf]
  %v7867 = vld [vmem:[%s65 + $0x148] sm:$0xf]
  %v7868 = vld [vmem:[%s65 + $0x14c] sm:$0xf]
  %v7869 = vld [vmem:[%s65 + $0x150] sm:$0xf]
  %v7870 = vld [vmem:[%s65 + $0x154] sm:$0xf]
  %v7871 = vld [vmem:[%s65 + $0x158] sm:$0xf]
  %v7872 = vld [vmem:[%s65 + $0x15c] sm:$0xf]
  %v7873 = vld [vmem:[%s65 + $0x160] sm:$0xf]
  %v7874 = vld [vmem:[%s65 + $0x164] sm:$0xf]
  %v7875 = vld [vmem:[%s65 + $0x168] sm:$0xf]
  %v7876 = vld [vmem:[%s65 + $0x16c] sm:$0xf]
  %v7877 = vld [vmem:[%s65 + $0x170] sm:$0xf]
  %v7878 = vld [vmem:[%s65 + $0x174] sm:$0xf]
  %v7879 = vld [vmem:[%s65 + $0x178] sm:$0xf]
  %v7880 = vld [vmem:[%s65 + $0x17c] sm:$0xf]
  %v7881 = vld [vmem:[%s65 + $0x180] sm:$0xf]
  %v7882 = vld [vmem:[%s65 + $0x184] sm:$0xf]
  %v7883 = vld [vmem:[%s65 + $0x188] sm:$0xf]
  %v7884 = vld [vmem:[%s65 + $0x18c] sm:$0xf]
  %v7885 = vld [vmem:[%s65 + $0x190] sm:$0xf]
  %v7886 = vld [vmem:[%s65 + $0x194] sm:$0xf]
  %v7887 = vld [vmem:[%s65 + $0x198] sm:$0xf]
  %v7888 = vld [vmem:[%s65 + $0x19c] sm:$0xf]
  %v7889 = vld [vmem:[%s65 + $0x1a0] sm:$0xf]
  %v7890 = vld [vmem:[%s65 + $0x1a4] sm:$0xf]
  %v7891 = vld [vmem:[%s65 + $0x1a8] sm:$0xf]
  %v7892 = vld [vmem:[%s65 + $0x1ac] sm:$0xf]
  %v7893 = vld [vmem:[%s65 + $0x1b0] sm:$0xf]
  %v7894 = vld [vmem:[%s65 + $0x1b4] sm:$0xf]
  %v7895 = vld [vmem:[%s65 + $0x1b8] sm:$0xf]
  %v7896 = vld [vmem:[%s65 + $0x1bc] sm:$0xf]
  %v7897 = vld [vmem:[%s65 + $0x1c0] sm:$0xf]
  %v7898 = vld [vmem:[%s65 + $0x1c4] sm:$0xf]
  %v7899 = vld [vmem:[%s65 + $0x1c8] sm:$0xf]
  %v7900 = vld [vmem:[%s65 + $0x1cc] sm:$0xf]
  %v7901 = vld [vmem:[%s65 + $0x1d0] sm:$0xf]
  %v7902 = vld [vmem:[%s65 + $0x1d4] sm:$0xf]
  %v7903 = vld [vmem:[%s65 + $0x1d8] sm:$0xf]
  %v7904 = vld [vmem:[%s65 + $0x1dc] sm:$0xf]
  %v7905 = vld [vmem:[%s65 + $0x1e0] sm:$0xf]
  %v7906 = vld [vmem:[%s65 + $0x1e4] sm:$0xf]
  %v7907 = vld [vmem:[%s65 + $0x1e8] sm:$0xf]
  %v7908 = vld [vmem:[%s65 + $0x1ec] sm:$0xf]
  %v7909 = vld [vmem:[%s65 + $0x1f0] sm:$0xf]
  %v7910 = vld [vmem:[%s65 + $0x1f4] sm:$0xf]
  %v7911 = vld [vmem:[%s65 + $0x1f8] sm:$0xf]
  %v7912 = vld [vmem:[%s65 + $0x1fc] sm:$0xf]
  %v7913 = vld [vmem:[%s65 + $0x200] sm:$0xf]
  %v7914 = vld [vmem:[%s65 + $0x204] sm:$0xf]
  %v7915 = vld [vmem:[%s65 + $0x208] sm:$0xf]
  %v7916 = vld [vmem:[%s65 + $0x20c] sm:$0xf]
  %v7917 = vld [vmem:[%s65 + $0x210] sm:$0xf]
  %v7918 = vld [vmem:[%s65 + $0x214] sm:$0xf]
  %v7919 = vld [vmem:[%s65 + $0x218] sm:$0xf]
  %v7920 = vld [vmem:[%s65 + $0x21c] sm:$0xf]
  %v7921 = vld [vmem:[%s65 + $0x220] sm:$0xf]
  %v7922 = vld [vmem:[%s65 + $0x224] sm:$0xf]
  %v7923 = vld [vmem:[%s65 + $0x228] sm:$0xf]
  %v7924 = vld [vmem:[%s65 + $0x22c] sm:$0xf]
  %v7925 = vld [vmem:[%s65 + $0x230] sm:$0xf]
  %v7926 = vld [vmem:[%s65 + $0x234] sm:$0xf]
  %v7927 = vld [vmem:[%s65 + $0x238] sm:$0xf]
  %v7928 = vld [vmem:[%s65 + $0x23c] sm:$0xf]
  %v7929 = vld [vmem:[%s65 + $0x240] sm:$0xf]
  %v7930 = vld [vmem:[%s65 + $0x244] sm:$0xf]
  %v7931 = vld [vmem:[%s65 + $0x248] sm:$0xf]
  %v7932 = vld [vmem:[%s65 + $0x24c] sm:$0xf]
  %v7933 = vld [vmem:[%s65 + $0x250] sm:$0xf]
  %v7934 = vld [vmem:[%s65 + $0x254] sm:$0xf]
  %v7935 = vld [vmem:[%s65 + $0x258] sm:$0xf]
  %v7936 = vld [vmem:[%s65 + $0x25c] sm:$0xf]
  %v7937 = vld [vmem:[%s65 + $0x260] sm:$0xf]
  %v7938 = vld [vmem:[%s65 + $0x264] sm:$0xf]
  %v7939 = vld [vmem:[%s65 + $0x268] sm:$0xf]
  %v7940 = vld [vmem:[%s65 + $0x26c] sm:$0xf]
  %v7941 = vld [vmem:[%s65 + $0x270] sm:$0xf]
  %v7942 = vld [vmem:[%s65 + $0x274] sm:$0xf]
  %v7943 = vld [vmem:[%s65 + $0x278] sm:$0xf]
  %v7944 = vld [vmem:[%s65 + $0x27c] sm:$0xf]
  %v7945 = vld [vmem:[%s65 + $0x280] sm:$0xf]
  %v7946 = vld [vmem:[%s65 + $0x284] sm:$0xf]
  %v7947 = vld [vmem:[%s65 + $0x288] sm:$0xf]
  %v7948 = vld [vmem:[%s65 + $0x28c] sm:$0xf]
  %v7949 = vld [vmem:[%s65 + $0x290] sm:$0xf]
  %v7950 = vld [vmem:[%s65 + $0x294] sm:$0xf]
  %v7951 = vld [vmem:[%s65 + $0x298] sm:$0xf]
  %v7952 = vld [vmem:[%s65 + $0x29c] sm:$0xf]
  %v7953 = vld [vmem:[%s65 + $0x2a0] sm:$0xf]
  %v7954 = vld [vmem:[%s65 + $0x2a4] sm:$0xf]
  %v7955 = vld [vmem:[%s65 + $0x2a8] sm:$0xf]
  %v7956 = vld [vmem:[%s65 + $0x2ac] sm:$0xf]
  %v7957 = vld [vmem:[%s65 + $0x2b0] sm:$0xf]
  %v7958 = vld [vmem:[%s65 + $0x2b4] sm:$0xf]
  %v7959 = vld [vmem:[%s65 + $0x2b8] sm:$0xf]
  %v7960 = vld [vmem:[%s65 + $0x2bc] sm:$0xf]
  %v7961 = vld [vmem:[%s65 + $0x2c0] sm:$0xf]
  %v7962 = vld [vmem:[%s65 + $0x2c4] sm:$0xf]
  %v7963 = vld [vmem:[%s65 + $0x2c8] sm:$0xf]
  %v7964 = vld [vmem:[%s65 + $0x2cc] sm:$0xf]
  %v7965 = vld [vmem:[%s65 + $0x2d0] sm:$0xf]
  %v7966 = vld [vmem:[%s65 + $0x2d4] sm:$0xf]
  %v7967 = vld [vmem:[%s65 + $0x2d8] sm:$0xf]
  %v7968 = vld [vmem:[%s65 + $0x2dc] sm:$0xf]
  %v7969 = vld [vmem:[%s65 + $0x2e0] sm:$0xf]
  %v7970 = vld [vmem:[%s65 + $0x2e4] sm:$0xf]
  %v7971 = vld [vmem:[%s65 + $0x2e8] sm:$0xf]
  %v7972 = vld [vmem:[%s65 + $0x2ec] sm:$0xf]
  %v7973 = vld [vmem:[%s65 + $0x2f0] sm:$0xf]
  %v7974 = vld [vmem:[%s65 + $0x2f4] sm:$0xf]
  %v7975 = vld [vmem:[%s65 + $0x2f8] sm:$0xf]
  %v7976 = vld [vmem:[%s65 + $0x2fc] sm:$0xf]
  %v7977 = vld [vmem:[%s65 + $0x300] sm:$0xf]
  %v7978 = vld [vmem:[%s65 + $0x304] sm:$0xf]
  %v7979 = vld [vmem:[%s65 + $0x308] sm:$0xf]
  %v7980 = vld [vmem:[%s65 + $0x30c] sm:$0xf]
  %v7981 = vld [vmem:[%s65 + $0x310] sm:$0xf]
  %v7982 = vld [vmem:[%s65 + $0x314] sm:$0xf]
  %v7983 = vld [vmem:[%s65 + $0x318] sm:$0xf]
  %v7984 = vld [vmem:[%s65 + $0x31c] sm:$0xf]
  %v7985 = vld [vmem:[%s65 + $0x320] sm:$0xf]
  %v7986 = vld [vmem:[%s65 + $0x324] sm:$0xf]
  %v7987 = vld [vmem:[%s65 + $0x328] sm:$0xf]
  %v7988 = vld [vmem:[%s65 + $0x32c] sm:$0xf]
  %v7989 = vld [vmem:[%s65 + $0x330] sm:$0xf]
  %v7990 = vld [vmem:[%s65 + $0x334] sm:$0xf]
  %v7991 = vld [vmem:[%s65 + $0x338] sm:$0xf]
  %v7992 = vld [vmem:[%s65 + $0x33c] sm:$0xf]
  %v7993 = vld [vmem:[%s65 + $0x340] sm:$0xf]
  %v7994 = vld [vmem:[%s65 + $0x344] sm:$0xf]
  %v7995 = vld [vmem:[%s65 + $0x348] sm:$0xf]
  %v7996 = vld [vmem:[%s65 + $0x34c] sm:$0xf]
  %v7997 = vld [vmem:[%s65 + $0x350] sm:$0xf]
  %v7998 = vld [vmem:[%s65 + $0x354] sm:$0xf]
  %v7999 = vld [vmem:[%s65 + $0x358] sm:$0xf]
  %v8000 = vld [vmem:[%s65 + $0x35c] sm:$0xf]
  %v8001 = vld [vmem:[%s65 + $0x360] sm:$0xf]
  %v8002 = vld [vmem:[%s65 + $0x364] sm:$0xf]
  %v8003 = vld [vmem:[%s65 + $0x368] sm:$0xf]
  %v8004 = vld [vmem:[%s65 + $0x36c] sm:$0xf]
  %v8005 = vld [vmem:[%s65 + $0x370] sm:$0xf]
  %v8006 = vld [vmem:[%s65 + $0x374] sm:$0xf]
  %v8007 = vld [vmem:[%s65 + $0x378] sm:$0xf]
  %v8008 = vld [vmem:[%s65 + $0x37c] sm:$0xf]
  %v8009 = vld [vmem:[%s65 + $0x380] sm:$0xf]
  %v8010 = vld [vmem:[%s65 + $0x384] sm:$0xf]
  %v8011 = vld [vmem:[%s65 + $0x388] sm:$0xf]
  %v8012 = vld [vmem:[%s65 + $0x38c] sm:$0xf]
  %v8013 = vld [vmem:[%s65 + $0x390] sm:$0xf]
  %v8014 = vld [vmem:[%s65 + $0x394] sm:$0xf]
  %v8015 = vld [vmem:[%s65 + $0x398] sm:$0xf]
  %v8016 = vld [vmem:[%s65 + $0x39c] sm:$0xf]
  %v8017 = vld [vmem:[%s65 + $0x3a0] sm:$0xf]
  %v8018 = vld [vmem:[%s65 + $0x3a4] sm:$0xf]
  %v8019 = vld [vmem:[%s65 + $0x3a8] sm:$0xf]
  %v8020 = vld [vmem:[%s65 + $0x3ac] sm:$0xf]
  %v8021 = vld [vmem:[%s65 + $0x3b0] sm:$0xf]
  %v8022 = vld [vmem:[%s65 + $0x3b4] sm:$0xf]
  %v8023 = vld [vmem:[%s65 + $0x3b8] sm:$0xf]
  %v8024 = vld [vmem:[%s65 + $0x3bc] sm:$0xf]
  %v8025 = vld [vmem:[%s65 + $0x3c0] sm:$0xf]
  %v8026 = vld [vmem:[%s65 + $0x3c4] sm:$0xf]
  %v8027 = vld [vmem:[%s65 + $0x3c8] sm:$0xf]
  %v8028 = vld [vmem:[%s65 + $0x3cc] sm:$0xf]
  %v8029 = vld [vmem:[%s65 + $0x3d0] sm:$0xf]
  %v8030 = vld [vmem:[%s65 + $0x3d4] sm:$0xf]
  %v8031 = vld [vmem:[%s65 + $0x3d8] sm:$0xf]
  %v8032 = vld [vmem:[%s65 + $0x3dc] sm:$0xf]
  %v8033 = vld [vmem:[%s65 + $0x3e0] sm:$0xf]
  %v8034 = vld [vmem:[%s65 + $0x3e4] sm:$0xf]
  %v8035 = vld [vmem:[%s65 + $0x3e8] sm:$0xf]
  %v8036 = vld [vmem:[%s65 + $0x3ec] sm:$0xf]
  %v8037 = vld [vmem:[%s65 + $0x3f0] sm:$0xf]
  %v8038 = vld [vmem:[%s65 + $0x3f4] sm:$0xf]
  %v8039 = vld [vmem:[%s65 + $0x3f8] sm:$0xf]
  %v8040 = vld [vmem:[%s65 + $0x3fc] sm:$0xf]
  %v8041 = vld [vmem:[%s67] sm:$0x1]
  %v8043 = vlaneseq
  %v8044 = vshrl.u32 %v8043, 7
  %v8045 = vsub.s32 0, %v8044
  %v8046 = vrot.slane %v8041, %v8045
  %v8304 = vunpack.c.l.b16 %v7785
  %v8305 = vunpack.c.l.b16 %v7786
  %v8306 = vunpack.c.l.b16 %v7787
  %v8307 = vunpack.c.l.b16 %v7788
  %v8308 = vunpack.c.l.b16 %v7789
  %v8309 = vunpack.c.l.b16 %v7790
  %v8310 = vunpack.c.l.b16 %v7791
  %v8311 = vunpack.c.l.b16 %v7792
  %v8312 = vunpack.c.l.b16 %v7793
  %v8313 = vunpack.c.l.b16 %v7794
  %v8314 = vunpack.c.l.b16 %v7795
  %v8315 = vunpack.c.l.b16 %v7796
  %v8316 = vunpack.c.l.b16 %v7797
  %v8317 = vunpack.c.l.b16 %v7798
  %v8318 = vunpack.c.l.b16 %v7799
  %v8319 = vunpack.c.l.b16 %v7800
  %v8320 = vunpack.c.l.b16 %v7801
  %v8321 = vunpack.c.l.b16 %v7802
  %v8322 = vunpack.c.l.b16 %v7803
  %v8323 = vunpack.c.l.b16 %v7804
  %v8324 = vunpack.c.l.b16 %v7805
  %v8325 = vunpack.c.l.b16 %v7806
  %v8326 = vunpack.c.l.b16 %v7807
  %v8327 = vunpack.c.l.b16 %v7808
  %v8328 = vunpack.c.l.b16 %v7809
  %v8329 = vunpack.c.l.b16 %v7810
  %v8330 = vunpack.c.l.b16 %v7811
  %v8331 = vunpack.c.l.b16 %v7812
  %v8332 = vunpack.c.l.b16 %v7813
  %v8333 = vunpack.c.l.b16 %v7814
  %v8334 = vunpack.c.l.b16 %v7815
  %v8335 = vunpack.c.l.b16 %v7816
  %v8336 = vunpack.c.l.b16 %v7817
  %v8337 = vunpack.c.l.b16 %v7818
  %v8338 = vunpack.c.l.b16 %v7819
  %v8339 = vunpack.c.l.b16 %v7820
  %v8340 = vunpack.c.l.b16 %v7821
  %v8341 = vunpack.c.l.b16 %v7822
  %v8342 = vunpack.c.l.b16 %v7823
  %v8343 = vunpack.c.l.b16 %v7824
  %v8344 = vunpack.c.l.b16 %v7825
  %v8345 = vunpack.c.l.b16 %v7826
  %v8346 = vunpack.c.l.b16 %v7827
  %v8347 = vunpack.c.l.b16 %v7828
  %v8348 = vunpack.c.l.b16 %v7829
  %v8349 = vunpack.c.l.b16 %v7830
  %v8350 = vunpack.c.l.b16 %v7831
  %v8351 = vunpack.c.l.b16 %v7832
  %v8352 = vunpack.c.l.b16 %v7833
  %v8353 = vunpack.c.l.b16 %v7834
  %v8354 = vunpack.c.l.b16 %v7835
  %v8355 = vunpack.c.l.b16 %v7836
  %v8356 = vunpack.c.l.b16 %v7837
  %v8357 = vunpack.c.l.b16 %v7838
  %v8358 = vunpack.c.l.b16 %v7839
  %v8359 = vunpack.c.l.b16 %v7840
  %v8360 = vunpack.c.l.b16 %v7841
  %v8361 = vunpack.c.l.b16 %v7842
  %v8362 = vunpack.c.l.b16 %v7843
  %v8363 = vunpack.c.l.b16 %v7844
  %v8364 = vunpack.c.l.b16 %v7845
  %v8365 = vunpack.c.l.b16 %v7846
  %v8366 = vunpack.c.l.b16 %v7847
  %v8367 = vunpack.c.l.b16 %v7848
  %v8368 = vunpack.c.l.b16 %v7849
  %v8369 = vunpack.c.l.b16 %v7850
  %v8370 = vunpack.c.l.b16 %v7851
  %v8371 = vunpack.c.l.b16 %v7852
  %v8372 = vunpack.c.l.b16 %v7853
  %v8373 = vunpack.c.l.b16 %v7854
  %v8374 = vunpack.c.l.b16 %v7855
  %v8375 = vunpack.c.l.b16 %v7856
  %v8376 = vunpack.c.l.b16 %v7857
  %v8377 = vunpack.c.l.b16 %v7858
  %v8378 = vunpack.c.l.b16 %v7859
  %v8379 = vunpack.c.l.b16 %v7860
  %v8380 = vunpack.c.l.b16 %v7861
  %v8381 = vunpack.c.l.b16 %v7862
  %v8382 = vunpack.c.l.b16 %v7863
  %v8383 = vunpack.c.l.b16 %v7864
  %v8384 = vunpack.c.l.b16 %v7865
  %v8385 = vunpack.c.l.b16 %v7866
  %v8386 = vunpack.c.l.b16 %v7867
  %v8387 = vunpack.c.l.b16 %v7868
  %v8388 = vunpack.c.l.b16 %v7869
  %v8389 = vunpack.c.l.b16 %v7870
  %v8390 = vunpack.c.l.b16 %v7871
  %v8391 = vunpack.c.l.b16 %v7872
  %v8392 = vunpack.c.l.b16 %v7873
  %v8393 = vunpack.c.l.b16 %v7874
  %v8394 = vunpack.c.l.b16 %v7875
  %v8395 = vunpack.c.l.b16 %v7876
  %v8396 = vunpack.c.l.b16 %v7877
  %v8397 = vunpack.c.l.b16 %v7878
  %v8398 = vunpack.c.l.b16 %v7879
  %v8399 = vunpack.c.l.b16 %v7880
  %v8400 = vunpack.c.l.b16 %v7881
  %v8401 = vunpack.c.l.b16 %v7882
  %v8402 = vunpack.c.l.b16 %v7883
  %v8403 = vunpack.c.l.b16 %v7884
  %v8404 = vunpack.c.l.b16 %v7885
  %v8405 = vunpack.c.l.b16 %v7886
  %v8406 = vunpack.c.l.b16 %v7887
  %v8407 = vunpack.c.l.b16 %v7888
  %v8408 = vunpack.c.l.b16 %v7889
  %v8409 = vunpack.c.l.b16 %v7890
  %v8410 = vunpack.c.l.b16 %v7891
  %v8411 = vunpack.c.l.b16 %v7892
  %v8412 = vunpack.c.l.b16 %v7893
  %v8413 = vunpack.c.l.b16 %v7894
  %v8414 = vunpack.c.l.b16 %v7895
  %v8415 = vunpack.c.l.b16 %v7896
  %v8416 = vunpack.c.l.b16 %v7897
  %v8417 = vunpack.c.l.b16 %v7898
  %v8418 = vunpack.c.l.b16 %v7899
  %v8419 = vunpack.c.l.b16 %v7900
  %v8420 = vunpack.c.l.b16 %v7901
  %v8421 = vunpack.c.l.b16 %v7902
  %v8422 = vunpack.c.l.b16 %v7903
  %v8423 = vunpack.c.l.b16 %v7904
  %v8424 = vunpack.c.l.b16 %v7905
  %v8425 = vunpack.c.l.b16 %v7906
  %v8426 = vunpack.c.l.b16 %v7907
  %v8427 = vunpack.c.l.b16 %v7908
  %v8428 = vunpack.c.l.b16 %v7909
  %v8429 = vunpack.c.l.b16 %v7910
  %v8430 = vunpack.c.l.b16 %v7911
  %v8431 = vunpack.c.l.b16 %v7912
  %v8432 = vunpack.c.l.b16 %v7913
  %v8433 = vunpack.c.l.b16 %v7914
  %v8434 = vunpack.c.l.b16 %v7915
  %v8435 = vunpack.c.l.b16 %v7916
  %v8436 = vunpack.c.l.b16 %v7917
  %v8437 = vunpack.c.l.b16 %v7918
  %v8438 = vunpack.c.l.b16 %v7919
  %v8439 = vunpack.c.l.b16 %v7920
  %v8440 = vunpack.c.l.b16 %v7921
  %v8441 = vunpack.c.l.b16 %v7922
  %v8442 = vunpack.c.l.b16 %v7923
  %v8443 = vunpack.c.l.b16 %v7924
  %v8444 = vunpack.c.l.b16 %v7925
  %v8445 = vunpack.c.l.b16 %v7926
  %v8446 = vunpack.c.l.b16 %v7927
  %v8447 = vunpack.c.l.b16 %v7928
  %v8448 = vunpack.c.l.b16 %v7929
  %v8449 = vunpack.c.l.b16 %v7930
  %v8450 = vunpack.c.l.b16 %v7931
  %v8451 = vunpack.c.l.b16 %v7932
  %v8452 = vunpack.c.l.b16 %v7933
  %v8453 = vunpack.c.l.b16 %v7934
  %v8454 = vunpack.c.l.b16 %v7935
  %v8455 = vunpack.c.l.b16 %v7936
  %v8456 = vunpack.c.l.b16 %v7937
  %v8457 = vunpack.c.l.b16 %v7938
  %v8458 = vunpack.c.l.b16 %v7939
  %v8459 = vunpack.c.l.b16 %v7940
  %v8460 = vunpack.c.l.b16 %v7941
  %v8461 = vunpack.c.l.b16 %v7942
  %v8462 = vunpack.c.l.b16 %v7943
  %v8463 = vunpack.c.l.b16 %v7944
  %v8464 = vunpack.c.l.b16 %v7945
  %v8465 = vunpack.c.l.b16 %v7946
  %v8466 = vunpack.c.l.b16 %v7947
  %v8467 = vunpack.c.l.b16 %v7948
  %v8468 = vunpack.c.l.b16 %v7949
  %v8469 = vunpack.c.l.b16 %v7950
  %v8470 = vunpack.c.l.b16 %v7951
  %v8471 = vunpack.c.l.b16 %v7952
  %v8472 = vunpack.c.l.b16 %v7953
  %v8473 = vunpack.c.l.b16 %v7954
  %v8474 = vunpack.c.l.b16 %v7955
  %v8475 = vunpack.c.l.b16 %v7956
  %v8476 = vunpack.c.l.b16 %v7957
  %v8477 = vunpack.c.l.b16 %v7958
  %v8478 = vunpack.c.l.b16 %v7959
  %v8479 = vunpack.c.l.b16 %v7960
  %v8480 = vunpack.c.l.b16 %v7961
  %v8481 = vunpack.c.l.b16 %v7962
  %v8482 = vunpack.c.l.b16 %v7963
  %v8483 = vunpack.c.l.b16 %v7964
  %v8484 = vunpack.c.l.b16 %v7965
  %v8485 = vunpack.c.l.b16 %v7966
  %v8486 = vunpack.c.l.b16 %v7967
  %v8487 = vunpack.c.l.b16 %v7968
  %v8488 = vunpack.c.l.b16 %v7969
  %v8489 = vunpack.c.l.b16 %v7970
  %v8490 = vunpack.c.l.b16 %v7971
  %v8491 = vunpack.c.l.b16 %v7972
  %v8492 = vunpack.c.l.b16 %v7973
  %v8493 = vunpack.c.l.b16 %v7974
  %v8494 = vunpack.c.l.b16 %v7975
  %v8495 = vunpack.c.l.b16 %v7976
  %v8496 = vunpack.c.l.b16 %v7977
  %v8497 = vunpack.c.l.b16 %v7978
  %v8498 = vunpack.c.l.b16 %v7979
  %v8499 = vunpack.c.l.b16 %v7980
  %v8500 = vunpack.c.l.b16 %v7981
  %v8501 = vunpack.c.l.b16 %v7982
  %v8502 = vunpack.c.l.b16 %v7983
  %v8503 = vunpack.c.l.b16 %v7984
  %v8504 = vunpack.c.l.b16 %v7985
  %v8505 = vunpack.c.l.b16 %v7986
  %v8506 = vunpack.c.l.b16 %v7987
  %v8507 = vunpack.c.l.b16 %v7988
  %v8508 = vunpack.c.l.b16 %v7989
  %v8509 = vunpack.c.l.b16 %v7990
  %v8510 = vunpack.c.l.b16 %v7991
  %v8511 = vunpack.c.l.b16 %v7992
  %v8512 = vunpack.c.l.b16 %v7993
  %v8513 = vunpack.c.l.b16 %v7994
  %v8514 = vunpack.c.l.b16 %v7995
  %v8515 = vunpack.c.l.b16 %v7996
  %v8516 = vunpack.c.l.b16 %v7997
  %v8517 = vunpack.c.l.b16 %v7998
  %v8518 = vunpack.c.l.b16 %v7999
  %v8519 = vunpack.c.l.b16 %v8000
  %v8520 = vunpack.c.l.b16 %v8001
  %v8521 = vunpack.c.l.b16 %v8002
  %v8522 = vunpack.c.l.b16 %v8003
  %v8523 = vunpack.c.l.b16 %v8004
  %v8524 = vunpack.c.l.b16 %v8005
  %v8525 = vunpack.c.l.b16 %v8006
  %v8526 = vunpack.c.l.b16 %v8007
  %v8527 = vunpack.c.l.b16 %v8008
  %v8528 = vunpack.c.l.b16 %v8009
  %v8529 = vunpack.c.l.b16 %v8010
  %v8530 = vunpack.c.l.b16 %v8011
  %v8531 = vunpack.c.l.b16 %v8012
  %v8532 = vunpack.c.l.b16 %v8013
  %v8533 = vunpack.c.l.b16 %v8014
  %v8534 = vunpack.c.l.b16 %v8015
  %v8535 = vunpack.c.l.b16 %v8016
  %v8536 = vunpack.c.l.b16 %v8017
  %v8537 = vunpack.c.l.b16 %v8018
  %v8538 = vunpack.c.l.b16 %v8019
  %v8539 = vunpack.c.l.b16 %v8020
  %v8540 = vunpack.c.l.b16 %v8021
  %v8541 = vunpack.c.l.b16 %v8022
  %v8542 = vunpack.c.l.b16 %v8023
  %v8543 = vunpack.c.l.b16 %v8024
  %v8544 = vunpack.c.l.b16 %v8025
  %v8545 = vunpack.c.l.b16 %v8026
  %v8546 = vunpack.c.l.b16 %v8027
  %v8547 = vunpack.c.l.b16 %v8028
  %v8548 = vunpack.c.l.b16 %v8029
  %v8549 = vunpack.c.l.b16 %v8030
  %v8550 = vunpack.c.l.b16 %v8031
  %v8551 = vunpack.c.l.b16 %v8032
  %v8552 = vunpack.c.l.b16 %v8033
  %v8553 = vunpack.c.l.b16 %v8034
  %v8554 = vunpack.c.l.b16 %v8035
  %v8555 = vunpack.c.l.b16 %v8036
  %v8556 = vunpack.c.l.b16 %v8037
  %v8557 = vunpack.c.l.b16 %v8038
  %v8558 = vunpack.c.l.b16 %v8039
  %v8559 = vunpack.c.l.b16 %v8040
  %v8560 = vpack.c.b16 %v8305, %v8304
  %v8561 = vpack.c.b16 %v8307, %v8306
  %v8562 = vpack.c.b16 %v8309, %v8308
  %v8563 = vpack.c.b16 %v8311, %v8310
  %v8564 = vpack.c.b16 %v8313, %v8312
  %v8565 = vpack.c.b16 %v8315, %v8314
  %v8566 = vpack.c.b16 %v8317, %v8316
  %v8567 = vpack.c.b16 %v8319, %v8318
  %v8568 = vpack.c.b16 %v8321, %v8320
  %v8569 = vpack.c.b16 %v8323, %v8322
  %v8570 = vpack.c.b16 %v8325, %v8324
  %v8571 = vpack.c.b16 %v8327, %v8326
  %v8572 = vpack.c.b16 %v8329, %v8328
  %v8573 = vpack.c.b16 %v8331, %v8330
  %v8574 = vpack.c.b16 %v8333, %v8332
  %v8575 = vpack.c.b16 %v8335, %v8334
  %v8576 = vpack.c.b16 %v8337, %v8336
  %v8577 = vpack.c.b16 %v8339, %v8338
  %v8578 = vpack.c.b16 %v8341, %v8340
  %v8579 = vpack.c.b16 %v8343, %v8342
  %v8580 = vpack.c.b16 %v8345, %v8344
  %v8581 = vpack.c.b16 %v8347, %v8346
  %v8582 = vpack.c.b16 %v8349, %v8348
  %v8583 = vpack.c.b16 %v8351, %v8350
  %v8584 = vpack.c.b16 %v8353, %v8352
  %v8585 = vpack.c.b16 %v8355, %v8354
  %v8586 = vpack.c.b16 %v8357, %v8356
  %v8587 = vpack.c.b16 %v8359, %v8358
  %v8588 = vpack.c.b16 %v8361, %v8360
  %v8589 = vpack.c.b16 %v8363, %v8362
  %v8590 = vpack.c.b16 %v8365, %v8364
  %v8591 = vpack.c.b16 %v8367, %v8366
  %v8592 = vpack.c.b16 %v8369, %v8368
  %v8593 = vpack.c.b16 %v8371, %v8370
  %v8594 = vpack.c.b16 %v8373, %v8372
  %v8595 = vpack.c.b16 %v8375, %v8374
  %v8596 = vpack.c.b16 %v8377, %v8376
  %v8597 = vpack.c.b16 %v8379, %v8378
  %v8598 = vpack.c.b16 %v8381, %v8380
  %v8599 = vpack.c.b16 %v8383, %v8382
  %v8600 = vpack.c.b16 %v8385, %v8384
  %v8601 = vpack.c.b16 %v8387, %v8386
  %v8602 = vpack.c.b16 %v8389, %v8388
  %v8603 = vpack.c.b16 %v8391, %v8390
  %v8604 = vpack.c.b16 %v8393, %v8392
  %v8605 = vpack.c.b16 %v8395, %v8394
  %v8606 = vpack.c.b16 %v8397, %v8396
  %v8607 = vpack.c.b16 %v8399, %v8398
  %v8608 = vpack.c.b16 %v8401, %v8400
  %v8609 = vpack.c.b16 %v8403, %v8402
  %v8610 = vpack.c.b16 %v8405, %v8404
  %v8611 = vpack.c.b16 %v8407, %v8406
  %v8612 = vpack.c.b16 %v8409, %v8408
  %v8613 = vpack.c.b16 %v8411, %v8410
  %v8614 = vpack.c.b16 %v8413, %v8412
  %v8615 = vpack.c.b16 %v8415, %v8414
  %v8616 = vpack.c.b16 %v8417, %v8416
  %v8617 = vpack.c.b16 %v8419, %v8418
  %v8618 = vpack.c.b16 %v8421, %v8420
  %v8619 = vpack.c.b16 %v8423, %v8422
  %v8620 = vpack.c.b16 %v8425, %v8424
  %v8621 = vpack.c.b16 %v8427, %v8426
  %v8622 = vpack.c.b16 %v8429, %v8428
  %v8623 = vpack.c.b16 %v8431, %v8430
  %v8624 = vpack.c.b16 %v8433, %v8432
  %v8625 = vpack.c.b16 %v8435, %v8434
  %v8626 = vpack.c.b16 %v8437, %v8436
  %v8627 = vpack.c.b16 %v8439, %v8438
  %v8628 = vpack.c.b16 %v8441, %v8440
  %v8629 = vpack.c.b16 %v8443, %v8442
  %v8630 = vpack.c.b16 %v8445, %v8444
  %v8631 = vpack.c.b16 %v8447, %v8446
  %v8632 = vpack.c.b16 %v8449, %v8448
  %v8633 = vpack.c.b16 %v8451, %v8450
  %v8634 = vpack.c.b16 %v8453, %v8452
  %v8635 = vpack.c.b16 %v8455, %v8454
  %v8636 = vpack.c.b16 %v8457, %v8456
  %v8637 = vpack.c.b16 %v8459, %v8458
  %v8638 = vpack.c.b16 %v8461, %v8460
  %v8639 = vpack.c.b16 %v8463, %v8462
  %v8640 = vpack.c.b16 %v8465, %v8464
  %v8641 = vpack.c.b16 %v8467, %v8466
  %v8642 = vpack.c.b16 %v8469, %v8468
  %v8643 = vpack.c.b16 %v8471, %v8470
  %v8644 = vpack.c.b16 %v8473, %v8472
  %v8645 = vpack.c.b16 %v8475, %v8474
  %v8646 = vpack.c.b16 %v8477, %v8476
  %v8647 = vpack.c.b16 %v8479, %v8478
  %v8648 = vpack.c.b16 %v8481, %v8480
  %v8649 = vpack.c.b16 %v8483, %v8482
  %v8650 = vpack.c.b16 %v8485, %v8484
  %v8651 = vpack.c.b16 %v8487, %v8486
  %v8652 = vpack.c.b16 %v8489, %v8488
  %v8653 = vpack.c.b16 %v8491, %v8490
  %v8654 = vpack.c.b16 %v8493, %v8492
  %v8655 = vpack.c.b16 %v8495, %v8494
  %v8656 = vpack.c.b16 %v8497, %v8496
  %v8657 = vpack.c.b16 %v8499, %v8498
  %v8658 = vpack.c.b16 %v8501, %v8500
  %v8659 = vpack.c.b16 %v8503, %v8502
  %v8660 = vpack.c.b16 %v8505, %v8504
  %v8661 = vpack.c.b16 %v8507, %v8506
  %v8662 = vpack.c.b16 %v8509, %v8508
  %v8663 = vpack.c.b16 %v8511, %v8510
  %v8664 = vpack.c.b16 %v8513, %v8512
  %v8665 = vpack.c.b16 %v8515, %v8514
  %v8666 = vpack.c.b16 %v8517, %v8516
  %v8667 = vpack.c.b16 %v8519, %v8518
  %v8668 = vpack.c.b16 %v8521, %v8520
  %v8669 = vpack.c.b16 %v8523, %v8522
  %v8670 = vpack.c.b16 %v8525, %v8524
  %v8671 = vpack.c.b16 %v8527, %v8526
  %v8672 = vpack.c.b16 %v8529, %v8528
  %v8673 = vpack.c.b16 %v8531, %v8530
  %v8674 = vpack.c.b16 %v8533, %v8532
  %v8675 = vpack.c.b16 %v8535, %v8534
  %v8676 = vpack.c.b16 %v8537, %v8536
  %v8677 = vpack.c.b16 %v8539, %v8538
  %v8678 = vpack.c.b16 %v8541, %v8540
  %v8679 = vpack.c.b16 %v8543, %v8542
  %v8680 = vpack.c.b16 %v8545, %v8544
  %v8681 = vpack.c.b16 %v8547, %v8546
  %v8682 = vpack.c.b16 %v8549, %v8548
  %v8683 = vpack.c.b16 %v8551, %v8550
  %v8684 = vpack.c.b16 %v8553, %v8552
  %v8685 = vpack.c.b16 %v8555, %v8554
  %v8686 = vpack.c.b16 %v8557, %v8556
  %v8687 = vpack.c.b16 %v8559, %v8558
  %8816 = vmatprep.subr.bf16.mxu0 0
  %8817 = vmatpush1.bf16.msra.mxu0 %v8560
  %8818 = vmatprep.subr.bf16.mxu0 0
  %8819 = vmatpush1.bf16.msra.mxu0 %v8561
  %8820 = vmatprep.subr.bf16.mxu0 0
  %8821 = vmatpush1.bf16.msra.mxu0 %v8562
  %8822 = vmatprep.subr.bf16.mxu0 0
  %8823 = vmatpush1.bf16.msra.mxu0 %v8563
  %8824 = vmatprep.subr.bf16.mxu0 0
  %8825 = vmatpush1.bf16.msra.mxu0 %v8564
  %8826 = vmatprep.subr.bf16.mxu0 0
  %8827 = vmatpush1.bf16.msra.mxu0 %v8565
  %8828 = vmatprep.subr.bf16.mxu0 0
  %8829 = vmatpush1.bf16.msra.mxu0 %v8566
  %8830 = vmatprep.subr.bf16.mxu0 0
  %8831 = vmatpush1.bf16.msra.mxu0 %v8567
  %8832 = vmatprep.subr.bf16.mxu0 0
  %8833 = vmatpush1.bf16.msra.mxu0 %v8568
  %8834 = vmatprep.subr.bf16.mxu0 0
  %8835 = vmatpush1.bf16.msra.mxu0 %v8569
  %8836 = vmatprep.subr.bf16.mxu0 0
  %8837 = vmatpush1.bf16.msra.mxu0 %v8570
  %8838 = vmatprep.subr.bf16.mxu0 0
  %8839 = vmatpush1.bf16.msra.mxu0 %v8571
  %8840 = vmatprep.subr.bf16.mxu0 0
  %8841 = vmatpush1.bf16.msra.mxu0 %v8572
  %8842 = vmatprep.subr.bf16.mxu0 0
  %8843 = vmatpush1.bf16.msra.mxu0 %v8573
  %8844 = vmatprep.subr.bf16.mxu0 0
  %8845 = vmatpush1.bf16.msra.mxu0 %v8574
  %8846 = vmatprep.subr.bf16.mxu0 0
  %8847 = vmatpush1.bf16.msra.mxu0 %v8575
  %8848 = vmatprep.mubr.bf16.mxu0 %v7770
  %8849 = vmatmul.mubr.bf16.gmra.mrb[0].mxu0 %v7769
  %v8850 = vpop.f32.mrb[0].mxu0
  %v8851 = vadd.f32 %v8046, %v8850
  %v8852 = vpop.f32.mrb[0].mxu0
  %v8853 = vpop.f32.mrb[0].mxu0
  %v8854 = vadd.f32 %v8046, %v8853
  %v8855 = vpop.f32.mrb[0].mxu0
  %8856 = vdwg.mxu0
  %8857 = vmatprep.subr.bf16.mxu0 0
  %8858 = vmatpush1.bf16.msra.mxu0 %v8576
  %8859 = vmatprep.subr.bf16.mxu0 0
  %8860 = vmatpush1.bf16.msra.mxu0 %v8577
  %8861 = vmatprep.subr.bf16.mxu0 0
  %8862 = vmatpush1.bf16.msra.mxu0 %v8578
  %8863 = vmatprep.subr.bf16.mxu0 0
  %8864 = vmatpush1.bf16.msra.mxu0 %v8579
  %8865 = vmatprep.subr.bf16.mxu0 0
  %8866 = vmatpush1.bf16.msra.mxu0 %v8580
  %8867 = vmatprep.subr.bf16.mxu0 0
  %8868 = vmatpush1.bf16.msra.mxu0 %v8581
  %8869 = vmatprep.subr.bf16.mxu0 0
  %8870 = vmatpush1.bf16.msra.mxu0 %v8582
  %8871 = vmatprep.subr.bf16.mxu0 0
  %8872 = vmatpush1.bf16.msra.mxu0 %v8583
  %8873 = vmatprep.subr.bf16.mxu0 0
  %8874 = vmatpush1.bf16.msra.mxu0 %v8584
  %8875 = vmatprep.subr.bf16.mxu0 0
  %8876 = vmatpush1.bf16.msra.mxu0 %v8585
  %8877 = vmatprep.subr.bf16.mxu0 0
  %8878 = vmatpush1.bf16.msra.mxu0 %v8586
  %8879 = vmatprep.subr.bf16.mxu0 0
  %8880 = vmatpush1.bf16.msra.mxu0 %v8587
  %8881 = vmatprep.subr.bf16.mxu0 0
  %8882 = vmatpush1.bf16.msra.mxu0 %v8588
  %8883 = vmatprep.subr.bf16.mxu0 0
  %8884 = vmatpush1.bf16.msra.mxu0 %v8589
  %8885 = vmatprep.subr.bf16.mxu0 0
  %8886 = vmatpush1.bf16.msra.mxu0 %v8590
  %8887 = vmatprep.subr.bf16.mxu0 0
  %8888 = vmatpush1.bf16.msra.mxu0 %v8591
  %8889 = vmatprep.mubr.bf16.mxu0 %v7772
  %8890 = vmatmul.mubr.bf16.gmra.mrb[0].mxu0 %v7771
  %v8891 = vpop.f32.mrb[0].mxu0
  %v8892 = vadd.f32 %v8851, %v8891
  %v8893 = vpop.f32.mrb[0].mxu0
  %v8894 = vpop.f32.mrb[0].mxu0
  %v8895 = vadd.f32 %v8854, %v8894
  %v8896 = vpop.f32.mrb[0].mxu0
  %8897 = vdwg.mxu0
  %8898 = vmatprep.subr.bf16.mxu0 0
  %8899 = vmatpush1.bf16.msra.mxu0 %v8592
  %8900 = vmatprep.subr.bf16.mxu0 0
  %8901 = vmatpush1.bf16.msra.mxu0 %v8593
  %8902 = vmatprep.subr.bf16.mxu0 0
  %8903 = vmatpush1.bf16.msra.mxu0 %v8594
  %8904 = vmatprep.subr.bf16.mxu0 0
  %8905 = vmatpush1.bf16.msra.mxu0 %v8595
  %8906 = vmatprep.subr.bf16.mxu0 0
  %8907 = vmatpush1.bf16.msra.mxu0 %v8596
  %8908 = vmatprep.subr.bf16.mxu0 0
  %8909 = vmatpush1.bf16.msra.mxu0 %v8597
  %8910 = vmatprep.subr.bf16.mxu0 0
  %8911 = vmatpush1.bf16.msra.mxu0 %v8598
  %8912 = vmatprep.subr.bf16.mxu0 0
  %8913 = vmatpush1.bf16.msra.mxu0 %v8599
  %8914 = vmatprep.subr.bf16.mxu0 0
  %8915 = vmatpush1.bf16.msra.mxu0 %v8600
  %8916 = vmatprep.subr.bf16.mxu0 0
  %8917 = vmatpush1.bf16.msra.mxu0 %v8601
  %8918 = vmatprep.subr.bf16.mxu0 0
  %8919 = vmatpush1.bf16.msra.mxu0 %v8602
  %8920 = vmatprep.subr.bf16.mxu0 0
  %8921 = vmatpush1.bf16.msra.mxu0 %v8603
  %8922 = vmatprep.subr.bf16.mxu0 0
  %8923 = vmatpush1.bf16.msra.mxu0 %v8604
  %8924 = vmatprep.subr.bf16.mxu0 0
  %8925 = vmatpush1.bf16.msra.mxu0 %v8605
  %8926 = vmatprep.subr.bf16.mxu0 0
  %8927 = vmatpush1.bf16.msra.mxu0 %v8606
  %8928 = vmatprep.subr.bf16.mxu0 0
  %8929 = vmatpush1.bf16.msra.mxu0 %v8607
  %8930 = vmatprep.mubr.bf16.mxu0 %v7774
  %8931 = vmatmul.mubr.bf16.gmra.mrb[0].mxu0 %v7773
  %v8932 = vpop.f32.mrb[0].mxu0
  %v8933 = vadd.f32 %v8892, %v8932
  %v8934 = vpop.f32.mrb[0].mxu0
  %v8935 = vpop.f32.mrb[0].mxu0
  %v8936 = vadd.f32 %v8895, %v8935
  %v8937 = vpop.f32.mrb[0].mxu0
  %8938 = vdwg.mxu0
  %8939 = vmatprep.subr.bf16.mxu0 0
  %8940 = vmatpush1.bf16.msra.mxu0 %v8608
  %8941 = vmatprep.subr.bf16.mxu0 0
  %8942 = vmatpush1.bf16.msra.mxu0 %v8609
  %8943 = vmatprep.subr.bf16.mxu0 0
  %8944 = vmatpush1.bf16.msra.mxu0 %v8610
  %8945 = vmatprep.subr.bf16.mxu0 0
  %8946 = vmatpush1.bf16.msra.mxu0 %v8611
  %8947 = vmatprep.subr.bf16.mxu0 0
  %8948 = vmatpush1.bf16.msra.mxu0 %v8612
  %8949 = vmatprep.subr.bf16.mxu0 0
  %8950 = vmatpush1.bf16.msra.mxu0 %v8613
  %8951 = vmatprep.subr.bf16.mxu0 0
  %8952 = vmatpush1.bf16.msra.mxu0 %v8614
  %8953 = vmatprep.subr.bf16.mxu0 0
  %8954 = vmatpush1.bf16.msra.mxu0 %v8615
  %8955 = vmatprep.subr.bf16.mxu0 0
  %8956 = vmatpush1.bf16.msra.mxu0 %v8616
  %8957 = vmatprep.subr.bf16.mxu0 0
  %8958 = vmatpush1.bf16.msra.mxu0 %v8617
  %8959 = vmatprep.subr.bf16.mxu0 0
  %8960 = vmatpush1.bf16.msra.mxu0 %v8618
  %8961 = vmatprep.subr.bf16.mxu0 0
  %8962 = vmatpush1.bf16.msra.mxu0 %v8619
  %8963 = vmatprep.subr.bf16.mxu0 0
  %8964 = vmatpush1.bf16.msra.mxu0 %v8620
  %8965 = vmatprep.subr.bf16.mxu0 0
  %8966 = vmatpush1.bf16.msra.mxu0 %v8621
  %8967 = vmatprep.subr.bf16.mxu0 0
  %8968 = vmatpush1.bf16.msra.mxu0 %v8622
  %8969 = vmatprep.subr.bf16.mxu0 0
  %8970 = vmatpush1.bf16.msra.mxu0 %v8623
  %8971 = vmatprep.mubr.bf16.mxu0 %v7776
  %8972 = vmatmul.mubr.bf16.gmra.mrb[0].mxu0 %v7775
  %v8973 = vpop.f32.mrb[0].mxu0
  %v8974 = vadd.f32 %v8933, %v8973
  %v8975 = vpop.f32.mrb[0].mxu0
  %v8976 = vpop.f32.mrb[0].mxu0
  %v8977 = vadd.f32 %v8936, %v8976
  %v8978 = vpop.f32.mrb[0].mxu0
  %8979 = vdwg.mxu0
  %8980 = vmatprep.subr.bf16.mxu0 0
  %8981 = vmatpush1.bf16.msra.mxu0 %v8624
  %8982 = vmatprep.subr.bf16.mxu0 0
  %8983 = vmatpush1.bf16.msra.mxu0 %v8625
  %8984 = vmatprep.subr.bf16.mxu0 0
  %8985 = vmatpush1.bf16.msra.mxu0 %v8626
  %8986 = vmatprep.subr.bf16.mxu0 0
  %8987 = vmatpush1.bf16.msra.mxu0 %v8627
  %8988 = vmatprep.subr.bf16.mxu0 0
  %8989 = vmatpush1.bf16.msra.mxu0 %v8628
  %8990 = vmatprep.subr.bf16.mxu0 0
  %8991 = vmatpush1.bf16.msra.mxu0 %v8629
  %8992 = vmatprep.subr.bf16.mxu0 0
  %8993 = vmatpush1.bf16.msra.mxu0 %v8630
  %8994 = vmatprep.subr.bf16.mxu0 0
  %8995 = vmatpush1.bf16.msra.mxu0 %v8631
  %8996 = vmatprep.subr.bf16.mxu0 0
  %8997 = vmatpush1.bf16.msra.mxu0 %v8632
  %8998 = vmatprep.subr.bf16.mxu0 0
  %8999 = vmatpush1.bf16.msra.mxu0 %v8633
  %9000 = vmatprep.subr.bf16.mxu0 0
  %9001 = vmatpush1.bf16.msra.mxu0 %v8634
  %9002 = vmatprep.subr.bf16.mxu0 0
  %9003 = vmatpush1.bf16.msra.mxu0 %v8635
  %9004 = vmatprep.subr.bf16.mxu0 0
  %9005 = vmatpush1.bf16.msra.mxu0 %v8636
  %9006 = vmatprep.subr.bf16.mxu0 0
  %9007 = vmatpush1.bf16.msra.mxu0 %v8637
  %9008 = vmatprep.subr.bf16.mxu0 0
  %9009 = vmatpush1.bf16.msra.mxu0 %v8638
  %9010 = vmatprep.subr.bf16.mxu0 0
  %9011 = vmatpush1.bf16.msra.mxu0 %v8639
  %9012 = vmatprep.mubr.bf16.mxu0 %v7778
  %9013 = vmatmul.mubr.bf16.gmra.mrb[0].mxu0 %v7777
  %v9014 = vpop.f32.mrb[0].mxu0
  %v9015 = vadd.f32 %v8974, %v9014
  %v9016 = vpop.f32.mrb[0].mxu0
  %v9017 = vpop.f32.mrb[0].mxu0
  %v9018 = vadd.f32 %v8977, %v9017
  %v9019 = vpop.f32.mrb[0].mxu0
  %9020 = vdwg.mxu0
  %9021 = vmatprep.subr.bf16.mxu0 0
  %9022 = vmatpush1.bf16.msra.mxu0 %v8640
  %9023 = vmatprep.subr.bf16.mxu0 0
  %9024 = vmatpush1.bf16.msra.mxu0 %v8641
  %9025 = vmatprep.subr.bf16.mxu0 0
  %9026 = vmatpush1.bf16.msra.mxu0 %v8642
  %9027 = vmatprep.subr.bf16.mxu0 0
  %9028 = vmatpush1.bf16.msra.mxu0 %v8643
  %9029 = vmatprep.subr.bf16.mxu0 0
  %9030 = vmatpush1.bf16.msra.mxu0 %v8644
  %9031 = vmatprep.subr.bf16.mxu0 0
  %9032 = vmatpush1.bf16.msra.mxu0 %v8645
  %9033 = vmatprep.subr.bf16.mxu0 0
  %9034 = vmatpush1.bf16.msra.mxu0 %v8646
  %9035 = vmatprep.subr.bf16.mxu0 0
  %9036 = vmatpush1.bf16.msra.mxu0 %v8647
  %9037 = vmatprep.subr.bf16.mxu0 0
  %9038 = vmatpush1.bf16.msra.mxu0 %v8648
  %9039 = vmatprep.subr.bf16.mxu0 0
  %9040 = vmatpush1.bf16.msra.mxu0 %v8649
  %9041 = vmatprep.subr.bf16.mxu0 0
  %9042 = vmatpush1.bf16.msra.mxu0 %v8650
  %9043 = vmatprep.subr.bf16.mxu0 0
  %9044 = vmatpush1.bf16.msra.mxu0 %v8651
  %9045 = vmatprep.subr.bf16.mxu0 0
  %9046 = vmatpush1.bf16.msra.mxu0 %v8652
  %9047 = vmatprep.subr.bf16.mxu0 0
  %9048 = vmatpush1.bf16.msra.mxu0 %v8653
  %9049 = vmatprep.subr.bf16.mxu0 0
  %9050 = vmatpush1.bf16.msra.mxu0 %v8654
  %9051 = vmatprep.subr.bf16.mxu0 0
  %9052 = vmatpush1.bf16.msra.mxu0 %v8655
  %9053 = vmatprep.mubr.bf16.mxu0 %v7780
  %9054 = vmatmul.mubr.bf16.gmra.mrb[0].mxu0 %v7779
  %v9055 = vpop.f32.mrb[0].mxu0
  %v9056 = vadd.f32 %v9015, %v9055
  %v9057 = vpop.f32.mrb[0].mxu0
  %v9058 = vpop.f32.mrb[0].mxu0
  %v9059 = vadd.f32 %v9018, %v9058
  %v9060 = vpop.f32.mrb[0].mxu0
  %9061 = vdwg.mxu0
  %9062 = vmatprep.subr.bf16.mxu0 0
  %9063 = vmatpush1.bf16.msra.mxu0 %v8656
  %9064 = vmatprep.subr.bf16.mxu0 0
  %9065 = vmatpush1.bf16.msra.mxu0 %v8657
  %9066 = vmatprep.subr.bf16.mxu0 0
  %9067 = vmatpush1.bf16.msra.mxu0 %v8658
  %9068 = vmatprep.subr.bf16.mxu0 0
  %9069 = vmatpush1.bf16.msra.mxu0 %v8659
  %9070 = vmatprep.subr.bf16.mxu0 0
  %9071 = vmatpush1.bf16.msra.mxu0 %v8660
  %9072 = vmatprep.subr.bf16.mxu0 0
  %9073 = vmatpush1.bf16.msra.mxu0 %v8661
  %9074 = vmatprep.subr.bf16.mxu0 0
  %9075 = vmatpush1.bf16.msra.mxu0 %v8662
  %9076 = vmatprep.subr.bf16.mxu0 0
  %9077 = vmatpush1.bf16.msra.mxu0 %v8663
  %9078 = vmatprep.subr.bf16.mxu0 0
  %9079 = vmatpush1.bf16.msra.mxu0 %v8664
  %9080 = vmatprep.subr.bf16.mxu0 0
  %9081 = vmatpush1.bf16.msra.mxu0 %v8665
  %9082 = vmatprep.subr.bf16.mxu0 0
  %9083 = vmatpush1.bf16.msra.mxu0 %v8666
  %9084 = vmatprep.subr.bf16.mxu0 0
  %9085 = vmatpush1.bf16.msra.mxu0 %v8667
  %9086 = vmatprep.subr.bf16.mxu0 0
  %9087 = vmatpush1.bf16.msra.mxu0 %v8668
  %9088 = vmatprep.subr.bf16.mxu0 0
  %9089 = vmatpush1.bf16.msra.mxu0 %v8669
  %9090 = vmatprep.subr.bf16.mxu0 0
  %9091 = vmatpush1.bf16.msra.mxu0 %v8670
  %9092 = vmatprep.subr.bf16.mxu0 0
  %9093 = vmatpush1.bf16.msra.mxu0 %v8671
  %9094 = vmatprep.mubr.bf16.mxu0 %v7782
  %9095 = vmatmul.mubr.bf16.gmra.mrb[0].mxu0 %v7781
  %v9096 = vpop.f32.mrb[0].mxu0
  %v9097 = vadd.f32 %v9056, %v9096
  %v9098 = vpop.f32.mrb[0].mxu0
  %v9099 = vpop.f32.mrb[0].mxu0
  %v9100 = vadd.f32 %v9059, %v9099
  %v9101 = vpop.f32.mrb[0].mxu0
  %9102 = vdwg.mxu0
  %9103 = vmatprep.subr.bf16.mxu0 0
  %9104 = vmatpush1.bf16.msra.mxu0 %v8672
  %9105 = vmatprep.subr.bf16.mxu0 0
  %9106 = vmatpush1.bf16.msra.mxu0 %v8673
  %9107 = vmatprep.subr.bf16.mxu0 0
  %9108 = vmatpush1.bf16.msra.mxu0 %v8674
  %9109 = vmatprep.subr.bf16.mxu0 0
  %9110 = vmatpush1.bf16.msra.mxu0 %v8675
  %9111 = vmatprep.subr.bf16.mxu0 0
  %9112 = vmatpush1.bf16.msra.mxu0 %v8676
  %9113 = vmatprep.subr.bf16.mxu0 0
  %9114 = vmatpush1.bf16.msra.mxu0 %v8677
  %9115 = vmatprep.subr.bf16.mxu0 0
  %9116 = vmatpush1.bf16.msra.mxu0 %v8678
  %9117 = vmatprep.subr.bf16.mxu0 0
  %9118 = vmatpush1.bf16.msra.mxu0 %v8679
  %9119 = vmatprep.subr.bf16.mxu0 0
  %9120 = vmatpush1.bf16.msra.mxu0 %v8680
  %9121 = vmatprep.subr.bf16.mxu0 0
  %9122 = vmatpush1.bf16.msra.mxu0 %v8681
  %9123 = vmatprep.subr.bf16.mxu0 0
  %9124 = vmatpush1.bf16.msra.mxu0 %v8682
  %9125 = vmatprep.subr.bf16.mxu0 0
  %9126 = vmatpush1.bf16.msra.mxu0 %v8683
  %9127 = vmatprep.subr.bf16.mxu0 0
  %9128 = vmatpush1.bf16.msra.mxu0 %v8684
  %9129 = vmatprep.subr.bf16.mxu0 0
  %9130 = vmatpush1.bf16.msra.mxu0 %v8685
  %9131 = vmatprep.subr.bf16.mxu0 0
  %9132 = vmatpush1.bf16.msra.mxu0 %v8686
  %9133 = vmatprep.subr.bf16.mxu0 0
  %9134 = vmatpush1.bf16.msra.mxu0 %v8687
  %9135 = vmatprep.mubr.bf16.mxu0 %v7784
  %9136 = vmatmul.mubr.bf16.gmra.mrb[0].mxu0 %v7783
  %v9137 = vpop.f32.mrb[0].mxu0
  %v9138 = vadd.f32 %v9097, %v9137
  %v9139 = vpop.f32.mrb[0].mxu0
  %v9140 = vpop.f32.mrb[0].mxu0
  %v9141 = vadd.f32 %v9100, %v9140
  %v9142 = vpop.f32.mrb[0].mxu0
  %9143 = vdwg.mxu0
  %v9144 = vadd.f32 %v7111, %v9138
  %v9145 = vadd.f32 %v7112, %v9141
  %v9146 = vsel %vm174, %v9144, 0.0
  %9147 = vadd.xlane.f32.xlu0 %v9146
  %v9148 = vpop.xlane.xlu0 %9147
  %v9149 = vsel %vm174, %v9145, 0.0
  %9150 = vadd.xlane.f32.xlu0 %v9149
  %v9151 = vpop.xlane.xlu0 %9150
  %v9152 = vmul.f32 %v9148, %v1707
  %v9153 = vmul.f32 %v9151, %v1707
  %v9154 = vsub.f32 %v9144, %v9152
  %v9155 = vsub.f32 %v9145, %v9153
  %v9156 = vmul.f32 %v9154, %v9154
  %v9157 = vmul.f32 %v9155, %v9155
  %v9158 = vsel %vm174, %v9156, 0.0
  %9159 = vadd.xlane.f32.xlu0 %v9158
  %v9160 = vpop.xlane.xlu0 %9159
  %v9161 = vsel %vm174, %v9157, 0.0
  %9162 = vadd.xlane.f32.xlu0 %v9161
  %v9163 = vpop.xlane.xlu0 %9162
  %v9164 = vmul.f32 %v9160, %v1707
  %v9165 = vmul.f32 %v9163, %v1707
  %v9166 = vadd.f32 %v9164, 1e-05
  %v9167 = vadd.f32 %v9165, 1e-05
  %v9168 = vrsqrt.pop %v9166
  %v9169 = vrsqrt.pop %v9167
  %v9170 = vmul.f32 %v9154, %v9168
  %v9171 = vmul.f32 %v9155, %v9169
  %v9172 = vld [vmem:[%s69] sm:$0x1]
  %v9174 = vlaneseq
  %v9175 = vshrl.u32 %v9174, 7
  %v9176 = vsub.s32 0, %v9175
  %v9177 = vrot.slane %v9172, %v9176
  %v9179 = vmul.f32 %v9170, %v9177
  %v9180 = vmul.f32 %v9171, %v9177
  %v9181 = vld [vmem:[%s71] sm:$0x1]
  %v9183 = vlaneseq
  %v9184 = vshrl.u32 %v9183, 7
  %v9185 = vsub.s32 0, %v9184
  %v9186 = vrot.slane %v9181, %v9185
  %v9188 = vadd.f32 %v9179, %v9186
  %v9189 = vadd.f32 %v9180, %v9186
  %v9190 = vsel %vm174, %v9188, 0.0
  %9191 = vadd.xlane.f32.xlu0 %v9190
  %v9192 = vpop.xlane.xlu0 %9191
  %v9193 = vsel %vm174, %v9189, 0.0
  %9194 = vadd.xlane.f32.xlu0 %v9193
  %v9195 = vpop.xlane.xlu0 %9194
  %v9196 = vmul.f32 %v9192, %v1707
  %v9197 = vmul.f32 %v9195, %v1707
  %v9198 = vsub.f32 %v9188, %v9196
  %v9199 = vsub.f32 %v9189, %v9197
  %v9200 = vmul.f32 %v9198, %v9198
  %v9201 = vmul.f32 %v9199, %v9199
  %v9202 = vsel %vm174, %v9200, 0.0
  %9203 = vadd.xlane.f32.xlu0 %v9202
  %v9204 = vpop.xlane.xlu0 %9203
  %v9205 = vsel %vm174, %v9201, 0.0
  %9206 = vadd.xlane.f32.xlu0 %v9205
  %v9207 = vpop.xlane.xlu0 %9206
  %v9208 = vmul.f32 %v9204, %v1707
  %v9209 = vmul.f32 %v9207, %v1707
  %v9210 = vadd.f32 %v9208, 1e-05
  %v9211 = vadd.f32 %v9209, 1e-05
  %v9212 = vrsqrt.pop %v9210
  %v9213 = vrsqrt.pop %v9211
  %v9214 = vmul.f32 %v9198, %v9212
  %v9215 = vmul.f32 %v9199, %v9213
  %v9216 = vld [vmem:[%s73] sm:$0x1]
  %v9218 = vlaneseq
  %v9219 = vshrl.u32 %v9218, 7
  %v9220 = vsub.s32 0, %v9219
  %v9221 = vrot.slane %v9216, %v9220
  %v9223 = vmul.f32 %v9214, %v9221
  %v9224 = vmul.f32 %v9215, %v9221
  %v9225 = vld [vmem:[%s75] sm:$0x1]
  %v9227 = vlaneseq
  %v9228 = vshrl.u32 %v9227, 7
  %v9229 = vsub.s32 0, %v9228
  %v9230 = vrot.slane %v9225, %v9229
  %v9232 = vadd.f32 %v9223, %v9230
  %v9233 = vadd.f32 %v9224, %v9230
  %9234 = vst.msk [vmem:[%s77] sm:$0xff] %vm174, %v9232
  %9235 = vst.msk [vmem:[%s77 + $0x8] sm:$0xff] %vm174, %v9233
  // Predicated region
  $region154: #{spiral_attention_forward.1} parent=0 // pred_check
    _
  $region155: #{spiral_attention_forward.1} parent=0 // pred_check_branch
    %9237 = sbr.rel (0) target = $region157
  $region156: #{spiral_attention_forward.1} parent=0 // pred_region
    _
  $region157: #{spiral_attention_forward.1} parent=0 // pred_fallthru
    _
  // Predicated region
  $region158: #{spiral_attention_forward.1} parent=0 // pred_check
    _
  $region159: #{spiral_attention_forward.1} parent=0 // pred_check_branch
    %9239 = sbr.rel (0) target = $region161
  $region160: #{spiral_attention_forward.1} parent=0 // pred_region
    _
  $region161: #{spiral_attention_forward.1} parent=0 // pred_fallthru
    _

</llo_original>
